<compile_context>
chip_gen: v5e
topology: v5e:2x2
jax: 0.10.0
libtpu: 0.0.40
codegen_flags: <defaults>
</compile_context>

<pallas_src>
import jax
import jax.numpy as jnp
from jax import lax
from jax.experimental import pallas as pl
from jax.experimental.pallas import tpu as pltpu


_TAPS = tuple((kh, kw) for kh in range(3) for kw in range(3))
_C1, _C2, _C3 = 32, 64, 128
_K1 = 16  # layer-1 im2col K: 9 taps zero-padded to 16 for the MXU


def _fused_mainnet_kernel(col1_ref, w1_ref, b1_ref, w2_ref, b2_ref,
                          w3_ref, b3_ref, o_ref, xp2_ref, xp3_ref):
    # col1_ref: (1, H*W, 16)      bf16  layer-1 im2col columns (this batch elem)
    # w1_ref  : (16, 32)          bf16  layer-1 weight (rows 9..15 are zero)
    # w2_ref  : (288, 64)         bf16  layer-2 weight, row = t*32 + ci, t = kh*3+kw
    # w3_ref  : (576, 128)        bf16  layer-3 weight, row = t*64 + ci
    # b*_ref  : (1, C)            f32
    # o_ref   : (1, H, W, 128)    f32   NHWC output tile (lane-dense, C = 128)
    # xp2_ref : (1, H+2, W+2, 32) bf16  zero-border padded act1 scratch
    # xp3_ref : (1, H+2, W+2, 64) bf16  zero-border padded act2 scratch
    H, W = o_ref.shape[1], o_ref.shape[2]
    M = H * W

    # Zero only the 1-pixel borders of the padded scratches; the interiors are
    # fully overwritten below.  Done every step so it is correct even when the
    # parallel batch axis is split across TensorCores.
    for ref, c in ((xp2_ref, _C1), (xp3_ref, _C2)):
        row = jnp.zeros((1, 1, W + 2, c), jnp.bfloat16)
        col = jnp.zeros((1, H + 2, 1, c), jnp.bfloat16)
        ref[:, 0:1, :, :] = row
        ref[:, H + 1:H + 2, :, :] = row
        ref[:, :, 0:1, :] = col
        ref[:, :, W + 1:W + 2, :] = col

    # ---- layer 1: conv3x3(1 -> 32) + ReLU — one small MXU matmul ------------
    h1 = jnp.dot(col1_ref[0], w1_ref[...],
                 preferred_element_type=jnp.float32)            # (M, 32) f32
    act1 = jnp.maximum(h1 + b1_ref[...], 0.0)
    xp2_ref[:, 1:H + 1, 1:W + 1, :] = (
        act1.reshape(1, H, W, _C1).astype(jnp.bfloat16))

    # ---- layer 2: conv3x3(32 -> 64) + ReLU — 9 accumulated tap matmuls ------
    acc2 = jnp.broadcast_to(b2_ref[...], (M, _C2))              # f32 init = bias
    for t, (kh, kw) in enumerate(_TAPS):
        patch = xp2_ref[:, kh:kh + H, kw:kw + W, :].reshape(M, _C1)   # bf16
        acc2 = acc2 + jnp.dot(patch, w2_ref[t * _C1:(t + 1) * _C1, :],
                              preferred_element_type=jnp.float32)
    act2 = jnp.maximum(acc2, 0.0)                               # (M, 64)
    xp3_ref[:, 1:H + 1, 1:W + 1, :] = (
        act2.reshape(1, H, W, _C2).astype(jnp.bfloat16))

    # ---- layer 3: conv3x3(64 -> 128) + ReLU — 9 accumulated tap matmuls -----
    # TODO(synk): on v7x these per-tap dots could accumulate in the MXU result
    # buffer (MRB) via pltpu.matmul_*; kept as portable VPU-add accumulation.
    acc3 = jnp.broadcast_to(b3_ref[...], (M, _C3))
    for t, (kh, kw) in enumerate(_TAPS):
        patch = xp3_ref[:, kh:kh + H, kw:kw + W, :].reshape(M, _C2)   # bf16
        acc3 = acc3 + jnp.dot(patch, w3_ref[t * _C2:(t + 1) * _C2, :],
                              preferred_element_type=jnp.float32)
    o_ref[...] = jnp.maximum(acc3, 0.0).reshape(1, H, W, _C3)   # lane-dense f32


def fused_mainnet(col1, params, B, H, W):
    """col1: (B, H*W, 16) bf16 layer-1 im2col -> (B, H, W, 128) f32 output."""
    (w1, b1), (w2, b2), (w3, b3) = params
    m = H * W
    const = lambda b: (0, 0)   # weights/biases: resident block, no re-DMA
    return pl.pallas_call(
        _fused_mainnet_kernel,
        out_shape=jax.ShapeDtypeStruct((B, H, W, _C3), jnp.float32),
        grid=(B,),
        in_specs=[
            pl.BlockSpec((1, m, _K1), lambda b: (b, 0, 0)),     # streamed
            pl.BlockSpec((_K1, _C1), const),
            pl.BlockSpec((1, _C1), const),
            pl.BlockSpec((9 * _C1, _C2), const),
            pl.BlockSpec((1, _C2), const),
            pl.BlockSpec((9 * _C2, _C3), const),
            pl.BlockSpec((1, _C3), const),
        ],
        out_specs=pl.BlockSpec((1, H, W, _C3), lambda b: (b, 0, 0, 0)),
        scratch_shapes=[
            pltpu.VMEM((1, H + 2, W + 2, _C1), jnp.bfloat16),   # padded act1
            pltpu.VMEM((1, H + 2, W + 2, _C2), jnp.bfloat16),   # padded act2
        ],
        compiler_params=pltpu.CompilerParams(
            dimension_semantics=("parallel",)),                 # 2 TCs on v7x
    )(col1, w1, b1, w2, b2, w3, b3)


def _im2col_layer1(x_nhwc):
    """(B, H, W, 1) f32 -> (B, H*W, 16) bf16 im2col for the 3x3 / pad=1 conv1."""
    B, H, W, _ = x_nhwc.shape
    xp = jnp.pad(x_nhwc[..., 0], ((0, 0), (1, 1), (1, 1)))
    cols = [xp[:, kh:kh + H, kw:kw + W] for kh, kw in _TAPS]    # 9 x (B, H, W)
    col = jnp.stack(cols, axis=-1).reshape(B, H * W, 9)
    col = jnp.pad(col, ((0, 0), (0, 0), (0, _K1 - 9)))          # K: 9 -> 16
    return col.astype(jnp.bfloat16)


def init_params(key):
    """PyTorch-style Conv2d init, packed as bf16 (9*Cin, Cout) matmul weights."""
    shapes = [(_C1, 1, 3, 3), (_C2, _C1, 3, 3), (_C3, _C2, 3, 3)]
    params = []
    for i, (co, ci, kh, kw) in enumerate(shapes):
        wk, bk = jax.random.split(jax.random.fold_in(key, i))
        fan_in = ci * kh * kw
        bound = 1.0 / jnp.sqrt(float(fan_in))
        w_oihw = jax.random.uniform(wk, (co, ci, kh, kw), jnp.float32,
                                    -bound, bound)
        bias = jax.random.uniform(bk, (co,), jnp.float32, -bound, bound)
        # OIHW -> HWIO -> (9*Cin, Cout); row = (kh*3 + kw)*Cin + ci.
        w_mat = jnp.transpose(w_oihw, (2, 3, 1, 0)).reshape(kh * kw * ci, co)
        w_mat = w_mat.astype(jnp.bfloat16)
        if i == 0:
            w_mat = jnp.pad(w_mat, ((0, _K1 - 9), (0, 0)))      # zero rows 9..15
        params.append((w_mat, bias.reshape(1, co)))
    return params


@jax.jit
def main_net_forward(x_nchw, params):
    B, C, H, W = x_nchw.shape                       # C == 1
    # NCHW -> NHWC is a pure relabel when C == 1 (no data movement).
    x = x_nchw.reshape(B, H, W, C).astype(jnp.float32)
    col1 = _im2col_layer1(x)                        # (B, H*W, 16) bf16 (~16 KB)
    y_nhwc = fused_mainnet(col1, params, B, H, W)   # (B, H, W, 128)
    # Final NHWC -> NCHW to match the PyTorch module's output convention.
    return jnp.transpose(y_nhwc, (0, 3, 1, 2))


def _reference_forward(x_nchw, params):
    """Pure-JAX f32 lax.conv reference (uses the same bf16-rounded weights)."""
    x = jnp.transpose(x_nchw, (0, 2, 3, 1)).astype(jnp.float32)
    (w1, b1), (w2, b2), (w3, b3) = params
    layers = [(w1[:9], b1, 1, _C1), (w2, b2, _C1, _C2), (w3, b3, _C2, _C3)]
    for w_mat, b, ci, co in layers:
        w = w_mat.astype(jnp.float32).reshape(3, 3, ci, co)
        x = lax.conv_general_dilated(
            x, w, window_strides=(1, 1), padding="SAME",
            dimension_numbers=("NHWC", "HWIO", "NHWC"),
            precision=lax.Precision.HIGHEST)
        x = jnp.maximum(x + b.reshape(1, 1, 1, co), 0.0)
    return jnp.transpose(x, (0, 3, 1, 2))


if __name__ == "__main__":
    key = jax.random.PRNGKey(0)
    x_key, p_key = jax.random.split(key)

    # Shapes consistent with MainNet: batch=2, 1 input channel, 16x16 spatial.
    x = jax.random.normal(x_key, (2, 1, 16, 16), dtype=jnp.float32)
    params = init_params(p_key)

    out = jax.block_until_ready(main_net_forward(x, params))

    assert out.shape == (2, 128, 16, 16), out.shape
    assert out.dtype == jnp.float32
    assert bool(jnp.all(out >= 0.0))                 # ReLU output is non-negative

    ref = jax.block_until_ready(_reference_forward(x, params))
    max_err = float(jnp.max(jnp.abs(out - ref)))
    # bf16 MXU operands with f32 accumulation: expect a few 1e-3 of error.
    assert max_err <= 2e-2, f"max abs error vs reference conv: {max_err}"

    print("KERNEL_OK")
</pallas_src>

<mosaic_0001>
module attributes {stable_mosaic.version = 11 : i64} {
  func.func @_fused_mainnet_kernel(%arg0: i32, %arg1: memref<1x256x16xbf16, #tpu.memory_space<vmem>>, %arg2: memref<16x32xbf16, #tpu.memory_space<vmem>>, %arg3: memref<1x32xf32, #tpu.memory_space<vmem>>, %arg4: memref<288x64xbf16, #tpu.memory_space<vmem>>, %arg5: memref<1x64xf32, #tpu.memory_space<vmem>>, %arg6: memref<576x128xbf16, #tpu.memory_space<vmem>>, %arg7: memref<1x128xf32, #tpu.memory_space<vmem>>, %arg8: memref<1x16x16x128xf32, #tpu.memory_space<vmem>>, %arg9: memref<1x18x18x32xbf16, #tpu.memory_space<vmem>>, %arg10: memref<1x18x18x64xbf16, #tpu.memory_space<vmem>>) attributes {dimension_semantics = [#tpu.dimension_semantics<parallel>], iteration_bounds = array<i64: 2>, scalar_prefetch = 0 : i64, scratch_operands = 2 : i64, tpu.core_type = #tpu.core_type<tc>, window_params = [{transform_indices = @transform_0, window_bounds = array<i64: 1, 256, 16>}, {pipeline_mode = #tpu.pipeline_mode<synchronous>, transform_indices = @transform_1, window_bounds = array<i64: 16, 32>}, {pipeline_mode = #tpu.pipeline_mode<synchronous>, transform_indices = @transform_2, window_bounds = array<i64: 1, 32>}, {pipeline_mode = #tpu.pipeline_mode<synchronous>, transform_indices = @transform_3, window_bounds = array<i64: 288, 64>}, {pipeline_mode = #tpu.pipeline_mode<synchronous>, transform_indices = @transform_4, window_bounds = array<i64: 1, 64>}, {pipeline_mode = #tpu.pipeline_mode<synchronous>, transform_indices = @transform_5, window_bounds = array<i64: 576, 128>}, {pipeline_mode = #tpu.pipeline_mode<synchronous>, transform_indices = @transform_6, window_bounds = array<i64: 1, 128>}, {transform_indices = @transform_7, window_bounds = array<i64: 1, 16, 16, 128>}]} {
    %cst = arith.constant 0.000000e+00 : bf16
    %0 = vector.broadcast %cst : bf16 to vector<1x1x18x32xbf16>
    %cst_0 = arith.constant 0.000000e+00 : bf16
    %1 = vector.broadcast %cst_0 : bf16 to vector<1x18x1x32xbf16>
    %c0 = arith.constant 0 : index
    %c0_1 = arith.constant 0 : index
    %c0_2 = arith.constant 0 : index
    %c0_3 = arith.constant 0 : index
    %2 = vector.load %arg9[%c0, %c0_1, %c0_2, %c0_3] : memref<1x18x18x32xbf16, #tpu.memory_space<vmem>>, vector<1x1x18x32xbf16>
    tpu.vector_store %arg9[%c0, %c0_1, %c0_2, %c0_3], %0 {strides = array<i32>} : memref<1x18x18x32xbf16, #tpu.memory_space<vmem>>, vector<1x1x18x32xbf16>,
    %c0_4 = arith.constant 0 : index
    %c17 = arith.constant 17 : index
    %c0_5 = arith.constant 0 : index
    %c0_6 = arith.constant 0 : index
    %3 = vector.load %arg9[%c0_4, %c17, %c0_5, %c0_6] : memref<1x18x18x32xbf16, #tpu.memory_space<vmem>>, vector<1x1x18x32xbf16>
    tpu.vector_store %arg9[%c0_4, %c17, %c0_5, %c0_6], %0 {strides = array<i32>} : memref<1x18x18x32xbf16, #tpu.memory_space<vmem>>, vector<1x1x18x32xbf16>,
    %c0_7 = arith.constant 0 : index
    %c0_8 = arith.constant 0 : index
    %c0_9 = arith.constant 0 : index
    %c0_10 = arith.constant 0 : index
    %4 = vector.load %arg9[%c0_7, %c0_8, %c0_9, %c0_10] : memref<1x18x18x32xbf16, #tpu.memory_space<vmem>>, vector<1x18x1x32xbf16>
    tpu.vector_store %arg9[%c0_7, %c0_8, %c0_9, %c0_10], %1 {strides = array<i32>} : memref<1x18x18x32xbf16, #tpu.memory_space<vmem>>, vector<1x18x1x32xbf16>,
    %c0_11 = arith.constant 0 : index
    %c0_12 = arith.constant 0 : index
    %c17_13 = arith.constant 17 : index
    %c0_14 = arith.constant 0 : index
    %5 = vector.load %arg9[%c0_11, %c0_12, %c17_13, %c0_14] : memref<1x18x18x32xbf16, #tpu.memory_space<vmem>>, vector<1x18x1x32xbf16>
    tpu.vector_store %arg9[%c0_11, %c0_12, %c17_13, %c0_14], %1 {strides = array<i32>} : memref<1x18x18x32xbf16, #tpu.memory_space<vmem>>, vector<1x18x1x32xbf16>,
    %cst_15 = arith.constant 0.000000e+00 : bf16
    %6 = vector.broadcast %cst_15 : bf16 to vector<1x1x18x64xbf16>
    %cst_16 = arith.constant 0.000000e+00 : bf16
    %7 = vector.broadcast %cst_16 : bf16 to vector<1x18x1x64xbf16>
    %c0_17 = arith.constant 0 : index
    %c0_18 = arith.constant 0 : index
    %c0_19 = arith.constant 0 : index
    %c0_20 = arith.constant 0 : index
    %8 = vector.load %arg10[%c0_17, %c0_18, %c0_19, %c0_20] : memref<1x18x18x64xbf16, #tpu.memory_space<vmem>>, vector<1x1x18x64xbf16>
    tpu.vector_store %arg10[%c0_17, %c0_18, %c0_19, %c0_20], %6 {strides = array<i32>} : memref<1x18x18x64xbf16, #tpu.memory_space<vmem>>, vector<1x1x18x64xbf16>,
    %c0_21 = arith.constant 0 : index
    %c17_22 = arith.constant 17 : index
    %c0_23 = arith.constant 0 : index
    %c0_24 = arith.constant 0 : index
    %9 = vector.load %arg10[%c0_21, %c17_22, %c0_23, %c0_24] : memref<1x18x18x64xbf16, #tpu.memory_space<vmem>>, vector<1x1x18x64xbf16>
    tpu.vector_store %arg10[%c0_21, %c17_22, %c0_23, %c0_24], %6 {strides = array<i32>} : memref<1x18x18x64xbf16, #tpu.memory_space<vmem>>, vector<1x1x18x64xbf16>,
    %c0_25 = arith.constant 0 : index
    %c0_26 = arith.constant 0 : index
    %c0_27 = arith.constant 0 : index
    %c0_28 = arith.constant 0 : index
    %10 = vector.load %arg10[%c0_25, %c0_26, %c0_27, %c0_28] : memref<1x18x18x64xbf16, #tpu.memory_space<vmem>>, vector<1x18x1x64xbf16>
    tpu.vector_store %arg10[%c0_25, %c0_26, %c0_27, %c0_28], %7 {strides = array<i32>} : memref<1x18x18x64xbf16, #tpu.memory_space<vmem>>, vector<1x18x1x64xbf16>,
    %c0_29 = arith.constant 0 : index
    %c0_30 = arith.constant 0 : index
    %c17_31 = arith.constant 17 : index
    %c0_32 = arith.constant 0 : index
    %11 = vector.load %arg10[%c0_29, %c0_30, %c17_31, %c0_32] : memref<1x18x18x64xbf16, #tpu.memory_space<vmem>>, vector<1x18x1x64xbf16>
    tpu.vector_store %arg10[%c0_29, %c0_30, %c17_31, %c0_32], %7 {strides = array<i32>} : memref<1x18x18x64xbf16, #tpu.memory_space<vmem>>, vector<1x18x1x64xbf16>,
    %c0_33 = arith.constant 0 : index
    %c0_34 = arith.constant 0 : index
    %c0_35 = arith.constant 0 : index
    %12 = vector.load %arg1[%c0_33, %c0_34, %c0_35] : memref<1x256x16xbf16, #tpu.memory_space<vmem>>, vector<1x256x16xbf16>
    %13 = vector.shape_cast %12 : vector<1x256x16xbf16> to vector<256x16xbf16>
    %c0_36 = arith.constant 0 : index
    %c0_37 = arith.constant 0 : index
    %14 = vector.load %arg2[%c0_36, %c0_37] : memref<16x32xbf16, #tpu.memory_space<vmem>>, vector<16x32xbf16>
    %cst_38 = arith.constant dense<0.000000e+00> : vector<256x32xf32>
    %15 = tpu.matmul %13, %14, %cst_38 {dimension_numbers = #tpu.dot_dimension_numbers<[1], [0], [0], [1], [0, 0, 1, 1], [], []>} : vector<256x16xbf16>, vector<16x32xbf16>, vector<256x32xf32> -> vector<256x32xf32>
    %c0_39 = arith.constant 0 : index
    %c0_40 = arith.constant 0 : index
    %16 = vector.load %arg3[%c0_39, %c0_40] : memref<1x32xf32, #tpu.memory_space<vmem>>, vector<1x32xf32>
    %17 = vector.broadcast %16 : vector<1x32xf32> to vector<256x32xf32>
    %18 = arith.addf %15, %17 : vector<256x32xf32>
    %cst_41 = arith.constant 0.000000e+00 : f32
    %19 = vector.broadcast %cst_41 : f32 to vector<256x32xf32>
    %20 = arith.maximumf %18, %19 : vector<256x32xf32>
    %21 = vector.shape_cast %20 : vector<256x32xf32> to vector<1x16x16x32xf32>
    %22 = arith.truncf %21 : vector<1x16x16x32xf32> to vector<1x16x16x32xbf16>
    %c0_42 = arith.constant 0 : index
    %c1 = arith.constant 1 : index
    %c1_43 = arith.constant 1 : index
    %c0_44 = arith.constant 0 : index
    %23 = vector.load %arg9[%c0_42, %c1, %c1_43, %c0_44] : memref<1x18x18x32xbf16, #tpu.memory_space<vmem>>, vector<1x16x16x32xbf16>
    tpu.vector_store %arg9[%c0_42, %c1, %c1_43, %c0_44], %22 {strides = array<i32>} : memref<1x18x18x32xbf16, #tpu.memory_space<vmem>>, vector<1x16x16x32xbf16>,
    %c0_45 = arith.constant 0 : index
    %c0_46 = arith.constant 0 : index
    %24 = vector.load %arg5[%c0_45, %c0_46] : memref<1x64xf32, #tpu.memory_space<vmem>>, vector<1x64xf32>
    %25 = vector.shape_cast %24 : vector<1x64xf32> to vector<1x64xf32>
    %26 = vector.broadcast %25 : vector<1x64xf32> to vector<256x64xf32>
    %c0_47 = arith.constant 0 : index
    %c0_48 = arith.constant 0 : index
    %c0_49 = arith.constant 0 : index
    %c0_50 = arith.constant 0 : index
    %27 = vector.load %arg9[%c0_47, %c0_48, %c0_49, %c0_50] : memref<1x18x18x32xbf16, #tpu.memory_space<vmem>>, vector<1x16x16x32xbf16>
    %28 = vector.shape_cast %27 : vector<1x16x16x32xbf16> to vector<256x32xbf16>
    %c0_51 = arith.constant 0 : index
    %c0_52 = arith.constant 0 : index
    %29 = vector.load %arg4[%c0_51, %c0_52] : memref<288x64xbf16, #tpu.memory_space<vmem>>, vector<32x64xbf16>
    %cst_53 = arith.constant dense<0.000000e+00> : vector<256x64xf32>
    %30 = tpu.matmul %28, %29, %cst_53 {dimension_numbers = #tpu.dot_dimension_numbers<[1], [0], [0], [1], [0, 0, 1, 1], [], []>} : vector<256x32xbf16>, vector<32x64xbf16>, vector<256x64xf32> -> vector<256x64xf32>
    %31 = arith.addf %26, %30 : vector<256x64xf32>
    %c0_54 = arith.constant 0 : index
    %c0_55 = arith.constant 0 : index
    %c1_56 = arith.constant 1 : index
    %c0_57 = arith.constant 0 : index
    %32 = vector.load %arg9[%c0_54, %c0_55, %c1_56, %c0_57] : memref<1x18x18x32xbf16, #tpu.memory_space<vmem>>, vector<1x16x16x32xbf16>
    %33 = vector.shape_cast %32 : vector<1x16x16x32xbf16> to vector<256x32xbf16>
    %c32 = arith.constant 32 : index
    %c0_58 = arith.constant 0 : index
    %34 = vector.load %arg4[%c32, %c0_58] : memref<288x64xbf16, #tpu.memory_space<vmem>>, vector<32x64xbf16>
    %cst_59 = arith.constant dense<0.000000e+00> : vector<256x64xf32>
    %35 = tpu.matmul %33, %34, %cst_59 {dimension_numbers = #tpu.dot_dimension_numbers<[1], [0], [0], [1], [0, 0, 1, 1], [], []>} : vector<256x32xbf16>, vector<32x64xbf16>, vector<256x64xf32> -> vector<256x64xf32>
    %36 = arith.addf %31, %35 : vector<256x64xf32>
    %c0_60 = arith.constant 0 : index
    %c0_61 = arith.constant 0 : index
    %c2 = arith.constant 2 : index
    %c0_62 = arith.constant 0 : index
    %37 = vector.load %arg9[%c0_60, %c0_61, %c2, %c0_62] : memref<1x18x18x32xbf16, #tpu.memory_space<vmem>>, vector<1x16x16x32xbf16>
    %38 = vector.shape_cast %37 : vector<1x16x16x32xbf16> to vector<256x32xbf16>
    %c64 = arith.constant 64 : index
    %c0_63 = arith.constant 0 : index
    %39 = vector.load %arg4[%c64, %c0_63] : memref<288x64xbf16, #tpu.memory_space<vmem>>, vector<32x64xbf16>
    %cst_64 = arith.constant dense<0.000000e+00> : vector<256x64xf32>
    %40 = tpu.matmul %38, %39, %cst_64 {dimension_numbers = #tpu.dot_dimension_numbers<[1], [0], [0], [1], [0, 0, 1, 1], [], []>} : vector<256x32xbf16>, vector<32x64xbf16>, vector<256x64xf32> -> vector<256x64xf32>
    %41 = arith.addf %36, %40 : vector<256x64xf32>
    %c0_65 = arith.constant 0 : index
    %c1_66 = arith.constant 1 : index
    %c0_67 = arith.constant 0 : index
    %c0_68 = arith.constant 0 : index
    %42 = vector.load %arg9[%c0_65, %c1_66, %c0_67, %c0_68] : memref<1x18x18x32xbf16, #tpu.memory_space<vmem>>, vector<1x16x16x32xbf16>
    %43 = vector.shape_cast %42 : vector<1x16x16x32xbf16> to vector<256x32xbf16>
    %c96 = arith.constant 96 : index
    %c0_69 = arith.constant 0 : index
    %44 = vector.load %arg4[%c96, %c0_69] : memref<288x64xbf16, #tpu.memory_space<vmem>>, vector<32x64xbf16>
    %cst_70 = arith.constant dense<0.000000e+00> : vector<256x64xf32>
    %45 = tpu.matmul %43, %44, %cst_70 {dimension_numbers = #tpu.dot_dimension_numbers<[1], [0], [0], [1], [0, 0, 1, 1], [], []>} : vector<256x32xbf16>, vector<32x64xbf16>, vector<256x64xf32> -> vector<256x64xf32>
    %46 = arith.addf %41, %45 : vector<256x64xf32>
    %c0_71 = arith.constant 0 : index
    %c1_72 = arith.constant 1 : index
    %c1_73 = arith.constant 1 : index
    %c0_74 = arith.constant 0 : index
    %47 = vector.load %arg9[%c0_71, %c1_72, %c1_73, %c0_74] : memref<1x18x18x32xbf16, #tpu.memory_space<vmem>>, vector<1x16x16x32xbf16>
    %48 = vector.shape_cast %47 : vector<1x16x16x32xbf16> to vector<256x32xbf16>
    %c128 = arith.constant 128 : index
    %c0_75 = arith.constant 0 : index
    %49 = vector.load %arg4[%c128, %c0_75] : memref<288x64xbf16, #tpu.memory_space<vmem>>, vector<32x64xbf16>
    %cst_76 = arith.constant dense<0.000000e+00> : vector<256x64xf32>
    %50 = tpu.matmul %48, %49, %cst_76 {dimension_numbers = #tpu.dot_dimension_numbers<[1], [0], [0], [1], [0, 0, 1, 1], [], []>} : vector<256x32xbf16>, vector<32x64xbf16>, vector<256x64xf32> -> vector<256x64xf32>
    %51 = arith.addf %46, %50 : vector<256x64xf32>
    %c0_77 = arith.constant 0 : index
    %c1_78 = arith.constant 1 : index
    %c2_79 = arith.constant 2 : index
    %c0_80 = arith.constant 0 : index
    %52 = vector.load %arg9[%c0_77, %c1_78, %c2_79, %c0_80] : memref<1x18x18x32xbf16, #tpu.memory_space<vmem>>, vector<1x16x16x32xbf16>
    %53 = vector.shape_cast %52 : vector<1x16x16x32xbf16> to vector<256x32xbf16>
    %c160 = arith.constant 160 : index
    %c0_81 = arith.constant 0 : index
    %54 = vector.load %arg4[%c160, %c0_81] : memref<288x64xbf16, #tpu.memory_space<vmem>>, vector<32x64xbf16>
    %cst_82 = arith.constant dense<0.000000e+00> : vector<256x64xf32>
    %55 = tpu.matmul %53, %54, %cst_82 {dimension_numbers = #tpu.dot_dimension_numbers<[1], [0], [0], [1], [0, 0, 1, 1], [], []>} : vector<256x32xbf16>, vector<32x64xbf16>, vector<256x64xf32> -> vector<256x64xf32>
    %56 = arith.addf %51, %55 : vector<256x64xf32>
    %c0_83 = arith.constant 0 : index
    %c2_84 = arith.constant 2 : index
    %c0_85 = arith.constant 0 : index
    %c0_86 = arith.constant 0 : index
    %57 = vector.load %arg9[%c0_83, %c2_84, %c0_85, %c0_86] : memref<1x18x18x32xbf16, #tpu.memory_space<vmem>>, vector<1x16x16x32xbf16>
    %58 = vector.shape_cast %57 : vector<1x16x16x32xbf16> to vector<256x32xbf16>
    %c192 = arith.constant 192 : index
    %c0_87 = arith.constant 0 : index
    %59 = vector.load %arg4[%c192, %c0_87] : memref<288x64xbf16, #tpu.memory_space<vmem>>, vector<32x64xbf16>
    %cst_88 = arith.constant dense<0.000000e+00> : vector<256x64xf32>
    %60 = tpu.matmul %58, %59, %cst_88 {dimension_numbers = #tpu.dot_dimension_numbers<[1], [0], [0], [1], [0, 0, 1, 1], [], []>} : vector<256x32xbf16>, vector<32x64xbf16>, vector<256x64xf32> -> vector<256x64xf32>
    %61 = arith.addf %56, %60 : vector<256x64xf32>
    %c0_89 = arith.constant 0 : index
    %c2_90 = arith.constant 2 : index
    %c1_91 = arith.constant 1 : index
    %c0_92 = arith.constant 0 : index
    %62 = vector.load %arg9[%c0_89, %c2_90, %c1_91, %c0_92] : memref<1x18x18x32xbf16, #tpu.memory_space<vmem>>, vector<1x16x16x32xbf16>
    %63 = vector.shape_cast %62 : vector<1x16x16x32xbf16> to vector<256x32xbf16>
    %c224 = arith.constant 224 : index
    %c0_93 = arith.constant 0 : index
    %64 = vector.load %arg4[%c224, %c0_93] : memref<288x64xbf16, #tpu.memory_space<vmem>>, vector<32x64xbf16>
    %cst_94 = arith.constant dense<0.000000e+00> : vector<256x64xf32>
    %65 = tpu.matmul %63, %64, %cst_94 {dimension_numbers = #tpu.dot_dimension_numbers<[1], [0], [0], [1], [0, 0, 1, 1], [], []>} : vector<256x32xbf16>, vector<32x64xbf16>, vector<256x64xf32> -> vector<256x64xf32>
    %66 = arith.addf %61, %65 : vector<256x64xf32>
    %c0_95 = arith.constant 0 : index
    %c2_96 = arith.constant 2 : index
    %c2_97 = arith.constant 2 : index
    %c0_98 = arith.constant 0 : index
    %67 = vector.load %arg9[%c0_95, %c2_96, %c2_97, %c0_98] : memref<1x18x18x32xbf16, #tpu.memory_space<vmem>>, vector<1x16x16x32xbf16>
    %68 = vector.shape_cast %67 : vector<1x16x16x32xbf16> to vector<256x32xbf16>
    %c256 = arith.constant 256 : index
    %c0_99 = arith.constant 0 : index
    %69 = vector.load %arg4[%c256, %c0_99] : memref<288x64xbf16, #tpu.memory_space<vmem>>, vector<32x64xbf16>
    %cst_100 = arith.constant dense<0.000000e+00> : vector<256x64xf32>
    %70 = tpu.matmul %68, %69, %cst_100 {dimension_numbers = #tpu.dot_dimension_numbers<[1], [0], [0], [1], [0, 0, 1, 1], [], []>} : vector<256x32xbf16>, vector<32x64xbf16>, vector<256x64xf32> -> vector<256x64xf32>
    %71 = arith.addf %66, %70 : vector<256x64xf32>
    %cst_101 = arith.constant 0.000000e+00 : f32
    %72 = vector.broadcast %cst_101 : f32 to vector<256x64xf32>
    %73 = arith.maximumf %71, %72 : vector<256x64xf32>
    %74 = vector.shape_cast %73 : vector<256x64xf32> to vector<1x16x16x64xf32>
    %75 = arith.truncf %74 : vector<1x16x16x64xf32> to vector<1x16x16x64xbf16>
    %c0_102 = arith.constant 0 : index
    %c1_103 = arith.constant 1 : index
    %c1_104 = arith.constant 1 : index
    %c0_105 = arith.constant 0 : index
    %76 = vector.load %arg10[%c0_102, %c1_103, %c1_104, %c0_105] : memref<1x18x18x64xbf16, #tpu.memory_space<vmem>>, vector<1x16x16x64xbf16>
    tpu.vector_store %arg10[%c0_102, %c1_103, %c1_104, %c0_105], %75 {strides = array<i32>} : memref<1x18x18x64xbf16, #tpu.memory_space<vmem>>, vector<1x16x16x64xbf16>,
    %c0_106 = arith.constant 0 : index
    %c0_107 = arith.constant 0 : index
    %77 = vector.load %arg7[%c0_106, %c0_107] : memref<1x128xf32, #tpu.memory_space<vmem>>, vector<1x128xf32>
    %78 = vector.shape_cast %77 : vector<1x128xf32> to vector<1x128xf32>
    %79 = vector.broadcast %78 : vector<1x128xf32> to vector<256x128xf32>
    %c0_108 = arith.constant 0 : index
    %c0_109 = arith.constant 0 : index
    %c0_110 = arith.constant 0 : index
    %c0_111 = arith.constant 0 : index
    %80 = vector.load %arg10[%c0_108, %c0_109, %c0_110, %c0_111] : memref<1x18x18x64xbf16, #tpu.memory_space<vmem>>, vector<1x16x16x64xbf16>
    %81 = vector.shape_cast %80 : vector<1x16x16x64xbf16> to vector<256x64xbf16>
    %c0_112 = arith.constant 0 : index
    %c0_113 = arith.constant 0 : index
    %82 = vector.load %arg6[%c0_112, %c0_113] : memref<576x128xbf16, #tpu.memory_space<vmem>>, vector<64x128xbf16>
    %cst_114 = arith.constant dense<0.000000e+00> : vector<256x128xf32>
    %83 = tpu.matmul %81, %82, %cst_114 {dimension_numbers = #tpu.dot_dimension_numbers<[1], [0], [0], [1], [0, 0, 1, 1], [], []>} : vector<256x64xbf16>, vector<64x128xbf16>, vector<256x128xf32> -> vector<256x128xf32>
    %84 = arith.addf %79, %83 : vector<256x128xf32>
    %c0_115 = arith.constant 0 : index
    %c0_116 = arith.constant 0 : index
    %c1_117 = arith.constant 1 : index
    %c0_118 = arith.constant 0 : index
    %85 = vector.load %arg10[%c0_115, %c0_116, %c1_117, %c0_118] : memref<1x18x18x64xbf16, #tpu.memory_space<vmem>>, vector<1x16x16x64xbf16>
    %86 = vector.shape_cast %85 : vector<1x16x16x64xbf16> to vector<256x64xbf16>
    %c64_119 = arith.constant 64 : index
    %c0_120 = arith.constant 0 : index
    %87 = vector.load %arg6[%c64_119, %c0_120] : memref<576x128xbf16, #tpu.memory_space<vmem>>, vector<64x128xbf16>
    %cst_121 = arith.constant dense<0.000000e+00> : vector<256x128xf32>
    %88 = tpu.matmul %86, %87, %cst_121 {dimension_numbers = #tpu.dot_dimension_numbers<[1], [0], [0], [1], [0, 0, 1, 1], [], []>} : vector<256x64xbf16>, vector<64x128xbf16>, vector<256x128xf32> -> vector<256x128xf32>
    %89 = arith.addf %84, %88 : vector<256x128xf32>
    %c0_122 = arith.constant 0 : index
    %c0_123 = arith.constant 0 : index
    %c2_124 = arith.constant 2 : index
    %c0_125 = arith.constant 0 : index
    %90 = vector.load %arg10[%c0_122, %c0_123, %c2_124, %c0_125] : memref<1x18x18x64xbf16, #tpu.memory_space<vmem>>, vector<1x16x16x64xbf16>
    %91 = vector.shape_cast %90 : vector<1x16x16x64xbf16> to vector<256x64xbf16>
    %c128_126 = arith.constant 128 : index
    %c0_127 = arith.constant 0 : index
    %92 = vector.load %arg6[%c128_126, %c0_127] : memref<576x128xbf16, #tpu.memory_space<vmem>>, vector<64x128xbf16>
    %cst_128 = arith.constant dense<0.000000e+00> : vector<256x128xf32>
    %93 = tpu.matmul %91, %92, %cst_128 {dimension_numbers = #tpu.dot_dimension_numbers<[1], [0], [0], [1], [0, 0, 1, 1], [], []>} : vector<256x64xbf16>, vector<64x128xbf16>, vector<256x128xf32> -> vector<256x128xf32>
    %94 = arith.addf %89, %93 : vector<256x128xf32>
    %c0_129 = arith.constant 0 : index
    %c1_130 = arith.constant 1 : index
    %c0_131 = arith.constant 0 : index
    %c0_132 = arith.constant 0 : index
    %95 = vector.load %arg10[%c0_129, %c1_130, %c0_131, %c0_132] : memref<1x18x18x64xbf16, #tpu.memory_space<vmem>>, vector<1x16x16x64xbf16>
    %96 = vector.shape_cast %95 : vector<1x16x16x64xbf16> to vector<256x64xbf16>
    %c192_133 = arith.constant 192 : index
    %c0_134 = arith.constant 0 : index
    %97 = vector.load %arg6[%c192_133, %c0_134] : memref<576x128xbf16, #tpu.memory_space<vmem>>, vector<64x128xbf16>
    %cst_135 = arith.constant dense<0.000000e+00> : vector<256x128xf32>
    %98 = tpu.matmul %96, %97, %cst_135 {dimension_numbers = #tpu.dot_dimension_numbers<[1], [0], [0], [1], [0, 0, 1, 1], [], []>} : vector<256x64xbf16>, vector<64x128xbf16>, vector<256x128xf32> -> vector<256x128xf32>
    %99 = arith.addf %94, %98 : vector<256x128xf32>
    %c0_136 = arith.constant 0 : index
    %c1_137 = arith.constant 1 : index
    %c1_138 = arith.constant 1 : index
    %c0_139 = arith.constant 0 : index
    %100 = vector.load %arg10[%c0_136, %c1_137, %c1_138, %c0_139] : memref<1x18x18x64xbf16, #tpu.memory_space<vmem>>, vector<1x16x16x64xbf16>
    %101 = vector.shape_cast %100 : vector<1x16x16x64xbf16> to vector<256x64xbf16>
    %c256_140 = arith.constant 256 : index
    %c0_141 = arith.constant 0 : index
    %102 = vector.load %arg6[%c256_140, %c0_141] : memref<576x128xbf16, #tpu.memory_space<vmem>>, vector<64x128xbf16>
    %cst_142 = arith.constant dense<0.000000e+00> : vector<256x128xf32>
    %103 = tpu.matmul %101, %102, %cst_142 {dimension_numbers = #tpu.dot_dimension_numbers<[1], [0], [0], [1], [0, 0, 1, 1], [], []>} : vector<256x64xbf16>, vector<64x128xbf16>, vector<256x128xf32> -> vector<256x128xf32>
    %104 = arith.addf %99, %103 : vector<256x128xf32>
    %c0_143 = arith.constant 0 : index
    %c1_144 = arith.constant 1 : index
    %c2_145 = arith.constant 2 : index
    %c0_146 = arith.constant 0 : index
    %105 = vector.load %arg10[%c0_143, %c1_144, %c2_145, %c0_146] : memref<1x18x18x64xbf16, #tpu.memory_space<vmem>>, vector<1x16x16x64xbf16>
    %106 = vector.shape_cast %105 : vector<1x16x16x64xbf16> to vector<256x64xbf16>
    %c320 = arith.constant 320 : index
    %c0_147 = arith.constant 0 : index
    %107 = vector.load %arg6[%c320, %c0_147] : memref<576x128xbf16, #tpu.memory_space<vmem>>, vector<64x128xbf16>
    %cst_148 = arith.constant dense<0.000000e+00> : vector<256x128xf32>
    %108 = tpu.matmul %106, %107, %cst_148 {dimension_numbers = #tpu.dot_dimension_numbers<[1], [0], [0], [1], [0, 0, 1, 1], [], []>} : vector<256x64xbf16>, vector<64x128xbf16>, vector<256x128xf32> -> vector<256x128xf32>
    %109 = arith.addf %104, %108 : vector<256x128xf32>
    %c0_149 = arith.constant 0 : index
    %c2_150 = arith.constant 2 : index
    %c0_151 = arith.constant 0 : index
    %c0_152 = arith.constant 0 : index
    %110 = vector.load %arg10[%c0_149, %c2_150, %c0_151, %c0_152] : memref<1x18x18x64xbf16, #tpu.memory_space<vmem>>, vector<1x16x16x64xbf16>
    %111 = vector.shape_cast %110 : vector<1x16x16x64xbf16> to vector<256x64xbf16>
    %c384 = arith.constant 384 : index
    %c0_153 = arith.constant 0 : index
    %112 = vector.load %arg6[%c384, %c0_153] : memref<576x128xbf16, #tpu.memory_space<vmem>>, vector<64x128xbf16>
    %cst_154 = arith.constant dense<0.000000e+00> : vector<256x128xf32>
    %113 = tpu.matmul %111, %112, %cst_154 {dimension_numbers = #tpu.dot_dimension_numbers<[1], [0], [0], [1], [0, 0, 1, 1], [], []>} : vector<256x64xbf16>, vector<64x128xbf16>, vector<256x128xf32> -> vector<256x128xf32>
    %114 = arith.addf %109, %113 : vector<256x128xf32>
    %c0_155 = arith.constant 0 : index
    %c2_156 = arith.constant 2 : index
    %c1_157 = arith.constant 1 : index
    %c0_158 = arith.constant 0 : index
    %115 = vector.load %arg10[%c0_155, %c2_156, %c1_157, %c0_158] : memref<1x18x18x64xbf16, #tpu.memory_space<vmem>>, vector<1x16x16x64xbf16>
    %116 = vector.shape_cast %115 : vector<1x16x16x64xbf16> to vector<256x64xbf16>
    %c448 = arith.constant 448 : index
    %c0_159 = arith.constant 0 : index
    %117 = vector.load %arg6[%c448, %c0_159] : memref<576x128xbf16, #tpu.memory_space<vmem>>, vector<64x128xbf16>
    %cst_160 = arith.constant dense<0.000000e+00> : vector<256x128xf32>
    %118 = tpu.matmul %116, %117, %cst_160 {dimension_numbers = #tpu.dot_dimension_numbers<[1], [0], [0], [1], [0, 0, 1, 1], [], []>} : vector<256x64xbf16>, vector<64x128xbf16>, vector<256x128xf32> -> vector<256x128xf32>
    %119 = arith.addf %114, %118 : vector<256x128xf32>
    %c0_161 = arith.constant 0 : index
    %c2_162 = arith.constant 2 : index
    %c2_163 = arith.constant 2 : index
    %c0_164 = arith.constant 0 : index
    %120 = vector.load %arg10[%c0_161, %c2_162, %c2_163, %c0_164] : memref<1x18x18x64xbf16, #tpu.memory_space<vmem>>, vector<1x16x16x64xbf16>
    %121 = vector.shape_cast %120 : vector<1x16x16x64xbf16> to vector<256x64xbf16>
    %c512 = arith.constant 512 : index
    %c0_165 = arith.constant 0 : index
    %122 = vector.load %arg6[%c512, %c0_165] : memref<576x128xbf16, #tpu.memory_space<vmem>>, vector<64x128xbf16>
    %cst_166 = arith.constant dense<0.000000e+00> : vector<256x128xf32>
    %123 = tpu.matmul %121, %122, %cst_166 {dimension_numbers = #tpu.dot_dimension_numbers<[1], [0], [0], [1], [0, 0, 1, 1], [], []>} : vector<256x64xbf16>, vector<64x128xbf16>, vector<256x128xf32> -> vector<256x128xf32>
    %124 = arith.addf %119, %123 : vector<256x128xf32>
    %cst_167 = arith.constant 0.000000e+00 : f32
    %125 = vector.broadcast %cst_167 : f32 to vector<256x128xf32>
    %126 = arith.maximumf %124, %125 : vector<256x128xf32>
    %127 = vector.shape_cast %126 : vector<256x128xf32> to vector<1x16x16x128xf32>
    %c0_168 = arith.constant 0 : index
    %c0_169 = arith.constant 0 : index
    %c0_170 = arith.constant 0 : index
    %c0_171 = arith.constant 0 : index
    %128 = vector.load %arg8[%c0_168, %c0_169, %c0_170, %c0_171] : memref<1x16x16x128xf32, #tpu.memory_space<vmem>>, vector<1x16x16x128xf32>
    tpu.vector_store %arg8[%c0_168, %c0_169, %c0_170, %c0_171], %127 {strides = array<i32>} : memref<1x16x16x128xf32, #tpu.memory_space<vmem>>, vector<1x16x16x128xf32>,
    return
  }
  func.func @transform_0(%arg0: i32) -> (i32, i32, i32) {
    %c0_i32 = arith.constant 0 : i32
    %c0_i32_0 = arith.constant 0 : i32
    %c0_i32_1 = arith.constant 0 : i32
    return %arg0, %c0_i32, %c0_i32_0 : i32, i32, i32
  }
  func.func @transform_1(%arg0: i32) -> (i32, i32) {
    %c0_i32 = arith.constant 0 : i32
    %c0_i32_0 = arith.constant 0 : i32
    %c0_i32_1 = arith.constant 0 : i32
    return %c0_i32, %c0_i32_0 : i32, i32
  }
  func.func @transform_2(%arg0: i32) -> (i32, i32) {
    %c0_i32 = arith.constant 0 : i32
    %c0_i32_0 = arith.constant 0 : i32
    %c0_i32_1 = arith.constant 0 : i32
    return %c0_i32, %c0_i32_0 : i32, i32
  }
  func.func @transform_3(%arg0: i32) -> (i32, i32) {
    %c0_i32 = arith.constant 0 : i32
    %c0_i32_0 = arith.constant 0 : i32
    %c0_i32_1 = arith.constant 0 : i32
    return %c0_i32, %c0_i32_0 : i32, i32
  }
  func.func @transform_4(%arg0: i32) -> (i32, i32) {
    %c0_i32 = arith.constant 0 : i32
    %c0_i32_0 = arith.constant 0 : i32
    %c0_i32_1 = arith.constant 0 : i32
    return %c0_i32, %c0_i32_0 : i32, i32
  }
  func.func @transform_5(%arg0: i32) -> (i32, i32) {
    %c0_i32 = arith.constant 0 : i32
    %c0_i32_0 = arith.constant 0 : i32
    %c0_i32_1 = arith.constant 0 : i32
    return %c0_i32, %c0_i32_0 : i32, i32
  }
  func.func @transform_6(%arg0: i32) -> (i32, i32) {
    %c0_i32 = arith.constant 0 : i32
    %c0_i32_0 = arith.constant 0 : i32
    %c0_i32_1 = arith.constant 0 : i32
    return %c0_i32, %c0_i32_0 : i32, i32
  }
  func.func @transform_7(%arg0: i32) -> (i32, i32, i32, i32) {
    %c0_i32 = arith.constant 0 : i32
    %c0_i32_0 = arith.constant 0 : i32
    %c0_i32_1 = arith.constant 0 : i32
    %c0_i32_2 = arith.constant 0 : i32
    return %arg0, %c0_i32, %c0_i32_0, %c0_i32_1 : i32, i32, i32, i32
  }
}

</mosaic_0001>

<llo_original>
// kernel: main_net_forward.1
$region0: #{main_net_forward.1}
  #allocation0 [shape = 'u32[]', space=smem, size = 0x4, offset = 0x4, fixed_abs, tag = 'smem constant byte address 0x4 - core index']
  #allocation1 [shape = 'u32[72,128]{1,0:T(1,128)}', space=vmem, size = 0x9000, scoped, tag = 'internal scratch']
  #allocation2 [shape = 'bf16[1,18,18,32]{3,2,1,0:T(8,128)(2,1)}', space=vmem, size = 0x1b000, scoped, tag = 'scratch operand']
  #allocation3 [shape = 'bf16[1,18,18,64]{3,2,1,0:T(8,128)(2,1)}', space=vmem, size = 0x1b000, scoped, tag = 'scratch operand']
  %s0 = inlined_call_operand.vmem [shape: bf16[2,256,16], index: 0, kind: input, shape index: {}]
  %s1 = inlined_call_operand.vmem [shape: bf16[16,32], index: 1, kind: input, shape index: {}]
  %s2 = inlined_call_operand.vmem [shape: f32[1,32], index: 2, kind: input, shape index: {}]
  %s3 = inlined_call_operand.vmem [shape: bf16[288,64], index: 3, kind: input, shape index: {}]
  %s4 = inlined_call_operand.vmem [shape: f32[1,64], index: 4, kind: input, shape index: {}]
  %s5 = inlined_call_operand.vmem [shape: bf16[576,128], index: 5, kind: input, shape index: {}]
  %s6 = inlined_call_operand.vmem [shape: f32[1,128], index: 6, kind: input, shape index: {}]
  %s7 = inlined_call_operand.hbm [shape: f32[2,16,16,128], index: 7, kind: output, shape index: {}]
  %s8 = sld [smem:[#allocation0]]
  $region61: #{main_net_forward.1} parent=0
    _
  %s10 = ssub.s32 1, %s8
  %s11 = scalar_select 0, %s10, %s8
  $region1: #{main_net_forward.1} parent=0
    #allocation4 [shape = 'u8[262144]{0}', space=vmem, size = 0x40000, scoped, tag = 'output window, operand 0']
    #allocation5 [shape = 's32[2]{0}', space=sflag, size = 0x8, scoped, tag = 'scoped memory for main_net_forward.1']
    %12 = vsyncpa [#allocation5], 0
    %s13 = scalar_lea.sflag [#allocation5], 1
    %14 = vsyncpa %s13, 0
    loop: start=0, step=1, limit=4
    $region2: #{main_net_forward.1} parent=1 // loop_pre_header
      _
    $region3: #{main_net_forward.1} parent=1 // loop_header
      %s16 = sphi 0, %s20
      %p17 = scmp.ge.s32.totalorder %s16, 4
      %s26 = sphi 0, %s28
      %s29 = sphi 0, %s26
      %s30 = sphi 0, %s29
      %s46 = sphi 0, %s30
      %s50 = sphi 0, %s50
      %s52 = sphi 0, %s50
      %s53 = sphi 0, %s52
      %s67 = sphi 0, %s53
      %s71 = sphi 0, %s71
      %s73 = sphi 0, %s71
      %s74 = sphi 0, %s73
      %s88 = sphi 0, %s74
      %s92 = sphi 0, %s92
      %s94 = sphi 0, %s92
      %s95 = sphi 0, %s94
      %s109 = sphi 0, %s95
      %s113 = sphi 0, %s113
      %s115 = sphi 0, %s113
      %s116 = sphi 0, %s115
      %s130 = sphi 0, %s116
      %s134 = sphi 0, %s134
      %s136 = sphi 0, %s134
      %s137 = sphi 0, %s136
      %s151 = sphi 0, %s137
      %s155 = sphi 0, %s155
      %s157 = sphi 0, %s155
      %s158 = sphi 0, %s157
      %s172 = sphi 0, %s158
      %s178 = sphi 0, %s180
      %s181 = sphi 0, %s178
      %s182 = sphi 0, %s181
      %s198 = sphi 0, %s182
    $region4: #{main_net_forward.1} parent=1 // loop_header_branch
      %19 = sbr.rel (%p17) target = $region8
    $region5: #{main_net_forward.1} parent=1 // loop_body
      %s21 = ssub.s32 %s16, 1
      %s22 = ssub.s32 %s16, 2
      %s23 = sadd.s32 %s16, 1
      %s24 = ssub.s32 %s16, %s23
      %p25 = scmp.eq.s32.totalorder %s24, 0
      %s27 = sadd.s32 %s26, 1
      %s28 = scalar_select %p25, %s26, %s27
      %p31 = pneg %p25
      %p32 = scmp.eq.s32.totalorder %s16, 1
      %p33 = por %p31, %p32
      %p34 = scmp.ne.s32.totalorder %s26, %s29
      %p35 = scmp.eq.s32.totalorder %s16, 0
      %p36 = por %p34, %p35
      %p37 = scmp.ne.s32.totalorder %s26, %s29
      %p38 = scmp.eq.s32.totalorder %s21, 1
      %p39 = por %p37, %p38
      %p40 = scmp.ne.s32.totalorder %s29, %s30
      %p41 = scmp.eq.s32.totalorder %s21, 0
      %p42 = por %p40, %p41
      %p43 = scmp.ne.s32.totalorder %s29, %s30
      %p44 = scmp.eq.s32.totalorder %s22, 1
      %p45 = por %p43, %p44
      %p47 = scmp.ne.s32.totalorder %s30, %s46
      %p48 = scmp.eq.s32.totalorder %s22, 0
      %p49 = por %p47, %p48
      %s51 = sadd.s32 %s50, 1
      %p54 = scmp.eq.s32.totalorder %s16, 1
      %p55 = scmp.ne.s32.totalorder %s50, %s52
      %p56 = scmp.eq.s32.totalorder %s16, 0
      %p57 = por %p55, %p56
      %p58 = scmp.ne.s32.totalorder %s50, %s52
      %p59 = scmp.eq.s32.totalorder %s21, 1
      %p60 = por %p58, %p59
      %p61 = scmp.ne.s32.totalorder %s52, %s53
      %p62 = scmp.eq.s32.totalorder %s21, 0
      %p63 = por %p61, %p62
      %p64 = scmp.ne.s32.totalorder %s52, %s53
      %p65 = scmp.eq.s32.totalorder %s22, 1
      %p66 = por %p64, %p65
      %p68 = scmp.ne.s32.totalorder %s53, %s67
      %p69 = scmp.eq.s32.totalorder %s22, 0
      %p70 = por %p68, %p69
      %s72 = sadd.s32 %s71, 1
      %p75 = scmp.eq.s32.totalorder %s16, 1
      %p76 = scmp.ne.s32.totalorder %s71, %s73
      %p77 = scmp.eq.s32.totalorder %s16, 0
      %p78 = por %p76, %p77
      %p79 = scmp.ne.s32.totalorder %s71, %s73
      %p80 = scmp.eq.s32.totalorder %s21, 1
      %p81 = por %p79, %p80
      %p82 = scmp.ne.s32.totalorder %s73, %s74
      %p83 = scmp.eq.s32.totalorder %s21, 0
      %p84 = por %p82, %p83
      %p85 = scmp.ne.s32.totalorder %s73, %s74
      %p86 = scmp.eq.s32.totalorder %s22, 1
      %p87 = por %p85, %p86
      %p89 = scmp.ne.s32.totalorder %s74, %s88
      %p90 = scmp.eq.s32.totalorder %s22, 0
      %p91 = por %p89, %p90
      %s93 = sadd.s32 %s92, 1
      %p96 = scmp.eq.s32.totalorder %s16, 1
      %p97 = scmp.ne.s32.totalorder %s92, %s94
      %p98 = scmp.eq.s32.totalorder %s16, 0
      %p99 = por %p97, %p98
      %p100 = scmp.ne.s32.totalorder %s92, %s94
      %p101 = scmp.eq.s32.totalorder %s21, 1
      %p102 = por %p100, %p101
      %p103 = scmp.ne.s32.totalorder %s94, %s95
      %p104 = scmp.eq.s32.totalorder %s21, 0
      %p105 = por %p103, %p104
      %p106 = scmp.ne.s32.totalorder %s94, %s95
      %p107 = scmp.eq.s32.totalorder %s22, 1
      %p108 = por %p106, %p107
      %p110 = scmp.ne.s32.totalorder %s95, %s109
      %p111 = scmp.eq.s32.totalorder %s22, 0
      %p112 = por %p110, %p111
      %s114 = sadd.s32 %s113, 1
      %p117 = scmp.eq.s32.totalorder %s16, 1
      %p118 = scmp.ne.s32.totalorder %s113, %s115
      %p119 = scmp.eq.s32.totalorder %s16, 0
      %p120 = por %p118, %p119
      %p121 = scmp.ne.s32.totalorder %s113, %s115
      %p122 = scmp.eq.s32.totalorder %s21, 1
      %p123 = por %p121, %p122
      %p124 = scmp.ne.s32.totalorder %s115, %s116
      %p125 = scmp.eq.s32.totalorder %s21, 0
      %p126 = por %p124, %p125
      %p127 = scmp.ne.s32.totalorder %s115, %s116
      %p128 = scmp.eq.s32.totalorder %s22, 1
      %p129 = por %p127, %p128
      %p131 = scmp.ne.s32.totalorder %s116, %s130
      %p132 = scmp.eq.s32.totalorder %s22, 0
      %p133 = por %p131, %p132
      %s135 = sadd.s32 %s134, 1
      %p138 = scmp.eq.s32.totalorder %s16, 1
      %p139 = scmp.ne.s32.totalorder %s134, %s136
      %p140 = scmp.eq.s32.totalorder %s16, 0
      %p141 = por %p139, %p140
      %p142 = scmp.ne.s32.totalorder %s134, %s136
      %p143 = scmp.eq.s32.totalorder %s21, 1
      %p144 = por %p142, %p143
      %p145 = scmp.ne.s32.totalorder %s136, %s137
      %p146 = scmp.eq.s32.totalorder %s21, 0
      %p147 = por %p145, %p146
      %p148 = scmp.ne.s32.totalorder %s136, %s137
      %p149 = scmp.eq.s32.totalorder %s22, 1
      %p150 = por %p148, %p149
      %p152 = scmp.ne.s32.totalorder %s137, %s151
      %p153 = scmp.eq.s32.totalorder %s22, 0
      %p154 = por %p152, %p153
      %s156 = sadd.s32 %s155, 1
      %p159 = scmp.eq.s32.totalorder %s16, 1
      %p160 = scmp.ne.s32.totalorder %s155, %s157
      %p161 = scmp.eq.s32.totalorder %s16, 0
      %p162 = por %p160, %p161
      %p163 = scmp.ne.s32.totalorder %s155, %s157
      %p164 = scmp.eq.s32.totalorder %s21, 1
      %p165 = por %p163, %p164
      %p166 = scmp.ne.s32.totalorder %s157, %s158
      %p167 = scmp.eq.s32.totalorder %s21, 0
      %p168 = por %p166, %p167
      %p169 = scmp.ne.s32.totalorder %s157, %s158
      %p170 = scmp.eq.s32.totalorder %s22, 1
      %p171 = por %p169, %p170
      %p173 = scmp.ne.s32.totalorder %s158, %s172
      %p174 = scmp.eq.s32.totalorder %s22, 0
      %p175 = por %p173, %p174
      %s176 = ssub.s32 %s16, %s23
      %p177 = scmp.eq.s32.totalorder %s176, 0
      %s179 = sadd.s32 %s178, 1
      %s180 = scalar_select %p177, %s178, %s179
      %p183 = pneg %p177
      %p184 = scmp.eq.s32.totalorder %s16, 1
      %p185 = por %p183, %p184
      %p186 = scmp.ne.s32.totalorder %s178, %s181
      %p187 = scmp.eq.s32.totalorder %s16, 0
      %p188 = por %p186, %p187
      %p189 = scmp.ne.s32.totalorder %s178, %s181
      %p190 = scmp.eq.s32.totalorder %s21, 1
      %p191 = por %p189, %p190
      %p192 = scmp.ne.s32.totalorder %s181, %s182
      %p193 = scmp.eq.s32.totalorder %s21, 0
      %p194 = por %p192, %p193
      %p195 = scmp.ne.s32.totalorder %s181, %s182
      %p196 = scmp.eq.s32.totalorder %s22, 1
      %p197 = por %p195, %p196
      %p199 = scmp.ne.s32.totalorder %s182, %s198
      %p200 = scmp.eq.s32.totalorder %s22, 0
      %p201 = por %p199, %p200
      %p202 = scmp.le.s32.totalorder 1, %s16
      %p203 = scmp.lt.s32.totalorder %s16, 3
      %p204 = pnand %p202, %p203
      %p205 = pneg %p204
      // Predicated region
      $region9: #{main_net_forward.1} parent=5 // pred_check
        _
      $region10: #{main_net_forward.1} parent=5 // pred_check_branch
        %207 = sbr.rel (%p204) target = $region12
      $region11: #{main_net_forward.1} parent=5 // pred_region
        %s208 = ssub.s32 %s16, 1
        // Predicated region
        $region13: #{main_net_forward.1} parent=11 // pred_check
          %p209 = pneg %p63
        $region14: #{main_net_forward.1} parent=11 // pred_check_branch
          %211 = sbr.rel (%p209) target = $region16
        $region15: #{main_net_forward.1} parent=11 // pred_region
          _
        $region16: #{main_net_forward.1} parent=11 // pred_fallthru
          _
        // Predicated region
        $region17: #{main_net_forward.1} parent=11 // pred_check
          %p212 = pneg %p84
        $region18: #{main_net_forward.1} parent=11 // pred_check_branch
          %214 = sbr.rel (%p212) target = $region20
        $region19: #{main_net_forward.1} parent=11 // pred_region
          _
        $region20: #{main_net_forward.1} parent=11 // pred_fallthru
          _
        // Predicated region
        $region21: #{main_net_forward.1} parent=11 // pred_check
          %p215 = pneg %p105
        $region22: #{main_net_forward.1} parent=11 // pred_check_branch
          %217 = sbr.rel (%p215) target = $region24
        $region23: #{main_net_forward.1} parent=11 // pred_region
          _
        $region24: #{main_net_forward.1} parent=11 // pred_fallthru
          _
        // Predicated region
        $region25: #{main_net_forward.1} parent=11 // pred_check
          %p218 = pneg %p126
        $region26: #{main_net_forward.1} parent=11 // pred_check_branch
          %220 = sbr.rel (%p218) target = $region28
        $region27: #{main_net_forward.1} parent=11 // pred_region
          _
        $region28: #{main_net_forward.1} parent=11 // pred_fallthru
          _
        // Predicated region
        $region29: #{main_net_forward.1} parent=11 // pred_check
          %p221 = pneg %p147
        $region30: #{main_net_forward.1} parent=11 // pred_check_branch
          %223 = sbr.rel (%p221) target = $region32
        $region31: #{main_net_forward.1} parent=11 // pred_region
          _
        $region32: #{main_net_forward.1} parent=11 // pred_fallthru
          _
        // Predicated region
        $region33: #{main_net_forward.1} parent=11 // pred_check
          %p224 = pneg %p168
        $region34: #{main_net_forward.1} parent=11 // pred_check_branch
          %226 = sbr.rel (%p224) target = $region36
        $region35: #{main_net_forward.1} parent=11 // pred_region
          _
        $region36: #{main_net_forward.1} parent=11 // pred_fallthru
          _
      $region12: #{main_net_forward.1} parent=5 // pred_fallthru
        _
      %p227 = scmp.lt.s32.totalorder %s16, 2
      // Predicated region
      $region37: #{main_net_forward.1} parent=5 // pred_check
        %p228 = pneg %p227
      $region38: #{main_net_forward.1} parent=5 // pred_check_branch
        %230 = sbr.rel (%p228) target = $region40
      $region39: #{main_net_forward.1} parent=5 // pred_region
        // Predicated region
        $region41: #{main_net_forward.1} parent=39 // pred_check
          %p231 = pneg %p36
        $region42: #{main_net_forward.1} parent=39 // pred_check_branch
          %233 = sbr.rel (%p231) target = $region44
        $region43: #{main_net_forward.1} parent=39 // pred_region
          %p234 = scmp.lt.s32.totalorder %s16, 1
          %s235 = scalar_select %p234, %s16, 1
          %s236 = smul.addr %s235, 32
          %s237 = smul.addr %s236, 4
          %s238 = scalar_lea.vmem %s0, %s237
        $region44: #{main_net_forward.1} parent=39 // pred_fallthru
          _
      $region40: #{main_net_forward.1} parent=5 // pred_fallthru
        _
      %p239 = scmp.le.s32.totalorder 1, %s16
      %p240 = scmp.lt.s32.totalorder %s16, 3
      %p241 = pnand %p239, %p240
      %p242 = pneg %p241
      // Predicated region
      $region45: #{main_net_forward.1} parent=5 // pred_check
        _
      $region46: #{main_net_forward.1} parent=5 // pred_check_branch
        %244 = sbr.rel (%p241) target = $region48
      $region47: #{main_net_forward.1} parent=5 // pred_region
        %s245 = ssub.s32 %s16, 1
        %p246 = scmp.lt.s32.totalorder %s21, 1
        %s247 = scalar_select %p246, %s21, 1
        %s248 = smul.addr %s247, 32
        %s249 = smul.addr %s248, 4
        %s250 = scalar_lea.vmem %s0, %s249
        %p251 = pneg %p42
        %p252 = pneg %p39
        %p253 = pneg %p63
        %p254 = pneg %p60
        %p255 = pneg %p84
        %p256 = pneg %p81
        %p257 = pneg %p105
        %p258 = pneg %p102
        %p259 = pneg %p126
        %p260 = pneg %p123
        %p261 = pneg %p147
        %p262 = pneg %p144
        %p263 = pneg %p168
        %p264 = pneg %p165
        %p265 = pneg %p194
        %p266 = pneg %p191
        %s267 = sand.u32 %s181, 1
        %s268 = scalar_lea.sflag [#allocation5], %s267
        %s269 = sand.u32 %s181, 1
        %s270 = smul.addr %s269, 256
        %s271 = scalar_lea.vmem [#allocation4], %s270
        %p272 = scmp.lt.s32.totalorder %s21, 1
        %s273 = scalar_select %p272, %s21, 1
        %s274 = smul.addr %s273, 32
        %s275 = smul.addr %s274, 4
        %s276 = scalar_lea.vmem %s0, %s275
        %vm278 = vcmask 257024
        %279 = vst.msk [vmem:[#allocation2] sm:$0xf] %vm278, 0
        %280 = vst.msk [vmem:[#allocation2 + $0x4] sm:$0xf] %vm278, 0
        %vm281 = vcmask 253952
        %282 = vst.msk [vmem:[#allocation2 + $0x8] sm:$0x1] %vm281, 0
        %s283 = scalar_lea.vmem [#allocation2], 204
        %284 = vst.msk [vmem:[%s283] sm:$0xf] %vm278, 0
        %285 = vst.msk [vmem:[%s283 + $0x4] sm:$0xf] %vm278, 0
        %286 = vst.msk [vmem:[%s283 + $0x8] sm:$0x1] %vm281, 0
        %vm287 = vcmask 253952
        %vm288 = vsmask.f32 256
        %vm289 = vmand %vm287, %vm288
        %v290 = vld [vmem:[#allocation2] sm:$0x1]
        %v291 = vsel %vm289, 0, %v290
        %292 = vst [vmem:[#allocation2] sm:$0x1] %v291
        %v293 = vld [vmem:[#allocation2 + $0xc] sm:$0x1]
        %v294 = vsel %vm289, 0, %v293
        %295 = vst [vmem:[#allocation2 + $0xc] sm:$0x1] %v294
        %v296 = vld [vmem:[#allocation2 + $0x18] sm:$0x1]
        %v297 = vsel %vm289, 0, %v296
        %298 = vst [vmem:[#allocation2 + $0x18] sm:$0x1] %v297
        %v299 = vld [vmem:[#allocation2 + $0x24] sm:$0x1]
        %v300 = vsel %vm289, 0, %v299
        %301 = vst [vmem:[#allocation2 + $0x24] sm:$0x1] %v300
        %v302 = vld [vmem:[#allocation2 + $0x30] sm:$0x1]
        %v303 = vsel %vm289, 0, %v302
        %304 = vst [vmem:[#allocation2 + $0x30] sm:$0x1] %v303
        %v305 = vld [vmem:[#allocation2 + $0x3c] sm:$0x1]
        %v306 = vsel %vm289, 0, %v305
        %307 = vst [vmem:[#allocation2 + $0x3c] sm:$0x1] %v306
        %v308 = vld [vmem:[#allocation2 + $0x48] sm:$0x1]
        %v309 = vsel %vm289, 0, %v308
        %310 = vst [vmem:[#allocation2 + $0x48] sm:$0x1] %v309
        %v311 = vld [vmem:[#allocation2 + $0x54] sm:$0x1]
        %v312 = vsel %vm289, 0, %v311
        %313 = vst [vmem:[#allocation2 + $0x54] sm:$0x1] %v312
        %v314 = vld [vmem:[#allocation2 + $0x60] sm:$0x1]
        %v315 = vsel %vm289, 0, %v314
        %316 = vst [vmem:[#allocation2 + $0x60] sm:$0x1] %v315
        %v317 = vld [vmem:[#allocation2 + $0x6c] sm:$0x1]
        %v318 = vsel %vm289, 0, %v317
        %319 = vst [vmem:[#allocation2 + $0x6c] sm:$0x1] %v318
        %v320 = vld [vmem:[#allocation2 + $0x78] sm:$0x1]
        %v321 = vsel %vm289, 0, %v320
        %322 = vst [vmem:[#allocation2 + $0x78] sm:$0x1] %v321
        %v323 = vld [vmem:[#allocation2 + $0x84] sm:$0x1]
        %v324 = vsel %vm289, 0, %v323
        %325 = vst [vmem:[#allocation2 + $0x84] sm:$0x1] %v324
        %v326 = vld [vmem:[#allocation2 + $0x90] sm:$0x1]
        %v327 = vsel %vm289, 0, %v326
        %328 = vst [vmem:[#allocation2 + $0x90] sm:$0x1] %v327
        %v329 = vld [vmem:[#allocation2 + $0x9c] sm:$0x1]
        %v330 = vsel %vm289, 0, %v329
        %331 = vst [vmem:[#allocation2 + $0x9c] sm:$0x1] %v330
        %v332 = vld [vmem:[#allocation2 + $0xa8] sm:$0x1]
        %v333 = vsel %vm289, 0, %v332
        %334 = vst [vmem:[#allocation2 + $0xa8] sm:$0x1] %v333
        %v335 = vld [vmem:[#allocation2 + $0xb4] sm:$0x1]
        %v336 = vsel %vm289, 0, %v335
        %337 = vst [vmem:[#allocation2 + $0xb4] sm:$0x1] %v336
        %v338 = vld [vmem:[#allocation2 + $0xc0] sm:$0x1]
        %v339 = vsel %vm289, 0, %v338
        %340 = vst [vmem:[#allocation2 + $0xc0] sm:$0x1] %v339
        %v341 = vld [vmem:[#allocation2 + $0xcc] sm:$0x1]
        %v342 = vsel %vm289, 0, %v341
        %343 = vst [vmem:[#allocation2 + $0xcc] sm:$0x1] %v342
        %vm344 = vsmask.f32 7938
        %vm345 = vmand %vm287, %vm344
        %v346 = vld [vmem:[#allocation2 + $0x8] sm:$0x1]
        %v347 = vsel %vm345, 0, %v346
        %348 = vst [vmem:[#allocation2 + $0x8] sm:$0x1] %v347
        %v349 = vld [vmem:[#allocation2 + $0x14] sm:$0x1]
        %v350 = vsel %vm345, 0, %v349
        %351 = vst [vmem:[#allocation2 + $0x14] sm:$0x1] %v350
        %v352 = vld [vmem:[#allocation2 + $0x20] sm:$0x1]
        %v353 = vsel %vm345, 0, %v352
        %354 = vst [vmem:[#allocation2 + $0x20] sm:$0x1] %v353
        %v355 = vld [vmem:[#allocation2 + $0x2c] sm:$0x1]
        %v356 = vsel %vm345, 0, %v355
        %357 = vst [vmem:[#allocation2 + $0x2c] sm:$0x1] %v356
        %v358 = vld [vmem:[#allocation2 + $0x38] sm:$0x1]
        %v359 = vsel %vm345, 0, %v358
        %360 = vst [vmem:[#allocation2 + $0x38] sm:$0x1] %v359
        %v361 = vld [vmem:[#allocation2 + $0x44] sm:$0x1]
        %v362 = vsel %vm345, 0, %v361
        %363 = vst [vmem:[#allocation2 + $0x44] sm:$0x1] %v362
        %v364 = vld [vmem:[#allocation2 + $0x50] sm:$0x1]
        %v365 = vsel %vm345, 0, %v364
        %366 = vst [vmem:[#allocation2 + $0x50] sm:$0x1] %v365
        %v367 = vld [vmem:[#allocation2 + $0x5c] sm:$0x1]
        %v368 = vsel %vm345, 0, %v367
        %369 = vst [vmem:[#allocation2 + $0x5c] sm:$0x1] %v368
        %v370 = vld [vmem:[#allocation2 + $0x68] sm:$0x1]
        %v371 = vsel %vm345, 0, %v370
        %372 = vst [vmem:[#allocation2 + $0x68] sm:$0x1] %v371
        %v373 = vld [vmem:[#allocation2 + $0x74] sm:$0x1]
        %v374 = vsel %vm345, 0, %v373
        %375 = vst [vmem:[#allocation2 + $0x74] sm:$0x1] %v374
        %v376 = vld [vmem:[#allocation2 + $0x80] sm:$0x1]
        %v377 = vsel %vm345, 0, %v376
        %378 = vst [vmem:[#allocation2 + $0x80] sm:$0x1] %v377
        %v379 = vld [vmem:[#allocation2 + $0x8c] sm:$0x1]
        %v380 = vsel %vm345, 0, %v379
        %381 = vst [vmem:[#allocation2 + $0x8c] sm:$0x1] %v380
        %v382 = vld [vmem:[#allocation2 + $0x98] sm:$0x1]
        %v383 = vsel %vm345, 0, %v382
        %384 = vst [vmem:[#allocation2 + $0x98] sm:$0x1] %v383
        %v385 = vld [vmem:[#allocation2 + $0xa4] sm:$0x1]
        %v386 = vsel %vm345, 0, %v385
        %387 = vst [vmem:[#allocation2 + $0xa4] sm:$0x1] %v386
        %v388 = vld [vmem:[#allocation2 + $0xb0] sm:$0x1]
        %v389 = vsel %vm345, 0, %v388
        %390 = vst [vmem:[#allocation2 + $0xb0] sm:$0x1] %v389
        %v391 = vld [vmem:[#allocation2 + $0xbc] sm:$0x1]
        %v392 = vsel %vm345, 0, %v391
        %393 = vst [vmem:[#allocation2 + $0xbc] sm:$0x1] %v392
        %v394 = vld [vmem:[#allocation2 + $0xc8] sm:$0x1]
        %v395 = vsel %vm345, 0, %v394
        %396 = vst [vmem:[#allocation2 + $0xc8] sm:$0x1] %v395
        %v397 = vld [vmem:[#allocation2 + $0xd4] sm:$0x1]
        %v398 = vsel %vm345, 0, %v397
        %399 = vst [vmem:[#allocation2 + $0xd4] sm:$0x1] %v398
        %vm400 = vcmask 519168
        %401 = vst.msk [vmem:[#allocation3] sm:$0xf] %vm400, 0
        %402 = vst.msk [vmem:[#allocation3 + $0x4] sm:$0xf] %vm400, 0
        %vm403 = vcmask 516096
        %404 = vst.msk [vmem:[#allocation3 + $0x8] sm:$0x1] %vm403, 0
        %s405 = scalar_lea.vmem [#allocation3], 204
        %406 = vst.msk [vmem:[%s405] sm:$0xf] %vm400, 0
        %407 = vst.msk [vmem:[%s405 + $0x4] sm:$0xf] %vm400, 0
        %408 = vst.msk [vmem:[%s405 + $0x8] sm:$0x1] %vm403, 0
        %vm409 = vcmask 516096
        %vm410 = vmand %vm409, %vm288
        %v411 = vld [vmem:[#allocation3] sm:$0x1]
        %v412 = vsel %vm410, 0, %v411
        %413 = vst [vmem:[#allocation3] sm:$0x1] %v412
        %v414 = vld [vmem:[#allocation3 + $0xc] sm:$0x1]
        %v415 = vsel %vm410, 0, %v414
        %416 = vst [vmem:[#allocation3 + $0xc] sm:$0x1] %v415
        %v417 = vld [vmem:[#allocation3 + $0x18] sm:$0x1]
        %v418 = vsel %vm410, 0, %v417
        %419 = vst [vmem:[#allocation3 + $0x18] sm:$0x1] %v418
        %v420 = vld [vmem:[#allocation3 + $0x24] sm:$0x1]
        %v421 = vsel %vm410, 0, %v420
        %422 = vst [vmem:[#allocation3 + $0x24] sm:$0x1] %v421
        %v423 = vld [vmem:[#allocation3 + $0x30] sm:$0x1]
        %v424 = vsel %vm410, 0, %v423
        %425 = vst [vmem:[#allocation3 + $0x30] sm:$0x1] %v424
        %v426 = vld [vmem:[#allocation3 + $0x3c] sm:$0x1]
        %v427 = vsel %vm410, 0, %v426
        %428 = vst [vmem:[#allocation3 + $0x3c] sm:$0x1] %v427
        %v429 = vld [vmem:[#allocation3 + $0x48] sm:$0x1]
        %v430 = vsel %vm410, 0, %v429
        %431 = vst [vmem:[#allocation3 + $0x48] sm:$0x1] %v430
        %v432 = vld [vmem:[#allocation3 + $0x54] sm:$0x1]
        %v433 = vsel %vm410, 0, %v432
        %434 = vst [vmem:[#allocation3 + $0x54] sm:$0x1] %v433
        %v435 = vld [vmem:[#allocation3 + $0x60] sm:$0x1]
        %v436 = vsel %vm410, 0, %v435
        %437 = vst [vmem:[#allocation3 + $0x60] sm:$0x1] %v436
        %v438 = vld [vmem:[#allocation3 + $0x6c] sm:$0x1]
        %v439 = vsel %vm410, 0, %v438
        %440 = vst [vmem:[#allocation3 + $0x6c] sm:$0x1] %v439
        %v441 = vld [vmem:[#allocation3 + $0x78] sm:$0x1]
        %v442 = vsel %vm410, 0, %v441
        %443 = vst [vmem:[#allocation3 + $0x78] sm:$0x1] %v442
        %v444 = vld [vmem:[#allocation3 + $0x84] sm:$0x1]
        %v445 = vsel %vm410, 0, %v444
        %446 = vst [vmem:[#allocation3 + $0x84] sm:$0x1] %v445
        %v447 = vld [vmem:[#allocation3 + $0x90] sm:$0x1]
        %v448 = vsel %vm410, 0, %v447
        %449 = vst [vmem:[#allocation3 + $0x90] sm:$0x1] %v448
        %v450 = vld [vmem:[#allocation3 + $0x9c] sm:$0x1]
        %v451 = vsel %vm410, 0, %v450
        %452 = vst [vmem:[#allocation3 + $0x9c] sm:$0x1] %v451
        %v453 = vld [vmem:[#allocation3 + $0xa8] sm:$0x1]
        %v454 = vsel %vm410, 0, %v453
        %455 = vst [vmem:[#allocation3 + $0xa8] sm:$0x1] %v454
        %v456 = vld [vmem:[#allocation3 + $0xb4] sm:$0x1]
        %v457 = vsel %vm410, 0, %v456
        %458 = vst [vmem:[#allocation3 + $0xb4] sm:$0x1] %v457
        %v459 = vld [vmem:[#allocation3 + $0xc0] sm:$0x1]
        %v460 = vsel %vm410, 0, %v459
        %461 = vst [vmem:[#allocation3 + $0xc0] sm:$0x1] %v460
        %v462 = vld [vmem:[#allocation3 + $0xcc] sm:$0x1]
        %v463 = vsel %vm410, 0, %v462
        %464 = vst [vmem:[#allocation3 + $0xcc] sm:$0x1] %v463
        %vm465 = vmand %vm409, %vm344
        %v466 = vld [vmem:[#allocation3 + $0x8] sm:$0x1]
        %v467 = vsel %vm465, 0, %v466
        %468 = vst [vmem:[#allocation3 + $0x8] sm:$0x1] %v467
        %v469 = vld [vmem:[#allocation3 + $0x14] sm:$0x1]
        %v470 = vsel %vm465, 0, %v469
        %471 = vst [vmem:[#allocation3 + $0x14] sm:$0x1] %v470
        %v472 = vld [vmem:[#allocation3 + $0x20] sm:$0x1]
        %v473 = vsel %vm465, 0, %v472
        %474 = vst [vmem:[#allocation3 + $0x20] sm:$0x1] %v473
        %v475 = vld [vmem:[#allocation3 + $0x2c] sm:$0x1]
        %v476 = vsel %vm465, 0, %v475
        %477 = vst [vmem:[#allocation3 + $0x2c] sm:$0x1] %v476
        %v478 = vld [vmem:[#allocation3 + $0x38] sm:$0x1]
        %v479 = vsel %vm465, 0, %v478
        %480 = vst [vmem:[#allocation3 + $0x38] sm:$0x1] %v479
        %v481 = vld [vmem:[#allocation3 + $0x44] sm:$0x1]
        %v482 = vsel %vm465, 0, %v481
        %483 = vst [vmem:[#allocation3 + $0x44] sm:$0x1] %v482
        %v484 = vld [vmem:[#allocation3 + $0x50] sm:$0x1]
        %v485 = vsel %vm465, 0, %v484
        %486 = vst [vmem:[#allocation3 + $0x50] sm:$0x1] %v485
        %v487 = vld [vmem:[#allocation3 + $0x5c] sm:$0x1]
        %v488 = vsel %vm465, 0, %v487
        %489 = vst [vmem:[#allocation3 + $0x5c] sm:$0x1] %v488
        %v490 = vld [vmem:[#allocation3 + $0x68] sm:$0x1]
        %v491 = vsel %vm465, 0, %v490
        %492 = vst [vmem:[#allocation3 + $0x68] sm:$0x1] %v491
        %v493 = vld [vmem:[#allocation3 + $0x74] sm:$0x1]
        %v494 = vsel %vm465, 0, %v493
        %495 = vst [vmem:[#allocation3 + $0x74] sm:$0x1] %v494
        %v496 = vld [vmem:[#allocation3 + $0x80] sm:$0x1]
        %v497 = vsel %vm465, 0, %v496
        %498 = vst [vmem:[#allocation3 + $0x80] sm:$0x1] %v497
        %v499 = vld [vmem:[#allocation3 + $0x8c] sm:$0x1]
        %v500 = vsel %vm465, 0, %v499
        %501 = vst [vmem:[#allocation3 + $0x8c] sm:$0x1] %v500
        %v502 = vld [vmem:[#allocation3 + $0x98] sm:$0x1]
        %v503 = vsel %vm465, 0, %v502
        %504 = vst [vmem:[#allocation3 + $0x98] sm:$0x1] %v503
        %v505 = vld [vmem:[#allocation3 + $0xa4] sm:$0x1]
        %v506 = vsel %vm465, 0, %v505
        %507 = vst [vmem:[#allocation3 + $0xa4] sm:$0x1] %v506
        %v508 = vld [vmem:[#allocation3 + $0xb0] sm:$0x1]
        %v509 = vsel %vm465, 0, %v508
        %510 = vst [vmem:[#allocation3 + $0xb0] sm:$0x1] %v509
        %v511 = vld [vmem:[#allocation3 + $0xbc] sm:$0x1]
        %v512 = vsel %vm465, 0, %v511
        %513 = vst [vmem:[#allocation3 + $0xbc] sm:$0x1] %v512
        %v514 = vld [vmem:[#allocation3 + $0xc8] sm:$0x1]
        %v515 = vsel %vm465, 0, %v514
        %516 = vst [vmem:[#allocation3 + $0xc8] sm:$0x1] %v515
        %v517 = vld [vmem:[#allocation3 + $0xd4] sm:$0x1]
        %v518 = vsel %vm465, 0, %v517
        %519 = vst [vmem:[#allocation3 + $0xd4] sm:$0x1] %v518
        %v520 = vld [vmem:[%s276] sm:$0xf]
        %v521 = vld [vmem:[%s276 + $0x4] sm:$0xf]
        %v522 = vld [vmem:[%s276 + $0x8] sm:$0xf]
        %v523 = vld [vmem:[%s276 + $0xc] sm:$0xf]
        %v524 = vld [vmem:[%s276 + $0x10] sm:$0xf]
        %v525 = vld [vmem:[%s276 + $0x14] sm:$0xf]
        %v526 = vld [vmem:[%s276 + $0x18] sm:$0xf]
        %v527 = vld [vmem:[%s276 + $0x1c] sm:$0xf]
        %v528 = vld [vmem:[%s276 + $0x20] sm:$0xf]
        %v529 = vld [vmem:[%s276 + $0x24] sm:$0xf]
        %v530 = vld [vmem:[%s276 + $0x28] sm:$0xf]
        %v531 = vld [vmem:[%s276 + $0x2c] sm:$0xf]
        %v532 = vld [vmem:[%s276 + $0x30] sm:$0xf]
        %v533 = vld [vmem:[%s276 + $0x34] sm:$0xf]
        %v534 = vld [vmem:[%s276 + $0x38] sm:$0xf]
        %v535 = vld [vmem:[%s276 + $0x3c] sm:$0xf]
        %v536 = vld [vmem:[%s276 + $0x40] sm:$0xf]
        %v537 = vld [vmem:[%s276 + $0x44] sm:$0xf]
        %v538 = vld [vmem:[%s276 + $0x48] sm:$0xf]
        %v539 = vld [vmem:[%s276 + $0x4c] sm:$0xf]
        %v540 = vld [vmem:[%s276 + $0x50] sm:$0xf]
        %v541 = vld [vmem:[%s276 + $0x54] sm:$0xf]
        %v542 = vld [vmem:[%s276 + $0x58] sm:$0xf]
        %v543 = vld [vmem:[%s276 + $0x5c] sm:$0xf]
        %v544 = vld [vmem:[%s276 + $0x60] sm:$0xf]
        %v545 = vld [vmem:[%s276 + $0x64] sm:$0xf]
        %v546 = vld [vmem:[%s276 + $0x68] sm:$0xf]
        %v547 = vld [vmem:[%s276 + $0x6c] sm:$0xf]
        %v548 = vld [vmem:[%s276 + $0x70] sm:$0xf]
        %v549 = vld [vmem:[%s276 + $0x74] sm:$0xf]
        %v550 = vld [vmem:[%s276 + $0x78] sm:$0xf]
        %v551 = vld [vmem:[%s276 + $0x7c] sm:$0xf]
        %v552 = vld [vmem:[%s1] sm:$0xf]
        %v553 = vld [vmem:[%s1 + $0x4] sm:$0xf]
        %v554 = vld [vmem:[%s2] sm:$0x1]
        %v556 = vperm.slane %v554, 0
        %v590 = vunpack.c.l.b16 %v520
        %v591 = vunpack.c.l.b16 %v521
        %v592 = vunpack.c.l.b16 %v522
        %v593 = vunpack.c.l.b16 %v523
        %v594 = vunpack.c.l.b16 %v524
        %v595 = vunpack.c.l.b16 %v525
        %v596 = vunpack.c.l.b16 %v526
        %v597 = vunpack.c.l.b16 %v527
        %v598 = vunpack.c.l.b16 %v528
        %v599 = vunpack.c.l.b16 %v529
        %v600 = vunpack.c.l.b16 %v530
        %v601 = vunpack.c.l.b16 %v531
        %v602 = vunpack.c.l.b16 %v532
        %v603 = vunpack.c.l.b16 %v533
        %v604 = vunpack.c.l.b16 %v534
        %v605 = vunpack.c.l.b16 %v535
        %v606 = vunpack.c.l.b16 %v536
        %v607 = vunpack.c.l.b16 %v537
        %v608 = vunpack.c.l.b16 %v538
        %v609 = vunpack.c.l.b16 %v539
        %v610 = vunpack.c.l.b16 %v540
        %v611 = vunpack.c.l.b16 %v541
        %v612 = vunpack.c.l.b16 %v542
        %v613 = vunpack.c.l.b16 %v543
        %v614 = vunpack.c.l.b16 %v544
        %v615 = vunpack.c.l.b16 %v545
        %v616 = vunpack.c.l.b16 %v546
        %v617 = vunpack.c.l.b16 %v547
        %v618 = vunpack.c.l.b16 %v548
        %v619 = vunpack.c.l.b16 %v549
        %v620 = vunpack.c.l.b16 %v550
        %v621 = vunpack.c.l.b16 %v551
        %v622 = vpack.c.b16 %v591, %v590
        %v623 = vpack.c.b16 %v593, %v592
        %v624 = vpack.c.b16 %v595, %v594
        %v625 = vpack.c.b16 %v597, %v596
        %v626 = vpack.c.b16 %v599, %v598
        %v627 = vpack.c.b16 %v601, %v600
        %v628 = vpack.c.b16 %v603, %v602
        %v629 = vpack.c.b16 %v605, %v604
        %v630 = vpack.c.b16 %v607, %v606
        %v631 = vpack.c.b16 %v609, %v608
        %v632 = vpack.c.b16 %v611, %v610
        %v633 = vpack.c.b16 %v613, %v612
        %v634 = vpack.c.b16 %v615, %v614
        %v635 = vpack.c.b16 %v617, %v616
        %v636 = vpack.c.b16 %v619, %v618
        %v637 = vpack.c.b16 %v621, %v620
        %v640 = vunpack.c.l.b16 %v552
        %v641 = vunpack.c.l.b16 %v553
        %v642 = vpack.c.b16 %v641, %v640
        %vm644 = vcmask 130048
        %v646 = vsel %vm644, %v622, 0
        %v649 = vsel %vm644, %v623, 0
        %v652 = vsel %vm644, %v624, 0
        %v655 = vsel %vm644, %v625, 0
        %v658 = vsel %vm644, %v626, 0
        %v661 = vsel %vm644, %v627, 0
        %v664 = vsel %vm644, %v628, 0
        %v667 = vsel %vm644, %v629, 0
        %v670 = vsel %vm644, %v630, 0
        %v673 = vsel %vm644, %v631, 0
        %v676 = vsel %vm644, %v632, 0
        %v679 = vsel %vm644, %v633, 0
        %v682 = vsel %vm644, %v634, 0
        %v685 = vsel %vm644, %v635, 0
        %v688 = vsel %vm644, %v636, 0
        %v691 = vsel %vm644, %v637, 0
        %693 = vmatpush.bf16.msra.mxu0 0
        %694 = vmatpush.bf16.msra.mxu0 0
        %695 = vmatpush.bf16.msra.mxu0 0
        %696 = vmatpush.bf16.msra.mxu0 0
        %697 = vmatpush.bf16.msra.mxu0 0
        %698 = vmatpush.bf16.msra.mxu0 0
        %699 = vmatpush.bf16.msra.mxu0 0
        %700 = vmatpush.bf16.msra.mxu0 %v642
        %701 = vmatmul.bf16.gmra.mxu0 %v646
        %v702 = vpop.f32.mrf.mxu0
        %v703 = vadd.f32 %v556, %v702
        %v704 = vpop.f32.mrf.mxu0
        %v705 = vadd.f32 %v556, %v704
        %706 = vmatmul.bf16.gmra.mxu0 %v649
        %v707 = vpop.f32.mrf.mxu0
        %v708 = vadd.f32 %v556, %v707
        %v709 = vpop.f32.mrf.mxu0
        %v710 = vadd.f32 %v556, %v709
        %711 = vmatmul.bf16.gmra.mxu0 %v652
        %v712 = vpop.f32.mrf.mxu0
        %v713 = vadd.f32 %v556, %v712
        %v714 = vpop.f32.mrf.mxu0
        %v715 = vadd.f32 %v556, %v714
        %716 = vmatmul.bf16.gmra.mxu0 %v655
        %v717 = vpop.f32.mrf.mxu0
        %v718 = vadd.f32 %v556, %v717
        %v719 = vpop.f32.mrf.mxu0
        %v720 = vadd.f32 %v556, %v719
        %721 = vmatmul.bf16.gmra.mxu0 %v658
        %v722 = vpop.f32.mrf.mxu0
        %v723 = vadd.f32 %v556, %v722
        %v724 = vpop.f32.mrf.mxu0
        %v725 = vadd.f32 %v556, %v724
        %726 = vmatmul.bf16.gmra.mxu0 %v661
        %v727 = vpop.f32.mrf.mxu0
        %v728 = vadd.f32 %v556, %v727
        %v729 = vpop.f32.mrf.mxu0
        %v730 = vadd.f32 %v556, %v729
        %731 = vmatmul.bf16.gmra.mxu0 %v664
        %v732 = vpop.f32.mrf.mxu0
        %v733 = vadd.f32 %v556, %v732
        %v734 = vpop.f32.mrf.mxu0
        %v735 = vadd.f32 %v556, %v734
        %736 = vmatmul.bf16.gmra.mxu0 %v667
        %v737 = vpop.f32.mrf.mxu0
        %v738 = vadd.f32 %v556, %v737
        %v739 = vpop.f32.mrf.mxu0
        %v740 = vadd.f32 %v556, %v739
        %741 = vmatmul.bf16.gmra.mxu0 %v670
        %v742 = vpop.f32.mrf.mxu0
        %v743 = vadd.f32 %v556, %v742
        %v744 = vpop.f32.mrf.mxu0
        %v745 = vadd.f32 %v556, %v744
        %746 = vmatmul.bf16.gmra.mxu0 %v673
        %v747 = vpop.f32.mrf.mxu0
        %v748 = vadd.f32 %v556, %v747
        %v749 = vpop.f32.mrf.mxu0
        %v750 = vadd.f32 %v556, %v749
        %751 = vmatmul.bf16.gmra.mxu0 %v676
        %v752 = vpop.f32.mrf.mxu0
        %v753 = vadd.f32 %v556, %v752
        %v754 = vpop.f32.mrf.mxu0
        %v755 = vadd.f32 %v556, %v754
        %756 = vmatmul.bf16.gmra.mxu0 %v679
        %v757 = vpop.f32.mrf.mxu0
        %v758 = vadd.f32 %v556, %v757
        %v759 = vpop.f32.mrf.mxu0
        %v760 = vadd.f32 %v556, %v759
        %761 = vmatmul.bf16.gmra.mxu0 %v682
        %v762 = vpop.f32.mrf.mxu0
        %v763 = vadd.f32 %v556, %v762
        %v764 = vpop.f32.mrf.mxu0
        %v765 = vadd.f32 %v556, %v764
        %766 = vmatmul.bf16.gmra.mxu0 %v685
        %v767 = vpop.f32.mrf.mxu0
        %v768 = vadd.f32 %v556, %v767
        %v769 = vpop.f32.mrf.mxu0
        %v770 = vadd.f32 %v556, %v769
        %771 = vmatmul.bf16.gmra.mxu0 %v688
        %v772 = vpop.f32.mrf.mxu0
        %v773 = vadd.f32 %v556, %v772
        %v774 = vpop.f32.mrf.mxu0
        %v775 = vadd.f32 %v556, %v774
        %776 = vmatmul.bf16.gmra.mxu0 %v691
        %v777 = vpop.f32.mrf.mxu0
        %v778 = vadd.f32 %v556, %v777
        %v779 = vpop.f32.mrf.mxu0
        %v780 = vadd.f32 %v556, %v779
        %781 = vdwg.mxu0
        %v782 = vmax.f32 %v703, 0.0
        %v783 = vmax.f32 %v705, 0.0
        %v784 = vmax.f32 %v708, 0.0
        %v785 = vmax.f32 %v710, 0.0
        %v786 = vmax.f32 %v713, 0.0
        %v787 = vmax.f32 %v715, 0.0
        %v788 = vmax.f32 %v718, 0.0
        %v789 = vmax.f32 %v720, 0.0
        %v790 = vmax.f32 %v723, 0.0
        %v791 = vmax.f32 %v725, 0.0
        %v792 = vmax.f32 %v728, 0.0
        %v793 = vmax.f32 %v730, 0.0
        %v794 = vmax.f32 %v733, 0.0
        %v795 = vmax.f32 %v735, 0.0
        %v796 = vmax.f32 %v738, 0.0
        %v797 = vmax.f32 %v740, 0.0
        %v798 = vmax.f32 %v743, 0.0
        %v799 = vmax.f32 %v745, 0.0
        %v800 = vmax.f32 %v748, 0.0
        %v801 = vmax.f32 %v750, 0.0
        %v802 = vmax.f32 %v753, 0.0
        %v803 = vmax.f32 %v755, 0.0
        %v804 = vmax.f32 %v758, 0.0
        %v805 = vmax.f32 %v760, 0.0
        %v806 = vmax.f32 %v763, 0.0
        %v807 = vmax.f32 %v765, 0.0
        %v808 = vmax.f32 %v768, 0.0
        %v809 = vmax.f32 %v770, 0.0
        %v810 = vmax.f32 %v773, 0.0
        %v811 = vmax.f32 %v775, 0.0
        %v812 = vmax.f32 %v778, 0.0
        %v813 = vmax.f32 %v780, 0.0
        %v814 = vpack.c.bf16 %v782, %v782
        %v815 = vpack.c.bf16 %v783, %v783
        %v816 = vpack.c.bf16 %v784, %v784
        %v817 = vpack.c.bf16 %v785, %v785
        %v818 = vpack.c.bf16 %v786, %v786
        %v819 = vpack.c.bf16 %v787, %v787
        %v820 = vpack.c.bf16 %v788, %v788
        %v821 = vpack.c.bf16 %v789, %v789
        %v822 = vpack.c.bf16 %v790, %v790
        %v823 = vpack.c.bf16 %v791, %v791
        %v824 = vpack.c.bf16 %v792, %v792
        %v825 = vpack.c.bf16 %v793, %v793
        %v826 = vpack.c.bf16 %v794, %v794
        %v827 = vpack.c.bf16 %v795, %v795
        %v828 = vpack.c.bf16 %v796, %v796
        %v829 = vpack.c.bf16 %v797, %v797
        %v830 = vpack.c.bf16 %v798, %v798
        %v831 = vpack.c.bf16 %v799, %v799
        %v832 = vpack.c.bf16 %v800, %v800
        %v833 = vpack.c.bf16 %v801, %v801
        %v834 = vpack.c.bf16 %v802, %v802
        %v835 = vpack.c.bf16 %v803, %v803
        %v836 = vpack.c.bf16 %v804, %v804
        %v837 = vpack.c.bf16 %v805, %v805
        %v838 = vpack.c.bf16 %v806, %v806
        %v839 = vpack.c.bf16 %v807, %v807
        %v840 = vpack.c.bf16 %v808, %v808
        %v841 = vpack.c.bf16 %v809, %v809
        %v842 = vpack.c.bf16 %v810, %v810
        %v843 = vpack.c.bf16 %v811, %v811
        %v844 = vpack.c.bf16 %v812, %v812
        %v845 = vpack.c.bf16 %v813, %v813
        %vm846 = vsmask.f32 4368
        %vm847 = vmor %vm288, %vm846
        %v849 = vshrl.u32 %v814, 16
        %v851 = vrot.slane %v849, 7
        %v852 = vshll.u32 %v814, 16
        %v854 = vor.u32 %v851, %v852
        %v855 = vrot.slane %v851, 4
        %v857 = vshrl.u32 %v815, 16
        %v859 = vrot.slane %v857, 7
        %v860 = vshll.u32 %v815, 16
        %v862 = vor.u32 %v859, %v860
        %v863 = vsel %vm847, %v855, %v862
        %v864 = vrot.slane %v859, 4
        %v866 = vshrl.u32 %v816, 16
        %v868 = vrot.slane %v866, 7
        %v869 = vshll.u32 %v816, 16
        %v871 = vor.u32 %v868, %v869
        %v872 = vrot.slane %v868, 4
        %v874 = vshrl.u32 %v817, 16
        %v876 = vrot.slane %v874, 7
        %v877 = vshll.u32 %v817, 16
        %v879 = vor.u32 %v876, %v877
        %v880 = vsel %vm847, %v872, %v879
        %v881 = vrot.slane %v876, 4
        %v883 = vshrl.u32 %v818, 16
        %v885 = vrot.slane %v883, 7
        %v886 = vshll.u32 %v818, 16
        %v888 = vor.u32 %v885, %v886
        %v889 = vrot.slane %v885, 4
        %v891 = vshrl.u32 %v819, 16
        %v893 = vrot.slane %v891, 7
        %v894 = vshll.u32 %v819, 16
        %v896 = vor.u32 %v893, %v894
        %v897 = vsel %vm847, %v889, %v896
        %v898 = vrot.slane %v893, 4
        %v900 = vshrl.u32 %v820, 16
        %v902 = vrot.slane %v900, 7
        %v903 = vshll.u32 %v820, 16
        %v905 = vor.u32 %v902, %v903
        %v906 = vrot.slane %v902, 4
        %v908 = vshrl.u32 %v821, 16
        %v910 = vrot.slane %v908, 7
        %v911 = vshll.u32 %v821, 16
        %v913 = vor.u32 %v910, %v911
        %v914 = vsel %vm847, %v906, %v913
        %v915 = vrot.slane %v910, 4
        %v917 = vshrl.u32 %v822, 16
        %v919 = vrot.slane %v917, 7
        %v920 = vshll.u32 %v822, 16
        %v922 = vor.u32 %v919, %v920
        %v923 = vrot.slane %v919, 4
        %v925 = vshrl.u32 %v823, 16
        %v927 = vrot.slane %v925, 7
        %v928 = vshll.u32 %v823, 16
        %v930 = vor.u32 %v927, %v928
        %v931 = vsel %vm847, %v923, %v930
        %v932 = vrot.slane %v927, 4
        %v934 = vshrl.u32 %v824, 16
        %v936 = vrot.slane %v934, 7
        %v937 = vshll.u32 %v824, 16
        %v939 = vor.u32 %v936, %v937
        %v940 = vrot.slane %v936, 4
        %v942 = vshrl.u32 %v825, 16
        %v944 = vrot.slane %v942, 7
        %v945 = vshll.u32 %v825, 16
        %v947 = vor.u32 %v944, %v945
        %v948 = vsel %vm847, %v940, %v947
        %v949 = vrot.slane %v944, 4
        %v951 = vshrl.u32 %v826, 16
        %v953 = vrot.slane %v951, 7
        %v954 = vshll.u32 %v826, 16
        %v956 = vor.u32 %v953, %v954
        %v957 = vrot.slane %v953, 4
        %v959 = vshrl.u32 %v827, 16
        %v961 = vrot.slane %v959, 7
        %v962 = vshll.u32 %v827, 16
        %v964 = vor.u32 %v961, %v962
        %v965 = vsel %vm847, %v957, %v964
        %v966 = vrot.slane %v961, 4
        %v968 = vshrl.u32 %v828, 16
        %v970 = vrot.slane %v968, 7
        %v971 = vshll.u32 %v828, 16
        %v973 = vor.u32 %v970, %v971
        %v974 = vrot.slane %v970, 4
        %v976 = vshrl.u32 %v829, 16
        %v978 = vrot.slane %v976, 7
        %v979 = vshll.u32 %v829, 16
        %v981 = vor.u32 %v978, %v979
        %v982 = vsel %vm847, %v974, %v981
        %v983 = vrot.slane %v978, 4
        %v985 = vshrl.u32 %v830, 16
        %v987 = vrot.slane %v985, 7
        %v988 = vshll.u32 %v830, 16
        %v990 = vor.u32 %v987, %v988
        %v991 = vrot.slane %v987, 4
        %v993 = vshrl.u32 %v831, 16
        %v995 = vrot.slane %v993, 7
        %v996 = vshll.u32 %v831, 16
        %v998 = vor.u32 %v995, %v996
        %v999 = vsel %vm847, %v991, %v998
        %v1000 = vrot.slane %v995, 4
        %v1002 = vshrl.u32 %v832, 16
        %v1004 = vrot.slane %v1002, 7
        %v1005 = vshll.u32 %v832, 16
        %v1007 = vor.u32 %v1004, %v1005
        %v1008 = vrot.slane %v1004, 4
        %v1010 = vshrl.u32 %v833, 16
        %v1012 = vrot.slane %v1010, 7
        %v1013 = vshll.u32 %v833, 16
        %v1015 = vor.u32 %v1012, %v1013
        %v1016 = vsel %vm847, %v1008, %v1015
        %v1017 = vrot.slane %v1012, 4
        %v1019 = vshrl.u32 %v834, 16
        %v1021 = vrot.slane %v1019, 7
        %v1022 = vshll.u32 %v834, 16
        %v1024 = vor.u32 %v1021, %v1022
        %v1025 = vrot.slane %v1021, 4
        %v1027 = vshrl.u32 %v835, 16
        %v1029 = vrot.slane %v1027, 7
        %v1030 = vshll.u32 %v835, 16
        %v1032 = vor.u32 %v1029, %v1030
        %v1033 = vsel %vm847, %v1025, %v1032
        %v1034 = vrot.slane %v1029, 4
        %v1036 = vshrl.u32 %v836, 16
        %v1038 = vrot.slane %v1036, 7
        %v1039 = vshll.u32 %v836, 16
        %v1041 = vor.u32 %v1038, %v1039
        %v1042 = vrot.slane %v1038, 4
        %v1044 = vshrl.u32 %v837, 16
        %v1046 = vrot.slane %v1044, 7
        %v1047 = vshll.u32 %v837, 16
        %v1049 = vor.u32 %v1046, %v1047
        %v1050 = vsel %vm847, %v1042, %v1049
        %v1051 = vrot.slane %v1046, 4
        %v1053 = vshrl.u32 %v838, 16
        %v1055 = vrot.slane %v1053, 7
        %v1056 = vshll.u32 %v838, 16
        %v1058 = vor.u32 %v1055, %v1056
        %v1059 = vrot.slane %v1055, 4
        %v1061 = vshrl.u32 %v839, 16
        %v1063 = vrot.slane %v1061, 7
        %v1064 = vshll.u32 %v839, 16
        %v1066 = vor.u32 %v1063, %v1064
        %v1067 = vsel %vm847, %v1059, %v1066
        %v1068 = vrot.slane %v1063, 4
        %v1070 = vshrl.u32 %v840, 16
        %v1072 = vrot.slane %v1070, 7
        %v1073 = vshll.u32 %v840, 16
        %v1075 = vor.u32 %v1072, %v1073
        %v1076 = vrot.slane %v1072, 4
        %v1078 = vshrl.u32 %v841, 16
        %v1080 = vrot.slane %v1078, 7
        %v1081 = vshll.u32 %v841, 16
        %v1083 = vor.u32 %v1080, %v1081
        %v1084 = vsel %vm847, %v1076, %v1083
        %v1085 = vrot.slane %v1080, 4
        %v1087 = vshrl.u32 %v842, 16
        %v1089 = vrot.slane %v1087, 7
        %v1090 = vshll.u32 %v842, 16
        %v1092 = vor.u32 %v1089, %v1090
        %v1093 = vrot.slane %v1089, 4
        %v1095 = vshrl.u32 %v843, 16
        %v1097 = vrot.slane %v1095, 7
        %v1098 = vshll.u32 %v843, 16
        %v1100 = vor.u32 %v1097, %v1098
        %v1101 = vsel %vm847, %v1093, %v1100
        %v1102 = vrot.slane %v1097, 4
        %v1104 = vshrl.u32 %v844, 16
        %v1106 = vrot.slane %v1104, 7
        %v1107 = vshll.u32 %v844, 16
        %v1109 = vor.u32 %v1106, %v1107
        %v1110 = vrot.slane %v1106, 4
        %v1112 = vshrl.u32 %v845, 16
        %v1114 = vrot.slane %v1112, 7
        %v1115 = vshll.u32 %v845, 16
        %v1117 = vor.u32 %v1114, %v1115
        %v1118 = vsel %vm847, %v1110, %v1117
        %v1119 = vrot.slane %v1114, 4
        %s1168 = scalar_lea.vmem [#allocation2], 12
        %vm1169 = vcmask 257024
        %vm1170 = vmand %vm1169, %vm344
        %v1171 = vld [vmem:[%s1168] sm:$0xf]
        %v1172 = vsel %vm1170, %v854, %v1171
        %1173 = vst [vmem:[%s1168] sm:$0xf] %v1172
        %1174 = vst.msk [vmem:[%s1168 + $0x4] sm:$0xf] %vm278, %v863
        %v1175 = vld [vmem:[%s1168 + $0x8] sm:$0x1]
        %v1176 = vsel %vm289, %v864, %v1175
        %1177 = vst [vmem:[%s1168 + $0x8] sm:$0x1] %v1176
        %v1178 = vld [vmem:[%s1168 + $0xc] sm:$0xf]
        %v1179 = vsel %vm1170, %v871, %v1178
        %1180 = vst [vmem:[%s1168 + $0xc] sm:$0xf] %v1179
        %1181 = vst.msk [vmem:[%s1168 + $0x10] sm:$0xf] %vm278, %v880
        %v1182 = vld [vmem:[%s1168 + $0x14] sm:$0x1]
        %v1183 = vsel %vm289, %v881, %v1182
        %1184 = vst [vmem:[%s1168 + $0x14] sm:$0x1] %v1183
        %v1185 = vld [vmem:[%s1168 + $0x18] sm:$0xf]
        %v1186 = vsel %vm1170, %v888, %v1185
        %1187 = vst [vmem:[%s1168 + $0x18] sm:$0xf] %v1186
        %1188 = vst.msk [vmem:[%s1168 + $0x1c] sm:$0xf] %vm278, %v897
        %v1189 = vld [vmem:[%s1168 + $0x20] sm:$0x1]
        %v1190 = vsel %vm289, %v898, %v1189
        %1191 = vst [vmem:[%s1168 + $0x20] sm:$0x1] %v1190
        %v1192 = vld [vmem:[%s1168 + $0x24] sm:$0xf]
        %v1193 = vsel %vm1170, %v905, %v1192
        %1194 = vst [vmem:[%s1168 + $0x24] sm:$0xf] %v1193
        %1195 = vst.msk [vmem:[%s1168 + $0x28] sm:$0xf] %vm278, %v914
        %v1196 = vld [vmem:[%s1168 + $0x2c] sm:$0x1]
        %v1197 = vsel %vm289, %v915, %v1196
        %1198 = vst [vmem:[%s1168 + $0x2c] sm:$0x1] %v1197
        %v1199 = vld [vmem:[%s1168 + $0x30] sm:$0xf]
        %v1200 = vsel %vm1170, %v922, %v1199
        %1201 = vst [vmem:[%s1168 + $0x30] sm:$0xf] %v1200
        %1202 = vst.msk [vmem:[%s1168 + $0x34] sm:$0xf] %vm278, %v931
        %v1203 = vld [vmem:[%s1168 + $0x38] sm:$0x1]
        %v1204 = vsel %vm289, %v932, %v1203
        %1205 = vst [vmem:[%s1168 + $0x38] sm:$0x1] %v1204
        %v1206 = vld [vmem:[%s1168 + $0x3c] sm:$0xf]
        %v1207 = vsel %vm1170, %v939, %v1206
        %1208 = vst [vmem:[%s1168 + $0x3c] sm:$0xf] %v1207
        %1209 = vst.msk [vmem:[%s1168 + $0x40] sm:$0xf] %vm278, %v948
        %v1210 = vld [vmem:[%s1168 + $0x44] sm:$0x1]
        %v1211 = vsel %vm289, %v949, %v1210
        %1212 = vst [vmem:[%s1168 + $0x44] sm:$0x1] %v1211
        %v1213 = vld [vmem:[%s1168 + $0x48] sm:$0xf]
        %v1214 = vsel %vm1170, %v956, %v1213
        %1215 = vst [vmem:[%s1168 + $0x48] sm:$0xf] %v1214
        %1216 = vst.msk [vmem:[%s1168 + $0x4c] sm:$0xf] %vm278, %v965
        %v1217 = vld [vmem:[%s1168 + $0x50] sm:$0x1]
        %v1218 = vsel %vm289, %v966, %v1217
        %1219 = vst [vmem:[%s1168 + $0x50] sm:$0x1] %v1218
        %v1220 = vld [vmem:[%s1168 + $0x54] sm:$0xf]
        %v1221 = vsel %vm1170, %v973, %v1220
        %1222 = vst [vmem:[%s1168 + $0x54] sm:$0xf] %v1221
        %1223 = vst.msk [vmem:[%s1168 + $0x58] sm:$0xf] %vm278, %v982
        %v1224 = vld [vmem:[%s1168 + $0x5c] sm:$0x1]
        %v1225 = vsel %vm289, %v983, %v1224
        %1226 = vst [vmem:[%s1168 + $0x5c] sm:$0x1] %v1225
        %v1227 = vld [vmem:[%s1168 + $0x60] sm:$0xf]
        %v1228 = vsel %vm1170, %v990, %v1227
        %1229 = vst [vmem:[%s1168 + $0x60] sm:$0xf] %v1228
        %1230 = vst.msk [vmem:[%s1168 + $0x64] sm:$0xf] %vm278, %v999
        %v1231 = vld [vmem:[%s1168 + $0x68] sm:$0x1]
        %v1232 = vsel %vm289, %v1000, %v1231
        %1233 = vst [vmem:[%s1168 + $0x68] sm:$0x1] %v1232
        %v1234 = vld [vmem:[%s1168 + $0x6c] sm:$0xf]
        %v1235 = vsel %vm1170, %v1007, %v1234
        %1236 = vst [vmem:[%s1168 + $0x6c] sm:$0xf] %v1235
        %1237 = vst.msk [vmem:[%s1168 + $0x70] sm:$0xf] %vm278, %v1016
        %v1238 = vld [vmem:[%s1168 + $0x74] sm:$0x1]
        %v1239 = vsel %vm289, %v1017, %v1238
        %1240 = vst [vmem:[%s1168 + $0x74] sm:$0x1] %v1239
        %v1241 = vld [vmem:[%s1168 + $0x78] sm:$0xf]
        %v1242 = vsel %vm1170, %v1024, %v1241
        %1243 = vst [vmem:[%s1168 + $0x78] sm:$0xf] %v1242
        %1244 = vst.msk [vmem:[%s1168 + $0x7c] sm:$0xf] %vm278, %v1033
        %v1245 = vld [vmem:[%s1168 + $0x80] sm:$0x1]
        %v1246 = vsel %vm289, %v1034, %v1245
        %1247 = vst [vmem:[%s1168 + $0x80] sm:$0x1] %v1246
        %v1248 = vld [vmem:[%s1168 + $0x84] sm:$0xf]
        %v1249 = vsel %vm1170, %v1041, %v1248
        %1250 = vst [vmem:[%s1168 + $0x84] sm:$0xf] %v1249
        %1251 = vst.msk [vmem:[%s1168 + $0x88] sm:$0xf] %vm278, %v1050
        %v1252 = vld [vmem:[%s1168 + $0x8c] sm:$0x1]
        %v1253 = vsel %vm289, %v1051, %v1252
        %1254 = vst [vmem:[%s1168 + $0x8c] sm:$0x1] %v1253
        %v1255 = vld [vmem:[%s1168 + $0x90] sm:$0xf]
        %v1256 = vsel %vm1170, %v1058, %v1255
        %1257 = vst [vmem:[%s1168 + $0x90] sm:$0xf] %v1256
        %1258 = vst.msk [vmem:[%s1168 + $0x94] sm:$0xf] %vm278, %v1067
        %v1259 = vld [vmem:[%s1168 + $0x98] sm:$0x1]
        %v1260 = vsel %vm289, %v1068, %v1259
        %1261 = vst [vmem:[%s1168 + $0x98] sm:$0x1] %v1260
        %v1262 = vld [vmem:[%s1168 + $0x9c] sm:$0xf]
        %v1263 = vsel %vm1170, %v1075, %v1262
        %1264 = vst [vmem:[%s1168 + $0x9c] sm:$0xf] %v1263
        %1265 = vst.msk [vmem:[%s1168 + $0xa0] sm:$0xf] %vm278, %v1084
        %v1266 = vld [vmem:[%s1168 + $0xa4] sm:$0x1]
        %v1267 = vsel %vm289, %v1085, %v1266
        %1268 = vst [vmem:[%s1168 + $0xa4] sm:$0x1] %v1267
        %v1269 = vld [vmem:[%s1168 + $0xa8] sm:$0xf]
        %v1270 = vsel %vm1170, %v1092, %v1269
        %1271 = vst [vmem:[%s1168 + $0xa8] sm:$0xf] %v1270
        %1272 = vst.msk [vmem:[%s1168 + $0xac] sm:$0xf] %vm278, %v1101
        %v1273 = vld [vmem:[%s1168 + $0xb0] sm:$0x1]
        %v1274 = vsel %vm289, %v1102, %v1273
        %1275 = vst [vmem:[%s1168 + $0xb0] sm:$0x1] %v1274
        %v1276 = vld [vmem:[%s1168 + $0xb4] sm:$0xf]
        %v1277 = vsel %vm1170, %v1109, %v1276
        %1278 = vst [vmem:[%s1168 + $0xb4] sm:$0xf] %v1277
        %1279 = vst.msk [vmem:[%s1168 + $0xb8] sm:$0xf] %vm278, %v1118
        %v1280 = vld [vmem:[%s1168 + $0xbc] sm:$0x1]
        %v1281 = vsel %vm289, %v1119, %v1280
        %1282 = vst [vmem:[%s1168 + $0xbc] sm:$0x1] %v1281
        %v1283 = vld [vmem:[%s4] sm:$0x1]
        %v1285 = vperm.slane %v1283, 0
        %v1287 = vld [vmem:[#allocation2] sm:$0xf]
        %v1288 = vld [vmem:[#allocation2 + $0x4] sm:$0xf]
        %v1289 = vld [vmem:[#allocation2 + $0xc] sm:$0xf]
        %v1290 = vld [vmem:[#allocation2 + $0x10] sm:$0xf]
        %v1291 = vld [vmem:[#allocation2 + $0x18] sm:$0xf]
        %v1292 = vld [vmem:[#allocation2 + $0x1c] sm:$0xf]
        %v1293 = vld [vmem:[#allocation2 + $0x24] sm:$0xf]
        %v1294 = vld [vmem:[#allocation2 + $0x28] sm:$0xf]
        %v1295 = vld [vmem:[#allocation2 + $0x30] sm:$0xf]
        %v1296 = vld [vmem:[#allocation2 + $0x34] sm:$0xf]
        %v1297 = vld [vmem:[#allocation2 + $0x3c] sm:$0xf]
        %v1298 = vld [vmem:[#allocation2 + $0x40] sm:$0xf]
        %v1299 = vld [vmem:[#allocation2 + $0x48] sm:$0xf]
        %v1300 = vld [vmem:[#allocation2 + $0x4c] sm:$0xf]
        %v1301 = vld [vmem:[#allocation2 + $0x54] sm:$0xf]
        %v1302 = vld [vmem:[#allocation2 + $0x58] sm:$0xf]
        %v1303 = vld [vmem:[#allocation2 + $0x60] sm:$0xf]
        %v1304 = vld [vmem:[#allocation2 + $0x64] sm:$0xf]
        %v1305 = vld [vmem:[#allocation2 + $0x6c] sm:$0xf]
        %v1306 = vld [vmem:[#allocation2 + $0x70] sm:$0xf]
        %v1307 = vld [vmem:[#allocation2 + $0x78] sm:$0xf]
        %v1308 = vld [vmem:[#allocation2 + $0x7c] sm:$0xf]
        %v1309 = vld [vmem:[#allocation2 + $0x84] sm:$0xf]
        %v1310 = vld [vmem:[#allocation2 + $0x88] sm:$0xf]
        %v1311 = vld [vmem:[#allocation2 + $0x90] sm:$0xf]
        %v1312 = vld [vmem:[#allocation2 + $0x94] sm:$0xf]
        %v1313 = vld [vmem:[#allocation2 + $0x9c] sm:$0xf]
        %v1314 = vld [vmem:[#allocation2 + $0xa0] sm:$0xf]
        %v1315 = vld [vmem:[#allocation2 + $0xa8] sm:$0xf]
        %v1316 = vld [vmem:[#allocation2 + $0xac] sm:$0xf]
        %v1317 = vld [vmem:[#allocation2 + $0xb4] sm:$0xf]
        %v1318 = vld [vmem:[#allocation2 + $0xb8] sm:$0xf]
        %v1319 = vld [vmem:[%s3] sm:$0xf]
        %v1320 = vld [vmem:[%s3 + $0x4] sm:$0xf]
        %v1321 = vld [vmem:[%s3 + $0x8] sm:$0xf]
        %v1322 = vld [vmem:[%s3 + $0xc] sm:$0xf]
        %v1355 = vunpack.c.l.b16 %v1287
        %v1356 = vunpack.c.l.b16 %v1288
        %v1357 = vunpack.c.l.b16 %v1289
        %v1358 = vunpack.c.l.b16 %v1290
        %v1359 = vunpack.c.l.b16 %v1291
        %v1360 = vunpack.c.l.b16 %v1292
        %v1361 = vunpack.c.l.b16 %v1293
        %v1362 = vunpack.c.l.b16 %v1294
        %v1363 = vunpack.c.l.b16 %v1295
        %v1364 = vunpack.c.l.b16 %v1296
        %v1365 = vunpack.c.l.b16 %v1297
        %v1366 = vunpack.c.l.b16 %v1298
        %v1367 = vunpack.c.l.b16 %v1299
        %v1368 = vunpack.c.l.b16 %v1300
        %v1369 = vunpack.c.l.b16 %v1301
        %v1370 = vunpack.c.l.b16 %v1302
        %v1371 = vunpack.c.l.b16 %v1303
        %v1372 = vunpack.c.l.b16 %v1304
        %v1373 = vunpack.c.l.b16 %v1305
        %v1374 = vunpack.c.l.b16 %v1306
        %v1375 = vunpack.c.l.b16 %v1307
        %v1376 = vunpack.c.l.b16 %v1308
        %v1377 = vunpack.c.l.b16 %v1309
        %v1378 = vunpack.c.l.b16 %v1310
        %v1379 = vunpack.c.l.b16 %v1311
        %v1380 = vunpack.c.l.b16 %v1312
        %v1381 = vunpack.c.l.b16 %v1313
        %v1382 = vunpack.c.l.b16 %v1314
        %v1383 = vunpack.c.l.b16 %v1315
        %v1384 = vunpack.c.l.b16 %v1316
        %v1385 = vunpack.c.l.b16 %v1317
        %v1386 = vunpack.c.l.b16 %v1318
        %v1387 = vpack.c.b16 %v1356, %v1355
        %v1388 = vpack.c.b16 %v1358, %v1357
        %v1389 = vpack.c.b16 %v1360, %v1359
        %v1390 = vpack.c.b16 %v1362, %v1361
        %v1391 = vpack.c.b16 %v1364, %v1363
        %v1392 = vpack.c.b16 %v1366, %v1365
        %v1393 = vpack.c.b16 %v1368, %v1367
        %v1394 = vpack.c.b16 %v1370, %v1369
        %v1395 = vpack.c.b16 %v1372, %v1371
        %v1396 = vpack.c.b16 %v1374, %v1373
        %v1397 = vpack.c.b16 %v1376, %v1375
        %v1398 = vpack.c.b16 %v1378, %v1377
        %v1399 = vpack.c.b16 %v1380, %v1379
        %v1400 = vpack.c.b16 %v1382, %v1381
        %v1401 = vpack.c.b16 %v1384, %v1383
        %v1402 = vpack.c.b16 %v1386, %v1385
        %v1407 = vunpack.c.l.b16 %v1319
        %v1408 = vunpack.c.l.b16 %v1320
        %v1409 = vunpack.c.l.b16 %v1321
        %v1410 = vunpack.c.l.b16 %v1322
        %v1411 = vpack.c.b16 %v1408, %v1407
        %v1412 = vpack.c.b16 %v1410, %v1409
        %vm1415 = vcmask 261120
        %v1417 = vsel %vm1415, %v1387, 0
        %v1420 = vsel %vm1415, %v1388, 0
        %v1423 = vsel %vm1415, %v1389, 0
        %v1426 = vsel %vm1415, %v1390, 0
        %v1429 = vsel %vm1415, %v1391, 0
        %v1432 = vsel %vm1415, %v1392, 0
        %v1435 = vsel %vm1415, %v1393, 0
        %v1438 = vsel %vm1415, %v1394, 0
        %v1441 = vsel %vm1415, %v1395, 0
        %v1444 = vsel %vm1415, %v1396, 0
        %v1447 = vsel %vm1415, %v1397, 0
        %v1450 = vsel %vm1415, %v1398, 0
        %v1453 = vsel %vm1415, %v1399, 0
        %v1456 = vsel %vm1415, %v1400, 0
        %v1459 = vsel %vm1415, %v1401, 0
        %v1462 = vsel %vm1415, %v1402, 0
        %1464 = vmatpush.bf16.msra.mxu0 0
        %1465 = vmatpush.bf16.msra.mxu0 0
        %1466 = vmatpush.bf16.msra.mxu0 0
        %1467 = vmatpush.bf16.msra.mxu0 0
        %1468 = vmatpush.bf16.msra.mxu0 0
        %1469 = vmatpush.bf16.msra.mxu0 0
        %1470 = vmatpush.bf16.msra.mxu0 %v1412
        %1471 = vmatpush.bf16.msra.mxu0 %v1411
        %1472 = vmatmul.bf16.gmra.mxu0 %v1417
        %v1473 = vpop.f32.mrf.mxu0
        %v1474 = vadd.f32 0.0, %v1473
        %v1475 = vpop.f32.mrf.mxu0
        %v1476 = vadd.f32 0.0, %v1475
        %1477 = vmatmul.bf16.gmra.mxu0 %v1420
        %v1478 = vpop.f32.mrf.mxu0
        %v1479 = vadd.f32 0.0, %v1478
        %v1480 = vpop.f32.mrf.mxu0
        %v1481 = vadd.f32 0.0, %v1480
        %1482 = vmatmul.bf16.gmra.mxu0 %v1423
        %v1483 = vpop.f32.mrf.mxu0
        %v1484 = vadd.f32 0.0, %v1483
        %v1485 = vpop.f32.mrf.mxu0
        %v1486 = vadd.f32 0.0, %v1485
        %1487 = vmatmul.bf16.gmra.mxu0 %v1426
        %v1488 = vpop.f32.mrf.mxu0
        %v1489 = vadd.f32 0.0, %v1488
        %v1490 = vpop.f32.mrf.mxu0
        %v1491 = vadd.f32 0.0, %v1490
        %1492 = vmatmul.bf16.gmra.mxu0 %v1429
        %v1493 = vpop.f32.mrf.mxu0
        %v1494 = vadd.f32 0.0, %v1493
        %v1495 = vpop.f32.mrf.mxu0
        %v1496 = vadd.f32 0.0, %v1495
        %1497 = vmatmul.bf16.gmra.mxu0 %v1432
        %v1498 = vpop.f32.mrf.mxu0
        %v1499 = vadd.f32 0.0, %v1498
        %v1500 = vpop.f32.mrf.mxu0
        %v1501 = vadd.f32 0.0, %v1500
        %1502 = vmatmul.bf16.gmra.mxu0 %v1435
        %v1503 = vpop.f32.mrf.mxu0
        %v1504 = vadd.f32 0.0, %v1503
        %v1505 = vpop.f32.mrf.mxu0
        %v1506 = vadd.f32 0.0, %v1505
        %1507 = vmatmul.bf16.gmra.mxu0 %v1438
        %v1508 = vpop.f32.mrf.mxu0
        %v1509 = vadd.f32 0.0, %v1508
        %v1510 = vpop.f32.mrf.mxu0
        %v1511 = vadd.f32 0.0, %v1510
        %1512 = vmatmul.bf16.gmra.mxu0 %v1441
        %v1513 = vpop.f32.mrf.mxu0
        %v1514 = vadd.f32 0.0, %v1513
        %v1515 = vpop.f32.mrf.mxu0
        %v1516 = vadd.f32 0.0, %v1515
        %1517 = vmatmul.bf16.gmra.mxu0 %v1444
        %v1518 = vpop.f32.mrf.mxu0
        %v1519 = vadd.f32 0.0, %v1518
        %v1520 = vpop.f32.mrf.mxu0
        %v1521 = vadd.f32 0.0, %v1520
        %1522 = vmatmul.bf16.gmra.mxu0 %v1447
        %v1523 = vpop.f32.mrf.mxu0
        %v1524 = vadd.f32 0.0, %v1523
        %v1525 = vpop.f32.mrf.mxu0
        %v1526 = vadd.f32 0.0, %v1525
        %1527 = vmatmul.bf16.gmra.mxu0 %v1450
        %v1528 = vpop.f32.mrf.mxu0
        %v1529 = vadd.f32 0.0, %v1528
        %v1530 = vpop.f32.mrf.mxu0
        %v1531 = vadd.f32 0.0, %v1530
        %1532 = vmatmul.bf16.gmra.mxu0 %v1453
        %v1533 = vpop.f32.mrf.mxu0
        %v1534 = vadd.f32 0.0, %v1533
        %v1535 = vpop.f32.mrf.mxu0
        %v1536 = vadd.f32 0.0, %v1535
        %1537 = vmatmul.bf16.gmra.mxu0 %v1456
        %v1538 = vpop.f32.mrf.mxu0
        %v1539 = vadd.f32 0.0, %v1538
        %v1540 = vpop.f32.mrf.mxu0
        %v1541 = vadd.f32 0.0, %v1540
        %1542 = vmatmul.bf16.gmra.mxu0 %v1459
        %v1543 = vpop.f32.mrf.mxu0
        %v1544 = vadd.f32 0.0, %v1543
        %v1545 = vpop.f32.mrf.mxu0
        %v1546 = vadd.f32 0.0, %v1545
        %1547 = vmatmul.bf16.gmra.mxu0 %v1462
        %v1548 = vpop.f32.mrf.mxu0
        %v1549 = vadd.f32 0.0, %v1548
        %v1550 = vpop.f32.mrf.mxu0
        %v1551 = vadd.f32 0.0, %v1550
        %1552 = vdwg.mxu0
        %v1553 = vadd.f32 %v1285, %v1474
        %v1554 = vadd.f32 %v1285, %v1476
        %v1555 = vadd.f32 %v1285, %v1479
        %v1556 = vadd.f32 %v1285, %v1481
        %v1557 = vadd.f32 %v1285, %v1484
        %v1558 = vadd.f32 %v1285, %v1486
        %v1559 = vadd.f32 %v1285, %v1489
        %v1560 = vadd.f32 %v1285, %v1491
        %v1561 = vadd.f32 %v1285, %v1494
        %v1562 = vadd.f32 %v1285, %v1496
        %v1563 = vadd.f32 %v1285, %v1499
        %v1564 = vadd.f32 %v1285, %v1501
        %v1565 = vadd.f32 %v1285, %v1504
        %v1566 = vadd.f32 %v1285, %v1506
        %v1567 = vadd.f32 %v1285, %v1509
        %v1568 = vadd.f32 %v1285, %v1511
        %v1569 = vadd.f32 %v1285, %v1514
        %v1570 = vadd.f32 %v1285, %v1516
        %v1571 = vadd.f32 %v1285, %v1519
        %v1572 = vadd.f32 %v1285, %v1521
        %v1573 = vadd.f32 %v1285, %v1524
        %v1574 = vadd.f32 %v1285, %v1526
        %v1575 = vadd.f32 %v1285, %v1529
        %v1576 = vadd.f32 %v1285, %v1531
        %v1577 = vadd.f32 %v1285, %v1534
        %v1578 = vadd.f32 %v1285, %v1536
        %v1579 = vadd.f32 %v1285, %v1539
        %v1580 = vadd.f32 %v1285, %v1541
        %v1581 = vadd.f32 %v1285, %v1544
        %v1582 = vadd.f32 %v1285, %v1546
        %v1583 = vadd.f32 %v1285, %v1549
        %v1584 = vadd.f32 %v1285, %v1551
        %v1585 = vld [vmem:[#allocation2] sm:$0xf]
        %v1586 = vld [vmem:[#allocation2 + $0x4] sm:$0xf]
        %v1587 = vld [vmem:[#allocation2 + $0x8] sm:$0x1]
        %v1588 = vld [vmem:[#allocation2 + $0xc] sm:$0xf]
        %v1589 = vld [vmem:[#allocation2 + $0x10] sm:$0xf]
        %v1590 = vld [vmem:[#allocation2 + $0x14] sm:$0x1]
        %v1591 = vld [vmem:[#allocation2 + $0x18] sm:$0xf]
        %v1592 = vld [vmem:[#allocation2 + $0x1c] sm:$0xf]
        %v1593 = vld [vmem:[#allocation2 + $0x20] sm:$0x1]
        %v1594 = vld [vmem:[#allocation2 + $0x24] sm:$0xf]
        %v1595 = vld [vmem:[#allocation2 + $0x28] sm:$0xf]
        %v1596 = vld [vmem:[#allocation2 + $0x2c] sm:$0x1]
        %v1597 = vld [vmem:[#allocation2 + $0x30] sm:$0xf]
        %v1598 = vld [vmem:[#allocation2 + $0x34] sm:$0xf]
        %v1599 = vld [vmem:[#allocation2 + $0x38] sm:$0x1]
        %v1600 = vld [vmem:[#allocation2 + $0x3c] sm:$0xf]
        %v1601 = vld [vmem:[#allocation2 + $0x40] sm:$0xf]
        %v1602 = vld [vmem:[#allocation2 + $0x44] sm:$0x1]
        %v1603 = vld [vmem:[#allocation2 + $0x48] sm:$0xf]
        %v1604 = vld [vmem:[#allocation2 + $0x4c] sm:$0xf]
        %v1605 = vld [vmem:[#allocation2 + $0x50] sm:$0x1]
        %v1606 = vld [vmem:[#allocation2 + $0x54] sm:$0xf]
        %v1607 = vld [vmem:[#allocation2 + $0x58] sm:$0xf]
        %v1608 = vld [vmem:[#allocation2 + $0x5c] sm:$0x1]
        %v1609 = vld [vmem:[#allocation2 + $0x60] sm:$0xf]
        %v1610 = vld [vmem:[#allocation2 + $0x64] sm:$0xf]
        %v1611 = vld [vmem:[#allocation2 + $0x68] sm:$0x1]
        %v1612 = vld [vmem:[#allocation2 + $0x6c] sm:$0xf]
        %v1613 = vld [vmem:[#allocation2 + $0x70] sm:$0xf]
        %v1614 = vld [vmem:[#allocation2 + $0x74] sm:$0x1]
        %v1615 = vld [vmem:[#allocation2 + $0x78] sm:$0xf]
        %v1616 = vld [vmem:[#allocation2 + $0x7c] sm:$0xf]
        %v1617 = vld [vmem:[#allocation2 + $0x80] sm:$0x1]
        %v1618 = vld [vmem:[#allocation2 + $0x84] sm:$0xf]
        %v1619 = vld [vmem:[#allocation2 + $0x88] sm:$0xf]
        %v1620 = vld [vmem:[#allocation2 + $0x8c] sm:$0x1]
        %v1621 = vld [vmem:[#allocation2 + $0x90] sm:$0xf]
        %v1622 = vld [vmem:[#allocation2 + $0x94] sm:$0xf]
        %v1623 = vld [vmem:[#allocation2 + $0x98] sm:$0x1]
        %v1624 = vld [vmem:[#allocation2 + $0x9c] sm:$0xf]
        %v1625 = vld [vmem:[#allocation2 + $0xa0] sm:$0xf]
        %v1626 = vld [vmem:[#allocation2 + $0xa4] sm:$0x1]
        %v1627 = vld [vmem:[#allocation2 + $0xa8] sm:$0xf]
        %v1628 = vld [vmem:[#allocation2 + $0xac] sm:$0xf]
        %v1629 = vld [vmem:[#allocation2 + $0xb0] sm:$0x1]
        %v1630 = vld [vmem:[#allocation2 + $0xb4] sm:$0xf]
        %v1631 = vld [vmem:[#allocation2 + $0xb8] sm:$0xf]
        %v1632 = vld [vmem:[#allocation2 + $0xbc] sm:$0x1]
        %vm1633 = vsmask.f32 3328
        %vm1634 = vsmask.f32 7440
        %vm1635 = vmor %vm1633, %vm1634
        %v1637 = vshrl.u32 %v1585, 16
        %v1639 = vrot.slane %v1637, 4
        %v1640 = vshll.u32 %v1585, 16
        %v1642 = vrot.slane %v1640, 5
        %v1643 = vor.u32 %v1639, %v1642
        %v1644 = vrot.slane %v1643, 4
        %v1646 = vshll.u32 %v1586, 16
        %v1648 = vrot.slane %v1646, 5
        %v1649 = vsel %vm1635, %v1644, %v1648
        %v1650 = vshrl.u32 %v1586, 16
        %v1652 = vrot.slane %v1650, 4
        %v1653 = vor.u32 %v1652, %v1648
        %v1654 = vrot.slane %v1653, 4
        %v1656 = vshll.u32 %v1587, 16
        %v1658 = vrot.slane %v1656, 5
        %v1659 = vsel %vm1635, %v1654, %v1658
        %v1661 = vshrl.u32 %v1588, 16
        %v1663 = vrot.slane %v1661, 4
        %v1664 = vshll.u32 %v1588, 16
        %v1666 = vrot.slane %v1664, 5
        %v1667 = vor.u32 %v1663, %v1666
        %v1668 = vrot.slane %v1667, 4
        %v1670 = vshll.u32 %v1589, 16
        %v1672 = vrot.slane %v1670, 5
        %v1673 = vsel %vm1635, %v1668, %v1672
        %v1674 = vshrl.u32 %v1589, 16
        %v1676 = vrot.slane %v1674, 4
        %v1677 = vor.u32 %v1676, %v1672
        %v1678 = vrot.slane %v1677, 4
        %v1680 = vshll.u32 %v1590, 16
        %v1682 = vrot.slane %v1680, 5
        %v1683 = vsel %vm1635, %v1678, %v1682
        %v1685 = vshrl.u32 %v1591, 16
        %v1687 = vrot.slane %v1685, 4
        %v1688 = vshll.u32 %v1591, 16
        %v1690 = vrot.slane %v1688, 5
        %v1691 = vor.u32 %v1687, %v1690
        %v1692 = vrot.slane %v1691, 4
        %v1694 = vshll.u32 %v1592, 16
        %v1696 = vrot.slane %v1694, 5
        %v1697 = vsel %vm1635, %v1692, %v1696
        %v1698 = vshrl.u32 %v1592, 16
        %v1700 = vrot.slane %v1698, 4
        %v1701 = vor.u32 %v1700, %v1696
        %v1702 = vrot.slane %v1701, 4
        %v1704 = vshll.u32 %v1593, 16
        %v1706 = vrot.slane %v1704, 5
        %v1707 = vsel %vm1635, %v1702, %v1706
        %v1709 = vshrl.u32 %v1594, 16
        %v1711 = vrot.slane %v1709, 4
        %v1712 = vshll.u32 %v1594, 16
        %v1714 = vrot.slane %v1712, 5
        %v1715 = vor.u32 %v1711, %v1714
        %v1716 = vrot.slane %v1715, 4
        %v1718 = vshll.u32 %v1595, 16
        %v1720 = vrot.slane %v1718, 5
        %v1721 = vsel %vm1635, %v1716, %v1720
        %v1722 = vshrl.u32 %v1595, 16
        %v1724 = vrot.slane %v1722, 4
        %v1725 = vor.u32 %v1724, %v1720
        %v1726 = vrot.slane %v1725, 4
        %v1728 = vshll.u32 %v1596, 16
        %v1730 = vrot.slane %v1728, 5
        %v1731 = vsel %vm1635, %v1726, %v1730
        %v1733 = vshrl.u32 %v1597, 16
        %v1735 = vrot.slane %v1733, 4
        %v1736 = vshll.u32 %v1597, 16
        %v1738 = vrot.slane %v1736, 5
        %v1739 = vor.u32 %v1735, %v1738
        %v1740 = vrot.slane %v1739, 4
        %v1742 = vshll.u32 %v1598, 16
        %v1744 = vrot.slane %v1742, 5
        %v1745 = vsel %vm1635, %v1740, %v1744
        %v1746 = vshrl.u32 %v1598, 16
        %v1748 = vrot.slane %v1746, 4
        %v1749 = vor.u32 %v1748, %v1744
        %v1750 = vrot.slane %v1749, 4
        %v1752 = vshll.u32 %v1599, 16
        %v1754 = vrot.slane %v1752, 5
        %v1755 = vsel %vm1635, %v1750, %v1754
        %v1757 = vshrl.u32 %v1600, 16
        %v1759 = vrot.slane %v1757, 4
        %v1760 = vshll.u32 %v1600, 16
        %v1762 = vrot.slane %v1760, 5
        %v1763 = vor.u32 %v1759, %v1762
        %v1764 = vrot.slane %v1763, 4
        %v1766 = vshll.u32 %v1601, 16
        %v1768 = vrot.slane %v1766, 5
        %v1769 = vsel %vm1635, %v1764, %v1768
        %v1770 = vshrl.u32 %v1601, 16
        %v1772 = vrot.slane %v1770, 4
        %v1773 = vor.u32 %v1772, %v1768
        %v1774 = vrot.slane %v1773, 4
        %v1776 = vshll.u32 %v1602, 16
        %v1778 = vrot.slane %v1776, 5
        %v1779 = vsel %vm1635, %v1774, %v1778
        %v1781 = vshrl.u32 %v1603, 16
        %v1783 = vrot.slane %v1781, 4
        %v1784 = vshll.u32 %v1603, 16
        %v1786 = vrot.slane %v1784, 5
        %v1787 = vor.u32 %v1783, %v1786
        %v1788 = vrot.slane %v1787, 4
        %v1790 = vshll.u32 %v1604, 16
        %v1792 = vrot.slane %v1790, 5
        %v1793 = vsel %vm1635, %v1788, %v1792
        %v1794 = vshrl.u32 %v1604, 16
        %v1796 = vrot.slane %v1794, 4
        %v1797 = vor.u32 %v1796, %v1792
        %v1798 = vrot.slane %v1797, 4
        %v1800 = vshll.u32 %v1605, 16
        %v1802 = vrot.slane %v1800, 5
        %v1803 = vsel %vm1635, %v1798, %v1802
        %v1805 = vshrl.u32 %v1606, 16
        %v1807 = vrot.slane %v1805, 4
        %v1808 = vshll.u32 %v1606, 16
        %v1810 = vrot.slane %v1808, 5
        %v1811 = vor.u32 %v1807, %v1810
        %v1812 = vrot.slane %v1811, 4
        %v1814 = vshll.u32 %v1607, 16
        %v1816 = vrot.slane %v1814, 5
        %v1817 = vsel %vm1635, %v1812, %v1816
        %v1818 = vshrl.u32 %v1607, 16
        %v1820 = vrot.slane %v1818, 4
        %v1821 = vor.u32 %v1820, %v1816
        %v1822 = vrot.slane %v1821, 4
        %v1824 = vshll.u32 %v1608, 16
        %v1826 = vrot.slane %v1824, 5
        %v1827 = vsel %vm1635, %v1822, %v1826
        %v1829 = vshrl.u32 %v1609, 16
        %v1831 = vrot.slane %v1829, 4
        %v1832 = vshll.u32 %v1609, 16
        %v1834 = vrot.slane %v1832, 5
        %v1835 = vor.u32 %v1831, %v1834
        %v1836 = vrot.slane %v1835, 4
        %v1838 = vshll.u32 %v1610, 16
        %v1840 = vrot.slane %v1838, 5
        %v1841 = vsel %vm1635, %v1836, %v1840
        %v1842 = vshrl.u32 %v1610, 16
        %v1844 = vrot.slane %v1842, 4
        %v1845 = vor.u32 %v1844, %v1840
        %v1846 = vrot.slane %v1845, 4
        %v1848 = vshll.u32 %v1611, 16
        %v1850 = vrot.slane %v1848, 5
        %v1851 = vsel %vm1635, %v1846, %v1850
        %v1853 = vshrl.u32 %v1612, 16
        %v1855 = vrot.slane %v1853, 4
        %v1856 = vshll.u32 %v1612, 16
        %v1858 = vrot.slane %v1856, 5
        %v1859 = vor.u32 %v1855, %v1858
        %v1860 = vrot.slane %v1859, 4
        %v1862 = vshll.u32 %v1613, 16
        %v1864 = vrot.slane %v1862, 5
        %v1865 = vsel %vm1635, %v1860, %v1864
        %v1866 = vshrl.u32 %v1613, 16
        %v1868 = vrot.slane %v1866, 4
        %v1869 = vor.u32 %v1868, %v1864
        %v1870 = vrot.slane %v1869, 4
        %v1872 = vshll.u32 %v1614, 16
        %v1874 = vrot.slane %v1872, 5
        %v1875 = vsel %vm1635, %v1870, %v1874
        %v1877 = vshrl.u32 %v1615, 16
        %v1879 = vrot.slane %v1877, 4
        %v1880 = vshll.u32 %v1615, 16
        %v1882 = vrot.slane %v1880, 5
        %v1883 = vor.u32 %v1879, %v1882
        %v1884 = vrot.slane %v1883, 4
        %v1886 = vshll.u32 %v1616, 16
        %v1888 = vrot.slane %v1886, 5
        %v1889 = vsel %vm1635, %v1884, %v1888
        %v1890 = vshrl.u32 %v1616, 16
        %v1892 = vrot.slane %v1890, 4
        %v1893 = vor.u32 %v1892, %v1888
        %v1894 = vrot.slane %v1893, 4
        %v1896 = vshll.u32 %v1617, 16
        %v1898 = vrot.slane %v1896, 5
        %v1899 = vsel %vm1635, %v1894, %v1898
        %v1901 = vshrl.u32 %v1618, 16
        %v1903 = vrot.slane %v1901, 4
        %v1904 = vshll.u32 %v1618, 16
        %v1906 = vrot.slane %v1904, 5
        %v1907 = vor.u32 %v1903, %v1906
        %v1908 = vrot.slane %v1907, 4
        %v1910 = vshll.u32 %v1619, 16
        %v1912 = vrot.slane %v1910, 5
        %v1913 = vsel %vm1635, %v1908, %v1912
        %v1914 = vshrl.u32 %v1619, 16
        %v1916 = vrot.slane %v1914, 4
        %v1917 = vor.u32 %v1916, %v1912
        %v1918 = vrot.slane %v1917, 4
        %v1920 = vshll.u32 %v1620, 16
        %v1922 = vrot.slane %v1920, 5
        %v1923 = vsel %vm1635, %v1918, %v1922
        %v1925 = vshrl.u32 %v1621, 16
        %v1927 = vrot.slane %v1925, 4
        %v1928 = vshll.u32 %v1621, 16
        %v1930 = vrot.slane %v1928, 5
        %v1931 = vor.u32 %v1927, %v1930
        %v1932 = vrot.slane %v1931, 4
        %v1934 = vshll.u32 %v1622, 16
        %v1936 = vrot.slane %v1934, 5
        %v1937 = vsel %vm1635, %v1932, %v1936
        %v1938 = vshrl.u32 %v1622, 16
        %v1940 = vrot.slane %v1938, 4
        %v1941 = vor.u32 %v1940, %v1936
        %v1942 = vrot.slane %v1941, 4
        %v1944 = vshll.u32 %v1623, 16
        %v1946 = vrot.slane %v1944, 5
        %v1947 = vsel %vm1635, %v1942, %v1946
        %v1949 = vshrl.u32 %v1624, 16
        %v1951 = vrot.slane %v1949, 4
        %v1952 = vshll.u32 %v1624, 16
        %v1954 = vrot.slane %v1952, 5
        %v1955 = vor.u32 %v1951, %v1954
        %v1956 = vrot.slane %v1955, 4
        %v1958 = vshll.u32 %v1625, 16
        %v1960 = vrot.slane %v1958, 5
        %v1961 = vsel %vm1635, %v1956, %v1960
        %v1962 = vshrl.u32 %v1625, 16
        %v1964 = vrot.slane %v1962, 4
        %v1965 = vor.u32 %v1964, %v1960
        %v1966 = vrot.slane %v1965, 4
        %v1968 = vshll.u32 %v1626, 16
        %v1970 = vrot.slane %v1968, 5
        %v1971 = vsel %vm1635, %v1966, %v1970
        %v1973 = vshrl.u32 %v1627, 16
        %v1975 = vrot.slane %v1973, 4
        %v1976 = vshll.u32 %v1627, 16
        %v1978 = vrot.slane %v1976, 5
        %v1979 = vor.u32 %v1975, %v1978
        %v1980 = vrot.slane %v1979, 4
        %v1982 = vshll.u32 %v1628, 16
        %v1984 = vrot.slane %v1982, 5
        %v1985 = vsel %vm1635, %v1980, %v1984
        %v1986 = vshrl.u32 %v1628, 16
        %v1988 = vrot.slane %v1986, 4
        %v1989 = vor.u32 %v1988, %v1984
        %v1990 = vrot.slane %v1989, 4
        %v1992 = vshll.u32 %v1629, 16
        %v1994 = vrot.slane %v1992, 5
        %v1995 = vsel %vm1635, %v1990, %v1994
        %v1997 = vshrl.u32 %v1630, 16
        %v1999 = vrot.slane %v1997, 4
        %v2000 = vshll.u32 %v1630, 16
        %v2002 = vrot.slane %v2000, 5
        %v2003 = vor.u32 %v1999, %v2002
        %v2004 = vrot.slane %v2003, 4
        %v2006 = vshll.u32 %v1631, 16
        %v2008 = vrot.slane %v2006, 5
        %v2009 = vsel %vm1635, %v2004, %v2008
        %v2010 = vshrl.u32 %v1631, 16
        %v2012 = vrot.slane %v2010, 4
        %v2013 = vor.u32 %v2012, %v2008
        %v2014 = vrot.slane %v2013, 4
        %v2016 = vshll.u32 %v1632, 16
        %v2018 = vrot.slane %v2016, 5
        %v2019 = vsel %vm1635, %v2014, %v2018
        %v2020 = vld [vmem:[%s3 + $0x10] sm:$0xf]
        %v2021 = vld [vmem:[%s3 + $0x14] sm:$0xf]
        %v2022 = vld [vmem:[%s3 + $0x18] sm:$0xf]
        %v2023 = vld [vmem:[%s3 + $0x1c] sm:$0xf]
        %v2024 = vunpack.c.l.b16 %v1649
        %v2025 = vunpack.c.l.b16 %v1659
        %v2026 = vunpack.c.l.b16 %v1673
        %v2027 = vunpack.c.l.b16 %v1683
        %v2028 = vunpack.c.l.b16 %v1697
        %v2029 = vunpack.c.l.b16 %v1707
        %v2030 = vunpack.c.l.b16 %v1721
        %v2031 = vunpack.c.l.b16 %v1731
        %v2032 = vunpack.c.l.b16 %v1745
        %v2033 = vunpack.c.l.b16 %v1755
        %v2034 = vunpack.c.l.b16 %v1769
        %v2035 = vunpack.c.l.b16 %v1779
        %v2036 = vunpack.c.l.b16 %v1793
        %v2037 = vunpack.c.l.b16 %v1803
        %v2038 = vunpack.c.l.b16 %v1817
        %v2039 = vunpack.c.l.b16 %v1827
        %v2040 = vunpack.c.l.b16 %v1841
        %v2041 = vunpack.c.l.b16 %v1851
        %v2042 = vunpack.c.l.b16 %v1865
        %v2043 = vunpack.c.l.b16 %v1875
        %v2044 = vunpack.c.l.b16 %v1889
        %v2045 = vunpack.c.l.b16 %v1899
        %v2046 = vunpack.c.l.b16 %v1913
        %v2047 = vunpack.c.l.b16 %v1923
        %v2048 = vunpack.c.l.b16 %v1937
        %v2049 = vunpack.c.l.b16 %v1947
        %v2050 = vunpack.c.l.b16 %v1961
        %v2051 = vunpack.c.l.b16 %v1971
        %v2052 = vunpack.c.l.b16 %v1985
        %v2053 = vunpack.c.l.b16 %v1995
        %v2054 = vunpack.c.l.b16 %v2009
        %v2055 = vunpack.c.l.b16 %v2019
        %v2056 = vpack.c.b16 %v2025, %v2024
        %v2057 = vpack.c.b16 %v2027, %v2026
        %v2058 = vpack.c.b16 %v2029, %v2028
        %v2059 = vpack.c.b16 %v2031, %v2030
        %v2060 = vpack.c.b16 %v2033, %v2032
        %v2061 = vpack.c.b16 %v2035, %v2034
        %v2062 = vpack.c.b16 %v2037, %v2036
        %v2063 = vpack.c.b16 %v2039, %v2038
        %v2064 = vpack.c.b16 %v2041, %v2040
        %v2065 = vpack.c.b16 %v2043, %v2042
        %v2066 = vpack.c.b16 %v2045, %v2044
        %v2067 = vpack.c.b16 %v2047, %v2046
        %v2068 = vpack.c.b16 %v2049, %v2048
        %v2069 = vpack.c.b16 %v2051, %v2050
        %v2070 = vpack.c.b16 %v2053, %v2052
        %v2071 = vpack.c.b16 %v2055, %v2054
        %v2076 = vunpack.c.l.b16 %v2020
        %v2077 = vunpack.c.l.b16 %v2021
        %v2078 = vunpack.c.l.b16 %v2022
        %v2079 = vunpack.c.l.b16 %v2023
        %v2080 = vpack.c.b16 %v2077, %v2076
        %v2081 = vpack.c.b16 %v2079, %v2078
        %v2085 = vsel %vm1415, %v2056, 0
        %v2088 = vsel %vm1415, %v2057, 0
        %v2091 = vsel %vm1415, %v2058, 0
        %v2094 = vsel %vm1415, %v2059, 0
        %v2097 = vsel %vm1415, %v2060, 0
        %v2100 = vsel %vm1415, %v2061, 0
        %v2103 = vsel %vm1415, %v2062, 0
        %v2106 = vsel %vm1415, %v2063, 0
        %v2109 = vsel %vm1415, %v2064, 0
        %v2112 = vsel %vm1415, %v2065, 0
        %v2115 = vsel %vm1415, %v2066, 0
        %v2118 = vsel %vm1415, %v2067, 0
        %v2121 = vsel %vm1415, %v2068, 0
        %v2124 = vsel %vm1415, %v2069, 0
        %v2127 = vsel %vm1415, %v2070, 0
        %v2130 = vsel %vm1415, %v2071, 0
        %2132 = vmatpush.bf16.msra.mxu0 0
        %2133 = vmatpush.bf16.msra.mxu0 0
        %2134 = vmatpush.bf16.msra.mxu0 0
        %2135 = vmatpush.bf16.msra.mxu0 0
        %2136 = vmatpush.bf16.msra.mxu0 0
        %2137 = vmatpush.bf16.msra.mxu0 0
        %2138 = vmatpush.bf16.msra.mxu0 %v2081
        %2139 = vmatpush.bf16.msra.mxu0 %v2080
        %2140 = vmatmul.bf16.gmra.mxu0 %v2085
        %v2141 = vpop.f32.mrf.mxu0
        %v2142 = vadd.f32 0.0, %v2141
        %v2143 = vpop.f32.mrf.mxu0
        %v2144 = vadd.f32 0.0, %v2143
        %2145 = vmatmul.bf16.gmra.mxu0 %v2088
        %v2146 = vpop.f32.mrf.mxu0
        %v2147 = vadd.f32 0.0, %v2146
        %v2148 = vpop.f32.mrf.mxu0
        %v2149 = vadd.f32 0.0, %v2148
        %2150 = vmatmul.bf16.gmra.mxu0 %v2091
        %v2151 = vpop.f32.mrf.mxu0
        %v2152 = vadd.f32 0.0, %v2151
        %v2153 = vpop.f32.mrf.mxu0
        %v2154 = vadd.f32 0.0, %v2153
        %2155 = vmatmul.bf16.gmra.mxu0 %v2094
        %v2156 = vpop.f32.mrf.mxu0
        %v2157 = vadd.f32 0.0, %v2156
        %v2158 = vpop.f32.mrf.mxu0
        %v2159 = vadd.f32 0.0, %v2158
        %2160 = vmatmul.bf16.gmra.mxu0 %v2097
        %v2161 = vpop.f32.mrf.mxu0
        %v2162 = vadd.f32 0.0, %v2161
        %v2163 = vpop.f32.mrf.mxu0
        %v2164 = vadd.f32 0.0, %v2163
        %2165 = vmatmul.bf16.gmra.mxu0 %v2100
        %v2166 = vpop.f32.mrf.mxu0
        %v2167 = vadd.f32 0.0, %v2166
        %v2168 = vpop.f32.mrf.mxu0
        %v2169 = vadd.f32 0.0, %v2168
        %2170 = vmatmul.bf16.gmra.mxu0 %v2103
        %v2171 = vpop.f32.mrf.mxu0
        %v2172 = vadd.f32 0.0, %v2171
        %v2173 = vpop.f32.mrf.mxu0
        %v2174 = vadd.f32 0.0, %v2173
        %2175 = vmatmul.bf16.gmra.mxu0 %v2106
        %v2176 = vpop.f32.mrf.mxu0
        %v2177 = vadd.f32 0.0, %v2176
        %v2178 = vpop.f32.mrf.mxu0
        %v2179 = vadd.f32 0.0, %v2178
        %2180 = vmatmul.bf16.gmra.mxu0 %v2109
        %v2181 = vpop.f32.mrf.mxu0
        %v2182 = vadd.f32 0.0, %v2181
        %v2183 = vpop.f32.mrf.mxu0
        %v2184 = vadd.f32 0.0, %v2183
        %2185 = vmatmul.bf16.gmra.mxu0 %v2112
        %v2186 = vpop.f32.mrf.mxu0
        %v2187 = vadd.f32 0.0, %v2186
        %v2188 = vpop.f32.mrf.mxu0
        %v2189 = vadd.f32 0.0, %v2188
        %2190 = vmatmul.bf16.gmra.mxu0 %v2115
        %v2191 = vpop.f32.mrf.mxu0
        %v2192 = vadd.f32 0.0, %v2191
        %v2193 = vpop.f32.mrf.mxu0
        %v2194 = vadd.f32 0.0, %v2193
        %2195 = vmatmul.bf16.gmra.mxu0 %v2118
        %v2196 = vpop.f32.mrf.mxu0
        %v2197 = vadd.f32 0.0, %v2196
        %v2198 = vpop.f32.mrf.mxu0
        %v2199 = vadd.f32 0.0, %v2198
        %2200 = vmatmul.bf16.gmra.mxu0 %v2121
        %v2201 = vpop.f32.mrf.mxu0
        %v2202 = vadd.f32 0.0, %v2201
        %v2203 = vpop.f32.mrf.mxu0
        %v2204 = vadd.f32 0.0, %v2203
        %2205 = vmatmul.bf16.gmra.mxu0 %v2124
        %v2206 = vpop.f32.mrf.mxu0
        %v2207 = vadd.f32 0.0, %v2206
        %v2208 = vpop.f32.mrf.mxu0
        %v2209 = vadd.f32 0.0, %v2208
        %2210 = vmatmul.bf16.gmra.mxu0 %v2127
        %v2211 = vpop.f32.mrf.mxu0
        %v2212 = vadd.f32 0.0, %v2211
        %v2213 = vpop.f32.mrf.mxu0
        %v2214 = vadd.f32 0.0, %v2213
        %2215 = vmatmul.bf16.gmra.mxu0 %v2130
        %v2216 = vpop.f32.mrf.mxu0
        %v2217 = vadd.f32 0.0, %v2216
        %v2218 = vpop.f32.mrf.mxu0
        %v2219 = vadd.f32 0.0, %v2218
        %2220 = vdwg.mxu0
        %v2221 = vadd.f32 %v1553, %v2142
        %v2222 = vadd.f32 %v1554, %v2144
        %v2223 = vadd.f32 %v1555, %v2147
        %v2224 = vadd.f32 %v1556, %v2149
        %v2225 = vadd.f32 %v1557, %v2152
        %v2226 = vadd.f32 %v1558, %v2154
        %v2227 = vadd.f32 %v1559, %v2157
        %v2228 = vadd.f32 %v1560, %v2159
        %v2229 = vadd.f32 %v1561, %v2162
        %v2230 = vadd.f32 %v1562, %v2164
        %v2231 = vadd.f32 %v1563, %v2167
        %v2232 = vadd.f32 %v1564, %v2169
        %v2233 = vadd.f32 %v1565, %v2172
        %v2234 = vadd.f32 %v1566, %v2174
        %v2235 = vadd.f32 %v1567, %v2177
        %v2236 = vadd.f32 %v1568, %v2179
        %v2237 = vadd.f32 %v1569, %v2182
        %v2238 = vadd.f32 %v1570, %v2184
        %v2239 = vadd.f32 %v1571, %v2187
        %v2240 = vadd.f32 %v1572, %v2189
        %v2241 = vadd.f32 %v1573, %v2192
        %v2242 = vadd.f32 %v1574, %v2194
        %v2243 = vadd.f32 %v1575, %v2197
        %v2244 = vadd.f32 %v1576, %v2199
        %v2245 = vadd.f32 %v1577, %v2202
        %v2246 = vadd.f32 %v1578, %v2204
        %v2247 = vadd.f32 %v1579, %v2207
        %v2248 = vadd.f32 %v1580, %v2209
        %v2249 = vadd.f32 %v1581, %v2212
        %v2250 = vadd.f32 %v1582, %v2214
        %v2251 = vadd.f32 %v1583, %v2217
        %v2252 = vadd.f32 %v1584, %v2219
        %v2253 = vld [vmem:[#allocation2] sm:$0xe]
        %v2254 = vld [vmem:[#allocation2 + $0xc] sm:$0xe]
        %v2255 = vld [vmem:[#allocation2 + $0x18] sm:$0xe]
        %v2256 = vld [vmem:[#allocation2 + $0x24] sm:$0xe]
        %v2257 = vld [vmem:[#allocation2 + $0x30] sm:$0xe]
        %v2258 = vld [vmem:[#allocation2 + $0x3c] sm:$0xe]
        %v2259 = vld [vmem:[#allocation2 + $0x48] sm:$0xe]
        %v2260 = vld [vmem:[#allocation2 + $0x54] sm:$0xe]
        %v2261 = vld [vmem:[#allocation2 + $0x60] sm:$0xe]
        %v2262 = vld [vmem:[#allocation2 + $0x6c] sm:$0xe]
        %v2263 = vld [vmem:[#allocation2 + $0x78] sm:$0xe]
        %v2264 = vld [vmem:[#allocation2 + $0x84] sm:$0xe]
        %v2265 = vld [vmem:[#allocation2 + $0x90] sm:$0xe]
        %v2266 = vld [vmem:[#allocation2 + $0x9c] sm:$0xe]
        %v2267 = vld [vmem:[#allocation2 + $0xa8] sm:$0xe]
        %v2268 = vld [vmem:[#allocation2 + $0xb4] sm:$0xe]
        %vm2317 = vcmask 1042432
        %vm2318 = vcmask 1046532
        %vm2319 = vmor %vm2317, %vm2318
        %v2320 = vrot.slane %v2253, 5
        %v2321 = vrot.slane %v2320, 4
        %v2322 = vrot.slane %v1586, 5
        %v2323 = vsel %vm2319, %v2321, %v2322
        %v2324 = vrot.slane %v2322, 4
        %v2325 = vrot.slane %v1587, 5
        %v2326 = vsel %vm2319, %v2324, %v2325
        %v2327 = vrot.slane %v2254, 5
        %v2328 = vrot.slane %v2327, 4
        %v2329 = vrot.slane %v1589, 5
        %v2330 = vsel %vm2319, %v2328, %v2329
        %v2331 = vrot.slane %v2329, 4
        %v2332 = vrot.slane %v1590, 5
        %v2333 = vsel %vm2319, %v2331, %v2332
        %v2334 = vrot.slane %v2255, 5
        %v2335 = vrot.slane %v2334, 4
        %v2336 = vrot.slane %v1592, 5
        %v2337 = vsel %vm2319, %v2335, %v2336
        %v2338 = vrot.slane %v2336, 4
        %v2339 = vrot.slane %v1593, 5
        %v2340 = vsel %vm2319, %v2338, %v2339
        %v2341 = vrot.slane %v2256, 5
        %v2342 = vrot.slane %v2341, 4
        %v2343 = vrot.slane %v1595, 5
        %v2344 = vsel %vm2319, %v2342, %v2343
        %v2345 = vrot.slane %v2343, 4
        %v2346 = vrot.slane %v1596, 5
        %v2347 = vsel %vm2319, %v2345, %v2346
        %v2348 = vrot.slane %v2257, 5
        %v2349 = vrot.slane %v2348, 4
        %v2350 = vrot.slane %v1598, 5
        %v2351 = vsel %vm2319, %v2349, %v2350
        %v2352 = vrot.slane %v2350, 4
        %v2353 = vrot.slane %v1599, 5
        %v2354 = vsel %vm2319, %v2352, %v2353
        %v2355 = vrot.slane %v2258, 5
        %v2356 = vrot.slane %v2355, 4
        %v2357 = vrot.slane %v1601, 5
        %v2358 = vsel %vm2319, %v2356, %v2357
        %v2359 = vrot.slane %v2357, 4
        %v2360 = vrot.slane %v1602, 5
        %v2361 = vsel %vm2319, %v2359, %v2360
        %v2362 = vrot.slane %v2259, 5
        %v2363 = vrot.slane %v2362, 4
        %v2364 = vrot.slane %v1604, 5
        %v2365 = vsel %vm2319, %v2363, %v2364
        %v2366 = vrot.slane %v2364, 4
        %v2367 = vrot.slane %v1605, 5
        %v2368 = vsel %vm2319, %v2366, %v2367
        %v2369 = vrot.slane %v2260, 5
        %v2370 = vrot.slane %v2369, 4
        %v2371 = vrot.slane %v1607, 5
        %v2372 = vsel %vm2319, %v2370, %v2371
        %v2373 = vrot.slane %v2371, 4
        %v2374 = vrot.slane %v1608, 5
        %v2375 = vsel %vm2319, %v2373, %v2374
        %v2376 = vrot.slane %v2261, 5
        %v2377 = vrot.slane %v2376, 4
        %v2378 = vrot.slane %v1610, 5
        %v2379 = vsel %vm2319, %v2377, %v2378
        %v2380 = vrot.slane %v2378, 4
        %v2381 = vrot.slane %v1611, 5
        %v2382 = vsel %vm2319, %v2380, %v2381
        %v2383 = vrot.slane %v2262, 5
        %v2384 = vrot.slane %v2383, 4
        %v2385 = vrot.slane %v1613, 5
        %v2386 = vsel %vm2319, %v2384, %v2385
        %v2387 = vrot.slane %v2385, 4
        %v2388 = vrot.slane %v1614, 5
        %v2389 = vsel %vm2319, %v2387, %v2388
        %v2390 = vrot.slane %v2263, 5
        %v2391 = vrot.slane %v2390, 4
        %v2392 = vrot.slane %v1616, 5
        %v2393 = vsel %vm2319, %v2391, %v2392
        %v2394 = vrot.slane %v2392, 4
        %v2395 = vrot.slane %v1617, 5
        %v2396 = vsel %vm2319, %v2394, %v2395
        %v2397 = vrot.slane %v2264, 5
        %v2398 = vrot.slane %v2397, 4
        %v2399 = vrot.slane %v1619, 5
        %v2400 = vsel %vm2319, %v2398, %v2399
        %v2401 = vrot.slane %v2399, 4
        %v2402 = vrot.slane %v1620, 5
        %v2403 = vsel %vm2319, %v2401, %v2402
        %v2404 = vrot.slane %v2265, 5
        %v2405 = vrot.slane %v2404, 4
        %v2406 = vrot.slane %v1622, 5
        %v2407 = vsel %vm2319, %v2405, %v2406
        %v2408 = vrot.slane %v2406, 4
        %v2409 = vrot.slane %v1623, 5
        %v2410 = vsel %vm2319, %v2408, %v2409
        %v2411 = vrot.slane %v2266, 5
        %v2412 = vrot.slane %v2411, 4
        %v2413 = vrot.slane %v1625, 5
        %v2414 = vsel %vm2319, %v2412, %v2413
        %v2415 = vrot.slane %v2413, 4
        %v2416 = vrot.slane %v1626, 5
        %v2417 = vsel %vm2319, %v2415, %v2416
        %v2418 = vrot.slane %v2267, 5
        %v2419 = vrot.slane %v2418, 4
        %v2420 = vrot.slane %v1628, 5
        %v2421 = vsel %vm2319, %v2419, %v2420
        %v2422 = vrot.slane %v2420, 4
        %v2423 = vrot.slane %v1629, 5
        %v2424 = vsel %vm2319, %v2422, %v2423
        %v2425 = vrot.slane %v2268, 5
        %v2426 = vrot.slane %v2425, 4
        %v2427 = vrot.slane %v1631, 5
        %v2428 = vsel %vm2319, %v2426, %v2427
        %v2429 = vrot.slane %v2427, 4
        %v2430 = vrot.slane %v1632, 5
        %v2431 = vsel %vm2319, %v2429, %v2430
        %v2432 = vld [vmem:[%s3 + $0x20] sm:$0xf]
        %v2433 = vld [vmem:[%s3 + $0x24] sm:$0xf]
        %v2434 = vld [vmem:[%s3 + $0x28] sm:$0xf]
        %v2435 = vld [vmem:[%s3 + $0x2c] sm:$0xf]
        %v2436 = vunpack.c.l.b16 %v2323
        %v2437 = vunpack.c.l.b16 %v2326
        %v2438 = vunpack.c.l.b16 %v2330
        %v2439 = vunpack.c.l.b16 %v2333
        %v2440 = vunpack.c.l.b16 %v2337
        %v2441 = vunpack.c.l.b16 %v2340
        %v2442 = vunpack.c.l.b16 %v2344
        %v2443 = vunpack.c.l.b16 %v2347
        %v2444 = vunpack.c.l.b16 %v2351
        %v2445 = vunpack.c.l.b16 %v2354
        %v2446 = vunpack.c.l.b16 %v2358
        %v2447 = vunpack.c.l.b16 %v2361
        %v2448 = vunpack.c.l.b16 %v2365
        %v2449 = vunpack.c.l.b16 %v2368
        %v2450 = vunpack.c.l.b16 %v2372
        %v2451 = vunpack.c.l.b16 %v2375
        %v2452 = vunpack.c.l.b16 %v2379
        %v2453 = vunpack.c.l.b16 %v2382
        %v2454 = vunpack.c.l.b16 %v2386
        %v2455 = vunpack.c.l.b16 %v2389
        %v2456 = vunpack.c.l.b16 %v2393
        %v2457 = vunpack.c.l.b16 %v2396
        %v2458 = vunpack.c.l.b16 %v2400
        %v2459 = vunpack.c.l.b16 %v2403
        %v2460 = vunpack.c.l.b16 %v2407
        %v2461 = vunpack.c.l.b16 %v2410
        %v2462 = vunpack.c.l.b16 %v2414
        %v2463 = vunpack.c.l.b16 %v2417
        %v2464 = vunpack.c.l.b16 %v2421
        %v2465 = vunpack.c.l.b16 %v2424
        %v2466 = vunpack.c.l.b16 %v2428
        %v2467 = vunpack.c.l.b16 %v2431
        %v2468 = vpack.c.b16 %v2437, %v2436
        %v2469 = vpack.c.b16 %v2439, %v2438
        %v2470 = vpack.c.b16 %v2441, %v2440
        %v2471 = vpack.c.b16 %v2443, %v2442
        %v2472 = vpack.c.b16 %v2445, %v2444
        %v2473 = vpack.c.b16 %v2447, %v2446
        %v2474 = vpack.c.b16 %v2449, %v2448
        %v2475 = vpack.c.b16 %v2451, %v2450
        %v2476 = vpack.c.b16 %v2453, %v2452
        %v2477 = vpack.c.b16 %v2455, %v2454
        %v2478 = vpack.c.b16 %v2457, %v2456
        %v2479 = vpack.c.b16 %v2459, %v2458
        %v2480 = vpack.c.b16 %v2461, %v2460
        %v2481 = vpack.c.b16 %v2463, %v2462
        %v2482 = vpack.c.b16 %v2465, %v2464
        %v2483 = vpack.c.b16 %v2467, %v2466
        %v2488 = vunpack.c.l.b16 %v2432
        %v2489 = vunpack.c.l.b16 %v2433
        %v2490 = vunpack.c.l.b16 %v2434
        %v2491 = vunpack.c.l.b16 %v2435
        %v2492 = vpack.c.b16 %v2489, %v2488
        %v2493 = vpack.c.b16 %v2491, %v2490
        %v2497 = vsel %vm1415, %v2468, 0
        %v2500 = vsel %vm1415, %v2469, 0
        %v2503 = vsel %vm1415, %v2470, 0
        %v2506 = vsel %vm1415, %v2471, 0
        %v2509 = vsel %vm1415, %v2472, 0
        %v2512 = vsel %vm1415, %v2473, 0
        %v2515 = vsel %vm1415, %v2474, 0
        %v2518 = vsel %vm1415, %v2475, 0
        %v2521 = vsel %vm1415, %v2476, 0
        %v2524 = vsel %vm1415, %v2477, 0
        %v2527 = vsel %vm1415, %v2478, 0
        %v2530 = vsel %vm1415, %v2479, 0
        %v2533 = vsel %vm1415, %v2480, 0
        %v2536 = vsel %vm1415, %v2481, 0
        %v2539 = vsel %vm1415, %v2482, 0
        %v2542 = vsel %vm1415, %v2483, 0
        %2544 = vmatpush.bf16.msra.mxu0 0
        %2545 = vmatpush.bf16.msra.mxu0 0
        %2546 = vmatpush.bf16.msra.mxu0 0
        %2547 = vmatpush.bf16.msra.mxu0 0
        %2548 = vmatpush.bf16.msra.mxu0 0
        %2549 = vmatpush.bf16.msra.mxu0 0
        %2550 = vmatpush.bf16.msra.mxu0 %v2493
        %2551 = vmatpush.bf16.msra.mxu0 %v2492
        %2552 = vmatmul.bf16.gmra.mxu0 %v2497
        %v2553 = vpop.f32.mrf.mxu0
        %v2554 = vadd.f32 0.0, %v2553
        %v2555 = vpop.f32.mrf.mxu0
        %v2556 = vadd.f32 0.0, %v2555
        %2557 = vmatmul.bf16.gmra.mxu0 %v2500
        %v2558 = vpop.f32.mrf.mxu0
        %v2559 = vadd.f32 0.0, %v2558
        %v2560 = vpop.f32.mrf.mxu0
        %v2561 = vadd.f32 0.0, %v2560
        %2562 = vmatmul.bf16.gmra.mxu0 %v2503
        %v2563 = vpop.f32.mrf.mxu0
        %v2564 = vadd.f32 0.0, %v2563
        %v2565 = vpop.f32.mrf.mxu0
        %v2566 = vadd.f32 0.0, %v2565
        %2567 = vmatmul.bf16.gmra.mxu0 %v2506
        %v2568 = vpop.f32.mrf.mxu0
        %v2569 = vadd.f32 0.0, %v2568
        %v2570 = vpop.f32.mrf.mxu0
        %v2571 = vadd.f32 0.0, %v2570
        %2572 = vmatmul.bf16.gmra.mxu0 %v2509
        %v2573 = vpop.f32.mrf.mxu0
        %v2574 = vadd.f32 0.0, %v2573
        %v2575 = vpop.f32.mrf.mxu0
        %v2576 = vadd.f32 0.0, %v2575
        %2577 = vmatmul.bf16.gmra.mxu0 %v2512
        %v2578 = vpop.f32.mrf.mxu0
        %v2579 = vadd.f32 0.0, %v2578
        %v2580 = vpop.f32.mrf.mxu0
        %v2581 = vadd.f32 0.0, %v2580
        %2582 = vmatmul.bf16.gmra.mxu0 %v2515
        %v2583 = vpop.f32.mrf.mxu0
        %v2584 = vadd.f32 0.0, %v2583
        %v2585 = vpop.f32.mrf.mxu0
        %v2586 = vadd.f32 0.0, %v2585
        %2587 = vmatmul.bf16.gmra.mxu0 %v2518
        %v2588 = vpop.f32.mrf.mxu0
        %v2589 = vadd.f32 0.0, %v2588
        %v2590 = vpop.f32.mrf.mxu0
        %v2591 = vadd.f32 0.0, %v2590
        %2592 = vmatmul.bf16.gmra.mxu0 %v2521
        %v2593 = vpop.f32.mrf.mxu0
        %v2594 = vadd.f32 0.0, %v2593
        %v2595 = vpop.f32.mrf.mxu0
        %v2596 = vadd.f32 0.0, %v2595
        %2597 = vmatmul.bf16.gmra.mxu0 %v2524
        %v2598 = vpop.f32.mrf.mxu0
        %v2599 = vadd.f32 0.0, %v2598
        %v2600 = vpop.f32.mrf.mxu0
        %v2601 = vadd.f32 0.0, %v2600
        %2602 = vmatmul.bf16.gmra.mxu0 %v2527
        %v2603 = vpop.f32.mrf.mxu0
        %v2604 = vadd.f32 0.0, %v2603
        %v2605 = vpop.f32.mrf.mxu0
        %v2606 = vadd.f32 0.0, %v2605
        %2607 = vmatmul.bf16.gmra.mxu0 %v2530
        %v2608 = vpop.f32.mrf.mxu0
        %v2609 = vadd.f32 0.0, %v2608
        %v2610 = vpop.f32.mrf.mxu0
        %v2611 = vadd.f32 0.0, %v2610
        %2612 = vmatmul.bf16.gmra.mxu0 %v2533
        %v2613 = vpop.f32.mrf.mxu0
        %v2614 = vadd.f32 0.0, %v2613
        %v2615 = vpop.f32.mrf.mxu0
        %v2616 = vadd.f32 0.0, %v2615
        %2617 = vmatmul.bf16.gmra.mxu0 %v2536
        %v2618 = vpop.f32.mrf.mxu0
        %v2619 = vadd.f32 0.0, %v2618
        %v2620 = vpop.f32.mrf.mxu0
        %v2621 = vadd.f32 0.0, %v2620
        %2622 = vmatmul.bf16.gmra.mxu0 %v2539
        %v2623 = vpop.f32.mrf.mxu0
        %v2624 = vadd.f32 0.0, %v2623
        %v2625 = vpop.f32.mrf.mxu0
        %v2626 = vadd.f32 0.0, %v2625
        %2627 = vmatmul.bf16.gmra.mxu0 %v2542
        %v2628 = vpop.f32.mrf.mxu0
        %v2629 = vadd.f32 0.0, %v2628
        %v2630 = vpop.f32.mrf.mxu0
        %v2631 = vadd.f32 0.0, %v2630
        %2632 = vdwg.mxu0
        %v2633 = vadd.f32 %v2221, %v2554
        %v2634 = vadd.f32 %v2222, %v2556
        %v2635 = vadd.f32 %v2223, %v2559
        %v2636 = vadd.f32 %v2224, %v2561
        %v2637 = vadd.f32 %v2225, %v2564
        %v2638 = vadd.f32 %v2226, %v2566
        %v2639 = vadd.f32 %v2227, %v2569
        %v2640 = vadd.f32 %v2228, %v2571
        %v2641 = vadd.f32 %v2229, %v2574
        %v2642 = vadd.f32 %v2230, %v2576
        %v2643 = vadd.f32 %v2231, %v2579
        %v2644 = vadd.f32 %v2232, %v2581
        %v2645 = vadd.f32 %v2233, %v2584
        %v2646 = vadd.f32 %v2234, %v2586
        %v2647 = vadd.f32 %v2235, %v2589
        %v2648 = vadd.f32 %v2236, %v2591
        %v2649 = vadd.f32 %v2237, %v2594
        %v2650 = vadd.f32 %v2238, %v2596
        %v2651 = vadd.f32 %v2239, %v2599
        %v2652 = vadd.f32 %v2240, %v2601
        %v2653 = vadd.f32 %v2241, %v2604
        %v2654 = vadd.f32 %v2242, %v2606
        %v2655 = vadd.f32 %v2243, %v2609
        %v2656 = vadd.f32 %v2244, %v2611
        %v2657 = vadd.f32 %v2245, %v2614
        %v2658 = vadd.f32 %v2246, %v2616
        %v2659 = vadd.f32 %v2247, %v2619
        %v2660 = vadd.f32 %v2248, %v2621
        %v2661 = vadd.f32 %v2249, %v2624
        %v2662 = vadd.f32 %v2250, %v2626
        %v2663 = vadd.f32 %v2251, %v2629
        %v2664 = vadd.f32 %v2252, %v2631
        %v2665 = vld [vmem:[%s1168] sm:$0xf]
        %v2666 = vld [vmem:[%s1168 + $0x4] sm:$0xf]
        %v2667 = vld [vmem:[%s1168 + $0xc] sm:$0xf]
        %v2668 = vld [vmem:[%s1168 + $0x10] sm:$0xf]
        %v2669 = vld [vmem:[%s1168 + $0x18] sm:$0xf]
        %v2670 = vld [vmem:[%s1168 + $0x1c] sm:$0xf]
        %v2671 = vld [vmem:[%s1168 + $0x24] sm:$0xf]
        %v2672 = vld [vmem:[%s1168 + $0x28] sm:$0xf]
        %v2673 = vld [vmem:[%s1168 + $0x30] sm:$0xf]
        %v2674 = vld [vmem:[%s1168 + $0x34] sm:$0xf]
        %v2675 = vld [vmem:[%s1168 + $0x3c] sm:$0xf]
        %v2676 = vld [vmem:[%s1168 + $0x40] sm:$0xf]
        %v2677 = vld [vmem:[%s1168 + $0x48] sm:$0xf]
        %v2678 = vld [vmem:[%s1168 + $0x4c] sm:$0xf]
        %v2679 = vld [vmem:[%s1168 + $0x54] sm:$0xf]
        %v2680 = vld [vmem:[%s1168 + $0x58] sm:$0xf]
        %v2681 = vld [vmem:[%s1168 + $0x60] sm:$0xf]
        %v2682 = vld [vmem:[%s1168 + $0x64] sm:$0xf]
        %v2683 = vld [vmem:[%s1168 + $0x6c] sm:$0xf]
        %v2684 = vld [vmem:[%s1168 + $0x70] sm:$0xf]
        %v2685 = vld [vmem:[%s1168 + $0x78] sm:$0xf]
        %v2686 = vld [vmem:[%s1168 + $0x7c] sm:$0xf]
        %v2687 = vld [vmem:[%s1168 + $0x84] sm:$0xf]
        %v2688 = vld [vmem:[%s1168 + $0x88] sm:$0xf]
        %v2689 = vld [vmem:[%s1168 + $0x90] sm:$0xf]
        %v2690 = vld [vmem:[%s1168 + $0x94] sm:$0xf]
        %v2691 = vld [vmem:[%s1168 + $0x9c] sm:$0xf]
        %v2692 = vld [vmem:[%s1168 + $0xa0] sm:$0xf]
        %v2693 = vld [vmem:[%s1168 + $0xa8] sm:$0xf]
        %v2694 = vld [vmem:[%s1168 + $0xac] sm:$0xf]
        %v2695 = vld [vmem:[%s1168 + $0xb4] sm:$0xf]
        %v2696 = vld [vmem:[%s1168 + $0xb8] sm:$0xf]
        %v2697 = vld [vmem:[%s3 + $0x30] sm:$0xf]
        %v2698 = vld [vmem:[%s3 + $0x34] sm:$0xf]
        %v2699 = vld [vmem:[%s3 + $0x38] sm:$0xf]
        %v2700 = vld [vmem:[%s3 + $0x3c] sm:$0xf]
        %v2733 = vunpack.c.l.b16 %v2665
        %v2734 = vunpack.c.l.b16 %v2666
        %v2735 = vunpack.c.l.b16 %v2667
        %v2736 = vunpack.c.l.b16 %v2668
        %v2737 = vunpack.c.l.b16 %v2669
        %v2738 = vunpack.c.l.b16 %v2670
        %v2739 = vunpack.c.l.b16 %v2671
        %v2740 = vunpack.c.l.b16 %v2672
        %v2741 = vunpack.c.l.b16 %v2673
        %v2742 = vunpack.c.l.b16 %v2674
        %v2743 = vunpack.c.l.b16 %v2675
        %v2744 = vunpack.c.l.b16 %v2676
        %v2745 = vunpack.c.l.b16 %v2677
        %v2746 = vunpack.c.l.b16 %v2678
        %v2747 = vunpack.c.l.b16 %v2679
        %v2748 = vunpack.c.l.b16 %v2680
        %v2749 = vunpack.c.l.b16 %v2681
        %v2750 = vunpack.c.l.b16 %v2682
        %v2751 = vunpack.c.l.b16 %v2683
        %v2752 = vunpack.c.l.b16 %v2684
        %v2753 = vunpack.c.l.b16 %v2685
        %v2754 = vunpack.c.l.b16 %v2686
        %v2755 = vunpack.c.l.b16 %v2687
        %v2756 = vunpack.c.l.b16 %v2688
        %v2757 = vunpack.c.l.b16 %v2689
        %v2758 = vunpack.c.l.b16 %v2690
        %v2759 = vunpack.c.l.b16 %v2691
        %v2760 = vunpack.c.l.b16 %v2692
        %v2761 = vunpack.c.l.b16 %v2693
        %v2762 = vunpack.c.l.b16 %v2694
        %v2763 = vunpack.c.l.b16 %v2695
        %v2764 = vunpack.c.l.b16 %v2696
        %v2765 = vpack.c.b16 %v2734, %v2733
        %v2766 = vpack.c.b16 %v2736, %v2735
        %v2767 = vpack.c.b16 %v2738, %v2737
        %v2768 = vpack.c.b16 %v2740, %v2739
        %v2769 = vpack.c.b16 %v2742, %v2741
        %v2770 = vpack.c.b16 %v2744, %v2743
        %v2771 = vpack.c.b16 %v2746, %v2745
        %v2772 = vpack.c.b16 %v2748, %v2747
        %v2773 = vpack.c.b16 %v2750, %v2749
        %v2774 = vpack.c.b16 %v2752, %v2751
        %v2775 = vpack.c.b16 %v2754, %v2753
        %v2776 = vpack.c.b16 %v2756, %v2755
        %v2777 = vpack.c.b16 %v2758, %v2757
        %v2778 = vpack.c.b16 %v2760, %v2759
        %v2779 = vpack.c.b16 %v2762, %v2761
        %v2780 = vpack.c.b16 %v2764, %v2763
        %v2785 = vunpack.c.l.b16 %v2697
        %v2786 = vunpack.c.l.b16 %v2698
        %v2787 = vunpack.c.l.b16 %v2699
        %v2788 = vunpack.c.l.b16 %v2700
        %v2789 = vpack.c.b16 %v2786, %v2785
        %v2790 = vpack.c.b16 %v2788, %v2787
        %v2794 = vsel %vm1415, %v2765, 0
        %v2797 = vsel %vm1415, %v2766, 0
        %v2800 = vsel %vm1415, %v2767, 0
        %v2803 = vsel %vm1415, %v2768, 0
        %v2806 = vsel %vm1415, %v2769, 0
        %v2809 = vsel %vm1415, %v2770, 0
        %v2812 = vsel %vm1415, %v2771, 0
        %v2815 = vsel %vm1415, %v2772, 0
        %v2818 = vsel %vm1415, %v2773, 0
        %v2821 = vsel %vm1415, %v2774, 0
        %v2824 = vsel %vm1415, %v2775, 0
        %v2827 = vsel %vm1415, %v2776, 0
        %v2830 = vsel %vm1415, %v2777, 0
        %v2833 = vsel %vm1415, %v2778, 0
        %v2836 = vsel %vm1415, %v2779, 0
        %v2839 = vsel %vm1415, %v2780, 0
        %2841 = vmatpush.bf16.msra.mxu0 0
        %2842 = vmatpush.bf16.msra.mxu0 0
        %2843 = vmatpush.bf16.msra.mxu0 0
        %2844 = vmatpush.bf16.msra.mxu0 0
        %2845 = vmatpush.bf16.msra.mxu0 0
        %2846 = vmatpush.bf16.msra.mxu0 0
        %2847 = vmatpush.bf16.msra.mxu0 %v2790
        %2848 = vmatpush.bf16.msra.mxu0 %v2789
        %2849 = vmatmul.bf16.gmra.mxu0 %v2794
        %v2850 = vpop.f32.mrf.mxu0
        %v2851 = vadd.f32 0.0, %v2850
        %v2852 = vpop.f32.mrf.mxu0
        %v2853 = vadd.f32 0.0, %v2852
        %2854 = vmatmul.bf16.gmra.mxu0 %v2797
        %v2855 = vpop.f32.mrf.mxu0
        %v2856 = vadd.f32 0.0, %v2855
        %v2857 = vpop.f32.mrf.mxu0
        %v2858 = vadd.f32 0.0, %v2857
        %2859 = vmatmul.bf16.gmra.mxu0 %v2800
        %v2860 = vpop.f32.mrf.mxu0
        %v2861 = vadd.f32 0.0, %v2860
        %v2862 = vpop.f32.mrf.mxu0
        %v2863 = vadd.f32 0.0, %v2862
        %2864 = vmatmul.bf16.gmra.mxu0 %v2803
        %v2865 = vpop.f32.mrf.mxu0
        %v2866 = vadd.f32 0.0, %v2865
        %v2867 = vpop.f32.mrf.mxu0
        %v2868 = vadd.f32 0.0, %v2867
        %2869 = vmatmul.bf16.gmra.mxu0 %v2806
        %v2870 = vpop.f32.mrf.mxu0
        %v2871 = vadd.f32 0.0, %v2870
        %v2872 = vpop.f32.mrf.mxu0
        %v2873 = vadd.f32 0.0, %v2872
        %2874 = vmatmul.bf16.gmra.mxu0 %v2809
        %v2875 = vpop.f32.mrf.mxu0
        %v2876 = vadd.f32 0.0, %v2875
        %v2877 = vpop.f32.mrf.mxu0
        %v2878 = vadd.f32 0.0, %v2877
        %2879 = vmatmul.bf16.gmra.mxu0 %v2812
        %v2880 = vpop.f32.mrf.mxu0
        %v2881 = vadd.f32 0.0, %v2880
        %v2882 = vpop.f32.mrf.mxu0
        %v2883 = vadd.f32 0.0, %v2882
        %2884 = vmatmul.bf16.gmra.mxu0 %v2815
        %v2885 = vpop.f32.mrf.mxu0
        %v2886 = vadd.f32 0.0, %v2885
        %v2887 = vpop.f32.mrf.mxu0
        %v2888 = vadd.f32 0.0, %v2887
        %2889 = vmatmul.bf16.gmra.mxu0 %v2818
        %v2890 = vpop.f32.mrf.mxu0
        %v2891 = vadd.f32 0.0, %v2890
        %v2892 = vpop.f32.mrf.mxu0
        %v2893 = vadd.f32 0.0, %v2892
        %2894 = vmatmul.bf16.gmra.mxu0 %v2821
        %v2895 = vpop.f32.mrf.mxu0
        %v2896 = vadd.f32 0.0, %v2895
        %v2897 = vpop.f32.mrf.mxu0
        %v2898 = vadd.f32 0.0, %v2897
        %2899 = vmatmul.bf16.gmra.mxu0 %v2824
        %v2900 = vpop.f32.mrf.mxu0
        %v2901 = vadd.f32 0.0, %v2900
        %v2902 = vpop.f32.mrf.mxu0
        %v2903 = vadd.f32 0.0, %v2902
        %2904 = vmatmul.bf16.gmra.mxu0 %v2827
        %v2905 = vpop.f32.mrf.mxu0
        %v2906 = vadd.f32 0.0, %v2905
        %v2907 = vpop.f32.mrf.mxu0
        %v2908 = vadd.f32 0.0, %v2907
        %2909 = vmatmul.bf16.gmra.mxu0 %v2830
        %v2910 = vpop.f32.mrf.mxu0
        %v2911 = vadd.f32 0.0, %v2910
        %v2912 = vpop.f32.mrf.mxu0
        %v2913 = vadd.f32 0.0, %v2912
        %2914 = vmatmul.bf16.gmra.mxu0 %v2833
        %v2915 = vpop.f32.mrf.mxu0
        %v2916 = vadd.f32 0.0, %v2915
        %v2917 = vpop.f32.mrf.mxu0
        %v2918 = vadd.f32 0.0, %v2917
        %2919 = vmatmul.bf16.gmra.mxu0 %v2836
        %v2920 = vpop.f32.mrf.mxu0
        %v2921 = vadd.f32 0.0, %v2920
        %v2922 = vpop.f32.mrf.mxu0
        %v2923 = vadd.f32 0.0, %v2922
        %2924 = vmatmul.bf16.gmra.mxu0 %v2839
        %v2925 = vpop.f32.mrf.mxu0
        %v2926 = vadd.f32 0.0, %v2925
        %v2927 = vpop.f32.mrf.mxu0
        %v2928 = vadd.f32 0.0, %v2927
        %2929 = vdwg.mxu0
        %v2930 = vadd.f32 %v2633, %v2851
        %v2931 = vadd.f32 %v2634, %v2853
        %v2932 = vadd.f32 %v2635, %v2856
        %v2933 = vadd.f32 %v2636, %v2858
        %v2934 = vadd.f32 %v2637, %v2861
        %v2935 = vadd.f32 %v2638, %v2863
        %v2936 = vadd.f32 %v2639, %v2866
        %v2937 = vadd.f32 %v2640, %v2868
        %v2938 = vadd.f32 %v2641, %v2871
        %v2939 = vadd.f32 %v2642, %v2873
        %v2940 = vadd.f32 %v2643, %v2876
        %v2941 = vadd.f32 %v2644, %v2878
        %v2942 = vadd.f32 %v2645, %v2881
        %v2943 = vadd.f32 %v2646, %v2883
        %v2944 = vadd.f32 %v2647, %v2886
        %v2945 = vadd.f32 %v2648, %v2888
        %v2946 = vadd.f32 %v2649, %v2891
        %v2947 = vadd.f32 %v2650, %v2893
        %v2948 = vadd.f32 %v2651, %v2896
        %v2949 = vadd.f32 %v2652, %v2898
        %v2950 = vadd.f32 %v2653, %v2901
        %v2951 = vadd.f32 %v2654, %v2903
        %v2952 = vadd.f32 %v2655, %v2906
        %v2953 = vadd.f32 %v2656, %v2908
        %v2954 = vadd.f32 %v2657, %v2911
        %v2955 = vadd.f32 %v2658, %v2913
        %v2956 = vadd.f32 %v2659, %v2916
        %v2957 = vadd.f32 %v2660, %v2918
        %v2958 = vadd.f32 %v2661, %v2921
        %v2959 = vadd.f32 %v2662, %v2923
        %v2960 = vadd.f32 %v2663, %v2926
        %v2961 = vadd.f32 %v2664, %v2928
        %v2962 = vld [vmem:[%s1168] sm:$0xf]
        %v2963 = vld [vmem:[%s1168 + $0x4] sm:$0xf]
        %v2964 = vld [vmem:[%s1168 + $0x8] sm:$0x1]
        %v2965 = vld [vmem:[%s1168 + $0xc] sm:$0xf]
        %v2966 = vld [vmem:[%s1168 + $0x10] sm:$0xf]
        %v2967 = vld [vmem:[%s1168 + $0x14] sm:$0x1]
        %v2968 = vld [vmem:[%s1168 + $0x18] sm:$0xf]
        %v2969 = vld [vmem:[%s1168 + $0x1c] sm:$0xf]
        %v2970 = vld [vmem:[%s1168 + $0x20] sm:$0x1]
        %v2971 = vld [vmem:[%s1168 + $0x24] sm:$0xf]
        %v2972 = vld [vmem:[%s1168 + $0x28] sm:$0xf]
        %v2973 = vld [vmem:[%s1168 + $0x2c] sm:$0x1]
        %v2974 = vld [vmem:[%s1168 + $0x30] sm:$0xf]
        %v2975 = vld [vmem:[%s1168 + $0x34] sm:$0xf]
        %v2976 = vld [vmem:[%s1168 + $0x38] sm:$0x1]
        %v2977 = vld [vmem:[%s1168 + $0x3c] sm:$0xf]
        %v2978 = vld [vmem:[%s1168 + $0x40] sm:$0xf]
        %v2979 = vld [vmem:[%s1168 + $0x44] sm:$0x1]
        %v2980 = vld [vmem:[%s1168 + $0x48] sm:$0xf]
        %v2981 = vld [vmem:[%s1168 + $0x4c] sm:$0xf]
        %v2982 = vld [vmem:[%s1168 + $0x50] sm:$0x1]
        %v2983 = vld [vmem:[%s1168 + $0x54] sm:$0xf]
        %v2984 = vld [vmem:[%s1168 + $0x58] sm:$0xf]
        %v2985 = vld [vmem:[%s1168 + $0x5c] sm:$0x1]
        %v2986 = vld [vmem:[%s1168 + $0x60] sm:$0xf]
        %v2987 = vld [vmem:[%s1168 + $0x64] sm:$0xf]
        %v2988 = vld [vmem:[%s1168 + $0x68] sm:$0x1]
        %v2989 = vld [vmem:[%s1168 + $0x6c] sm:$0xf]
        %v2990 = vld [vmem:[%s1168 + $0x70] sm:$0xf]
        %v2991 = vld [vmem:[%s1168 + $0x74] sm:$0x1]
        %v2992 = vld [vmem:[%s1168 + $0x78] sm:$0xf]
        %v2993 = vld [vmem:[%s1168 + $0x7c] sm:$0xf]
        %v2994 = vld [vmem:[%s1168 + $0x80] sm:$0x1]
        %v2995 = vld [vmem:[%s1168 + $0x84] sm:$0xf]
        %v2996 = vld [vmem:[%s1168 + $0x88] sm:$0xf]
        %v2997 = vld [vmem:[%s1168 + $0x8c] sm:$0x1]
        %v2998 = vld [vmem:[%s1168 + $0x90] sm:$0xf]
        %v2999 = vld [vmem:[%s1168 + $0x94] sm:$0xf]
        %v3000 = vld [vmem:[%s1168 + $0x98] sm:$0x1]
        %v3001 = vld [vmem:[%s1168 + $0x9c] sm:$0xf]
        %v3002 = vld [vmem:[%s1168 + $0xa0] sm:$0xf]
        %v3003 = vld [vmem:[%s1168 + $0xa4] sm:$0x1]
        %v3004 = vld [vmem:[%s1168 + $0xa8] sm:$0xf]
        %v3005 = vld [vmem:[%s1168 + $0xac] sm:$0xf]
        %v3006 = vld [vmem:[%s1168 + $0xb0] sm:$0x1]
        %v3007 = vld [vmem:[%s1168 + $0xb4] sm:$0xf]
        %v3008 = vld [vmem:[%s1168 + $0xb8] sm:$0xf]
        %v3009 = vld [vmem:[%s1168 + $0xbc] sm:$0x1]
        %v3011 = vshrl.u32 %v2962, 16
        %v3013 = vrot.slane %v3011, 4
        %v3014 = vshll.u32 %v2962, 16
        %v3016 = vrot.slane %v3014, 5
        %v3017 = vor.u32 %v3013, %v3016
        %v3018 = vrot.slane %v3017, 4
        %v3020 = vshll.u32 %v2963, 16
        %v3022 = vrot.slane %v3020, 5
        %v3023 = vsel %vm1635, %v3018, %v3022
        %v3024 = vshrl.u32 %v2963, 16
        %v3026 = vrot.slane %v3024, 4
        %v3027 = vor.u32 %v3026, %v3022
        %v3028 = vrot.slane %v3027, 4
        %v3030 = vshll.u32 %v2964, 16
        %v3032 = vrot.slane %v3030, 5
        %v3033 = vsel %vm1635, %v3028, %v3032
        %v3035 = vshrl.u32 %v2965, 16
        %v3037 = vrot.slane %v3035, 4
        %v3038 = vshll.u32 %v2965, 16
        %v3040 = vrot.slane %v3038, 5
        %v3041 = vor.u32 %v3037, %v3040
        %v3042 = vrot.slane %v3041, 4
        %v3044 = vshll.u32 %v2966, 16
        %v3046 = vrot.slane %v3044, 5
        %v3047 = vsel %vm1635, %v3042, %v3046
        %v3048 = vshrl.u32 %v2966, 16
        %v3050 = vrot.slane %v3048, 4
        %v3051 = vor.u32 %v3050, %v3046
        %v3052 = vrot.slane %v3051, 4
        %v3054 = vshll.u32 %v2967, 16
        %v3056 = vrot.slane %v3054, 5
        %v3057 = vsel %vm1635, %v3052, %v3056
        %v3059 = vshrl.u32 %v2968, 16
        %v3061 = vrot.slane %v3059, 4
        %v3062 = vshll.u32 %v2968, 16
        %v3064 = vrot.slane %v3062, 5
        %v3065 = vor.u32 %v3061, %v3064
        %v3066 = vrot.slane %v3065, 4
        %v3068 = vshll.u32 %v2969, 16
        %v3070 = vrot.slane %v3068, 5
        %v3071 = vsel %vm1635, %v3066, %v3070
        %v3072 = vshrl.u32 %v2969, 16
        %v3074 = vrot.slane %v3072, 4
        %v3075 = vor.u32 %v3074, %v3070
        %v3076 = vrot.slane %v3075, 4
        %v3078 = vshll.u32 %v2970, 16
        %v3080 = vrot.slane %v3078, 5
        %v3081 = vsel %vm1635, %v3076, %v3080
        %v3083 = vshrl.u32 %v2971, 16
        %v3085 = vrot.slane %v3083, 4
        %v3086 = vshll.u32 %v2971, 16
        %v3088 = vrot.slane %v3086, 5
        %v3089 = vor.u32 %v3085, %v3088
        %v3090 = vrot.slane %v3089, 4
        %v3092 = vshll.u32 %v2972, 16
        %v3094 = vrot.slane %v3092, 5
        %v3095 = vsel %vm1635, %v3090, %v3094
        %v3096 = vshrl.u32 %v2972, 16
        %v3098 = vrot.slane %v3096, 4
        %v3099 = vor.u32 %v3098, %v3094
        %v3100 = vrot.slane %v3099, 4
        %v3102 = vshll.u32 %v2973, 16
        %v3104 = vrot.slane %v3102, 5
        %v3105 = vsel %vm1635, %v3100, %v3104
        %v3107 = vshrl.u32 %v2974, 16
        %v3109 = vrot.slane %v3107, 4
        %v3110 = vshll.u32 %v2974, 16
        %v3112 = vrot.slane %v3110, 5
        %v3113 = vor.u32 %v3109, %v3112
        %v3114 = vrot.slane %v3113, 4
        %v3116 = vshll.u32 %v2975, 16
        %v3118 = vrot.slane %v3116, 5
        %v3119 = vsel %vm1635, %v3114, %v3118
        %v3120 = vshrl.u32 %v2975, 16
        %v3122 = vrot.slane %v3120, 4
        %v3123 = vor.u32 %v3122, %v3118
        %v3124 = vrot.slane %v3123, 4
        %v3126 = vshll.u32 %v2976, 16
        %v3128 = vrot.slane %v3126, 5
        %v3129 = vsel %vm1635, %v3124, %v3128
        %v3131 = vshrl.u32 %v2977, 16
        %v3133 = vrot.slane %v3131, 4
        %v3134 = vshll.u32 %v2977, 16
        %v3136 = vrot.slane %v3134, 5
        %v3137 = vor.u32 %v3133, %v3136
        %v3138 = vrot.slane %v3137, 4
        %v3140 = vshll.u32 %v2978, 16
        %v3142 = vrot.slane %v3140, 5
        %v3143 = vsel %vm1635, %v3138, %v3142
        %v3144 = vshrl.u32 %v2978, 16
        %v3146 = vrot.slane %v3144, 4
        %v3147 = vor.u32 %v3146, %v3142
        %v3148 = vrot.slane %v3147, 4
        %v3150 = vshll.u32 %v2979, 16
        %v3152 = vrot.slane %v3150, 5
        %v3153 = vsel %vm1635, %v3148, %v3152
        %v3155 = vshrl.u32 %v2980, 16
        %v3157 = vrot.slane %v3155, 4
        %v3158 = vshll.u32 %v2980, 16
        %v3160 = vrot.slane %v3158, 5
        %v3161 = vor.u32 %v3157, %v3160
        %v3162 = vrot.slane %v3161, 4
        %v3164 = vshll.u32 %v2981, 16
        %v3166 = vrot.slane %v3164, 5
        %v3167 = vsel %vm1635, %v3162, %v3166
        %v3168 = vshrl.u32 %v2981, 16
        %v3170 = vrot.slane %v3168, 4
        %v3171 = vor.u32 %v3170, %v3166
        %v3172 = vrot.slane %v3171, 4
        %v3174 = vshll.u32 %v2982, 16
        %v3176 = vrot.slane %v3174, 5
        %v3177 = vsel %vm1635, %v3172, %v3176
        %v3179 = vshrl.u32 %v2983, 16
        %v3181 = vrot.slane %v3179, 4
        %v3182 = vshll.u32 %v2983, 16
        %v3184 = vrot.slane %v3182, 5
        %v3185 = vor.u32 %v3181, %v3184
        %v3186 = vrot.slane %v3185, 4
        %v3188 = vshll.u32 %v2984, 16
        %v3190 = vrot.slane %v3188, 5
        %v3191 = vsel %vm1635, %v3186, %v3190
        %v3192 = vshrl.u32 %v2984, 16
        %v3194 = vrot.slane %v3192, 4
        %v3195 = vor.u32 %v3194, %v3190
        %v3196 = vrot.slane %v3195, 4
        %v3198 = vshll.u32 %v2985, 16
        %v3200 = vrot.slane %v3198, 5
        %v3201 = vsel %vm1635, %v3196, %v3200
        %v3203 = vshrl.u32 %v2986, 16
        %v3205 = vrot.slane %v3203, 4
        %v3206 = vshll.u32 %v2986, 16
        %v3208 = vrot.slane %v3206, 5
        %v3209 = vor.u32 %v3205, %v3208
        %v3210 = vrot.slane %v3209, 4
        %v3212 = vshll.u32 %v2987, 16
        %v3214 = vrot.slane %v3212, 5
        %v3215 = vsel %vm1635, %v3210, %v3214
        %v3216 = vshrl.u32 %v2987, 16
        %v3218 = vrot.slane %v3216, 4
        %v3219 = vor.u32 %v3218, %v3214
        %v3220 = vrot.slane %v3219, 4
        %v3222 = vshll.u32 %v2988, 16
        %v3224 = vrot.slane %v3222, 5
        %v3225 = vsel %vm1635, %v3220, %v3224
        %v3227 = vshrl.u32 %v2989, 16
        %v3229 = vrot.slane %v3227, 4
        %v3230 = vshll.u32 %v2989, 16
        %v3232 = vrot.slane %v3230, 5
        %v3233 = vor.u32 %v3229, %v3232
        %v3234 = vrot.slane %v3233, 4
        %v3236 = vshll.u32 %v2990, 16
        %v3238 = vrot.slane %v3236, 5
        %v3239 = vsel %vm1635, %v3234, %v3238
        %v3240 = vshrl.u32 %v2990, 16
        %v3242 = vrot.slane %v3240, 4
        %v3243 = vor.u32 %v3242, %v3238
        %v3244 = vrot.slane %v3243, 4
        %v3246 = vshll.u32 %v2991, 16
        %v3248 = vrot.slane %v3246, 5
        %v3249 = vsel %vm1635, %v3244, %v3248
        %v3251 = vshrl.u32 %v2992, 16
        %v3253 = vrot.slane %v3251, 4
        %v3254 = vshll.u32 %v2992, 16
        %v3256 = vrot.slane %v3254, 5
        %v3257 = vor.u32 %v3253, %v3256
        %v3258 = vrot.slane %v3257, 4
        %v3260 = vshll.u32 %v2993, 16
        %v3262 = vrot.slane %v3260, 5
        %v3263 = vsel %vm1635, %v3258, %v3262
        %v3264 = vshrl.u32 %v2993, 16
        %v3266 = vrot.slane %v3264, 4
        %v3267 = vor.u32 %v3266, %v3262
        %v3268 = vrot.slane %v3267, 4
        %v3270 = vshll.u32 %v2994, 16
        %v3272 = vrot.slane %v3270, 5
        %v3273 = vsel %vm1635, %v3268, %v3272
        %v3275 = vshrl.u32 %v2995, 16
        %v3277 = vrot.slane %v3275, 4
        %v3278 = vshll.u32 %v2995, 16
        %v3280 = vrot.slane %v3278, 5
        %v3281 = vor.u32 %v3277, %v3280
        %v3282 = vrot.slane %v3281, 4
        %v3284 = vshll.u32 %v2996, 16
        %v3286 = vrot.slane %v3284, 5
        %v3287 = vsel %vm1635, %v3282, %v3286
        %v3288 = vshrl.u32 %v2996, 16
        %v3290 = vrot.slane %v3288, 4
        %v3291 = vor.u32 %v3290, %v3286
        %v3292 = vrot.slane %v3291, 4
        %v3294 = vshll.u32 %v2997, 16
        %v3296 = vrot.slane %v3294, 5
        %v3297 = vsel %vm1635, %v3292, %v3296
        %v3299 = vshrl.u32 %v2998, 16
        %v3301 = vrot.slane %v3299, 4
        %v3302 = vshll.u32 %v2998, 16
        %v3304 = vrot.slane %v3302, 5
        %v3305 = vor.u32 %v3301, %v3304
        %v3306 = vrot.slane %v3305, 4
        %v3308 = vshll.u32 %v2999, 16
        %v3310 = vrot.slane %v3308, 5
        %v3311 = vsel %vm1635, %v3306, %v3310
        %v3312 = vshrl.u32 %v2999, 16
        %v3314 = vrot.slane %v3312, 4
        %v3315 = vor.u32 %v3314, %v3310
        %v3316 = vrot.slane %v3315, 4
        %v3318 = vshll.u32 %v3000, 16
        %v3320 = vrot.slane %v3318, 5
        %v3321 = vsel %vm1635, %v3316, %v3320
        %v3323 = vshrl.u32 %v3001, 16
        %v3325 = vrot.slane %v3323, 4
        %v3326 = vshll.u32 %v3001, 16
        %v3328 = vrot.slane %v3326, 5
        %v3329 = vor.u32 %v3325, %v3328
        %v3330 = vrot.slane %v3329, 4
        %v3332 = vshll.u32 %v3002, 16
        %v3334 = vrot.slane %v3332, 5
        %v3335 = vsel %vm1635, %v3330, %v3334
        %v3336 = vshrl.u32 %v3002, 16
        %v3338 = vrot.slane %v3336, 4
        %v3339 = vor.u32 %v3338, %v3334
        %v3340 = vrot.slane %v3339, 4
        %v3342 = vshll.u32 %v3003, 16
        %v3344 = vrot.slane %v3342, 5
        %v3345 = vsel %vm1635, %v3340, %v3344
        %v3347 = vshrl.u32 %v3004, 16
        %v3349 = vrot.slane %v3347, 4
        %v3350 = vshll.u32 %v3004, 16
        %v3352 = vrot.slane %v3350, 5
        %v3353 = vor.u32 %v3349, %v3352
        %v3354 = vrot.slane %v3353, 4
        %v3356 = vshll.u32 %v3005, 16
        %v3358 = vrot.slane %v3356, 5
        %v3359 = vsel %vm1635, %v3354, %v3358
        %v3360 = vshrl.u32 %v3005, 16
        %v3362 = vrot.slane %v3360, 4
        %v3363 = vor.u32 %v3362, %v3358
        %v3364 = vrot.slane %v3363, 4
        %v3366 = vshll.u32 %v3006, 16
        %v3368 = vrot.slane %v3366, 5
        %v3369 = vsel %vm1635, %v3364, %v3368
        %v3371 = vshrl.u32 %v3007, 16
        %v3373 = vrot.slane %v3371, 4
        %v3374 = vshll.u32 %v3007, 16
        %v3376 = vrot.slane %v3374, 5
        %v3377 = vor.u32 %v3373, %v3376
        %v3378 = vrot.slane %v3377, 4
        %v3380 = vshll.u32 %v3008, 16
        %v3382 = vrot.slane %v3380, 5
        %v3383 = vsel %vm1635, %v3378, %v3382
        %v3384 = vshrl.u32 %v3008, 16
        %v3386 = vrot.slane %v3384, 4
        %v3387 = vor.u32 %v3386, %v3382
        %v3388 = vrot.slane %v3387, 4
        %v3390 = vshll.u32 %v3009, 16
        %v3392 = vrot.slane %v3390, 5
        %v3393 = vsel %vm1635, %v3388, %v3392
        %v3394 = vld [vmem:[%s3 + $0x40] sm:$0xf]
        %v3395 = vld [vmem:[%s3 + $0x44] sm:$0xf]
        %v3396 = vld [vmem:[%s3 + $0x48] sm:$0xf]
        %v3397 = vld [vmem:[%s3 + $0x4c] sm:$0xf]
        %v3398 = vunpack.c.l.b16 %v3023
        %v3399 = vunpack.c.l.b16 %v3033
        %v3400 = vunpack.c.l.b16 %v3047
        %v3401 = vunpack.c.l.b16 %v3057
        %v3402 = vunpack.c.l.b16 %v3071
        %v3403 = vunpack.c.l.b16 %v3081
        %v3404 = vunpack.c.l.b16 %v3095
        %v3405 = vunpack.c.l.b16 %v3105
        %v3406 = vunpack.c.l.b16 %v3119
        %v3407 = vunpack.c.l.b16 %v3129
        %v3408 = vunpack.c.l.b16 %v3143
        %v3409 = vunpack.c.l.b16 %v3153
        %v3410 = vunpack.c.l.b16 %v3167
        %v3411 = vunpack.c.l.b16 %v3177
        %v3412 = vunpack.c.l.b16 %v3191
        %v3413 = vunpack.c.l.b16 %v3201
        %v3414 = vunpack.c.l.b16 %v3215
        %v3415 = vunpack.c.l.b16 %v3225
        %v3416 = vunpack.c.l.b16 %v3239
        %v3417 = vunpack.c.l.b16 %v3249
        %v3418 = vunpack.c.l.b16 %v3263
        %v3419 = vunpack.c.l.b16 %v3273
        %v3420 = vunpack.c.l.b16 %v3287
        %v3421 = vunpack.c.l.b16 %v3297
        %v3422 = vunpack.c.l.b16 %v3311
        %v3423 = vunpack.c.l.b16 %v3321
        %v3424 = vunpack.c.l.b16 %v3335
        %v3425 = vunpack.c.l.b16 %v3345
        %v3426 = vunpack.c.l.b16 %v3359
        %v3427 = vunpack.c.l.b16 %v3369
        %v3428 = vunpack.c.l.b16 %v3383
        %v3429 = vunpack.c.l.b16 %v3393
        %v3430 = vpack.c.b16 %v3399, %v3398
        %v3431 = vpack.c.b16 %v3401, %v3400
        %v3432 = vpack.c.b16 %v3403, %v3402
        %v3433 = vpack.c.b16 %v3405, %v3404
        %v3434 = vpack.c.b16 %v3407, %v3406
        %v3435 = vpack.c.b16 %v3409, %v3408
        %v3436 = vpack.c.b16 %v3411, %v3410
        %v3437 = vpack.c.b16 %v3413, %v3412
        %v3438 = vpack.c.b16 %v3415, %v3414
        %v3439 = vpack.c.b16 %v3417, %v3416
        %v3440 = vpack.c.b16 %v3419, %v3418
        %v3441 = vpack.c.b16 %v3421, %v3420
        %v3442 = vpack.c.b16 %v3423, %v3422
        %v3443 = vpack.c.b16 %v3425, %v3424
        %v3444 = vpack.c.b16 %v3427, %v3426
        %v3445 = vpack.c.b16 %v3429, %v3428
        %v3450 = vunpack.c.l.b16 %v3394
        %v3451 = vunpack.c.l.b16 %v3395
        %v3452 = vunpack.c.l.b16 %v3396
        %v3453 = vunpack.c.l.b16 %v3397
        %v3454 = vpack.c.b16 %v3451, %v3450
        %v3455 = vpack.c.b16 %v3453, %v3452
        %v3459 = vsel %vm1415, %v3430, 0
        %v3462 = vsel %vm1415, %v3431, 0
        %v3465 = vsel %vm1415, %v3432, 0
        %v3468 = vsel %vm1415, %v3433, 0
        %v3471 = vsel %vm1415, %v3434, 0
        %v3474 = vsel %vm1415, %v3435, 0
        %v3477 = vsel %vm1415, %v3436, 0
        %v3480 = vsel %vm1415, %v3437, 0
        %v3483 = vsel %vm1415, %v3438, 0
        %v3486 = vsel %vm1415, %v3439, 0
        %v3489 = vsel %vm1415, %v3440, 0
        %v3492 = vsel %vm1415, %v3441, 0
        %v3495 = vsel %vm1415, %v3442, 0
        %v3498 = vsel %vm1415, %v3443, 0
        %v3501 = vsel %vm1415, %v3444, 0
        %v3504 = vsel %vm1415, %v3445, 0
        %3506 = vmatpush.bf16.msra.mxu0 0
        %3507 = vmatpush.bf16.msra.mxu0 0
        %3508 = vmatpush.bf16.msra.mxu0 0
        %3509 = vmatpush.bf16.msra.mxu0 0
        %3510 = vmatpush.bf16.msra.mxu0 0
        %3511 = vmatpush.bf16.msra.mxu0 0
        %3512 = vmatpush.bf16.msra.mxu0 %v3455
        %3513 = vmatpush.bf16.msra.mxu0 %v3454
        %3514 = vmatmul.bf16.gmra.mxu0 %v3459
        %v3515 = vpop.f32.mrf.mxu0
        %v3516 = vadd.f32 0.0, %v3515
        %v3517 = vpop.f32.mrf.mxu0
        %v3518 = vadd.f32 0.0, %v3517
        %3519 = vmatmul.bf16.gmra.mxu0 %v3462
        %v3520 = vpop.f32.mrf.mxu0
        %v3521 = vadd.f32 0.0, %v3520
        %v3522 = vpop.f32.mrf.mxu0
        %v3523 = vadd.f32 0.0, %v3522
        %3524 = vmatmul.bf16.gmra.mxu0 %v3465
        %v3525 = vpop.f32.mrf.mxu0
        %v3526 = vadd.f32 0.0, %v3525
        %v3527 = vpop.f32.mrf.mxu0
        %v3528 = vadd.f32 0.0, %v3527
        %3529 = vmatmul.bf16.gmra.mxu0 %v3468
        %v3530 = vpop.f32.mrf.mxu0
        %v3531 = vadd.f32 0.0, %v3530
        %v3532 = vpop.f32.mrf.mxu0
        %v3533 = vadd.f32 0.0, %v3532
        %3534 = vmatmul.bf16.gmra.mxu0 %v3471
        %v3535 = vpop.f32.mrf.mxu0
        %v3536 = vadd.f32 0.0, %v3535
        %v3537 = vpop.f32.mrf.mxu0
        %v3538 = vadd.f32 0.0, %v3537
        %3539 = vmatmul.bf16.gmra.mxu0 %v3474
        %v3540 = vpop.f32.mrf.mxu0
        %v3541 = vadd.f32 0.0, %v3540
        %v3542 = vpop.f32.mrf.mxu0
        %v3543 = vadd.f32 0.0, %v3542
        %3544 = vmatmul.bf16.gmra.mxu0 %v3477
        %v3545 = vpop.f32.mrf.mxu0
        %v3546 = vadd.f32 0.0, %v3545
        %v3547 = vpop.f32.mrf.mxu0
        %v3548 = vadd.f32 0.0, %v3547
        %3549 = vmatmul.bf16.gmra.mxu0 %v3480
        %v3550 = vpop.f32.mrf.mxu0
        %v3551 = vadd.f32 0.0, %v3550
        %v3552 = vpop.f32.mrf.mxu0
        %v3553 = vadd.f32 0.0, %v3552
        %3554 = vmatmul.bf16.gmra.mxu0 %v3483
        %v3555 = vpop.f32.mrf.mxu0
        %v3556 = vadd.f32 0.0, %v3555
        %v3557 = vpop.f32.mrf.mxu0
        %v3558 = vadd.f32 0.0, %v3557
        %3559 = vmatmul.bf16.gmra.mxu0 %v3486
        %v3560 = vpop.f32.mrf.mxu0
        %v3561 = vadd.f32 0.0, %v3560
        %v3562 = vpop.f32.mrf.mxu0
        %v3563 = vadd.f32 0.0, %v3562
        %3564 = vmatmul.bf16.gmra.mxu0 %v3489
        %v3565 = vpop.f32.mrf.mxu0
        %v3566 = vadd.f32 0.0, %v3565
        %v3567 = vpop.f32.mrf.mxu0
        %v3568 = vadd.f32 0.0, %v3567
        %3569 = vmatmul.bf16.gmra.mxu0 %v3492
        %v3570 = vpop.f32.mrf.mxu0
        %v3571 = vadd.f32 0.0, %v3570
        %v3572 = vpop.f32.mrf.mxu0
        %v3573 = vadd.f32 0.0, %v3572
        %3574 = vmatmul.bf16.gmra.mxu0 %v3495
        %v3575 = vpop.f32.mrf.mxu0
        %v3576 = vadd.f32 0.0, %v3575
        %v3577 = vpop.f32.mrf.mxu0
        %v3578 = vadd.f32 0.0, %v3577
        %3579 = vmatmul.bf16.gmra.mxu0 %v3498
        %v3580 = vpop.f32.mrf.mxu0
        %v3581 = vadd.f32 0.0, %v3580
        %v3582 = vpop.f32.mrf.mxu0
        %v3583 = vadd.f32 0.0, %v3582
        %3584 = vmatmul.bf16.gmra.mxu0 %v3501
        %v3585 = vpop.f32.mrf.mxu0
        %v3586 = vadd.f32 0.0, %v3585
        %v3587 = vpop.f32.mrf.mxu0
        %v3588 = vadd.f32 0.0, %v3587
        %3589 = vmatmul.bf16.gmra.mxu0 %v3504
        %v3590 = vpop.f32.mrf.mxu0
        %v3591 = vadd.f32 0.0, %v3590
        %v3592 = vpop.f32.mrf.mxu0
        %v3593 = vadd.f32 0.0, %v3592
        %3594 = vdwg.mxu0
        %v3595 = vadd.f32 %v2930, %v3516
        %v3596 = vadd.f32 %v2931, %v3518
        %v3597 = vadd.f32 %v2932, %v3521
        %v3598 = vadd.f32 %v2933, %v3523
        %v3599 = vadd.f32 %v2934, %v3526
        %v3600 = vadd.f32 %v2935, %v3528
        %v3601 = vadd.f32 %v2936, %v3531
        %v3602 = vadd.f32 %v2937, %v3533
        %v3603 = vadd.f32 %v2938, %v3536
        %v3604 = vadd.f32 %v2939, %v3538
        %v3605 = vadd.f32 %v2940, %v3541
        %v3606 = vadd.f32 %v2941, %v3543
        %v3607 = vadd.f32 %v2942, %v3546
        %v3608 = vadd.f32 %v2943, %v3548
        %v3609 = vadd.f32 %v2944, %v3551
        %v3610 = vadd.f32 %v2945, %v3553
        %v3611 = vadd.f32 %v2946, %v3556
        %v3612 = vadd.f32 %v2947, %v3558
        %v3613 = vadd.f32 %v2948, %v3561
        %v3614 = vadd.f32 %v2949, %v3563
        %v3615 = vadd.f32 %v2950, %v3566
        %v3616 = vadd.f32 %v2951, %v3568
        %v3617 = vadd.f32 %v2952, %v3571
        %v3618 = vadd.f32 %v2953, %v3573
        %v3619 = vadd.f32 %v2954, %v3576
        %v3620 = vadd.f32 %v2955, %v3578
        %v3621 = vadd.f32 %v2956, %v3581
        %v3622 = vadd.f32 %v2957, %v3583
        %v3623 = vadd.f32 %v2958, %v3586
        %v3624 = vadd.f32 %v2959, %v3588
        %v3625 = vadd.f32 %v2960, %v3591
        %v3626 = vadd.f32 %v2961, %v3593
        %v3627 = vld [vmem:[%s1168] sm:$0xe]
        %v3628 = vld [vmem:[%s1168 + $0xc] sm:$0xe]
        %v3629 = vld [vmem:[%s1168 + $0x18] sm:$0xe]
        %v3630 = vld [vmem:[%s1168 + $0x24] sm:$0xe]
        %v3631 = vld [vmem:[%s1168 + $0x30] sm:$0xe]
        %v3632 = vld [vmem:[%s1168 + $0x3c] sm:$0xe]
        %v3633 = vld [vmem:[%s1168 + $0x48] sm:$0xe]
        %v3634 = vld [vmem:[%s1168 + $0x54] sm:$0xe]
        %v3635 = vld [vmem:[%s1168 + $0x60] sm:$0xe]
        %v3636 = vld [vmem:[%s1168 + $0x6c] sm:$0xe]
        %v3637 = vld [vmem:[%s1168 + $0x78] sm:$0xe]
        %v3638 = vld [vmem:[%s1168 + $0x84] sm:$0xe]
        %v3639 = vld [vmem:[%s1168 + $0x90] sm:$0xe]
        %v3640 = vld [vmem:[%s1168 + $0x9c] sm:$0xe]
        %v3641 = vld [vmem:[%s1168 + $0xa8] sm:$0xe]
        %v3642 = vld [vmem:[%s1168 + $0xb4] sm:$0xe]
        %v3691 = vrot.slane %v3627, 5
        %v3692 = vrot.slane %v3691, 4
        %v3693 = vrot.slane %v2963, 5
        %v3694 = vsel %vm2319, %v3692, %v3693
        %v3695 = vrot.slane %v3693, 4
        %v3696 = vrot.slane %v2964, 5
        %v3697 = vsel %vm2319, %v3695, %v3696
        %v3698 = vrot.slane %v3628, 5
        %v3699 = vrot.slane %v3698, 4
        %v3700 = vrot.slane %v2966, 5
        %v3701 = vsel %vm2319, %v3699, %v3700
        %v3702 = vrot.slane %v3700, 4
        %v3703 = vrot.slane %v2967, 5
        %v3704 = vsel %vm2319, %v3702, %v3703
        %v3705 = vrot.slane %v3629, 5
        %v3706 = vrot.slane %v3705, 4
        %v3707 = vrot.slane %v2969, 5
        %v3708 = vsel %vm2319, %v3706, %v3707
        %v3709 = vrot.slane %v3707, 4
        %v3710 = vrot.slane %v2970, 5
        %v3711 = vsel %vm2319, %v3709, %v3710
        %v3712 = vrot.slane %v3630, 5
        %v3713 = vrot.slane %v3712, 4
        %v3714 = vrot.slane %v2972, 5
        %v3715 = vsel %vm2319, %v3713, %v3714
        %v3716 = vrot.slane %v3714, 4
        %v3717 = vrot.slane %v2973, 5
        %v3718 = vsel %vm2319, %v3716, %v3717
        %v3719 = vrot.slane %v3631, 5
        %v3720 = vrot.slane %v3719, 4
        %v3721 = vrot.slane %v2975, 5
        %v3722 = vsel %vm2319, %v3720, %v3721
        %v3723 = vrot.slane %v3721, 4
        %v3724 = vrot.slane %v2976, 5
        %v3725 = vsel %vm2319, %v3723, %v3724
        %v3726 = vrot.slane %v3632, 5
        %v3727 = vrot.slane %v3726, 4
        %v3728 = vrot.slane %v2978, 5
        %v3729 = vsel %vm2319, %v3727, %v3728
        %v3730 = vrot.slane %v3728, 4
        %v3731 = vrot.slane %v2979, 5
        %v3732 = vsel %vm2319, %v3730, %v3731
        %v3733 = vrot.slane %v3633, 5
        %v3734 = vrot.slane %v3733, 4
        %v3735 = vrot.slane %v2981, 5
        %v3736 = vsel %vm2319, %v3734, %v3735
        %v3737 = vrot.slane %v3735, 4
        %v3738 = vrot.slane %v2982, 5
        %v3739 = vsel %vm2319, %v3737, %v3738
        %v3740 = vrot.slane %v3634, 5
        %v3741 = vrot.slane %v3740, 4
        %v3742 = vrot.slane %v2984, 5
        %v3743 = vsel %vm2319, %v3741, %v3742
        %v3744 = vrot.slane %v3742, 4
        %v3745 = vrot.slane %v2985, 5
        %v3746 = vsel %vm2319, %v3744, %v3745
        %v3747 = vrot.slane %v3635, 5
        %v3748 = vrot.slane %v3747, 4
        %v3749 = vrot.slane %v2987, 5
        %v3750 = vsel %vm2319, %v3748, %v3749
        %v3751 = vrot.slane %v3749, 4
        %v3752 = vrot.slane %v2988, 5
        %v3753 = vsel %vm2319, %v3751, %v3752
        %v3754 = vrot.slane %v3636, 5
        %v3755 = vrot.slane %v3754, 4
        %v3756 = vrot.slane %v2990, 5
        %v3757 = vsel %vm2319, %v3755, %v3756
        %v3758 = vrot.slane %v3756, 4
        %v3759 = vrot.slane %v2991, 5
        %v3760 = vsel %vm2319, %v3758, %v3759
        %v3761 = vrot.slane %v3637, 5
        %v3762 = vrot.slane %v3761, 4
        %v3763 = vrot.slane %v2993, 5
        %v3764 = vsel %vm2319, %v3762, %v3763
        %v3765 = vrot.slane %v3763, 4
        %v3766 = vrot.slane %v2994, 5
        %v3767 = vsel %vm2319, %v3765, %v3766
        %v3768 = vrot.slane %v3638, 5
        %v3769 = vrot.slane %v3768, 4
        %v3770 = vrot.slane %v2996, 5
        %v3771 = vsel %vm2319, %v3769, %v3770
        %v3772 = vrot.slane %v3770, 4
        %v3773 = vrot.slane %v2997, 5
        %v3774 = vsel %vm2319, %v3772, %v3773
        %v3775 = vrot.slane %v3639, 5
        %v3776 = vrot.slane %v3775, 4
        %v3777 = vrot.slane %v2999, 5
        %v3778 = vsel %vm2319, %v3776, %v3777
        %v3779 = vrot.slane %v3777, 4
        %v3780 = vrot.slane %v3000, 5
        %v3781 = vsel %vm2319, %v3779, %v3780
        %v3782 = vrot.slane %v3640, 5
        %v3783 = vrot.slane %v3782, 4
        %v3784 = vrot.slane %v3002, 5
        %v3785 = vsel %vm2319, %v3783, %v3784
        %v3786 = vrot.slane %v3784, 4
        %v3787 = vrot.slane %v3003, 5
        %v3788 = vsel %vm2319, %v3786, %v3787
        %v3789 = vrot.slane %v3641, 5
        %v3790 = vrot.slane %v3789, 4
        %v3791 = vrot.slane %v3005, 5
        %v3792 = vsel %vm2319, %v3790, %v3791
        %v3793 = vrot.slane %v3791, 4
        %v3794 = vrot.slane %v3006, 5
        %v3795 = vsel %vm2319, %v3793, %v3794
        %v3796 = vrot.slane %v3642, 5
        %v3797 = vrot.slane %v3796, 4
        %v3798 = vrot.slane %v3008, 5
        %v3799 = vsel %vm2319, %v3797, %v3798
        %v3800 = vrot.slane %v3798, 4
        %v3801 = vrot.slane %v3009, 5
        %v3802 = vsel %vm2319, %v3800, %v3801
        %v3803 = vld [vmem:[%s3 + $0x50] sm:$0xf]
        %v3804 = vld [vmem:[%s3 + $0x54] sm:$0xf]
        %v3805 = vld [vmem:[%s3 + $0x58] sm:$0xf]
        %v3806 = vld [vmem:[%s3 + $0x5c] sm:$0xf]
        %v3807 = vunpack.c.l.b16 %v3694
        %v3808 = vunpack.c.l.b16 %v3697
        %v3809 = vunpack.c.l.b16 %v3701
        %v3810 = vunpack.c.l.b16 %v3704
        %v3811 = vunpack.c.l.b16 %v3708
        %v3812 = vunpack.c.l.b16 %v3711
        %v3813 = vunpack.c.l.b16 %v3715
        %v3814 = vunpack.c.l.b16 %v3718
        %v3815 = vunpack.c.l.b16 %v3722
        %v3816 = vunpack.c.l.b16 %v3725
        %v3817 = vunpack.c.l.b16 %v3729
        %v3818 = vunpack.c.l.b16 %v3732
        %v3819 = vunpack.c.l.b16 %v3736
        %v3820 = vunpack.c.l.b16 %v3739
        %v3821 = vunpack.c.l.b16 %v3743
        %v3822 = vunpack.c.l.b16 %v3746
        %v3823 = vunpack.c.l.b16 %v3750
        %v3824 = vunpack.c.l.b16 %v3753
        %v3825 = vunpack.c.l.b16 %v3757
        %v3826 = vunpack.c.l.b16 %v3760
        %v3827 = vunpack.c.l.b16 %v3764
        %v3828 = vunpack.c.l.b16 %v3767
        %v3829 = vunpack.c.l.b16 %v3771
        %v3830 = vunpack.c.l.b16 %v3774
        %v3831 = vunpack.c.l.b16 %v3778
        %v3832 = vunpack.c.l.b16 %v3781
        %v3833 = vunpack.c.l.b16 %v3785
        %v3834 = vunpack.c.l.b16 %v3788
        %v3835 = vunpack.c.l.b16 %v3792
        %v3836 = vunpack.c.l.b16 %v3795
        %v3837 = vunpack.c.l.b16 %v3799
        %v3838 = vunpack.c.l.b16 %v3802
        %v3839 = vpack.c.b16 %v3808, %v3807
        %v3840 = vpack.c.b16 %v3810, %v3809
        %v3841 = vpack.c.b16 %v3812, %v3811
        %v3842 = vpack.c.b16 %v3814, %v3813
        %v3843 = vpack.c.b16 %v3816, %v3815
        %v3844 = vpack.c.b16 %v3818, %v3817
        %v3845 = vpack.c.b16 %v3820, %v3819
        %v3846 = vpack.c.b16 %v3822, %v3821
        %v3847 = vpack.c.b16 %v3824, %v3823
        %v3848 = vpack.c.b16 %v3826, %v3825
        %v3849 = vpack.c.b16 %v3828, %v3827
        %v3850 = vpack.c.b16 %v3830, %v3829
        %v3851 = vpack.c.b16 %v3832, %v3831
        %v3852 = vpack.c.b16 %v3834, %v3833
        %v3853 = vpack.c.b16 %v3836, %v3835
        %v3854 = vpack.c.b16 %v3838, %v3837
        %v3859 = vunpack.c.l.b16 %v3803
        %v3860 = vunpack.c.l.b16 %v3804
        %v3861 = vunpack.c.l.b16 %v3805
        %v3862 = vunpack.c.l.b16 %v3806
        %v3863 = vpack.c.b16 %v3860, %v3859
        %v3864 = vpack.c.b16 %v3862, %v3861
        %v3868 = vsel %vm1415, %v3839, 0
        %v3871 = vsel %vm1415, %v3840, 0
        %v3874 = vsel %vm1415, %v3841, 0
        %v3877 = vsel %vm1415, %v3842, 0
        %v3880 = vsel %vm1415, %v3843, 0
        %v3883 = vsel %vm1415, %v3844, 0
        %v3886 = vsel %vm1415, %v3845, 0
        %v3889 = vsel %vm1415, %v3846, 0
        %v3892 = vsel %vm1415, %v3847, 0
        %v3895 = vsel %vm1415, %v3848, 0
        %v3898 = vsel %vm1415, %v3849, 0
        %v3901 = vsel %vm1415, %v3850, 0
        %v3904 = vsel %vm1415, %v3851, 0
        %v3907 = vsel %vm1415, %v3852, 0
        %v3910 = vsel %vm1415, %v3853, 0
        %v3913 = vsel %vm1415, %v3854, 0
        %3915 = vmatpush.bf16.msra.mxu0 0
        %3916 = vmatpush.bf16.msra.mxu0 0
        %3917 = vmatpush.bf16.msra.mxu0 0
        %3918 = vmatpush.bf16.msra.mxu0 0
        %3919 = vmatpush.bf16.msra.mxu0 0
        %3920 = vmatpush.bf16.msra.mxu0 0
        %3921 = vmatpush.bf16.msra.mxu0 %v3864
        %3922 = vmatpush.bf16.msra.mxu0 %v3863
        %3923 = vmatmul.bf16.gmra.mxu0 %v3868
        %v3924 = vpop.f32.mrf.mxu0
        %v3925 = vadd.f32 0.0, %v3924
        %v3926 = vpop.f32.mrf.mxu0
        %v3927 = vadd.f32 0.0, %v3926
        %3928 = vmatmul.bf16.gmra.mxu0 %v3871
        %v3929 = vpop.f32.mrf.mxu0
        %v3930 = vadd.f32 0.0, %v3929
        %v3931 = vpop.f32.mrf.mxu0
        %v3932 = vadd.f32 0.0, %v3931
        %3933 = vmatmul.bf16.gmra.mxu0 %v3874
        %v3934 = vpop.f32.mrf.mxu0
        %v3935 = vadd.f32 0.0, %v3934
        %v3936 = vpop.f32.mrf.mxu0
        %v3937 = vadd.f32 0.0, %v3936
        %3938 = vmatmul.bf16.gmra.mxu0 %v3877
        %v3939 = vpop.f32.mrf.mxu0
        %v3940 = vadd.f32 0.0, %v3939
        %v3941 = vpop.f32.mrf.mxu0
        %v3942 = vadd.f32 0.0, %v3941
        %3943 = vmatmul.bf16.gmra.mxu0 %v3880
        %v3944 = vpop.f32.mrf.mxu0
        %v3945 = vadd.f32 0.0, %v3944
        %v3946 = vpop.f32.mrf.mxu0
        %v3947 = vadd.f32 0.0, %v3946
        %3948 = vmatmul.bf16.gmra.mxu0 %v3883
        %v3949 = vpop.f32.mrf.mxu0
        %v3950 = vadd.f32 0.0, %v3949
        %v3951 = vpop.f32.mrf.mxu0
        %v3952 = vadd.f32 0.0, %v3951
        %3953 = vmatmul.bf16.gmra.mxu0 %v3886
        %v3954 = vpop.f32.mrf.mxu0
        %v3955 = vadd.f32 0.0, %v3954
        %v3956 = vpop.f32.mrf.mxu0
        %v3957 = vadd.f32 0.0, %v3956
        %3958 = vmatmul.bf16.gmra.mxu0 %v3889
        %v3959 = vpop.f32.mrf.mxu0
        %v3960 = vadd.f32 0.0, %v3959
        %v3961 = vpop.f32.mrf.mxu0
        %v3962 = vadd.f32 0.0, %v3961
        %3963 = vmatmul.bf16.gmra.mxu0 %v3892
        %v3964 = vpop.f32.mrf.mxu0
        %v3965 = vadd.f32 0.0, %v3964
        %v3966 = vpop.f32.mrf.mxu0
        %v3967 = vadd.f32 0.0, %v3966
        %3968 = vmatmul.bf16.gmra.mxu0 %v3895
        %v3969 = vpop.f32.mrf.mxu0
        %v3970 = vadd.f32 0.0, %v3969
        %v3971 = vpop.f32.mrf.mxu0
        %v3972 = vadd.f32 0.0, %v3971
        %3973 = vmatmul.bf16.gmra.mxu0 %v3898
        %v3974 = vpop.f32.mrf.mxu0
        %v3975 = vadd.f32 0.0, %v3974
        %v3976 = vpop.f32.mrf.mxu0
        %v3977 = vadd.f32 0.0, %v3976
        %3978 = vmatmul.bf16.gmra.mxu0 %v3901
        %v3979 = vpop.f32.mrf.mxu0
        %v3980 = vadd.f32 0.0, %v3979
        %v3981 = vpop.f32.mrf.mxu0
        %v3982 = vadd.f32 0.0, %v3981
        %3983 = vmatmul.bf16.gmra.mxu0 %v3904
        %v3984 = vpop.f32.mrf.mxu0
        %v3985 = vadd.f32 0.0, %v3984
        %v3986 = vpop.f32.mrf.mxu0
        %v3987 = vadd.f32 0.0, %v3986
        %3988 = vmatmul.bf16.gmra.mxu0 %v3907
        %v3989 = vpop.f32.mrf.mxu0
        %v3990 = vadd.f32 0.0, %v3989
        %v3991 = vpop.f32.mrf.mxu0
        %v3992 = vadd.f32 0.0, %v3991
        %3993 = vmatmul.bf16.gmra.mxu0 %v3910
        %v3994 = vpop.f32.mrf.mxu0
        %v3995 = vadd.f32 0.0, %v3994
        %v3996 = vpop.f32.mrf.mxu0
        %v3997 = vadd.f32 0.0, %v3996
        %3998 = vmatmul.bf16.gmra.mxu0 %v3913
        %v3999 = vpop.f32.mrf.mxu0
        %v4000 = vadd.f32 0.0, %v3999
        %v4001 = vpop.f32.mrf.mxu0
        %v4002 = vadd.f32 0.0, %v4001
        %4003 = vdwg.mxu0
        %v4004 = vadd.f32 %v3595, %v3925
        %v4005 = vadd.f32 %v3596, %v3927
        %v4006 = vadd.f32 %v3597, %v3930
        %v4007 = vadd.f32 %v3598, %v3932
        %v4008 = vadd.f32 %v3599, %v3935
        %v4009 = vadd.f32 %v3600, %v3937
        %v4010 = vadd.f32 %v3601, %v3940
        %v4011 = vadd.f32 %v3602, %v3942
        %v4012 = vadd.f32 %v3603, %v3945
        %v4013 = vadd.f32 %v3604, %v3947
        %v4014 = vadd.f32 %v3605, %v3950
        %v4015 = vadd.f32 %v3606, %v3952
        %v4016 = vadd.f32 %v3607, %v3955
        %v4017 = vadd.f32 %v3608, %v3957
        %v4018 = vadd.f32 %v3609, %v3960
        %v4019 = vadd.f32 %v3610, %v3962
        %v4020 = vadd.f32 %v3611, %v3965
        %v4021 = vadd.f32 %v3612, %v3967
        %v4022 = vadd.f32 %v3613, %v3970
        %v4023 = vadd.f32 %v3614, %v3972
        %v4024 = vadd.f32 %v3615, %v3975
        %v4025 = vadd.f32 %v3616, %v3977
        %v4026 = vadd.f32 %v3617, %v3980
        %v4027 = vadd.f32 %v3618, %v3982
        %v4028 = vadd.f32 %v3619, %v3985
        %v4029 = vadd.f32 %v3620, %v3987
        %v4030 = vadd.f32 %v3621, %v3990
        %v4031 = vadd.f32 %v3622, %v3992
        %v4032 = vadd.f32 %v3623, %v3995
        %v4033 = vadd.f32 %v3624, %v3997
        %v4034 = vadd.f32 %v3625, %v4000
        %v4035 = vadd.f32 %v3626, %v4002
        %s4036 = scalar_lea.vmem [#allocation2], 24
        %v4037 = vld [vmem:[%s4036] sm:$0xf]
        %v4038 = vld [vmem:[%s4036 + $0x4] sm:$0xf]
        %v4039 = vld [vmem:[%s4036 + $0xc] sm:$0xf]
        %v4040 = vld [vmem:[%s4036 + $0x10] sm:$0xf]
        %v4041 = vld [vmem:[%s4036 + $0x18] sm:$0xf]
        %v4042 = vld [vmem:[%s4036 + $0x1c] sm:$0xf]
        %v4043 = vld [vmem:[%s4036 + $0x24] sm:$0xf]
        %v4044 = vld [vmem:[%s4036 + $0x28] sm:$0xf]
        %v4045 = vld [vmem:[%s4036 + $0x30] sm:$0xf]
        %v4046 = vld [vmem:[%s4036 + $0x34] sm:$0xf]
        %v4047 = vld [vmem:[%s4036 + $0x3c] sm:$0xf]
        %v4048 = vld [vmem:[%s4036 + $0x40] sm:$0xf]
        %v4049 = vld [vmem:[%s4036 + $0x48] sm:$0xf]
        %v4050 = vld [vmem:[%s4036 + $0x4c] sm:$0xf]
        %v4051 = vld [vmem:[%s4036 + $0x54] sm:$0xf]
        %v4052 = vld [vmem:[%s4036 + $0x58] sm:$0xf]
        %v4053 = vld [vmem:[%s4036 + $0x60] sm:$0xf]
        %v4054 = vld [vmem:[%s4036 + $0x64] sm:$0xf]
        %v4055 = vld [vmem:[%s4036 + $0x6c] sm:$0xf]
        %v4056 = vld [vmem:[%s4036 + $0x70] sm:$0xf]
        %v4057 = vld [vmem:[%s4036 + $0x78] sm:$0xf]
        %v4058 = vld [vmem:[%s4036 + $0x7c] sm:$0xf]
        %v4059 = vld [vmem:[%s4036 + $0x84] sm:$0xf]
        %v4060 = vld [vmem:[%s4036 + $0x88] sm:$0xf]
        %v4061 = vld [vmem:[%s4036 + $0x90] sm:$0xf]
        %v4062 = vld [vmem:[%s4036 + $0x94] sm:$0xf]
        %v4063 = vld [vmem:[%s4036 + $0x9c] sm:$0xf]
        %v4064 = vld [vmem:[%s4036 + $0xa0] sm:$0xf]
        %v4065 = vld [vmem:[%s4036 + $0xa8] sm:$0xf]
        %v4066 = vld [vmem:[%s4036 + $0xac] sm:$0xf]
        %v4067 = vld [vmem:[%s4036 + $0xb4] sm:$0xf]
        %v4068 = vld [vmem:[%s4036 + $0xb8] sm:$0xf]
        %v4069 = vld [vmem:[%s3 + $0x60] sm:$0xf]
        %v4070 = vld [vmem:[%s3 + $0x64] sm:$0xf]
        %v4071 = vld [vmem:[%s3 + $0x68] sm:$0xf]
        %v4072 = vld [vmem:[%s3 + $0x6c] sm:$0xf]
        %v4105 = vunpack.c.l.b16 %v4037
        %v4106 = vunpack.c.l.b16 %v4038
        %v4107 = vunpack.c.l.b16 %v4039
        %v4108 = vunpack.c.l.b16 %v4040
        %v4109 = vunpack.c.l.b16 %v4041
        %v4110 = vunpack.c.l.b16 %v4042
        %v4111 = vunpack.c.l.b16 %v4043
        %v4112 = vunpack.c.l.b16 %v4044
        %v4113 = vunpack.c.l.b16 %v4045
        %v4114 = vunpack.c.l.b16 %v4046
        %v4115 = vunpack.c.l.b16 %v4047
        %v4116 = vunpack.c.l.b16 %v4048
        %v4117 = vunpack.c.l.b16 %v4049
        %v4118 = vunpack.c.l.b16 %v4050
        %v4119 = vunpack.c.l.b16 %v4051
        %v4120 = vunpack.c.l.b16 %v4052
        %v4121 = vunpack.c.l.b16 %v4053
        %v4122 = vunpack.c.l.b16 %v4054
        %v4123 = vunpack.c.l.b16 %v4055
        %v4124 = vunpack.c.l.b16 %v4056
        %v4125 = vunpack.c.l.b16 %v4057
        %v4126 = vunpack.c.l.b16 %v4058
        %v4127 = vunpack.c.l.b16 %v4059
        %v4128 = vunpack.c.l.b16 %v4060
        %v4129 = vunpack.c.l.b16 %v4061
        %v4130 = vunpack.c.l.b16 %v4062
        %v4131 = vunpack.c.l.b16 %v4063
        %v4132 = vunpack.c.l.b16 %v4064
        %v4133 = vunpack.c.l.b16 %v4065
        %v4134 = vunpack.c.l.b16 %v4066
        %v4135 = vunpack.c.l.b16 %v4067
        %v4136 = vunpack.c.l.b16 %v4068
        %v4137 = vpack.c.b16 %v4106, %v4105
        %v4138 = vpack.c.b16 %v4108, %v4107
        %v4139 = vpack.c.b16 %v4110, %v4109
        %v4140 = vpack.c.b16 %v4112, %v4111
        %v4141 = vpack.c.b16 %v4114, %v4113
        %v4142 = vpack.c.b16 %v4116, %v4115
        %v4143 = vpack.c.b16 %v4118, %v4117
        %v4144 = vpack.c.b16 %v4120, %v4119
        %v4145 = vpack.c.b16 %v4122, %v4121
        %v4146 = vpack.c.b16 %v4124, %v4123
        %v4147 = vpack.c.b16 %v4126, %v4125
        %v4148 = vpack.c.b16 %v4128, %v4127
        %v4149 = vpack.c.b16 %v4130, %v4129
        %v4150 = vpack.c.b16 %v4132, %v4131
        %v4151 = vpack.c.b16 %v4134, %v4133
        %v4152 = vpack.c.b16 %v4136, %v4135
        %v4157 = vunpack.c.l.b16 %v4069
        %v4158 = vunpack.c.l.b16 %v4070
        %v4159 = vunpack.c.l.b16 %v4071
        %v4160 = vunpack.c.l.b16 %v4072
        %v4161 = vpack.c.b16 %v4158, %v4157
        %v4162 = vpack.c.b16 %v4160, %v4159
        %v4166 = vsel %vm1415, %v4137, 0
        %v4169 = vsel %vm1415, %v4138, 0
        %v4172 = vsel %vm1415, %v4139, 0
        %v4175 = vsel %vm1415, %v4140, 0
        %v4178 = vsel %vm1415, %v4141, 0
        %v4181 = vsel %vm1415, %v4142, 0
        %v4184 = vsel %vm1415, %v4143, 0
        %v4187 = vsel %vm1415, %v4144, 0
        %v4190 = vsel %vm1415, %v4145, 0
        %v4193 = vsel %vm1415, %v4146, 0
        %v4196 = vsel %vm1415, %v4147, 0
        %v4199 = vsel %vm1415, %v4148, 0
        %v4202 = vsel %vm1415, %v4149, 0
        %v4205 = vsel %vm1415, %v4150, 0
        %v4208 = vsel %vm1415, %v4151, 0
        %v4211 = vsel %vm1415, %v4152, 0
        %4213 = vmatpush.bf16.msra.mxu0 0
        %4214 = vmatpush.bf16.msra.mxu0 0
        %4215 = vmatpush.bf16.msra.mxu0 0
        %4216 = vmatpush.bf16.msra.mxu0 0
        %4217 = vmatpush.bf16.msra.mxu0 0
        %4218 = vmatpush.bf16.msra.mxu0 0
        %4219 = vmatpush.bf16.msra.mxu0 %v4162
        %4220 = vmatpush.bf16.msra.mxu0 %v4161
        %4221 = vmatmul.bf16.gmra.mxu0 %v4166
        %v4222 = vpop.f32.mrf.mxu0
        %v4223 = vadd.f32 0.0, %v4222
        %v4224 = vpop.f32.mrf.mxu0
        %v4225 = vadd.f32 0.0, %v4224
        %4226 = vmatmul.bf16.gmra.mxu0 %v4169
        %v4227 = vpop.f32.mrf.mxu0
        %v4228 = vadd.f32 0.0, %v4227
        %v4229 = vpop.f32.mrf.mxu0
        %v4230 = vadd.f32 0.0, %v4229
        %4231 = vmatmul.bf16.gmra.mxu0 %v4172
        %v4232 = vpop.f32.mrf.mxu0
        %v4233 = vadd.f32 0.0, %v4232
        %v4234 = vpop.f32.mrf.mxu0
        %v4235 = vadd.f32 0.0, %v4234
        %4236 = vmatmul.bf16.gmra.mxu0 %v4175
        %v4237 = vpop.f32.mrf.mxu0
        %v4238 = vadd.f32 0.0, %v4237
        %v4239 = vpop.f32.mrf.mxu0
        %v4240 = vadd.f32 0.0, %v4239
        %4241 = vmatmul.bf16.gmra.mxu0 %v4178
        %v4242 = vpop.f32.mrf.mxu0
        %v4243 = vadd.f32 0.0, %v4242
        %v4244 = vpop.f32.mrf.mxu0
        %v4245 = vadd.f32 0.0, %v4244
        %4246 = vmatmul.bf16.gmra.mxu0 %v4181
        %v4247 = vpop.f32.mrf.mxu0
        %v4248 = vadd.f32 0.0, %v4247
        %v4249 = vpop.f32.mrf.mxu0
        %v4250 = vadd.f32 0.0, %v4249
        %4251 = vmatmul.bf16.gmra.mxu0 %v4184
        %v4252 = vpop.f32.mrf.mxu0
        %v4253 = vadd.f32 0.0, %v4252
        %v4254 = vpop.f32.mrf.mxu0
        %v4255 = vadd.f32 0.0, %v4254
        %4256 = vmatmul.bf16.gmra.mxu0 %v4187
        %v4257 = vpop.f32.mrf.mxu0
        %v4258 = vadd.f32 0.0, %v4257
        %v4259 = vpop.f32.mrf.mxu0
        %v4260 = vadd.f32 0.0, %v4259
        %4261 = vmatmul.bf16.gmra.mxu0 %v4190
        %v4262 = vpop.f32.mrf.mxu0
        %v4263 = vadd.f32 0.0, %v4262
        %v4264 = vpop.f32.mrf.mxu0
        %v4265 = vadd.f32 0.0, %v4264
        %4266 = vmatmul.bf16.gmra.mxu0 %v4193
        %v4267 = vpop.f32.mrf.mxu0
        %v4268 = vadd.f32 0.0, %v4267
        %v4269 = vpop.f32.mrf.mxu0
        %v4270 = vadd.f32 0.0, %v4269
        %4271 = vmatmul.bf16.gmra.mxu0 %v4196
        %v4272 = vpop.f32.mrf.mxu0
        %v4273 = vadd.f32 0.0, %v4272
        %v4274 = vpop.f32.mrf.mxu0
        %v4275 = vadd.f32 0.0, %v4274
        %4276 = vmatmul.bf16.gmra.mxu0 %v4199
        %v4277 = vpop.f32.mrf.mxu0
        %v4278 = vadd.f32 0.0, %v4277
        %v4279 = vpop.f32.mrf.mxu0
        %v4280 = vadd.f32 0.0, %v4279
        %4281 = vmatmul.bf16.gmra.mxu0 %v4202
        %v4282 = vpop.f32.mrf.mxu0
        %v4283 = vadd.f32 0.0, %v4282
        %v4284 = vpop.f32.mrf.mxu0
        %v4285 = vadd.f32 0.0, %v4284
        %4286 = vmatmul.bf16.gmra.mxu0 %v4205
        %v4287 = vpop.f32.mrf.mxu0
        %v4288 = vadd.f32 0.0, %v4287
        %v4289 = vpop.f32.mrf.mxu0
        %v4290 = vadd.f32 0.0, %v4289
        %4291 = vmatmul.bf16.gmra.mxu0 %v4208
        %v4292 = vpop.f32.mrf.mxu0
        %v4293 = vadd.f32 0.0, %v4292
        %v4294 = vpop.f32.mrf.mxu0
        %v4295 = vadd.f32 0.0, %v4294
        %4296 = vmatmul.bf16.gmra.mxu0 %v4211
        %v4297 = vpop.f32.mrf.mxu0
        %v4298 = vadd.f32 0.0, %v4297
        %v4299 = vpop.f32.mrf.mxu0
        %v4300 = vadd.f32 0.0, %v4299
        %4301 = vdwg.mxu0
        %v4302 = vadd.f32 %v4004, %v4223
        %v4303 = vadd.f32 %v4005, %v4225
        %v4304 = vadd.f32 %v4006, %v4228
        %v4305 = vadd.f32 %v4007, %v4230
        %v4306 = vadd.f32 %v4008, %v4233
        %v4307 = vadd.f32 %v4009, %v4235
        %v4308 = vadd.f32 %v4010, %v4238
        %v4309 = vadd.f32 %v4011, %v4240
        %v4310 = vadd.f32 %v4012, %v4243
        %v4311 = vadd.f32 %v4013, %v4245
        %v4312 = vadd.f32 %v4014, %v4248
        %v4313 = vadd.f32 %v4015, %v4250
        %v4314 = vadd.f32 %v4016, %v4253
        %v4315 = vadd.f32 %v4017, %v4255
        %v4316 = vadd.f32 %v4018, %v4258
        %v4317 = vadd.f32 %v4019, %v4260
        %v4318 = vadd.f32 %v4020, %v4263
        %v4319 = vadd.f32 %v4021, %v4265
        %v4320 = vadd.f32 %v4022, %v4268
        %v4321 = vadd.f32 %v4023, %v4270
        %v4322 = vadd.f32 %v4024, %v4273
        %v4323 = vadd.f32 %v4025, %v4275
        %v4324 = vadd.f32 %v4026, %v4278
        %v4325 = vadd.f32 %v4027, %v4280
        %v4326 = vadd.f32 %v4028, %v4283
        %v4327 = vadd.f32 %v4029, %v4285
        %v4328 = vadd.f32 %v4030, %v4288
        %v4329 = vadd.f32 %v4031, %v4290
        %v4330 = vadd.f32 %v4032, %v4293
        %v4331 = vadd.f32 %v4033, %v4295
        %v4332 = vadd.f32 %v4034, %v4298
        %v4333 = vadd.f32 %v4035, %v4300
        %v4334 = vld [vmem:[%s4036] sm:$0xf]
        %v4335 = vld [vmem:[%s4036 + $0x4] sm:$0xf]
        %v4336 = vld [vmem:[%s4036 + $0x8] sm:$0x1]
        %v4337 = vld [vmem:[%s4036 + $0xc] sm:$0xf]
        %v4338 = vld [vmem:[%s4036 + $0x10] sm:$0xf]
        %v4339 = vld [vmem:[%s4036 + $0x14] sm:$0x1]
        %v4340 = vld [vmem:[%s4036 + $0x18] sm:$0xf]
        %v4341 = vld [vmem:[%s4036 + $0x1c] sm:$0xf]
        %v4342 = vld [vmem:[%s4036 + $0x20] sm:$0x1]
        %v4343 = vld [vmem:[%s4036 + $0x24] sm:$0xf]
        %v4344 = vld [vmem:[%s4036 + $0x28] sm:$0xf]
        %v4345 = vld [vmem:[%s4036 + $0x2c] sm:$0x1]
        %v4346 = vld [vmem:[%s4036 + $0x30] sm:$0xf]
        %v4347 = vld [vmem:[%s4036 + $0x34] sm:$0xf]
        %v4348 = vld [vmem:[%s4036 + $0x38] sm:$0x1]
        %v4349 = vld [vmem:[%s4036 + $0x3c] sm:$0xf]
        %v4350 = vld [vmem:[%s4036 + $0x40] sm:$0xf]
        %v4351 = vld [vmem:[%s4036 + $0x44] sm:$0x1]
        %v4352 = vld [vmem:[%s4036 + $0x48] sm:$0xf]
        %v4353 = vld [vmem:[%s4036 + $0x4c] sm:$0xf]
        %v4354 = vld [vmem:[%s4036 + $0x50] sm:$0x1]
        %v4355 = vld [vmem:[%s4036 + $0x54] sm:$0xf]
        %v4356 = vld [vmem:[%s4036 + $0x58] sm:$0xf]
        %v4357 = vld [vmem:[%s4036 + $0x5c] sm:$0x1]
        %v4358 = vld [vmem:[%s4036 + $0x60] sm:$0xf]
        %v4359 = vld [vmem:[%s4036 + $0x64] sm:$0xf]
        %v4360 = vld [vmem:[%s4036 + $0x68] sm:$0x1]
        %v4361 = vld [vmem:[%s4036 + $0x6c] sm:$0xf]
        %v4362 = vld [vmem:[%s4036 + $0x70] sm:$0xf]
        %v4363 = vld [vmem:[%s4036 + $0x74] sm:$0x1]
        %v4364 = vld [vmem:[%s4036 + $0x78] sm:$0xf]
        %v4365 = vld [vmem:[%s4036 + $0x7c] sm:$0xf]
        %v4366 = vld [vmem:[%s4036 + $0x80] sm:$0x1]
        %v4367 = vld [vmem:[%s4036 + $0x84] sm:$0xf]
        %v4368 = vld [vmem:[%s4036 + $0x88] sm:$0xf]
        %v4369 = vld [vmem:[%s4036 + $0x8c] sm:$0x1]
        %v4370 = vld [vmem:[%s4036 + $0x90] sm:$0xf]
        %v4371 = vld [vmem:[%s4036 + $0x94] sm:$0xf]
        %v4372 = vld [vmem:[%s4036 + $0x98] sm:$0x1]
        %v4373 = vld [vmem:[%s4036 + $0x9c] sm:$0xf]
        %v4374 = vld [vmem:[%s4036 + $0xa0] sm:$0xf]
        %v4375 = vld [vmem:[%s4036 + $0xa4] sm:$0x1]
        %v4376 = vld [vmem:[%s4036 + $0xa8] sm:$0xf]
        %v4377 = vld [vmem:[%s4036 + $0xac] sm:$0xf]
        %v4378 = vld [vmem:[%s4036 + $0xb0] sm:$0x1]
        %v4379 = vld [vmem:[%s4036 + $0xb4] sm:$0xf]
        %v4380 = vld [vmem:[%s4036 + $0xb8] sm:$0xf]
        %v4381 = vld [vmem:[%s4036 + $0xbc] sm:$0x1]
        %v4383 = vshrl.u32 %v4334, 16
        %v4385 = vrot.slane %v4383, 4
        %v4386 = vshll.u32 %v4334, 16
        %v4388 = vrot.slane %v4386, 5
        %v4389 = vor.u32 %v4385, %v4388
        %v4390 = vrot.slane %v4389, 4
        %v4392 = vshll.u32 %v4335, 16
        %v4394 = vrot.slane %v4392, 5
        %v4395 = vsel %vm1635, %v4390, %v4394
        %v4396 = vshrl.u32 %v4335, 16
        %v4398 = vrot.slane %v4396, 4
        %v4399 = vor.u32 %v4398, %v4394
        %v4400 = vrot.slane %v4399, 4
        %v4402 = vshll.u32 %v4336, 16
        %v4404 = vrot.slane %v4402, 5
        %v4405 = vsel %vm1635, %v4400, %v4404
        %v4407 = vshrl.u32 %v4337, 16
        %v4409 = vrot.slane %v4407, 4
        %v4410 = vshll.u32 %v4337, 16
        %v4412 = vrot.slane %v4410, 5
        %v4413 = vor.u32 %v4409, %v4412
        %v4414 = vrot.slane %v4413, 4
        %v4416 = vshll.u32 %v4338, 16
        %v4418 = vrot.slane %v4416, 5
        %v4419 = vsel %vm1635, %v4414, %v4418
        %v4420 = vshrl.u32 %v4338, 16
        %v4422 = vrot.slane %v4420, 4
        %v4423 = vor.u32 %v4422, %v4418
        %v4424 = vrot.slane %v4423, 4
        %v4426 = vshll.u32 %v4339, 16
        %v4428 = vrot.slane %v4426, 5
        %v4429 = vsel %vm1635, %v4424, %v4428
        %v4431 = vshrl.u32 %v4340, 16
        %v4433 = vrot.slane %v4431, 4
        %v4434 = vshll.u32 %v4340, 16
        %v4436 = vrot.slane %v4434, 5
        %v4437 = vor.u32 %v4433, %v4436
        %v4438 = vrot.slane %v4437, 4
        %v4440 = vshll.u32 %v4341, 16
        %v4442 = vrot.slane %v4440, 5
        %v4443 = vsel %vm1635, %v4438, %v4442
        %v4444 = vshrl.u32 %v4341, 16
        %v4446 = vrot.slane %v4444, 4
        %v4447 = vor.u32 %v4446, %v4442
        %v4448 = vrot.slane %v4447, 4
        %v4450 = vshll.u32 %v4342, 16
        %v4452 = vrot.slane %v4450, 5
        %v4453 = vsel %vm1635, %v4448, %v4452
        %v4455 = vshrl.u32 %v4343, 16
        %v4457 = vrot.slane %v4455, 4
        %v4458 = vshll.u32 %v4343, 16
        %v4460 = vrot.slane %v4458, 5
        %v4461 = vor.u32 %v4457, %v4460
        %v4462 = vrot.slane %v4461, 4
        %v4464 = vshll.u32 %v4344, 16
        %v4466 = vrot.slane %v4464, 5
        %v4467 = vsel %vm1635, %v4462, %v4466
        %v4468 = vshrl.u32 %v4344, 16
        %v4470 = vrot.slane %v4468, 4
        %v4471 = vor.u32 %v4470, %v4466
        %v4472 = vrot.slane %v4471, 4
        %v4474 = vshll.u32 %v4345, 16
        %v4476 = vrot.slane %v4474, 5
        %v4477 = vsel %vm1635, %v4472, %v4476
        %v4479 = vshrl.u32 %v4346, 16
        %v4481 = vrot.slane %v4479, 4
        %v4482 = vshll.u32 %v4346, 16
        %v4484 = vrot.slane %v4482, 5
        %v4485 = vor.u32 %v4481, %v4484
        %v4486 = vrot.slane %v4485, 4
        %v4488 = vshll.u32 %v4347, 16
        %v4490 = vrot.slane %v4488, 5
        %v4491 = vsel %vm1635, %v4486, %v4490
        %v4492 = vshrl.u32 %v4347, 16
        %v4494 = vrot.slane %v4492, 4
        %v4495 = vor.u32 %v4494, %v4490
        %v4496 = vrot.slane %v4495, 4
        %v4498 = vshll.u32 %v4348, 16
        %v4500 = vrot.slane %v4498, 5
        %v4501 = vsel %vm1635, %v4496, %v4500
        %v4503 = vshrl.u32 %v4349, 16
        %v4505 = vrot.slane %v4503, 4
        %v4506 = vshll.u32 %v4349, 16
        %v4508 = vrot.slane %v4506, 5
        %v4509 = vor.u32 %v4505, %v4508
        %v4510 = vrot.slane %v4509, 4
        %v4512 = vshll.u32 %v4350, 16
        %v4514 = vrot.slane %v4512, 5
        %v4515 = vsel %vm1635, %v4510, %v4514
        %v4516 = vshrl.u32 %v4350, 16
        %v4518 = vrot.slane %v4516, 4
        %v4519 = vor.u32 %v4518, %v4514
        %v4520 = vrot.slane %v4519, 4
        %v4522 = vshll.u32 %v4351, 16
        %v4524 = vrot.slane %v4522, 5
        %v4525 = vsel %vm1635, %v4520, %v4524
        %v4527 = vshrl.u32 %v4352, 16
        %v4529 = vrot.slane %v4527, 4
        %v4530 = vshll.u32 %v4352, 16
        %v4532 = vrot.slane %v4530, 5
        %v4533 = vor.u32 %v4529, %v4532
        %v4534 = vrot.slane %v4533, 4
        %v4536 = vshll.u32 %v4353, 16
        %v4538 = vrot.slane %v4536, 5
        %v4539 = vsel %vm1635, %v4534, %v4538
        %v4540 = vshrl.u32 %v4353, 16
        %v4542 = vrot.slane %v4540, 4
        %v4543 = vor.u32 %v4542, %v4538
        %v4544 = vrot.slane %v4543, 4
        %v4546 = vshll.u32 %v4354, 16
        %v4548 = vrot.slane %v4546, 5
        %v4549 = vsel %vm1635, %v4544, %v4548
        %v4551 = vshrl.u32 %v4355, 16
        %v4553 = vrot.slane %v4551, 4
        %v4554 = vshll.u32 %v4355, 16
        %v4556 = vrot.slane %v4554, 5
        %v4557 = vor.u32 %v4553, %v4556
        %v4558 = vrot.slane %v4557, 4
        %v4560 = vshll.u32 %v4356, 16
        %v4562 = vrot.slane %v4560, 5
        %v4563 = vsel %vm1635, %v4558, %v4562
        %v4564 = vshrl.u32 %v4356, 16
        %v4566 = vrot.slane %v4564, 4
        %v4567 = vor.u32 %v4566, %v4562
        %v4568 = vrot.slane %v4567, 4
        %v4570 = vshll.u32 %v4357, 16
        %v4572 = vrot.slane %v4570, 5
        %v4573 = vsel %vm1635, %v4568, %v4572
        %v4575 = vshrl.u32 %v4358, 16
        %v4577 = vrot.slane %v4575, 4
        %v4578 = vshll.u32 %v4358, 16
        %v4580 = vrot.slane %v4578, 5
        %v4581 = vor.u32 %v4577, %v4580
        %v4582 = vrot.slane %v4581, 4
        %v4584 = vshll.u32 %v4359, 16
        %v4586 = vrot.slane %v4584, 5
        %v4587 = vsel %vm1635, %v4582, %v4586
        %v4588 = vshrl.u32 %v4359, 16
        %v4590 = vrot.slane %v4588, 4
        %v4591 = vor.u32 %v4590, %v4586
        %v4592 = vrot.slane %v4591, 4
        %v4594 = vshll.u32 %v4360, 16
        %v4596 = vrot.slane %v4594, 5
        %v4597 = vsel %vm1635, %v4592, %v4596
        %v4599 = vshrl.u32 %v4361, 16
        %v4601 = vrot.slane %v4599, 4
        %v4602 = vshll.u32 %v4361, 16
        %v4604 = vrot.slane %v4602, 5
        %v4605 = vor.u32 %v4601, %v4604
        %v4606 = vrot.slane %v4605, 4
        %v4608 = vshll.u32 %v4362, 16
        %v4610 = vrot.slane %v4608, 5
        %v4611 = vsel %vm1635, %v4606, %v4610
        %v4612 = vshrl.u32 %v4362, 16
        %v4614 = vrot.slane %v4612, 4
        %v4615 = vor.u32 %v4614, %v4610
        %v4616 = vrot.slane %v4615, 4
        %v4618 = vshll.u32 %v4363, 16
        %v4620 = vrot.slane %v4618, 5
        %v4621 = vsel %vm1635, %v4616, %v4620
        %v4623 = vshrl.u32 %v4364, 16
        %v4625 = vrot.slane %v4623, 4
        %v4626 = vshll.u32 %v4364, 16
        %v4628 = vrot.slane %v4626, 5
        %v4629 = vor.u32 %v4625, %v4628
        %v4630 = vrot.slane %v4629, 4
        %v4632 = vshll.u32 %v4365, 16
        %v4634 = vrot.slane %v4632, 5
        %v4635 = vsel %vm1635, %v4630, %v4634
        %v4636 = vshrl.u32 %v4365, 16
        %v4638 = vrot.slane %v4636, 4
        %v4639 = vor.u32 %v4638, %v4634
        %v4640 = vrot.slane %v4639, 4
        %v4642 = vshll.u32 %v4366, 16
        %v4644 = vrot.slane %v4642, 5
        %v4645 = vsel %vm1635, %v4640, %v4644
        %v4647 = vshrl.u32 %v4367, 16
        %v4649 = vrot.slane %v4647, 4
        %v4650 = vshll.u32 %v4367, 16
        %v4652 = vrot.slane %v4650, 5
        %v4653 = vor.u32 %v4649, %v4652
        %v4654 = vrot.slane %v4653, 4
        %v4656 = vshll.u32 %v4368, 16
        %v4658 = vrot.slane %v4656, 5
        %v4659 = vsel %vm1635, %v4654, %v4658
        %v4660 = vshrl.u32 %v4368, 16
        %v4662 = vrot.slane %v4660, 4
        %v4663 = vor.u32 %v4662, %v4658
        %v4664 = vrot.slane %v4663, 4
        %v4666 = vshll.u32 %v4369, 16
        %v4668 = vrot.slane %v4666, 5
        %v4669 = vsel %vm1635, %v4664, %v4668
        %v4671 = vshrl.u32 %v4370, 16
        %v4673 = vrot.slane %v4671, 4
        %v4674 = vshll.u32 %v4370, 16
        %v4676 = vrot.slane %v4674, 5
        %v4677 = vor.u32 %v4673, %v4676
        %v4678 = vrot.slane %v4677, 4
        %v4680 = vshll.u32 %v4371, 16
        %v4682 = vrot.slane %v4680, 5
        %v4683 = vsel %vm1635, %v4678, %v4682
        %v4684 = vshrl.u32 %v4371, 16
        %v4686 = vrot.slane %v4684, 4
        %v4687 = vor.u32 %v4686, %v4682
        %v4688 = vrot.slane %v4687, 4
        %v4690 = vshll.u32 %v4372, 16
        %v4692 = vrot.slane %v4690, 5
        %v4693 = vsel %vm1635, %v4688, %v4692
        %v4695 = vshrl.u32 %v4373, 16
        %v4697 = vrot.slane %v4695, 4
        %v4698 = vshll.u32 %v4373, 16
        %v4700 = vrot.slane %v4698, 5
        %v4701 = vor.u32 %v4697, %v4700
        %v4702 = vrot.slane %v4701, 4
        %v4704 = vshll.u32 %v4374, 16
        %v4706 = vrot.slane %v4704, 5
        %v4707 = vsel %vm1635, %v4702, %v4706
        %v4708 = vshrl.u32 %v4374, 16
        %v4710 = vrot.slane %v4708, 4
        %v4711 = vor.u32 %v4710, %v4706
        %v4712 = vrot.slane %v4711, 4
        %v4714 = vshll.u32 %v4375, 16
        %v4716 = vrot.slane %v4714, 5
        %v4717 = vsel %vm1635, %v4712, %v4716
        %v4719 = vshrl.u32 %v4376, 16
        %v4721 = vrot.slane %v4719, 4
        %v4722 = vshll.u32 %v4376, 16
        %v4724 = vrot.slane %v4722, 5
        %v4725 = vor.u32 %v4721, %v4724
        %v4726 = vrot.slane %v4725, 4
        %v4728 = vshll.u32 %v4377, 16
        %v4730 = vrot.slane %v4728, 5
        %v4731 = vsel %vm1635, %v4726, %v4730
        %v4732 = vshrl.u32 %v4377, 16
        %v4734 = vrot.slane %v4732, 4
        %v4735 = vor.u32 %v4734, %v4730
        %v4736 = vrot.slane %v4735, 4
        %v4738 = vshll.u32 %v4378, 16
        %v4740 = vrot.slane %v4738, 5
        %v4741 = vsel %vm1635, %v4736, %v4740
        %v4743 = vshrl.u32 %v4379, 16
        %v4745 = vrot.slane %v4743, 4
        %v4746 = vshll.u32 %v4379, 16
        %v4748 = vrot.slane %v4746, 5
        %v4749 = vor.u32 %v4745, %v4748
        %v4750 = vrot.slane %v4749, 4
        %v4752 = vshll.u32 %v4380, 16
        %v4754 = vrot.slane %v4752, 5
        %v4755 = vsel %vm1635, %v4750, %v4754
        %v4756 = vshrl.u32 %v4380, 16
        %v4758 = vrot.slane %v4756, 4
        %v4759 = vor.u32 %v4758, %v4754
        %v4760 = vrot.slane %v4759, 4
        %v4762 = vshll.u32 %v4381, 16
        %v4764 = vrot.slane %v4762, 5
        %v4765 = vsel %vm1635, %v4760, %v4764
        %v4766 = vld [vmem:[%s3 + $0x70] sm:$0xf]
        %v4767 = vld [vmem:[%s3 + $0x74] sm:$0xf]
        %v4768 = vld [vmem:[%s3 + $0x78] sm:$0xf]
        %v4769 = vld [vmem:[%s3 + $0x7c] sm:$0xf]
        %v4770 = vunpack.c.l.b16 %v4395
        %v4771 = vunpack.c.l.b16 %v4405
        %v4772 = vunpack.c.l.b16 %v4419
        %v4773 = vunpack.c.l.b16 %v4429
        %v4774 = vunpack.c.l.b16 %v4443
        %v4775 = vunpack.c.l.b16 %v4453
        %v4776 = vunpack.c.l.b16 %v4467
        %v4777 = vunpack.c.l.b16 %v4477
        %v4778 = vunpack.c.l.b16 %v4491
        %v4779 = vunpack.c.l.b16 %v4501
        %v4780 = vunpack.c.l.b16 %v4515
        %v4781 = vunpack.c.l.b16 %v4525
        %v4782 = vunpack.c.l.b16 %v4539
        %v4783 = vunpack.c.l.b16 %v4549
        %v4784 = vunpack.c.l.b16 %v4563
        %v4785 = vunpack.c.l.b16 %v4573
        %v4786 = vunpack.c.l.b16 %v4587
        %v4787 = vunpack.c.l.b16 %v4597
        %v4788 = vunpack.c.l.b16 %v4611
        %v4789 = vunpack.c.l.b16 %v4621
        %v4790 = vunpack.c.l.b16 %v4635
        %v4791 = vunpack.c.l.b16 %v4645
        %v4792 = vunpack.c.l.b16 %v4659
        %v4793 = vunpack.c.l.b16 %v4669
        %v4794 = vunpack.c.l.b16 %v4683
        %v4795 = vunpack.c.l.b16 %v4693
        %v4796 = vunpack.c.l.b16 %v4707
        %v4797 = vunpack.c.l.b16 %v4717
        %v4798 = vunpack.c.l.b16 %v4731
        %v4799 = vunpack.c.l.b16 %v4741
        %v4800 = vunpack.c.l.b16 %v4755
        %v4801 = vunpack.c.l.b16 %v4765
        %v4802 = vpack.c.b16 %v4771, %v4770
        %v4803 = vpack.c.b16 %v4773, %v4772
        %v4804 = vpack.c.b16 %v4775, %v4774
        %v4805 = vpack.c.b16 %v4777, %v4776
        %v4806 = vpack.c.b16 %v4779, %v4778
        %v4807 = vpack.c.b16 %v4781, %v4780
        %v4808 = vpack.c.b16 %v4783, %v4782
        %v4809 = vpack.c.b16 %v4785, %v4784
        %v4810 = vpack.c.b16 %v4787, %v4786
        %v4811 = vpack.c.b16 %v4789, %v4788
        %v4812 = vpack.c.b16 %v4791, %v4790
        %v4813 = vpack.c.b16 %v4793, %v4792
        %v4814 = vpack.c.b16 %v4795, %v4794
        %v4815 = vpack.c.b16 %v4797, %v4796
        %v4816 = vpack.c.b16 %v4799, %v4798
        %v4817 = vpack.c.b16 %v4801, %v4800
        %v4822 = vunpack.c.l.b16 %v4766
        %v4823 = vunpack.c.l.b16 %v4767
        %v4824 = vunpack.c.l.b16 %v4768
        %v4825 = vunpack.c.l.b16 %v4769
        %v4826 = vpack.c.b16 %v4823, %v4822
        %v4827 = vpack.c.b16 %v4825, %v4824
        %v4831 = vsel %vm1415, %v4802, 0
        %v4834 = vsel %vm1415, %v4803, 0
        %v4837 = vsel %vm1415, %v4804, 0
        %v4840 = vsel %vm1415, %v4805, 0
        %v4843 = vsel %vm1415, %v4806, 0
        %v4846 = vsel %vm1415, %v4807, 0
        %v4849 = vsel %vm1415, %v4808, 0
        %v4852 = vsel %vm1415, %v4809, 0
        %v4855 = vsel %vm1415, %v4810, 0
        %v4858 = vsel %vm1415, %v4811, 0
        %v4861 = vsel %vm1415, %v4812, 0
        %v4864 = vsel %vm1415, %v4813, 0
        %v4867 = vsel %vm1415, %v4814, 0
        %v4870 = vsel %vm1415, %v4815, 0
        %v4873 = vsel %vm1415, %v4816, 0
        %v4876 = vsel %vm1415, %v4817, 0
        %4878 = vmatpush.bf16.msra.mxu0 0
        %4879 = vmatpush.bf16.msra.mxu0 0
        %4880 = vmatpush.bf16.msra.mxu0 0
        %4881 = vmatpush.bf16.msra.mxu0 0
        %4882 = vmatpush.bf16.msra.mxu0 0
        %4883 = vmatpush.bf16.msra.mxu0 0
        %4884 = vmatpush.bf16.msra.mxu0 %v4827
        %4885 = vmatpush.bf16.msra.mxu0 %v4826
        %4886 = vmatmul.bf16.gmra.mxu0 %v4831
        %v4887 = vpop.f32.mrf.mxu0
        %v4888 = vadd.f32 0.0, %v4887
        %v4889 = vpop.f32.mrf.mxu0
        %v4890 = vadd.f32 0.0, %v4889
        %4891 = vmatmul.bf16.gmra.mxu0 %v4834
        %v4892 = vpop.f32.mrf.mxu0
        %v4893 = vadd.f32 0.0, %v4892
        %v4894 = vpop.f32.mrf.mxu0
        %v4895 = vadd.f32 0.0, %v4894
        %4896 = vmatmul.bf16.gmra.mxu0 %v4837
        %v4897 = vpop.f32.mrf.mxu0
        %v4898 = vadd.f32 0.0, %v4897
        %v4899 = vpop.f32.mrf.mxu0
        %v4900 = vadd.f32 0.0, %v4899
        %4901 = vmatmul.bf16.gmra.mxu0 %v4840
        %v4902 = vpop.f32.mrf.mxu0
        %v4903 = vadd.f32 0.0, %v4902
        %v4904 = vpop.f32.mrf.mxu0
        %v4905 = vadd.f32 0.0, %v4904
        %4906 = vmatmul.bf16.gmra.mxu0 %v4843
        %v4907 = vpop.f32.mrf.mxu0
        %v4908 = vadd.f32 0.0, %v4907
        %v4909 = vpop.f32.mrf.mxu0
        %v4910 = vadd.f32 0.0, %v4909
        %4911 = vmatmul.bf16.gmra.mxu0 %v4846
        %v4912 = vpop.f32.mrf.mxu0
        %v4913 = vadd.f32 0.0, %v4912
        %v4914 = vpop.f32.mrf.mxu0
        %v4915 = vadd.f32 0.0, %v4914
        %4916 = vmatmul.bf16.gmra.mxu0 %v4849
        %v4917 = vpop.f32.mrf.mxu0
        %v4918 = vadd.f32 0.0, %v4917
        %v4919 = vpop.f32.mrf.mxu0
        %v4920 = vadd.f32 0.0, %v4919
        %4921 = vmatmul.bf16.gmra.mxu0 %v4852
        %v4922 = vpop.f32.mrf.mxu0
        %v4923 = vadd.f32 0.0, %v4922
        %v4924 = vpop.f32.mrf.mxu0
        %v4925 = vadd.f32 0.0, %v4924
        %4926 = vmatmul.bf16.gmra.mxu0 %v4855
        %v4927 = vpop.f32.mrf.mxu0
        %v4928 = vadd.f32 0.0, %v4927
        %v4929 = vpop.f32.mrf.mxu0
        %v4930 = vadd.f32 0.0, %v4929
        %4931 = vmatmul.bf16.gmra.mxu0 %v4858
        %v4932 = vpop.f32.mrf.mxu0
        %v4933 = vadd.f32 0.0, %v4932
        %v4934 = vpop.f32.mrf.mxu0
        %v4935 = vadd.f32 0.0, %v4934
        %4936 = vmatmul.bf16.gmra.mxu0 %v4861
        %v4937 = vpop.f32.mrf.mxu0
        %v4938 = vadd.f32 0.0, %v4937
        %v4939 = vpop.f32.mrf.mxu0
        %v4940 = vadd.f32 0.0, %v4939
        %4941 = vmatmul.bf16.gmra.mxu0 %v4864
        %v4942 = vpop.f32.mrf.mxu0
        %v4943 = vadd.f32 0.0, %v4942
        %v4944 = vpop.f32.mrf.mxu0
        %v4945 = vadd.f32 0.0, %v4944
        %4946 = vmatmul.bf16.gmra.mxu0 %v4867
        %v4947 = vpop.f32.mrf.mxu0
        %v4948 = vadd.f32 0.0, %v4947
        %v4949 = vpop.f32.mrf.mxu0
        %v4950 = vadd.f32 0.0, %v4949
        %4951 = vmatmul.bf16.gmra.mxu0 %v4870
        %v4952 = vpop.f32.mrf.mxu0
        %v4953 = vadd.f32 0.0, %v4952
        %v4954 = vpop.f32.mrf.mxu0
        %v4955 = vadd.f32 0.0, %v4954
        %4956 = vmatmul.bf16.gmra.mxu0 %v4873
        %v4957 = vpop.f32.mrf.mxu0
        %v4958 = vadd.f32 0.0, %v4957
        %v4959 = vpop.f32.mrf.mxu0
        %v4960 = vadd.f32 0.0, %v4959
        %4961 = vmatmul.bf16.gmra.mxu0 %v4876
        %v4962 = vpop.f32.mrf.mxu0
        %v4963 = vadd.f32 0.0, %v4962
        %v4964 = vpop.f32.mrf.mxu0
        %v4965 = vadd.f32 0.0, %v4964
        %4966 = vdwg.mxu0
        %v4967 = vadd.f32 %v4302, %v4888
        %v4968 = vadd.f32 %v4303, %v4890
        %v4969 = vadd.f32 %v4304, %v4893
        %v4970 = vadd.f32 %v4305, %v4895
        %v4971 = vadd.f32 %v4306, %v4898
        %v4972 = vadd.f32 %v4307, %v4900
        %v4973 = vadd.f32 %v4308, %v4903
        %v4974 = vadd.f32 %v4309, %v4905
        %v4975 = vadd.f32 %v4310, %v4908
        %v4976 = vadd.f32 %v4311, %v4910
        %v4977 = vadd.f32 %v4312, %v4913
        %v4978 = vadd.f32 %v4313, %v4915
        %v4979 = vadd.f32 %v4314, %v4918
        %v4980 = vadd.f32 %v4315, %v4920
        %v4981 = vadd.f32 %v4316, %v4923
        %v4982 = vadd.f32 %v4317, %v4925
        %v4983 = vadd.f32 %v4318, %v4928
        %v4984 = vadd.f32 %v4319, %v4930
        %v4985 = vadd.f32 %v4320, %v4933
        %v4986 = vadd.f32 %v4321, %v4935
        %v4987 = vadd.f32 %v4322, %v4938
        %v4988 = vadd.f32 %v4323, %v4940
        %v4989 = vadd.f32 %v4324, %v4943
        %v4990 = vadd.f32 %v4325, %v4945
        %v4991 = vadd.f32 %v4326, %v4948
        %v4992 = vadd.f32 %v4327, %v4950
        %v4993 = vadd.f32 %v4328, %v4953
        %v4994 = vadd.f32 %v4329, %v4955
        %v4995 = vadd.f32 %v4330, %v4958
        %v4996 = vadd.f32 %v4331, %v4960
        %v4997 = vadd.f32 %v4332, %v4963
        %v4998 = vadd.f32 %v4333, %v4965
        %v4999 = vld [vmem:[%s4036] sm:$0xe]
        %v5000 = vld [vmem:[%s4036 + $0xc] sm:$0xe]
        %v5001 = vld [vmem:[%s4036 + $0x18] sm:$0xe]
        %v5002 = vld [vmem:[%s4036 + $0x24] sm:$0xe]
        %v5003 = vld [vmem:[%s4036 + $0x30] sm:$0xe]
        %v5004 = vld [vmem:[%s4036 + $0x3c] sm:$0xe]
        %v5005 = vld [vmem:[%s4036 + $0x48] sm:$0xe]
        %v5006 = vld [vmem:[%s4036 + $0x54] sm:$0xe]
        %v5007 = vld [vmem:[%s4036 + $0x60] sm:$0xe]
        %v5008 = vld [vmem:[%s4036 + $0x6c] sm:$0xe]
        %v5009 = vld [vmem:[%s4036 + $0x78] sm:$0xe]
        %v5010 = vld [vmem:[%s4036 + $0x84] sm:$0xe]
        %v5011 = vld [vmem:[%s4036 + $0x90] sm:$0xe]
        %v5012 = vld [vmem:[%s4036 + $0x9c] sm:$0xe]
        %v5013 = vld [vmem:[%s4036 + $0xa8] sm:$0xe]
        %v5014 = vld [vmem:[%s4036 + $0xb4] sm:$0xe]
        %v5063 = vrot.slane %v4999, 5
        %v5064 = vrot.slane %v5063, 4
        %v5065 = vrot.slane %v4335, 5
        %v5066 = vsel %vm2319, %v5064, %v5065
        %v5067 = vrot.slane %v5065, 4
        %v5068 = vrot.slane %v4336, 5
        %v5069 = vsel %vm2319, %v5067, %v5068
        %v5070 = vrot.slane %v5000, 5
        %v5071 = vrot.slane %v5070, 4
        %v5072 = vrot.slane %v4338, 5
        %v5073 = vsel %vm2319, %v5071, %v5072
        %v5074 = vrot.slane %v5072, 4
        %v5075 = vrot.slane %v4339, 5
        %v5076 = vsel %vm2319, %v5074, %v5075
        %v5077 = vrot.slane %v5001, 5
        %v5078 = vrot.slane %v5077, 4
        %v5079 = vrot.slane %v4341, 5
        %v5080 = vsel %vm2319, %v5078, %v5079
        %v5081 = vrot.slane %v5079, 4
        %v5082 = vrot.slane %v4342, 5
        %v5083 = vsel %vm2319, %v5081, %v5082
        %v5084 = vrot.slane %v5002, 5
        %v5085 = vrot.slane %v5084, 4
        %v5086 = vrot.slane %v4344, 5
        %v5087 = vsel %vm2319, %v5085, %v5086
        %v5088 = vrot.slane %v5086, 4
        %v5089 = vrot.slane %v4345, 5
        %v5090 = vsel %vm2319, %v5088, %v5089
        %v5091 = vrot.slane %v5003, 5
        %v5092 = vrot.slane %v5091, 4
        %v5093 = vrot.slane %v4347, 5
        %v5094 = vsel %vm2319, %v5092, %v5093
        %v5095 = vrot.slane %v5093, 4
        %v5096 = vrot.slane %v4348, 5
        %v5097 = vsel %vm2319, %v5095, %v5096
        %v5098 = vrot.slane %v5004, 5
        %v5099 = vrot.slane %v5098, 4
        %v5100 = vrot.slane %v4350, 5
        %v5101 = vsel %vm2319, %v5099, %v5100
        %v5102 = vrot.slane %v5100, 4
        %v5103 = vrot.slane %v4351, 5
        %v5104 = vsel %vm2319, %v5102, %v5103
        %v5105 = vrot.slane %v5005, 5
        %v5106 = vrot.slane %v5105, 4
        %v5107 = vrot.slane %v4353, 5
        %v5108 = vsel %vm2319, %v5106, %v5107
        %v5109 = vrot.slane %v5107, 4
        %v5110 = vrot.slane %v4354, 5
        %v5111 = vsel %vm2319, %v5109, %v5110
        %v5112 = vrot.slane %v5006, 5
        %v5113 = vrot.slane %v5112, 4
        %v5114 = vrot.slane %v4356, 5
        %v5115 = vsel %vm2319, %v5113, %v5114
        %v5116 = vrot.slane %v5114, 4
        %v5117 = vrot.slane %v4357, 5
        %v5118 = vsel %vm2319, %v5116, %v5117
        %v5119 = vrot.slane %v5007, 5
        %v5120 = vrot.slane %v5119, 4
        %v5121 = vrot.slane %v4359, 5
        %v5122 = vsel %vm2319, %v5120, %v5121
        %v5123 = vrot.slane %v5121, 4
        %v5124 = vrot.slane %v4360, 5
        %v5125 = vsel %vm2319, %v5123, %v5124
        %v5126 = vrot.slane %v5008, 5
        %v5127 = vrot.slane %v5126, 4
        %v5128 = vrot.slane %v4362, 5
        %v5129 = vsel %vm2319, %v5127, %v5128
        %v5130 = vrot.slane %v5128, 4
        %v5131 = vrot.slane %v4363, 5
        %v5132 = vsel %vm2319, %v5130, %v5131
        %v5133 = vrot.slane %v5009, 5
        %v5134 = vrot.slane %v5133, 4
        %v5135 = vrot.slane %v4365, 5
        %v5136 = vsel %vm2319, %v5134, %v5135
        %v5137 = vrot.slane %v5135, 4
        %v5138 = vrot.slane %v4366, 5
        %v5139 = vsel %vm2319, %v5137, %v5138
        %v5140 = vrot.slane %v5010, 5
        %v5141 = vrot.slane %v5140, 4
        %v5142 = vrot.slane %v4368, 5
        %v5143 = vsel %vm2319, %v5141, %v5142
        %v5144 = vrot.slane %v5142, 4
        %v5145 = vrot.slane %v4369, 5
        %v5146 = vsel %vm2319, %v5144, %v5145
        %v5147 = vrot.slane %v5011, 5
        %v5148 = vrot.slane %v5147, 4
        %v5149 = vrot.slane %v4371, 5
        %v5150 = vsel %vm2319, %v5148, %v5149
        %v5151 = vrot.slane %v5149, 4
        %v5152 = vrot.slane %v4372, 5
        %v5153 = vsel %vm2319, %v5151, %v5152
        %v5154 = vrot.slane %v5012, 5
        %v5155 = vrot.slane %v5154, 4
        %v5156 = vrot.slane %v4374, 5
        %v5157 = vsel %vm2319, %v5155, %v5156
        %v5158 = vrot.slane %v5156, 4
        %v5159 = vrot.slane %v4375, 5
        %v5160 = vsel %vm2319, %v5158, %v5159
        %v5161 = vrot.slane %v5013, 5
        %v5162 = vrot.slane %v5161, 4
        %v5163 = vrot.slane %v4377, 5
        %v5164 = vsel %vm2319, %v5162, %v5163
        %v5165 = vrot.slane %v5163, 4
        %v5166 = vrot.slane %v4378, 5
        %v5167 = vsel %vm2319, %v5165, %v5166
        %v5168 = vrot.slane %v5014, 5
        %v5169 = vrot.slane %v5168, 4
        %v5170 = vrot.slane %v4380, 5
        %v5171 = vsel %vm2319, %v5169, %v5170
        %v5172 = vrot.slane %v5170, 4
        %v5173 = vrot.slane %v4381, 5
        %v5174 = vsel %vm2319, %v5172, %v5173
        %v5175 = vld [vmem:[%s3 + $0x80] sm:$0xf]
        %v5176 = vld [vmem:[%s3 + $0x84] sm:$0xf]
        %v5177 = vld [vmem:[%s3 + $0x88] sm:$0xf]
        %v5178 = vld [vmem:[%s3 + $0x8c] sm:$0xf]
        %v5179 = vunpack.c.l.b16 %v5066
        %v5180 = vunpack.c.l.b16 %v5069
        %v5181 = vunpack.c.l.b16 %v5073
        %v5182 = vunpack.c.l.b16 %v5076
        %v5183 = vunpack.c.l.b16 %v5080
        %v5184 = vunpack.c.l.b16 %v5083
        %v5185 = vunpack.c.l.b16 %v5087
        %v5186 = vunpack.c.l.b16 %v5090
        %v5187 = vunpack.c.l.b16 %v5094
        %v5188 = vunpack.c.l.b16 %v5097
        %v5189 = vunpack.c.l.b16 %v5101
        %v5190 = vunpack.c.l.b16 %v5104
        %v5191 = vunpack.c.l.b16 %v5108
        %v5192 = vunpack.c.l.b16 %v5111
        %v5193 = vunpack.c.l.b16 %v5115
        %v5194 = vunpack.c.l.b16 %v5118
        %v5195 = vunpack.c.l.b16 %v5122
        %v5196 = vunpack.c.l.b16 %v5125
        %v5197 = vunpack.c.l.b16 %v5129
        %v5198 = vunpack.c.l.b16 %v5132
        %v5199 = vunpack.c.l.b16 %v5136
        %v5200 = vunpack.c.l.b16 %v5139
        %v5201 = vunpack.c.l.b16 %v5143
        %v5202 = vunpack.c.l.b16 %v5146
        %v5203 = vunpack.c.l.b16 %v5150
        %v5204 = vunpack.c.l.b16 %v5153
        %v5205 = vunpack.c.l.b16 %v5157
        %v5206 = vunpack.c.l.b16 %v5160
        %v5207 = vunpack.c.l.b16 %v5164
        %v5208 = vunpack.c.l.b16 %v5167
        %v5209 = vunpack.c.l.b16 %v5171
        %v5210 = vunpack.c.l.b16 %v5174
        %v5211 = vpack.c.b16 %v5180, %v5179
        %v5212 = vpack.c.b16 %v5182, %v5181
        %v5213 = vpack.c.b16 %v5184, %v5183
        %v5214 = vpack.c.b16 %v5186, %v5185
        %v5215 = vpack.c.b16 %v5188, %v5187
        %v5216 = vpack.c.b16 %v5190, %v5189
        %v5217 = vpack.c.b16 %v5192, %v5191
        %v5218 = vpack.c.b16 %v5194, %v5193
        %v5219 = vpack.c.b16 %v5196, %v5195
        %v5220 = vpack.c.b16 %v5198, %v5197
        %v5221 = vpack.c.b16 %v5200, %v5199
        %v5222 = vpack.c.b16 %v5202, %v5201
        %v5223 = vpack.c.b16 %v5204, %v5203
        %v5224 = vpack.c.b16 %v5206, %v5205
        %v5225 = vpack.c.b16 %v5208, %v5207
        %v5226 = vpack.c.b16 %v5210, %v5209
        %v5231 = vunpack.c.l.b16 %v5175
        %v5232 = vunpack.c.l.b16 %v5176
        %v5233 = vunpack.c.l.b16 %v5177
        %v5234 = vunpack.c.l.b16 %v5178
        %v5235 = vpack.c.b16 %v5232, %v5231
        %v5236 = vpack.c.b16 %v5234, %v5233
        %v5240 = vsel %vm1415, %v5211, 0
        %v5243 = vsel %vm1415, %v5212, 0
        %v5246 = vsel %vm1415, %v5213, 0
        %v5249 = vsel %vm1415, %v5214, 0
        %v5252 = vsel %vm1415, %v5215, 0
        %v5255 = vsel %vm1415, %v5216, 0
        %v5258 = vsel %vm1415, %v5217, 0
        %v5261 = vsel %vm1415, %v5218, 0
        %v5264 = vsel %vm1415, %v5219, 0
        %v5267 = vsel %vm1415, %v5220, 0
        %v5270 = vsel %vm1415, %v5221, 0
        %v5273 = vsel %vm1415, %v5222, 0
        %v5276 = vsel %vm1415, %v5223, 0
        %v5279 = vsel %vm1415, %v5224, 0
        %v5282 = vsel %vm1415, %v5225, 0
        %v5285 = vsel %vm1415, %v5226, 0
        %5287 = vmatpush.bf16.msra.mxu0 0
        %5288 = vmatpush.bf16.msra.mxu0 0
        %5289 = vmatpush.bf16.msra.mxu0 0
        %5290 = vmatpush.bf16.msra.mxu0 0
        %5291 = vmatpush.bf16.msra.mxu0 0
        %5292 = vmatpush.bf16.msra.mxu0 0
        %5293 = vmatpush.bf16.msra.mxu0 %v5236
        %5294 = vmatpush.bf16.msra.mxu0 %v5235
        %5295 = vmatmul.bf16.gmra.mxu0 %v5240
        %v5296 = vpop.f32.mrf.mxu0
        %v5297 = vadd.f32 0.0, %v5296
        %v5298 = vpop.f32.mrf.mxu0
        %v5299 = vadd.f32 0.0, %v5298
        %5300 = vmatmul.bf16.gmra.mxu0 %v5243
        %v5301 = vpop.f32.mrf.mxu0
        %v5302 = vadd.f32 0.0, %v5301
        %v5303 = vpop.f32.mrf.mxu0
        %v5304 = vadd.f32 0.0, %v5303
        %5305 = vmatmul.bf16.gmra.mxu0 %v5246
        %v5306 = vpop.f32.mrf.mxu0
        %v5307 = vadd.f32 0.0, %v5306
        %v5308 = vpop.f32.mrf.mxu0
        %v5309 = vadd.f32 0.0, %v5308
        %5310 = vmatmul.bf16.gmra.mxu0 %v5249
        %v5311 = vpop.f32.mrf.mxu0
        %v5312 = vadd.f32 0.0, %v5311
        %v5313 = vpop.f32.mrf.mxu0
        %v5314 = vadd.f32 0.0, %v5313
        %5315 = vmatmul.bf16.gmra.mxu0 %v5252
        %v5316 = vpop.f32.mrf.mxu0
        %v5317 = vadd.f32 0.0, %v5316
        %v5318 = vpop.f32.mrf.mxu0
        %v5319 = vadd.f32 0.0, %v5318
        %5320 = vmatmul.bf16.gmra.mxu0 %v5255
        %v5321 = vpop.f32.mrf.mxu0
        %v5322 = vadd.f32 0.0, %v5321
        %v5323 = vpop.f32.mrf.mxu0
        %v5324 = vadd.f32 0.0, %v5323
        %5325 = vmatmul.bf16.gmra.mxu0 %v5258
        %v5326 = vpop.f32.mrf.mxu0
        %v5327 = vadd.f32 0.0, %v5326
        %v5328 = vpop.f32.mrf.mxu0
        %v5329 = vadd.f32 0.0, %v5328
        %5330 = vmatmul.bf16.gmra.mxu0 %v5261
        %v5331 = vpop.f32.mrf.mxu0
        %v5332 = vadd.f32 0.0, %v5331
        %v5333 = vpop.f32.mrf.mxu0
        %v5334 = vadd.f32 0.0, %v5333
        %5335 = vmatmul.bf16.gmra.mxu0 %v5264
        %v5336 = vpop.f32.mrf.mxu0
        %v5337 = vadd.f32 0.0, %v5336
        %v5338 = vpop.f32.mrf.mxu0
        %v5339 = vadd.f32 0.0, %v5338
        %5340 = vmatmul.bf16.gmra.mxu0 %v5267
        %v5341 = vpop.f32.mrf.mxu0
        %v5342 = vadd.f32 0.0, %v5341
        %v5343 = vpop.f32.mrf.mxu0
        %v5344 = vadd.f32 0.0, %v5343
        %5345 = vmatmul.bf16.gmra.mxu0 %v5270
        %v5346 = vpop.f32.mrf.mxu0
        %v5347 = vadd.f32 0.0, %v5346
        %v5348 = vpop.f32.mrf.mxu0
        %v5349 = vadd.f32 0.0, %v5348
        %5350 = vmatmul.bf16.gmra.mxu0 %v5273
        %v5351 = vpop.f32.mrf.mxu0
        %v5352 = vadd.f32 0.0, %v5351
        %v5353 = vpop.f32.mrf.mxu0
        %v5354 = vadd.f32 0.0, %v5353
        %5355 = vmatmul.bf16.gmra.mxu0 %v5276
        %v5356 = vpop.f32.mrf.mxu0
        %v5357 = vadd.f32 0.0, %v5356
        %v5358 = vpop.f32.mrf.mxu0
        %v5359 = vadd.f32 0.0, %v5358
        %5360 = vmatmul.bf16.gmra.mxu0 %v5279
        %v5361 = vpop.f32.mrf.mxu0
        %v5362 = vadd.f32 0.0, %v5361
        %v5363 = vpop.f32.mrf.mxu0
        %v5364 = vadd.f32 0.0, %v5363
        %5365 = vmatmul.bf16.gmra.mxu0 %v5282
        %v5366 = vpop.f32.mrf.mxu0
        %v5367 = vadd.f32 0.0, %v5366
        %v5368 = vpop.f32.mrf.mxu0
        %v5369 = vadd.f32 0.0, %v5368
        %5370 = vmatmul.bf16.gmra.mxu0 %v5285
        %v5371 = vpop.f32.mrf.mxu0
        %v5372 = vadd.f32 0.0, %v5371
        %v5373 = vpop.f32.mrf.mxu0
        %v5374 = vadd.f32 0.0, %v5373
        %5375 = vdwg.mxu0
        %v5376 = vadd.f32 %v4967, %v5297
        %v5377 = vadd.f32 %v4968, %v5299
        %v5378 = vadd.f32 %v4969, %v5302
        %v5379 = vadd.f32 %v4970, %v5304
        %v5380 = vadd.f32 %v4971, %v5307
        %v5381 = vadd.f32 %v4972, %v5309
        %v5382 = vadd.f32 %v4973, %v5312
        %v5383 = vadd.f32 %v4974, %v5314
        %v5384 = vadd.f32 %v4975, %v5317
        %v5385 = vadd.f32 %v4976, %v5319
        %v5386 = vadd.f32 %v4977, %v5322
        %v5387 = vadd.f32 %v4978, %v5324
        %v5388 = vadd.f32 %v4979, %v5327
        %v5389 = vadd.f32 %v4980, %v5329
        %v5390 = vadd.f32 %v4981, %v5332
        %v5391 = vadd.f32 %v4982, %v5334
        %v5392 = vadd.f32 %v4983, %v5337
        %v5393 = vadd.f32 %v4984, %v5339
        %v5394 = vadd.f32 %v4985, %v5342
        %v5395 = vadd.f32 %v4986, %v5344
        %v5396 = vadd.f32 %v4987, %v5347
        %v5397 = vadd.f32 %v4988, %v5349
        %v5398 = vadd.f32 %v4989, %v5352
        %v5399 = vadd.f32 %v4990, %v5354
        %v5400 = vadd.f32 %v4991, %v5357
        %v5401 = vadd.f32 %v4992, %v5359
        %v5402 = vadd.f32 %v4993, %v5362
        %v5403 = vadd.f32 %v4994, %v5364
        %v5404 = vadd.f32 %v4995, %v5367
        %v5405 = vadd.f32 %v4996, %v5369
        %v5406 = vadd.f32 %v4997, %v5372
        %v5407 = vadd.f32 %v4998, %v5374
        %v5408 = vmax.f32 %v5376, 0.0
        %v5409 = vmax.f32 %v5377, 0.0
        %v5410 = vmax.f32 %v5378, 0.0
        %v5411 = vmax.f32 %v5379, 0.0
        %v5412 = vmax.f32 %v5380, 0.0
        %v5413 = vmax.f32 %v5381, 0.0
        %v5414 = vmax.f32 %v5382, 0.0
        %v5415 = vmax.f32 %v5383, 0.0
        %v5416 = vmax.f32 %v5384, 0.0
        %v5417 = vmax.f32 %v5385, 0.0
        %v5418 = vmax.f32 %v5386, 0.0
        %v5419 = vmax.f32 %v5387, 0.0
        %v5420 = vmax.f32 %v5388, 0.0
        %v5421 = vmax.f32 %v5389, 0.0
        %v5422 = vmax.f32 %v5390, 0.0
        %v5423 = vmax.f32 %v5391, 0.0
        %v5424 = vmax.f32 %v5392, 0.0
        %v5425 = vmax.f32 %v5393, 0.0
        %v5426 = vmax.f32 %v5394, 0.0
        %v5427 = vmax.f32 %v5395, 0.0
        %v5428 = vmax.f32 %v5396, 0.0
        %v5429 = vmax.f32 %v5397, 0.0
        %v5430 = vmax.f32 %v5398, 0.0
        %v5431 = vmax.f32 %v5399, 0.0
        %v5432 = vmax.f32 %v5400, 0.0
        %v5433 = vmax.f32 %v5401, 0.0
        %v5434 = vmax.f32 %v5402, 0.0
        %v5435 = vmax.f32 %v5403, 0.0
        %v5436 = vmax.f32 %v5404, 0.0
        %v5437 = vmax.f32 %v5405, 0.0
        %v5438 = vmax.f32 %v5406, 0.0
        %v5439 = vmax.f32 %v5407, 0.0
        %v5440 = vpack.c.bf16 %v5408, %v5408
        %v5441 = vpack.c.bf16 %v5409, %v5409
        %v5442 = vpack.c.bf16 %v5410, %v5410
        %v5443 = vpack.c.bf16 %v5411, %v5411
        %v5444 = vpack.c.bf16 %v5412, %v5412
        %v5445 = vpack.c.bf16 %v5413, %v5413
        %v5446 = vpack.c.bf16 %v5414, %v5414
        %v5447 = vpack.c.bf16 %v5415, %v5415
        %v5448 = vpack.c.bf16 %v5416, %v5416
        %v5449 = vpack.c.bf16 %v5417, %v5417
        %v5450 = vpack.c.bf16 %v5418, %v5418
        %v5451 = vpack.c.bf16 %v5419, %v5419
        %v5452 = vpack.c.bf16 %v5420, %v5420
        %v5453 = vpack.c.bf16 %v5421, %v5421
        %v5454 = vpack.c.bf16 %v5422, %v5422
        %v5455 = vpack.c.bf16 %v5423, %v5423
        %v5456 = vpack.c.bf16 %v5424, %v5424
        %v5457 = vpack.c.bf16 %v5425, %v5425
        %v5458 = vpack.c.bf16 %v5426, %v5426
        %v5459 = vpack.c.bf16 %v5427, %v5427
        %v5460 = vpack.c.bf16 %v5428, %v5428
        %v5461 = vpack.c.bf16 %v5429, %v5429
        %v5462 = vpack.c.bf16 %v5430, %v5430
        %v5463 = vpack.c.bf16 %v5431, %v5431
        %v5464 = vpack.c.bf16 %v5432, %v5432
        %v5465 = vpack.c.bf16 %v5433, %v5433
        %v5466 = vpack.c.bf16 %v5434, %v5434
        %v5467 = vpack.c.bf16 %v5435, %v5435
        %v5468 = vpack.c.bf16 %v5436, %v5436
        %v5469 = vpack.c.bf16 %v5437, %v5437
        %v5470 = vpack.c.bf16 %v5438, %v5438
        %v5471 = vpack.c.bf16 %v5439, %v5439
        %v5473 = vshrl.u32 %v5440, 16
        %v5475 = vrot.slane %v5473, 7
        %v5476 = vshll.u32 %v5440, 16
        %v5478 = vor.u32 %v5475, %v5476
        %v5479 = vrot.slane %v5475, 4
        %v5481 = vshrl.u32 %v5441, 16
        %v5483 = vrot.slane %v5481, 7
        %v5484 = vshll.u32 %v5441, 16
        %v5486 = vor.u32 %v5483, %v5484
        %v5487 = vsel %vm847, %v5479, %v5486
        %v5488 = vrot.slane %v5483, 4
        %v5490 = vshrl.u32 %v5442, 16
        %v5492 = vrot.slane %v5490, 7
        %v5493 = vshll.u32 %v5442, 16
        %v5495 = vor.u32 %v5492, %v5493
        %v5496 = vrot.slane %v5492, 4
        %v5498 = vshrl.u32 %v5443, 16
        %v5500 = vrot.slane %v5498, 7
        %v5501 = vshll.u32 %v5443, 16
        %v5503 = vor.u32 %v5500, %v5501
        %v5504 = vsel %vm847, %v5496, %v5503
        %v5505 = vrot.slane %v5500, 4
        %v5507 = vshrl.u32 %v5444, 16
        %v5509 = vrot.slane %v5507, 7
        %v5510 = vshll.u32 %v5444, 16
        %v5512 = vor.u32 %v5509, %v5510
        %v5513 = vrot.slane %v5509, 4
        %v5515 = vshrl.u32 %v5445, 16
        %v5517 = vrot.slane %v5515, 7
        %v5518 = vshll.u32 %v5445, 16
        %v5520 = vor.u32 %v5517, %v5518
        %v5521 = vsel %vm847, %v5513, %v5520
        %v5522 = vrot.slane %v5517, 4
        %v5524 = vshrl.u32 %v5446, 16
        %v5526 = vrot.slane %v5524, 7
        %v5527 = vshll.u32 %v5446, 16
        %v5529 = vor.u32 %v5526, %v5527
        %v5530 = vrot.slane %v5526, 4
        %v5532 = vshrl.u32 %v5447, 16
        %v5534 = vrot.slane %v5532, 7
        %v5535 = vshll.u32 %v5447, 16
        %v5537 = vor.u32 %v5534, %v5535
        %v5538 = vsel %vm847, %v5530, %v5537
        %v5539 = vrot.slane %v5534, 4
        %v5541 = vshrl.u32 %v5448, 16
        %v5543 = vrot.slane %v5541, 7
        %v5544 = vshll.u32 %v5448, 16
        %v5546 = vor.u32 %v5543, %v5544
        %v5547 = vrot.slane %v5543, 4
        %v5549 = vshrl.u32 %v5449, 16
        %v5551 = vrot.slane %v5549, 7
        %v5552 = vshll.u32 %v5449, 16
        %v5554 = vor.u32 %v5551, %v5552
        %v5555 = vsel %vm847, %v5547, %v5554
        %v5556 = vrot.slane %v5551, 4
        %v5558 = vshrl.u32 %v5450, 16
        %v5560 = vrot.slane %v5558, 7
        %v5561 = vshll.u32 %v5450, 16
        %v5563 = vor.u32 %v5560, %v5561
        %v5564 = vrot.slane %v5560, 4
        %v5566 = vshrl.u32 %v5451, 16
        %v5568 = vrot.slane %v5566, 7
        %v5569 = vshll.u32 %v5451, 16
        %v5571 = vor.u32 %v5568, %v5569
        %v5572 = vsel %vm847, %v5564, %v5571
        %v5573 = vrot.slane %v5568, 4
        %v5575 = vshrl.u32 %v5452, 16
        %v5577 = vrot.slane %v5575, 7
        %v5578 = vshll.u32 %v5452, 16
        %v5580 = vor.u32 %v5577, %v5578
        %v5581 = vrot.slane %v5577, 4
        %v5583 = vshrl.u32 %v5453, 16
        %v5585 = vrot.slane %v5583, 7
        %v5586 = vshll.u32 %v5453, 16
        %v5588 = vor.u32 %v5585, %v5586
        %v5589 = vsel %vm847, %v5581, %v5588
        %v5590 = vrot.slane %v5585, 4
        %v5592 = vshrl.u32 %v5454, 16
        %v5594 = vrot.slane %v5592, 7
        %v5595 = vshll.u32 %v5454, 16
        %v5597 = vor.u32 %v5594, %v5595
        %v5598 = vrot.slane %v5594, 4
        %v5600 = vshrl.u32 %v5455, 16
        %v5602 = vrot.slane %v5600, 7
        %v5603 = vshll.u32 %v5455, 16
        %v5605 = vor.u32 %v5602, %v5603
        %v5606 = vsel %vm847, %v5598, %v5605
        %v5607 = vrot.slane %v5602, 4
        %v5609 = vshrl.u32 %v5456, 16
        %v5611 = vrot.slane %v5609, 7
        %v5612 = vshll.u32 %v5456, 16
        %v5614 = vor.u32 %v5611, %v5612
        %v5615 = vrot.slane %v5611, 4
        %v5617 = vshrl.u32 %v5457, 16
        %v5619 = vrot.slane %v5617, 7
        %v5620 = vshll.u32 %v5457, 16
        %v5622 = vor.u32 %v5619, %v5620
        %v5623 = vsel %vm847, %v5615, %v5622
        %v5624 = vrot.slane %v5619, 4
        %v5626 = vshrl.u32 %v5458, 16
        %v5628 = vrot.slane %v5626, 7
        %v5629 = vshll.u32 %v5458, 16
        %v5631 = vor.u32 %v5628, %v5629
        %v5632 = vrot.slane %v5628, 4
        %v5634 = vshrl.u32 %v5459, 16
        %v5636 = vrot.slane %v5634, 7
        %v5637 = vshll.u32 %v5459, 16
        %v5639 = vor.u32 %v5636, %v5637
        %v5640 = vsel %vm847, %v5632, %v5639
        %v5641 = vrot.slane %v5636, 4
        %v5643 = vshrl.u32 %v5460, 16
        %v5645 = vrot.slane %v5643, 7
        %v5646 = vshll.u32 %v5460, 16
        %v5648 = vor.u32 %v5645, %v5646
        %v5649 = vrot.slane %v5645, 4
        %v5651 = vshrl.u32 %v5461, 16
        %v5653 = vrot.slane %v5651, 7
        %v5654 = vshll.u32 %v5461, 16
        %v5656 = vor.u32 %v5653, %v5654
        %v5657 = vsel %vm847, %v5649, %v5656
        %v5658 = vrot.slane %v5653, 4
        %v5660 = vshrl.u32 %v5462, 16
        %v5662 = vrot.slane %v5660, 7
        %v5663 = vshll.u32 %v5462, 16
        %v5665 = vor.u32 %v5662, %v5663
        %v5666 = vrot.slane %v5662, 4
        %v5668 = vshrl.u32 %v5463, 16
        %v5670 = vrot.slane %v5668, 7
        %v5671 = vshll.u32 %v5463, 16
        %v5673 = vor.u32 %v5670, %v5671
        %v5674 = vsel %vm847, %v5666, %v5673
        %v5675 = vrot.slane %v5670, 4
        %v5677 = vshrl.u32 %v5464, 16
        %v5679 = vrot.slane %v5677, 7
        %v5680 = vshll.u32 %v5464, 16
        %v5682 = vor.u32 %v5679, %v5680
        %v5683 = vrot.slane %v5679, 4
        %v5685 = vshrl.u32 %v5465, 16
        %v5687 = vrot.slane %v5685, 7
        %v5688 = vshll.u32 %v5465, 16
        %v5690 = vor.u32 %v5687, %v5688
        %v5691 = vsel %vm847, %v5683, %v5690
        %v5692 = vrot.slane %v5687, 4
        %v5694 = vshrl.u32 %v5466, 16
        %v5696 = vrot.slane %v5694, 7
        %v5697 = vshll.u32 %v5466, 16
        %v5699 = vor.u32 %v5696, %v5697
        %v5700 = vrot.slane %v5696, 4
        %v5702 = vshrl.u32 %v5467, 16
        %v5704 = vrot.slane %v5702, 7
        %v5705 = vshll.u32 %v5467, 16
        %v5707 = vor.u32 %v5704, %v5705
        %v5708 = vsel %vm847, %v5700, %v5707
        %v5709 = vrot.slane %v5704, 4
        %v5711 = vshrl.u32 %v5468, 16
        %v5713 = vrot.slane %v5711, 7
        %v5714 = vshll.u32 %v5468, 16
        %v5716 = vor.u32 %v5713, %v5714
        %v5717 = vrot.slane %v5713, 4
        %v5719 = vshrl.u32 %v5469, 16
        %v5721 = vrot.slane %v5719, 7
        %v5722 = vshll.u32 %v5469, 16
        %v5724 = vor.u32 %v5721, %v5722
        %v5725 = vsel %vm847, %v5717, %v5724
        %v5726 = vrot.slane %v5721, 4
        %v5728 = vshrl.u32 %v5470, 16
        %v5730 = vrot.slane %v5728, 7
        %v5731 = vshll.u32 %v5470, 16
        %v5733 = vor.u32 %v5730, %v5731
        %v5734 = vrot.slane %v5730, 4
        %v5736 = vshrl.u32 %v5471, 16
        %v5738 = vrot.slane %v5736, 7
        %v5739 = vshll.u32 %v5471, 16
        %v5741 = vor.u32 %v5738, %v5739
        %v5742 = vsel %vm847, %v5734, %v5741
        %v5743 = vrot.slane %v5738, 4
        %s5792 = scalar_lea.vmem [#allocation3], 12
        %vm5793 = vcmask 519168
        %vm5794 = vmand %vm5793, %vm344
        %v5795 = vld [vmem:[%s5792] sm:$0xf]
        %v5796 = vsel %vm5794, %v5478, %v5795
        %5797 = vst [vmem:[%s5792] sm:$0xf] %v5796
        %5798 = vst.msk [vmem:[%s5792 + $0x4] sm:$0xf] %vm400, %v5487
        %v5799 = vld [vmem:[%s5792 + $0x8] sm:$0x1]
        %v5800 = vsel %vm410, %v5488, %v5799
        %5801 = vst [vmem:[%s5792 + $0x8] sm:$0x1] %v5800
        %v5802 = vld [vmem:[%s5792 + $0xc] sm:$0xf]
        %v5803 = vsel %vm5794, %v5495, %v5802
        %5804 = vst [vmem:[%s5792 + $0xc] sm:$0xf] %v5803
        %5805 = vst.msk [vmem:[%s5792 + $0x10] sm:$0xf] %vm400, %v5504
        %v5806 = vld [vmem:[%s5792 + $0x14] sm:$0x1]
        %v5807 = vsel %vm410, %v5505, %v5806
        %5808 = vst [vmem:[%s5792 + $0x14] sm:$0x1] %v5807
        %v5809 = vld [vmem:[%s5792 + $0x18] sm:$0xf]
        %v5810 = vsel %vm5794, %v5512, %v5809
        %5811 = vst [vmem:[%s5792 + $0x18] sm:$0xf] %v5810
        %5812 = vst.msk [vmem:[%s5792 + $0x1c] sm:$0xf] %vm400, %v5521
        %v5813 = vld [vmem:[%s5792 + $0x20] sm:$0x1]
        %v5814 = vsel %vm410, %v5522, %v5813
        %5815 = vst [vmem:[%s5792 + $0x20] sm:$0x1] %v5814
        %v5816 = vld [vmem:[%s5792 + $0x24] sm:$0xf]
        %v5817 = vsel %vm5794, %v5529, %v5816
        %5818 = vst [vmem:[%s5792 + $0x24] sm:$0xf] %v5817
        %5819 = vst.msk [vmem:[%s5792 + $0x28] sm:$0xf] %vm400, %v5538
        %v5820 = vld [vmem:[%s5792 + $0x2c] sm:$0x1]
        %v5821 = vsel %vm410, %v5539, %v5820
        %5822 = vst [vmem:[%s5792 + $0x2c] sm:$0x1] %v5821
        %v5823 = vld [vmem:[%s5792 + $0x30] sm:$0xf]
        %v5824 = vsel %vm5794, %v5546, %v5823
        %5825 = vst [vmem:[%s5792 + $0x30] sm:$0xf] %v5824
        %5826 = vst.msk [vmem:[%s5792 + $0x34] sm:$0xf] %vm400, %v5555
        %v5827 = vld [vmem:[%s5792 + $0x38] sm:$0x1]
        %v5828 = vsel %vm410, %v5556, %v5827
        %5829 = vst [vmem:[%s5792 + $0x38] sm:$0x1] %v5828
        %v5830 = vld [vmem:[%s5792 + $0x3c] sm:$0xf]
        %v5831 = vsel %vm5794, %v5563, %v5830
        %5832 = vst [vmem:[%s5792 + $0x3c] sm:$0xf] %v5831
        %5833 = vst.msk [vmem:[%s5792 + $0x40] sm:$0xf] %vm400, %v5572
        %v5834 = vld [vmem:[%s5792 + $0x44] sm:$0x1]
        %v5835 = vsel %vm410, %v5573, %v5834
        %5836 = vst [vmem:[%s5792 + $0x44] sm:$0x1] %v5835
        %v5837 = vld [vmem:[%s5792 + $0x48] sm:$0xf]
        %v5838 = vsel %vm5794, %v5580, %v5837
        %5839 = vst [vmem:[%s5792 + $0x48] sm:$0xf] %v5838
        %5840 = vst.msk [vmem:[%s5792 + $0x4c] sm:$0xf] %vm400, %v5589
        %v5841 = vld [vmem:[%s5792 + $0x50] sm:$0x1]
        %v5842 = vsel %vm410, %v5590, %v5841
        %5843 = vst [vmem:[%s5792 + $0x50] sm:$0x1] %v5842
        %v5844 = vld [vmem:[%s5792 + $0x54] sm:$0xf]
        %v5845 = vsel %vm5794, %v5597, %v5844
        %5846 = vst [vmem:[%s5792 + $0x54] sm:$0xf] %v5845
        %5847 = vst.msk [vmem:[%s5792 + $0x58] sm:$0xf] %vm400, %v5606
        %v5848 = vld [vmem:[%s5792 + $0x5c] sm:$0x1]
        %v5849 = vsel %vm410, %v5607, %v5848
        %5850 = vst [vmem:[%s5792 + $0x5c] sm:$0x1] %v5849
        %v5851 = vld [vmem:[%s5792 + $0x60] sm:$0xf]
        %v5852 = vsel %vm5794, %v5614, %v5851
        %5853 = vst [vmem:[%s5792 + $0x60] sm:$0xf] %v5852
        %5854 = vst.msk [vmem:[%s5792 + $0x64] sm:$0xf] %vm400, %v5623
        %v5855 = vld [vmem:[%s5792 + $0x68] sm:$0x1]
        %v5856 = vsel %vm410, %v5624, %v5855
        %5857 = vst [vmem:[%s5792 + $0x68] sm:$0x1] %v5856
        %v5858 = vld [vmem:[%s5792 + $0x6c] sm:$0xf]
        %v5859 = vsel %vm5794, %v5631, %v5858
        %5860 = vst [vmem:[%s5792 + $0x6c] sm:$0xf] %v5859
        %5861 = vst.msk [vmem:[%s5792 + $0x70] sm:$0xf] %vm400, %v5640
        %v5862 = vld [vmem:[%s5792 + $0x74] sm:$0x1]
        %v5863 = vsel %vm410, %v5641, %v5862
        %5864 = vst [vmem:[%s5792 + $0x74] sm:$0x1] %v5863
        %v5865 = vld [vmem:[%s5792 + $0x78] sm:$0xf]
        %v5866 = vsel %vm5794, %v5648, %v5865
        %5867 = vst [vmem:[%s5792 + $0x78] sm:$0xf] %v5866
        %5868 = vst.msk [vmem:[%s5792 + $0x7c] sm:$0xf] %vm400, %v5657
        %v5869 = vld [vmem:[%s5792 + $0x80] sm:$0x1]
        %v5870 = vsel %vm410, %v5658, %v5869
        %5871 = vst [vmem:[%s5792 + $0x80] sm:$0x1] %v5870
        %v5872 = vld [vmem:[%s5792 + $0x84] sm:$0xf]
        %v5873 = vsel %vm5794, %v5665, %v5872
        %5874 = vst [vmem:[%s5792 + $0x84] sm:$0xf] %v5873
        %5875 = vst.msk [vmem:[%s5792 + $0x88] sm:$0xf] %vm400, %v5674
        %v5876 = vld [vmem:[%s5792 + $0x8c] sm:$0x1]
        %v5877 = vsel %vm410, %v5675, %v5876
        %5878 = vst [vmem:[%s5792 + $0x8c] sm:$0x1] %v5877
        %v5879 = vld [vmem:[%s5792 + $0x90] sm:$0xf]
        %v5880 = vsel %vm5794, %v5682, %v5879
        %5881 = vst [vmem:[%s5792 + $0x90] sm:$0xf] %v5880
        %5882 = vst.msk [vmem:[%s5792 + $0x94] sm:$0xf] %vm400, %v5691
        %v5883 = vld [vmem:[%s5792 + $0x98] sm:$0x1]
        %v5884 = vsel %vm410, %v5692, %v5883
        %5885 = vst [vmem:[%s5792 + $0x98] sm:$0x1] %v5884
        %v5886 = vld [vmem:[%s5792 + $0x9c] sm:$0xf]
        %v5887 = vsel %vm5794, %v5699, %v5886
        %5888 = vst [vmem:[%s5792 + $0x9c] sm:$0xf] %v5887
        %5889 = vst.msk [vmem:[%s5792 + $0xa0] sm:$0xf] %vm400, %v5708
        %v5890 = vld [vmem:[%s5792 + $0xa4] sm:$0x1]
        %v5891 = vsel %vm410, %v5709, %v5890
        %5892 = vst [vmem:[%s5792 + $0xa4] sm:$0x1] %v5891
        %v5893 = vld [vmem:[%s5792 + $0xa8] sm:$0xf]
        %v5894 = vsel %vm5794, %v5716, %v5893
        %5895 = vst [vmem:[%s5792 + $0xa8] sm:$0xf] %v5894
        %5896 = vst.msk [vmem:[%s5792 + $0xac] sm:$0xf] %vm400, %v5725
        %v5897 = vld [vmem:[%s5792 + $0xb0] sm:$0x1]
        %v5898 = vsel %vm410, %v5726, %v5897
        %5899 = vst [vmem:[%s5792 + $0xb0] sm:$0x1] %v5898
        %v5900 = vld [vmem:[%s5792 + $0xb4] sm:$0xf]
        %v5901 = vsel %vm5794, %v5733, %v5900
        %5902 = vst [vmem:[%s5792 + $0xb4] sm:$0xf] %v5901
        %5903 = vst.msk [vmem:[%s5792 + $0xb8] sm:$0xf] %vm400, %v5742
        %v5904 = vld [vmem:[%s5792 + $0xbc] sm:$0x1]
        %v5905 = vsel %vm410, %v5743, %v5904
        %5906 = vst [vmem:[%s5792 + $0xbc] sm:$0x1] %v5905
        %v5907 = vld [vmem:[%s6] sm:$0x1]
        %v5909 = vperm.slane %v5907, 0
        %v5911 = vld [vmem:[#allocation3] sm:$0xf]
        %v5912 = vld [vmem:[#allocation3 + $0x4] sm:$0xf]
        %v5913 = vld [vmem:[#allocation3 + $0xc] sm:$0xf]
        %v5914 = vld [vmem:[#allocation3 + $0x10] sm:$0xf]
        %v5915 = vld [vmem:[#allocation3 + $0x18] sm:$0xf]
        %v5916 = vld [vmem:[#allocation3 + $0x1c] sm:$0xf]
        %v5917 = vld [vmem:[#allocation3 + $0x24] sm:$0xf]
        %v5918 = vld [vmem:[#allocation3 + $0x28] sm:$0xf]
        %v5919 = vld [vmem:[#allocation3 + $0x30] sm:$0xf]
        %v5920 = vld [vmem:[#allocation3 + $0x34] sm:$0xf]
        %v5921 = vld [vmem:[#allocation3 + $0x3c] sm:$0xf]
        %v5922 = vld [vmem:[#allocation3 + $0x40] sm:$0xf]
        %v5923 = vld [vmem:[#allocation3 + $0x48] sm:$0xf]
        %v5924 = vld [vmem:[#allocation3 + $0x4c] sm:$0xf]
        %v5925 = vld [vmem:[#allocation3 + $0x54] sm:$0xf]
        %v5926 = vld [vmem:[#allocation3 + $0x58] sm:$0xf]
        %v5927 = vld [vmem:[#allocation3 + $0x60] sm:$0xf]
        %v5928 = vld [vmem:[#allocation3 + $0x64] sm:$0xf]
        %v5929 = vld [vmem:[#allocation3 + $0x6c] sm:$0xf]
        %v5930 = vld [vmem:[#allocation3 + $0x70] sm:$0xf]
        %v5931 = vld [vmem:[#allocation3 + $0x78] sm:$0xf]
        %v5932 = vld [vmem:[#allocation3 + $0x7c] sm:$0xf]
        %v5933 = vld [vmem:[#allocation3 + $0x84] sm:$0xf]
        %v5934 = vld [vmem:[#allocation3 + $0x88] sm:$0xf]
        %v5935 = vld [vmem:[#allocation3 + $0x90] sm:$0xf]
        %v5936 = vld [vmem:[#allocation3 + $0x94] sm:$0xf]
        %v5937 = vld [vmem:[#allocation3 + $0x9c] sm:$0xf]
        %v5938 = vld [vmem:[#allocation3 + $0xa0] sm:$0xf]
        %v5939 = vld [vmem:[#allocation3 + $0xa8] sm:$0xf]
        %v5940 = vld [vmem:[#allocation3 + $0xac] sm:$0xf]
        %v5941 = vld [vmem:[#allocation3 + $0xb4] sm:$0xf]
        %v5942 = vld [vmem:[#allocation3 + $0xb8] sm:$0xf]
        %v5943 = vld [vmem:[%s5] sm:$0xf]
        %v5944 = vld [vmem:[%s5 + $0x4] sm:$0xf]
        %v5945 = vld [vmem:[%s5 + $0x8] sm:$0xf]
        %v5946 = vld [vmem:[%s5 + $0xc] sm:$0xf]
        %v5947 = vld [vmem:[%s5 + $0x10] sm:$0xf]
        %v5948 = vld [vmem:[%s5 + $0x14] sm:$0xf]
        %v5949 = vld [vmem:[%s5 + $0x18] sm:$0xf]
        %v5950 = vld [vmem:[%s5 + $0x1c] sm:$0xf]
        %v5983 = vunpack.c.l.b16 %v5911
        %v5984 = vunpack.c.l.b16 %v5912
        %v5985 = vunpack.c.l.b16 %v5913
        %v5986 = vunpack.c.l.b16 %v5914
        %v5987 = vunpack.c.l.b16 %v5915
        %v5988 = vunpack.c.l.b16 %v5916
        %v5989 = vunpack.c.l.b16 %v5917
        %v5990 = vunpack.c.l.b16 %v5918
        %v5991 = vunpack.c.l.b16 %v5919
        %v5992 = vunpack.c.l.b16 %v5920
        %v5993 = vunpack.c.l.b16 %v5921
        %v5994 = vunpack.c.l.b16 %v5922
        %v5995 = vunpack.c.l.b16 %v5923
        %v5996 = vunpack.c.l.b16 %v5924
        %v5997 = vunpack.c.l.b16 %v5925
        %v5998 = vunpack.c.l.b16 %v5926
        %v5999 = vunpack.c.l.b16 %v5927
        %v6000 = vunpack.c.l.b16 %v5928
        %v6001 = vunpack.c.l.b16 %v5929
        %v6002 = vunpack.c.l.b16 %v5930
        %v6003 = vunpack.c.l.b16 %v5931
        %v6004 = vunpack.c.l.b16 %v5932
        %v6005 = vunpack.c.l.b16 %v5933
        %v6006 = vunpack.c.l.b16 %v5934
        %v6007 = vunpack.c.l.b16 %v5935
        %v6008 = vunpack.c.l.b16 %v5936
        %v6009 = vunpack.c.l.b16 %v5937
        %v6010 = vunpack.c.l.b16 %v5938
        %v6011 = vunpack.c.l.b16 %v5939
        %v6012 = vunpack.c.l.b16 %v5940
        %v6013 = vunpack.c.l.b16 %v5941
        %v6014 = vunpack.c.l.b16 %v5942
        %v6015 = vpack.c.b16 %v5984, %v5983
        %v6016 = vpack.c.b16 %v5986, %v5985
        %v6017 = vpack.c.b16 %v5988, %v5987
        %v6018 = vpack.c.b16 %v5990, %v5989
        %v6019 = vpack.c.b16 %v5992, %v5991
        %v6020 = vpack.c.b16 %v5994, %v5993
        %v6021 = vpack.c.b16 %v5996, %v5995
        %v6022 = vpack.c.b16 %v5998, %v5997
        %v6023 = vpack.c.b16 %v6000, %v5999
        %v6024 = vpack.c.b16 %v6002, %v6001
        %v6025 = vpack.c.b16 %v6004, %v6003
        %v6026 = vpack.c.b16 %v6006, %v6005
        %v6027 = vpack.c.b16 %v6008, %v6007
        %v6028 = vpack.c.b16 %v6010, %v6009
        %v6029 = vpack.c.b16 %v6012, %v6011
        %v6030 = vpack.c.b16 %v6014, %v6013
        %v6039 = vunpack.c.l.b16 %v5943
        %v6040 = vunpack.c.l.b16 %v5944
        %v6041 = vunpack.c.l.b16 %v5945
        %v6042 = vunpack.c.l.b16 %v5946
        %v6043 = vunpack.c.l.b16 %v5947
        %v6044 = vunpack.c.l.b16 %v5948
        %v6045 = vunpack.c.l.b16 %v5949
        %v6046 = vunpack.c.l.b16 %v5950
        %v6047 = vpack.c.b16 %v6040, %v6039
        %v6048 = vpack.c.b16 %v6042, %v6041
        %v6049 = vpack.c.b16 %v6044, %v6043
        %v6050 = vpack.c.b16 %v6046, %v6045
        %vm6055 = vcmask 523264
        %v6057 = vsel %vm6055, %v6015, 0
        %v6060 = vsel %vm6055, %v6016, 0
        %v6063 = vsel %vm6055, %v6017, 0
        %v6066 = vsel %vm6055, %v6018, 0
        %v6069 = vsel %vm6055, %v6019, 0
        %v6072 = vsel %vm6055, %v6020, 0
        %v6075 = vsel %vm6055, %v6021, 0
        %v6078 = vsel %vm6055, %v6022, 0
        %v6081 = vsel %vm6055, %v6023, 0
        %v6084 = vsel %vm6055, %v6024, 0
        %v6087 = vsel %vm6055, %v6025, 0
        %v6090 = vsel %vm6055, %v6026, 0
        %v6093 = vsel %vm6055, %v6027, 0
        %v6096 = vsel %vm6055, %v6028, 0
        %v6099 = vsel %vm6055, %v6029, 0
        %v6102 = vsel %vm6055, %v6030, 0
        %6104 = vmatpush.bf16.msra.mxu0 0
        %6105 = vmatpush.bf16.msra.mxu0 0
        %6106 = vmatpush.bf16.msra.mxu0 0
        %6107 = vmatpush.bf16.msra.mxu0 0
        %6108 = vmatpush.bf16.msra.mxu0 %v6050
        %6109 = vmatpush.bf16.msra.mxu0 %v6049
        %6110 = vmatpush.bf16.msra.mxu0 %v6048
        %6111 = vmatpush.bf16.msra.mxu0 %v6047
        %6112 = vmatmul.bf16.gmra.mxu0 %v6057
        %v6113 = vpop.f32.mrf.mxu0
        %v6114 = vadd.f32 0.0, %v6113
        %v6115 = vpop.f32.mrf.mxu0
        %v6116 = vadd.f32 0.0, %v6115
        %6117 = vmatmul.bf16.gmra.mxu0 %v6060
        %v6118 = vpop.f32.mrf.mxu0
        %v6119 = vadd.f32 0.0, %v6118
        %v6120 = vpop.f32.mrf.mxu0
        %v6121 = vadd.f32 0.0, %v6120
        %6122 = vmatmul.bf16.gmra.mxu0 %v6063
        %v6123 = vpop.f32.mrf.mxu0
        %v6124 = vadd.f32 0.0, %v6123
        %v6125 = vpop.f32.mrf.mxu0
        %v6126 = vadd.f32 0.0, %v6125
        %6127 = vmatmul.bf16.gmra.mxu0 %v6066
        %v6128 = vpop.f32.mrf.mxu0
        %v6129 = vadd.f32 0.0, %v6128
        %v6130 = vpop.f32.mrf.mxu0
        %v6131 = vadd.f32 0.0, %v6130
        %6132 = vmatmul.bf16.gmra.mxu0 %v6069
        %v6133 = vpop.f32.mrf.mxu0
        %v6134 = vadd.f32 0.0, %v6133
        %v6135 = vpop.f32.mrf.mxu0
        %v6136 = vadd.f32 0.0, %v6135
        %6137 = vmatmul.bf16.gmra.mxu0 %v6072
        %v6138 = vpop.f32.mrf.mxu0
        %v6139 = vadd.f32 0.0, %v6138
        %v6140 = vpop.f32.mrf.mxu0
        %v6141 = vadd.f32 0.0, %v6140
        %6142 = vmatmul.bf16.gmra.mxu0 %v6075
        %v6143 = vpop.f32.mrf.mxu0
        %v6144 = vadd.f32 0.0, %v6143
        %v6145 = vpop.f32.mrf.mxu0
        %v6146 = vadd.f32 0.0, %v6145
        %6147 = vmatmul.bf16.gmra.mxu0 %v6078
        %v6148 = vpop.f32.mrf.mxu0
        %v6149 = vadd.f32 0.0, %v6148
        %v6150 = vpop.f32.mrf.mxu0
        %v6151 = vadd.f32 0.0, %v6150
        %6152 = vmatmul.bf16.gmra.mxu0 %v6081
        %v6153 = vpop.f32.mrf.mxu0
        %v6154 = vadd.f32 0.0, %v6153
        %v6155 = vpop.f32.mrf.mxu0
        %v6156 = vadd.f32 0.0, %v6155
        %6157 = vmatmul.bf16.gmra.mxu0 %v6084
        %v6158 = vpop.f32.mrf.mxu0
        %v6159 = vadd.f32 0.0, %v6158
        %v6160 = vpop.f32.mrf.mxu0
        %v6161 = vadd.f32 0.0, %v6160
        %6162 = vmatmul.bf16.gmra.mxu0 %v6087
        %v6163 = vpop.f32.mrf.mxu0
        %v6164 = vadd.f32 0.0, %v6163
        %v6165 = vpop.f32.mrf.mxu0
        %v6166 = vadd.f32 0.0, %v6165
        %6167 = vmatmul.bf16.gmra.mxu0 %v6090
        %v6168 = vpop.f32.mrf.mxu0
        %v6169 = vadd.f32 0.0, %v6168
        %v6170 = vpop.f32.mrf.mxu0
        %v6171 = vadd.f32 0.0, %v6170
        %6172 = vmatmul.bf16.gmra.mxu0 %v6093
        %v6173 = vpop.f32.mrf.mxu0
        %v6174 = vadd.f32 0.0, %v6173
        %v6175 = vpop.f32.mrf.mxu0
        %v6176 = vadd.f32 0.0, %v6175
        %6177 = vmatmul.bf16.gmra.mxu0 %v6096
        %v6178 = vpop.f32.mrf.mxu0
        %v6179 = vadd.f32 0.0, %v6178
        %v6180 = vpop.f32.mrf.mxu0
        %v6181 = vadd.f32 0.0, %v6180
        %6182 = vmatmul.bf16.gmra.mxu0 %v6099
        %v6183 = vpop.f32.mrf.mxu0
        %v6184 = vadd.f32 0.0, %v6183
        %v6185 = vpop.f32.mrf.mxu0
        %v6186 = vadd.f32 0.0, %v6185
        %6187 = vmatmul.bf16.gmra.mxu0 %v6102
        %v6188 = vpop.f32.mrf.mxu0
        %v6189 = vadd.f32 0.0, %v6188
        %v6190 = vpop.f32.mrf.mxu0
        %v6191 = vadd.f32 0.0, %v6190
        %6192 = vdwg.mxu0
        %v6193 = vadd.f32 %v5909, %v6114
        %v6194 = vadd.f32 %v5909, %v6116
        %v6195 = vadd.f32 %v5909, %v6119
        %v6196 = vadd.f32 %v5909, %v6121
        %v6197 = vadd.f32 %v5909, %v6124
        %v6198 = vadd.f32 %v5909, %v6126
        %v6199 = vadd.f32 %v5909, %v6129
        %v6200 = vadd.f32 %v5909, %v6131
        %v6201 = vadd.f32 %v5909, %v6134
        %v6202 = vadd.f32 %v5909, %v6136
        %v6203 = vadd.f32 %v5909, %v6139
        %v6204 = vadd.f32 %v5909, %v6141
        %v6205 = vadd.f32 %v5909, %v6144
        %v6206 = vadd.f32 %v5909, %v6146
        %v6207 = vadd.f32 %v5909, %v6149
        %v6208 = vadd.f32 %v5909, %v6151
        %v6209 = vadd.f32 %v5909, %v6154
        %v6210 = vadd.f32 %v5909, %v6156
        %v6211 = vadd.f32 %v5909, %v6159
        %v6212 = vadd.f32 %v5909, %v6161
        %v6213 = vadd.f32 %v5909, %v6164
        %v6214 = vadd.f32 %v5909, %v6166
        %v6215 = vadd.f32 %v5909, %v6169
        %v6216 = vadd.f32 %v5909, %v6171
        %v6217 = vadd.f32 %v5909, %v6174
        %v6218 = vadd.f32 %v5909, %v6176
        %v6219 = vadd.f32 %v5909, %v6179
        %v6220 = vadd.f32 %v5909, %v6181
        %v6221 = vadd.f32 %v5909, %v6184
        %v6222 = vadd.f32 %v5909, %v6186
        %v6223 = vadd.f32 %v5909, %v6189
        %v6224 = vadd.f32 %v5909, %v6191
        %v6225 = vld [vmem:[#allocation3] sm:$0xf]
        %v6226 = vld [vmem:[#allocation3 + $0x4] sm:$0xf]
        %v6227 = vld [vmem:[#allocation3 + $0x8] sm:$0x1]
        %v6228 = vld [vmem:[#allocation3 + $0xc] sm:$0xf]
        %v6229 = vld [vmem:[#allocation3 + $0x10] sm:$0xf]
        %v6230 = vld [vmem:[#allocation3 + $0x14] sm:$0x1]
        %v6231 = vld [vmem:[#allocation3 + $0x18] sm:$0xf]
        %v6232 = vld [vmem:[#allocation3 + $0x1c] sm:$0xf]
        %v6233 = vld [vmem:[#allocation3 + $0x20] sm:$0x1]
        %v6234 = vld [vmem:[#allocation3 + $0x24] sm:$0xf]
        %v6235 = vld [vmem:[#allocation3 + $0x28] sm:$0xf]
        %v6236 = vld [vmem:[#allocation3 + $0x2c] sm:$0x1]
        %v6237 = vld [vmem:[#allocation3 + $0x30] sm:$0xf]
        %v6238 = vld [vmem:[#allocation3 + $0x34] sm:$0xf]
        %v6239 = vld [vmem:[#allocation3 + $0x38] sm:$0x1]
        %v6240 = vld [vmem:[#allocation3 + $0x3c] sm:$0xf]
        %v6241 = vld [vmem:[#allocation3 + $0x40] sm:$0xf]
        %v6242 = vld [vmem:[#allocation3 + $0x44] sm:$0x1]
        %v6243 = vld [vmem:[#allocation3 + $0x48] sm:$0xf]
        %v6244 = vld [vmem:[#allocation3 + $0x4c] sm:$0xf]
        %v6245 = vld [vmem:[#allocation3 + $0x50] sm:$0x1]
        %v6246 = vld [vmem:[#allocation3 + $0x54] sm:$0xf]
        %v6247 = vld [vmem:[#allocation3 + $0x58] sm:$0xf]
        %v6248 = vld [vmem:[#allocation3 + $0x5c] sm:$0x1]
        %v6249 = vld [vmem:[#allocation3 + $0x60] sm:$0xf]
        %v6250 = vld [vmem:[#allocation3 + $0x64] sm:$0xf]
        %v6251 = vld [vmem:[#allocation3 + $0x68] sm:$0x1]
        %v6252 = vld [vmem:[#allocation3 + $0x6c] sm:$0xf]
        %v6253 = vld [vmem:[#allocation3 + $0x70] sm:$0xf]
        %v6254 = vld [vmem:[#allocation3 + $0x74] sm:$0x1]
        %v6255 = vld [vmem:[#allocation3 + $0x78] sm:$0xf]
        %v6256 = vld [vmem:[#allocation3 + $0x7c] sm:$0xf]
        %v6257 = vld [vmem:[#allocation3 + $0x80] sm:$0x1]
        %v6258 = vld [vmem:[#allocation3 + $0x84] sm:$0xf]
        %v6259 = vld [vmem:[#allocation3 + $0x88] sm:$0xf]
        %v6260 = vld [vmem:[#allocation3 + $0x8c] sm:$0x1]
        %v6261 = vld [vmem:[#allocation3 + $0x90] sm:$0xf]
        %v6262 = vld [vmem:[#allocation3 + $0x94] sm:$0xf]
        %v6263 = vld [vmem:[#allocation3 + $0x98] sm:$0x1]
        %v6264 = vld [vmem:[#allocation3 + $0x9c] sm:$0xf]
        %v6265 = vld [vmem:[#allocation3 + $0xa0] sm:$0xf]
        %v6266 = vld [vmem:[#allocation3 + $0xa4] sm:$0x1]
        %v6267 = vld [vmem:[#allocation3 + $0xa8] sm:$0xf]
        %v6268 = vld [vmem:[#allocation3 + $0xac] sm:$0xf]
        %v6269 = vld [vmem:[#allocation3 + $0xb0] sm:$0x1]
        %v6270 = vld [vmem:[#allocation3 + $0xb4] sm:$0xf]
        %v6271 = vld [vmem:[#allocation3 + $0xb8] sm:$0xf]
        %v6272 = vld [vmem:[#allocation3 + $0xbc] sm:$0x1]
        %v6274 = vshrl.u32 %v6225, 16
        %v6276 = vrot.slane %v6274, 4
        %v6277 = vshll.u32 %v6225, 16
        %v6279 = vrot.slane %v6277, 5
        %v6280 = vor.u32 %v6276, %v6279
        %v6281 = vrot.slane %v6280, 4
        %v6283 = vshll.u32 %v6226, 16
        %v6285 = vrot.slane %v6283, 5
        %v6286 = vsel %vm1635, %v6281, %v6285
        %v6287 = vshrl.u32 %v6226, 16
        %v6289 = vrot.slane %v6287, 4
        %v6290 = vor.u32 %v6289, %v6285
        %v6291 = vrot.slane %v6290, 4
        %v6293 = vshll.u32 %v6227, 16
        %v6295 = vrot.slane %v6293, 5
        %v6296 = vsel %vm1635, %v6291, %v6295
        %v6298 = vshrl.u32 %v6228, 16
        %v6300 = vrot.slane %v6298, 4
        %v6301 = vshll.u32 %v6228, 16
        %v6303 = vrot.slane %v6301, 5
        %v6304 = vor.u32 %v6300, %v6303
        %v6305 = vrot.slane %v6304, 4
        %v6307 = vshll.u32 %v6229, 16
        %v6309 = vrot.slane %v6307, 5
        %v6310 = vsel %vm1635, %v6305, %v6309
        %v6311 = vshrl.u32 %v6229, 16
        %v6313 = vrot.slane %v6311, 4
        %v6314 = vor.u32 %v6313, %v6309
        %v6315 = vrot.slane %v6314, 4
        %v6317 = vshll.u32 %v6230, 16
        %v6319 = vrot.slane %v6317, 5
        %v6320 = vsel %vm1635, %v6315, %v6319
        %v6322 = vshrl.u32 %v6231, 16
        %v6324 = vrot.slane %v6322, 4
        %v6325 = vshll.u32 %v6231, 16
        %v6327 = vrot.slane %v6325, 5
        %v6328 = vor.u32 %v6324, %v6327
        %v6329 = vrot.slane %v6328, 4
        %v6331 = vshll.u32 %v6232, 16
        %v6333 = vrot.slane %v6331, 5
        %v6334 = vsel %vm1635, %v6329, %v6333
        %v6335 = vshrl.u32 %v6232, 16
        %v6337 = vrot.slane %v6335, 4
        %v6338 = vor.u32 %v6337, %v6333
        %v6339 = vrot.slane %v6338, 4
        %v6341 = vshll.u32 %v6233, 16
        %v6343 = vrot.slane %v6341, 5
        %v6344 = vsel %vm1635, %v6339, %v6343
        %v6346 = vshrl.u32 %v6234, 16
        %v6348 = vrot.slane %v6346, 4
        %v6349 = vshll.u32 %v6234, 16
        %v6351 = vrot.slane %v6349, 5
        %v6352 = vor.u32 %v6348, %v6351
        %v6353 = vrot.slane %v6352, 4
        %v6355 = vshll.u32 %v6235, 16
        %v6357 = vrot.slane %v6355, 5
        %v6358 = vsel %vm1635, %v6353, %v6357
        %v6359 = vshrl.u32 %v6235, 16
        %v6361 = vrot.slane %v6359, 4
        %v6362 = vor.u32 %v6361, %v6357
        %v6363 = vrot.slane %v6362, 4
        %v6365 = vshll.u32 %v6236, 16
        %v6367 = vrot.slane %v6365, 5
        %v6368 = vsel %vm1635, %v6363, %v6367
        %v6370 = vshrl.u32 %v6237, 16
        %v6372 = vrot.slane %v6370, 4
        %v6373 = vshll.u32 %v6237, 16
        %v6375 = vrot.slane %v6373, 5
        %v6376 = vor.u32 %v6372, %v6375
        %v6377 = vrot.slane %v6376, 4
        %v6379 = vshll.u32 %v6238, 16
        %v6381 = vrot.slane %v6379, 5
        %v6382 = vsel %vm1635, %v6377, %v6381
        %v6383 = vshrl.u32 %v6238, 16
        %v6385 = vrot.slane %v6383, 4
        %v6386 = vor.u32 %v6385, %v6381
        %v6387 = vrot.slane %v6386, 4
        %v6389 = vshll.u32 %v6239, 16
        %v6391 = vrot.slane %v6389, 5
        %v6392 = vsel %vm1635, %v6387, %v6391
        %v6394 = vshrl.u32 %v6240, 16
        %v6396 = vrot.slane %v6394, 4
        %v6397 = vshll.u32 %v6240, 16
        %v6399 = vrot.slane %v6397, 5
        %v6400 = vor.u32 %v6396, %v6399
        %v6401 = vrot.slane %v6400, 4
        %v6403 = vshll.u32 %v6241, 16
        %v6405 = vrot.slane %v6403, 5
        %v6406 = vsel %vm1635, %v6401, %v6405
        %v6407 = vshrl.u32 %v6241, 16
        %v6409 = vrot.slane %v6407, 4
        %v6410 = vor.u32 %v6409, %v6405
        %v6411 = vrot.slane %v6410, 4
        %v6413 = vshll.u32 %v6242, 16
        %v6415 = vrot.slane %v6413, 5
        %v6416 = vsel %vm1635, %v6411, %v6415
        %v6418 = vshrl.u32 %v6243, 16
        %v6420 = vrot.slane %v6418, 4
        %v6421 = vshll.u32 %v6243, 16
        %v6423 = vrot.slane %v6421, 5
        %v6424 = vor.u32 %v6420, %v6423
        %v6425 = vrot.slane %v6424, 4
        %v6427 = vshll.u32 %v6244, 16
        %v6429 = vrot.slane %v6427, 5
        %v6430 = vsel %vm1635, %v6425, %v6429
        %v6431 = vshrl.u32 %v6244, 16
        %v6433 = vrot.slane %v6431, 4
        %v6434 = vor.u32 %v6433, %v6429
        %v6435 = vrot.slane %v6434, 4
        %v6437 = vshll.u32 %v6245, 16
        %v6439 = vrot.slane %v6437, 5
        %v6440 = vsel %vm1635, %v6435, %v6439
        %v6442 = vshrl.u32 %v6246, 16
        %v6444 = vrot.slane %v6442, 4
        %v6445 = vshll.u32 %v6246, 16
        %v6447 = vrot.slane %v6445, 5
        %v6448 = vor.u32 %v6444, %v6447
        %v6449 = vrot.slane %v6448, 4
        %v6451 = vshll.u32 %v6247, 16
        %v6453 = vrot.slane %v6451, 5
        %v6454 = vsel %vm1635, %v6449, %v6453
        %v6455 = vshrl.u32 %v6247, 16
        %v6457 = vrot.slane %v6455, 4
        %v6458 = vor.u32 %v6457, %v6453
        %v6459 = vrot.slane %v6458, 4
        %v6461 = vshll.u32 %v6248, 16
        %v6463 = vrot.slane %v6461, 5
        %v6464 = vsel %vm1635, %v6459, %v6463
        %v6466 = vshrl.u32 %v6249, 16
        %v6468 = vrot.slane %v6466, 4
        %v6469 = vshll.u32 %v6249, 16
        %v6471 = vrot.slane %v6469, 5
        %v6472 = vor.u32 %v6468, %v6471
        %v6473 = vrot.slane %v6472, 4
        %v6475 = vshll.u32 %v6250, 16
        %v6477 = vrot.slane %v6475, 5
        %v6478 = vsel %vm1635, %v6473, %v6477
        %v6479 = vshrl.u32 %v6250, 16
        %v6481 = vrot.slane %v6479, 4
        %v6482 = vor.u32 %v6481, %v6477
        %v6483 = vrot.slane %v6482, 4
        %v6485 = vshll.u32 %v6251, 16
        %v6487 = vrot.slane %v6485, 5
        %v6488 = vsel %vm1635, %v6483, %v6487
        %v6490 = vshrl.u32 %v6252, 16
        %v6492 = vrot.slane %v6490, 4
        %v6493 = vshll.u32 %v6252, 16
        %v6495 = vrot.slane %v6493, 5
        %v6496 = vor.u32 %v6492, %v6495
        %v6497 = vrot.slane %v6496, 4
        %v6499 = vshll.u32 %v6253, 16
        %v6501 = vrot.slane %v6499, 5
        %v6502 = vsel %vm1635, %v6497, %v6501
        %v6503 = vshrl.u32 %v6253, 16
        %v6505 = vrot.slane %v6503, 4
        %v6506 = vor.u32 %v6505, %v6501
        %v6507 = vrot.slane %v6506, 4
        %v6509 = vshll.u32 %v6254, 16
        %v6511 = vrot.slane %v6509, 5
        %v6512 = vsel %vm1635, %v6507, %v6511
        %v6514 = vshrl.u32 %v6255, 16
        %v6516 = vrot.slane %v6514, 4
        %v6517 = vshll.u32 %v6255, 16
        %v6519 = vrot.slane %v6517, 5
        %v6520 = vor.u32 %v6516, %v6519
        %v6521 = vrot.slane %v6520, 4
        %v6523 = vshll.u32 %v6256, 16
        %v6525 = vrot.slane %v6523, 5
        %v6526 = vsel %vm1635, %v6521, %v6525
        %v6527 = vshrl.u32 %v6256, 16
        %v6529 = vrot.slane %v6527, 4
        %v6530 = vor.u32 %v6529, %v6525
        %v6531 = vrot.slane %v6530, 4
        %v6533 = vshll.u32 %v6257, 16
        %v6535 = vrot.slane %v6533, 5
        %v6536 = vsel %vm1635, %v6531, %v6535
        %v6538 = vshrl.u32 %v6258, 16
        %v6540 = vrot.slane %v6538, 4
        %v6541 = vshll.u32 %v6258, 16
        %v6543 = vrot.slane %v6541, 5
        %v6544 = vor.u32 %v6540, %v6543
        %v6545 = vrot.slane %v6544, 4
        %v6547 = vshll.u32 %v6259, 16
        %v6549 = vrot.slane %v6547, 5
        %v6550 = vsel %vm1635, %v6545, %v6549
        %v6551 = vshrl.u32 %v6259, 16
        %v6553 = vrot.slane %v6551, 4
        %v6554 = vor.u32 %v6553, %v6549
        %v6555 = vrot.slane %v6554, 4
        %v6557 = vshll.u32 %v6260, 16
        %v6559 = vrot.slane %v6557, 5
        %v6560 = vsel %vm1635, %v6555, %v6559
        %v6562 = vshrl.u32 %v6261, 16
        %v6564 = vrot.slane %v6562, 4
        %v6565 = vshll.u32 %v6261, 16
        %v6567 = vrot.slane %v6565, 5
        %v6568 = vor.u32 %v6564, %v6567
        %v6569 = vrot.slane %v6568, 4
        %v6571 = vshll.u32 %v6262, 16
        %v6573 = vrot.slane %v6571, 5
        %v6574 = vsel %vm1635, %v6569, %v6573
        %v6575 = vshrl.u32 %v6262, 16
        %v6577 = vrot.slane %v6575, 4
        %v6578 = vor.u32 %v6577, %v6573
        %v6579 = vrot.slane %v6578, 4
        %v6581 = vshll.u32 %v6263, 16
        %v6583 = vrot.slane %v6581, 5
        %v6584 = vsel %vm1635, %v6579, %v6583
        %v6586 = vshrl.u32 %v6264, 16
        %v6588 = vrot.slane %v6586, 4
        %v6589 = vshll.u32 %v6264, 16
        %v6591 = vrot.slane %v6589, 5
        %v6592 = vor.u32 %v6588, %v6591
        %v6593 = vrot.slane %v6592, 4
        %v6595 = vshll.u32 %v6265, 16
        %v6597 = vrot.slane %v6595, 5
        %v6598 = vsel %vm1635, %v6593, %v6597
        %v6599 = vshrl.u32 %v6265, 16
        %v6601 = vrot.slane %v6599, 4
        %v6602 = vor.u32 %v6601, %v6597
        %v6603 = vrot.slane %v6602, 4
        %v6605 = vshll.u32 %v6266, 16
        %v6607 = vrot.slane %v6605, 5
        %v6608 = vsel %vm1635, %v6603, %v6607
        %v6610 = vshrl.u32 %v6267, 16
        %v6612 = vrot.slane %v6610, 4
        %v6613 = vshll.u32 %v6267, 16
        %v6615 = vrot.slane %v6613, 5
        %v6616 = vor.u32 %v6612, %v6615
        %v6617 = vrot.slane %v6616, 4
        %v6619 = vshll.u32 %v6268, 16
        %v6621 = vrot.slane %v6619, 5
        %v6622 = vsel %vm1635, %v6617, %v6621
        %v6623 = vshrl.u32 %v6268, 16
        %v6625 = vrot.slane %v6623, 4
        %v6626 = vor.u32 %v6625, %v6621
        %v6627 = vrot.slane %v6626, 4
        %v6629 = vshll.u32 %v6269, 16
        %v6631 = vrot.slane %v6629, 5
        %v6632 = vsel %vm1635, %v6627, %v6631
        %v6634 = vshrl.u32 %v6270, 16
        %v6636 = vrot.slane %v6634, 4
        %v6637 = vshll.u32 %v6270, 16
        %v6639 = vrot.slane %v6637, 5
        %v6640 = vor.u32 %v6636, %v6639
        %v6641 = vrot.slane %v6640, 4
        %v6643 = vshll.u32 %v6271, 16
        %v6645 = vrot.slane %v6643, 5
        %v6646 = vsel %vm1635, %v6641, %v6645
        %v6647 = vshrl.u32 %v6271, 16
        %v6649 = vrot.slane %v6647, 4
        %v6650 = vor.u32 %v6649, %v6645
        %v6651 = vrot.slane %v6650, 4
        %v6653 = vshll.u32 %v6272, 16
        %v6655 = vrot.slane %v6653, 5
        %v6656 = vsel %vm1635, %v6651, %v6655
        %v6657 = vld [vmem:[%s5 + $0x20] sm:$0xf]
        %v6658 = vld [vmem:[%s5 + $0x24] sm:$0xf]
        %v6659 = vld [vmem:[%s5 + $0x28] sm:$0xf]
        %v6660 = vld [vmem:[%s5 + $0x2c] sm:$0xf]
        %v6661 = vld [vmem:[%s5 + $0x30] sm:$0xf]
        %v6662 = vld [vmem:[%s5 + $0x34] sm:$0xf]
        %v6663 = vld [vmem:[%s5 + $0x38] sm:$0xf]
        %v6664 = vld [vmem:[%s5 + $0x3c] sm:$0xf]
        %v6665 = vunpack.c.l.b16 %v6286
        %v6666 = vunpack.c.l.b16 %v6296
        %v6667 = vunpack.c.l.b16 %v6310
        %v6668 = vunpack.c.l.b16 %v6320
        %v6669 = vunpack.c.l.b16 %v6334
        %v6670 = vunpack.c.l.b16 %v6344
        %v6671 = vunpack.c.l.b16 %v6358
        %v6672 = vunpack.c.l.b16 %v6368
        %v6673 = vunpack.c.l.b16 %v6382
        %v6674 = vunpack.c.l.b16 %v6392
        %v6675 = vunpack.c.l.b16 %v6406
        %v6676 = vunpack.c.l.b16 %v6416
        %v6677 = vunpack.c.l.b16 %v6430
        %v6678 = vunpack.c.l.b16 %v6440
        %v6679 = vunpack.c.l.b16 %v6454
        %v6680 = vunpack.c.l.b16 %v6464
        %v6681 = vunpack.c.l.b16 %v6478
        %v6682 = vunpack.c.l.b16 %v6488
        %v6683 = vunpack.c.l.b16 %v6502
        %v6684 = vunpack.c.l.b16 %v6512
        %v6685 = vunpack.c.l.b16 %v6526
        %v6686 = vunpack.c.l.b16 %v6536
        %v6687 = vunpack.c.l.b16 %v6550
        %v6688 = vunpack.c.l.b16 %v6560
        %v6689 = vunpack.c.l.b16 %v6574
        %v6690 = vunpack.c.l.b16 %v6584
        %v6691 = vunpack.c.l.b16 %v6598
        %v6692 = vunpack.c.l.b16 %v6608
        %v6693 = vunpack.c.l.b16 %v6622
        %v6694 = vunpack.c.l.b16 %v6632
        %v6695 = vunpack.c.l.b16 %v6646
        %v6696 = vunpack.c.l.b16 %v6656
        %v6697 = vpack.c.b16 %v6666, %v6665
        %v6698 = vpack.c.b16 %v6668, %v6667
        %v6699 = vpack.c.b16 %v6670, %v6669
        %v6700 = vpack.c.b16 %v6672, %v6671
        %v6701 = vpack.c.b16 %v6674, %v6673
        %v6702 = vpack.c.b16 %v6676, %v6675
        %v6703 = vpack.c.b16 %v6678, %v6677
        %v6704 = vpack.c.b16 %v6680, %v6679
        %v6705 = vpack.c.b16 %v6682, %v6681
        %v6706 = vpack.c.b16 %v6684, %v6683
        %v6707 = vpack.c.b16 %v6686, %v6685
        %v6708 = vpack.c.b16 %v6688, %v6687
        %v6709 = vpack.c.b16 %v6690, %v6689
        %v6710 = vpack.c.b16 %v6692, %v6691
        %v6711 = vpack.c.b16 %v6694, %v6693
        %v6712 = vpack.c.b16 %v6696, %v6695
        %v6721 = vunpack.c.l.b16 %v6657
        %v6722 = vunpack.c.l.b16 %v6658
        %v6723 = vunpack.c.l.b16 %v6659
        %v6724 = vunpack.c.l.b16 %v6660
        %v6725 = vunpack.c.l.b16 %v6661
        %v6726 = vunpack.c.l.b16 %v6662
        %v6727 = vunpack.c.l.b16 %v6663
        %v6728 = vunpack.c.l.b16 %v6664
        %v6729 = vpack.c.b16 %v6722, %v6721
        %v6730 = vpack.c.b16 %v6724, %v6723
        %v6731 = vpack.c.b16 %v6726, %v6725
        %v6732 = vpack.c.b16 %v6728, %v6727
        %v6738 = vsel %vm6055, %v6697, 0
        %v6741 = vsel %vm6055, %v6698, 0
        %v6744 = vsel %vm6055, %v6699, 0
        %v6747 = vsel %vm6055, %v6700, 0
        %v6750 = vsel %vm6055, %v6701, 0
        %v6753 = vsel %vm6055, %v6702, 0
        %v6756 = vsel %vm6055, %v6703, 0
        %v6759 = vsel %vm6055, %v6704, 0
        %v6762 = vsel %vm6055, %v6705, 0
        %v6765 = vsel %vm6055, %v6706, 0
        %v6768 = vsel %vm6055, %v6707, 0
        %v6771 = vsel %vm6055, %v6708, 0
        %v6774 = vsel %vm6055, %v6709, 0
        %v6777 = vsel %vm6055, %v6710, 0
        %v6780 = vsel %vm6055, %v6711, 0
        %v6783 = vsel %vm6055, %v6712, 0
        %6785 = vmatpush.bf16.msra.mxu0 0
        %6786 = vmatpush.bf16.msra.mxu0 0
        %6787 = vmatpush.bf16.msra.mxu0 0
        %6788 = vmatpush.bf16.msra.mxu0 0
        %6789 = vmatpush.bf16.msra.mxu0 %v6732
        %6790 = vmatpush.bf16.msra.mxu0 %v6731
        %6791 = vmatpush.bf16.msra.mxu0 %v6730
        %6792 = vmatpush.bf16.msra.mxu0 %v6729
        %6793 = vmatmul.bf16.gmra.mxu0 %v6738
        %v6794 = vpop.f32.mrf.mxu0
        %v6795 = vadd.f32 0.0, %v6794
        %v6796 = vpop.f32.mrf.mxu0
        %v6797 = vadd.f32 0.0, %v6796
        %6798 = vmatmul.bf16.gmra.mxu0 %v6741
        %v6799 = vpop.f32.mrf.mxu0
        %v6800 = vadd.f32 0.0, %v6799
        %v6801 = vpop.f32.mrf.mxu0
        %v6802 = vadd.f32 0.0, %v6801
        %6803 = vmatmul.bf16.gmra.mxu0 %v6744
        %v6804 = vpop.f32.mrf.mxu0
        %v6805 = vadd.f32 0.0, %v6804
        %v6806 = vpop.f32.mrf.mxu0
        %v6807 = vadd.f32 0.0, %v6806
        %6808 = vmatmul.bf16.gmra.mxu0 %v6747
        %v6809 = vpop.f32.mrf.mxu0
        %v6810 = vadd.f32 0.0, %v6809
        %v6811 = vpop.f32.mrf.mxu0
        %v6812 = vadd.f32 0.0, %v6811
        %6813 = vmatmul.bf16.gmra.mxu0 %v6750
        %v6814 = vpop.f32.mrf.mxu0
        %v6815 = vadd.f32 0.0, %v6814
        %v6816 = vpop.f32.mrf.mxu0
        %v6817 = vadd.f32 0.0, %v6816
        %6818 = vmatmul.bf16.gmra.mxu0 %v6753
        %v6819 = vpop.f32.mrf.mxu0
        %v6820 = vadd.f32 0.0, %v6819
        %v6821 = vpop.f32.mrf.mxu0
        %v6822 = vadd.f32 0.0, %v6821
        %6823 = vmatmul.bf16.gmra.mxu0 %v6756
        %v6824 = vpop.f32.mrf.mxu0
        %v6825 = vadd.f32 0.0, %v6824
        %v6826 = vpop.f32.mrf.mxu0
        %v6827 = vadd.f32 0.0, %v6826
        %6828 = vmatmul.bf16.gmra.mxu0 %v6759
        %v6829 = vpop.f32.mrf.mxu0
        %v6830 = vadd.f32 0.0, %v6829
        %v6831 = vpop.f32.mrf.mxu0
        %v6832 = vadd.f32 0.0, %v6831
        %6833 = vmatmul.bf16.gmra.mxu0 %v6762
        %v6834 = vpop.f32.mrf.mxu0
        %v6835 = vadd.f32 0.0, %v6834
        %v6836 = vpop.f32.mrf.mxu0
        %v6837 = vadd.f32 0.0, %v6836
        %6838 = vmatmul.bf16.gmra.mxu0 %v6765
        %v6839 = vpop.f32.mrf.mxu0
        %v6840 = vadd.f32 0.0, %v6839
        %v6841 = vpop.f32.mrf.mxu0
        %v6842 = vadd.f32 0.0, %v6841
        %6843 = vmatmul.bf16.gmra.mxu0 %v6768
        %v6844 = vpop.f32.mrf.mxu0
        %v6845 = vadd.f32 0.0, %v6844
        %v6846 = vpop.f32.mrf.mxu0
        %v6847 = vadd.f32 0.0, %v6846
        %6848 = vmatmul.bf16.gmra.mxu0 %v6771
        %v6849 = vpop.f32.mrf.mxu0
        %v6850 = vadd.f32 0.0, %v6849
        %v6851 = vpop.f32.mrf.mxu0
        %v6852 = vadd.f32 0.0, %v6851
        %6853 = vmatmul.bf16.gmra.mxu0 %v6774
        %v6854 = vpop.f32.mrf.mxu0
        %v6855 = vadd.f32 0.0, %v6854
        %v6856 = vpop.f32.mrf.mxu0
        %v6857 = vadd.f32 0.0, %v6856
        %6858 = vmatmul.bf16.gmra.mxu0 %v6777
        %v6859 = vpop.f32.mrf.mxu0
        %v6860 = vadd.f32 0.0, %v6859
        %v6861 = vpop.f32.mrf.mxu0
        %v6862 = vadd.f32 0.0, %v6861
        %6863 = vmatmul.bf16.gmra.mxu0 %v6780
        %v6864 = vpop.f32.mrf.mxu0
        %v6865 = vadd.f32 0.0, %v6864
        %v6866 = vpop.f32.mrf.mxu0
        %v6867 = vadd.f32 0.0, %v6866
        %6868 = vmatmul.bf16.gmra.mxu0 %v6783
        %v6869 = vpop.f32.mrf.mxu0
        %v6870 = vadd.f32 0.0, %v6869
        %v6871 = vpop.f32.mrf.mxu0
        %v6872 = vadd.f32 0.0, %v6871
        %6873 = vdwg.mxu0
        %v6874 = vadd.f32 %v6193, %v6795
        %v6875 = vadd.f32 %v6194, %v6797
        %v6876 = vadd.f32 %v6195, %v6800
        %v6877 = vadd.f32 %v6196, %v6802
        %v6878 = vadd.f32 %v6197, %v6805
        %v6879 = vadd.f32 %v6198, %v6807
        %v6880 = vadd.f32 %v6199, %v6810
        %v6881 = vadd.f32 %v6200, %v6812
        %v6882 = vadd.f32 %v6201, %v6815
        %v6883 = vadd.f32 %v6202, %v6817
        %v6884 = vadd.f32 %v6203, %v6820
        %v6885 = vadd.f32 %v6204, %v6822
        %v6886 = vadd.f32 %v6205, %v6825
        %v6887 = vadd.f32 %v6206, %v6827
        %v6888 = vadd.f32 %v6207, %v6830
        %v6889 = vadd.f32 %v6208, %v6832
        %v6890 = vadd.f32 %v6209, %v6835
        %v6891 = vadd.f32 %v6210, %v6837
        %v6892 = vadd.f32 %v6211, %v6840
        %v6893 = vadd.f32 %v6212, %v6842
        %v6894 = vadd.f32 %v6213, %v6845
        %v6895 = vadd.f32 %v6214, %v6847
        %v6896 = vadd.f32 %v6215, %v6850
        %v6897 = vadd.f32 %v6216, %v6852
        %v6898 = vadd.f32 %v6217, %v6855
        %v6899 = vadd.f32 %v6218, %v6857
        %v6900 = vadd.f32 %v6219, %v6860
        %v6901 = vadd.f32 %v6220, %v6862
        %v6902 = vadd.f32 %v6221, %v6865
        %v6903 = vadd.f32 %v6222, %v6867
        %v6904 = vadd.f32 %v6223, %v6870
        %v6905 = vadd.f32 %v6224, %v6872
        %v6906 = vld [vmem:[#allocation3] sm:$0xe]
        %v6907 = vld [vmem:[#allocation3 + $0xc] sm:$0xe]
        %v6908 = vld [vmem:[#allocation3 + $0x18] sm:$0xe]
        %v6909 = vld [vmem:[#allocation3 + $0x24] sm:$0xe]
        %v6910 = vld [vmem:[#allocation3 + $0x30] sm:$0xe]
        %v6911 = vld [vmem:[#allocation3 + $0x3c] sm:$0xe]
        %v6912 = vld [vmem:[#allocation3 + $0x48] sm:$0xe]
        %v6913 = vld [vmem:[#allocation3 + $0x54] sm:$0xe]
        %v6914 = vld [vmem:[#allocation3 + $0x60] sm:$0xe]
        %v6915 = vld [vmem:[#allocation3 + $0x6c] sm:$0xe]
        %v6916 = vld [vmem:[#allocation3 + $0x78] sm:$0xe]
        %v6917 = vld [vmem:[#allocation3 + $0x84] sm:$0xe]
        %v6918 = vld [vmem:[#allocation3 + $0x90] sm:$0xe]
        %v6919 = vld [vmem:[#allocation3 + $0x9c] sm:$0xe]
        %v6920 = vld [vmem:[#allocation3 + $0xa8] sm:$0xe]
        %v6921 = vld [vmem:[#allocation3 + $0xb4] sm:$0xe]
        %v6970 = vrot.slane %v6906, 5
        %v6971 = vrot.slane %v6970, 4
        %v6972 = vrot.slane %v6226, 5
        %v6973 = vsel %vm2319, %v6971, %v6972
        %v6974 = vrot.slane %v6972, 4
        %v6975 = vrot.slane %v6227, 5
        %v6976 = vsel %vm2319, %v6974, %v6975
        %v6977 = vrot.slane %v6907, 5
        %v6978 = vrot.slane %v6977, 4
        %v6979 = vrot.slane %v6229, 5
        %v6980 = vsel %vm2319, %v6978, %v6979
        %v6981 = vrot.slane %v6979, 4
        %v6982 = vrot.slane %v6230, 5
        %v6983 = vsel %vm2319, %v6981, %v6982
        %v6984 = vrot.slane %v6908, 5
        %v6985 = vrot.slane %v6984, 4
        %v6986 = vrot.slane %v6232, 5
        %v6987 = vsel %vm2319, %v6985, %v6986
        %v6988 = vrot.slane %v6986, 4
        %v6989 = vrot.slane %v6233, 5
        %v6990 = vsel %vm2319, %v6988, %v6989
        %v6991 = vrot.slane %v6909, 5
        %v6992 = vrot.slane %v6991, 4
        %v6993 = vrot.slane %v6235, 5
        %v6994 = vsel %vm2319, %v6992, %v6993
        %v6995 = vrot.slane %v6993, 4
        %v6996 = vrot.slane %v6236, 5
        %v6997 = vsel %vm2319, %v6995, %v6996
        %v6998 = vrot.slane %v6910, 5
        %v6999 = vrot.slane %v6998, 4
        %v7000 = vrot.slane %v6238, 5
        %v7001 = vsel %vm2319, %v6999, %v7000
        %v7002 = vrot.slane %v7000, 4
        %v7003 = vrot.slane %v6239, 5
        %v7004 = vsel %vm2319, %v7002, %v7003
        %v7005 = vrot.slane %v6911, 5
        %v7006 = vrot.slane %v7005, 4
        %v7007 = vrot.slane %v6241, 5
        %v7008 = vsel %vm2319, %v7006, %v7007
        %v7009 = vrot.slane %v7007, 4
        %v7010 = vrot.slane %v6242, 5
        %v7011 = vsel %vm2319, %v7009, %v7010
        %v7012 = vrot.slane %v6912, 5
        %v7013 = vrot.slane %v7012, 4
        %v7014 = vrot.slane %v6244, 5
        %v7015 = vsel %vm2319, %v7013, %v7014
        %v7016 = vrot.slane %v7014, 4
        %v7017 = vrot.slane %v6245, 5
        %v7018 = vsel %vm2319, %v7016, %v7017
        %v7019 = vrot.slane %v6913, 5
        %v7020 = vrot.slane %v7019, 4
        %v7021 = vrot.slane %v6247, 5
        %v7022 = vsel %vm2319, %v7020, %v7021
        %v7023 = vrot.slane %v7021, 4
        %v7024 = vrot.slane %v6248, 5
        %v7025 = vsel %vm2319, %v7023, %v7024
        %v7026 = vrot.slane %v6914, 5
        %v7027 = vrot.slane %v7026, 4
        %v7028 = vrot.slane %v6250, 5
        %v7029 = vsel %vm2319, %v7027, %v7028
        %v7030 = vrot.slane %v7028, 4
        %v7031 = vrot.slane %v6251, 5
        %v7032 = vsel %vm2319, %v7030, %v7031
        %v7033 = vrot.slane %v6915, 5
        %v7034 = vrot.slane %v7033, 4
        %v7035 = vrot.slane %v6253, 5
        %v7036 = vsel %vm2319, %v7034, %v7035
        %v7037 = vrot.slane %v7035, 4
        %v7038 = vrot.slane %v6254, 5
        %v7039 = vsel %vm2319, %v7037, %v7038
        %v7040 = vrot.slane %v6916, 5
        %v7041 = vrot.slane %v7040, 4
        %v7042 = vrot.slane %v6256, 5
        %v7043 = vsel %vm2319, %v7041, %v7042
        %v7044 = vrot.slane %v7042, 4
        %v7045 = vrot.slane %v6257, 5
        %v7046 = vsel %vm2319, %v7044, %v7045
        %v7047 = vrot.slane %v6917, 5
        %v7048 = vrot.slane %v7047, 4
        %v7049 = vrot.slane %v6259, 5
        %v7050 = vsel %vm2319, %v7048, %v7049
        %v7051 = vrot.slane %v7049, 4
        %v7052 = vrot.slane %v6260, 5
        %v7053 = vsel %vm2319, %v7051, %v7052
        %v7054 = vrot.slane %v6918, 5
        %v7055 = vrot.slane %v7054, 4
        %v7056 = vrot.slane %v6262, 5
        %v7057 = vsel %vm2319, %v7055, %v7056
        %v7058 = vrot.slane %v7056, 4
        %v7059 = vrot.slane %v6263, 5
        %v7060 = vsel %vm2319, %v7058, %v7059
        %v7061 = vrot.slane %v6919, 5
        %v7062 = vrot.slane %v7061, 4
        %v7063 = vrot.slane %v6265, 5
        %v7064 = vsel %vm2319, %v7062, %v7063
        %v7065 = vrot.slane %v7063, 4
        %v7066 = vrot.slane %v6266, 5
        %v7067 = vsel %vm2319, %v7065, %v7066
        %v7068 = vrot.slane %v6920, 5
        %v7069 = vrot.slane %v7068, 4
        %v7070 = vrot.slane %v6268, 5
        %v7071 = vsel %vm2319, %v7069, %v7070
        %v7072 = vrot.slane %v7070, 4
        %v7073 = vrot.slane %v6269, 5
        %v7074 = vsel %vm2319, %v7072, %v7073
        %v7075 = vrot.slane %v6921, 5
        %v7076 = vrot.slane %v7075, 4
        %v7077 = vrot.slane %v6271, 5
        %v7078 = vsel %vm2319, %v7076, %v7077
        %v7079 = vrot.slane %v7077, 4
        %v7080 = vrot.slane %v6272, 5
        %v7081 = vsel %vm2319, %v7079, %v7080
        %v7082 = vld [vmem:[%s5 + $0x40] sm:$0xf]
        %v7083 = vld [vmem:[%s5 + $0x44] sm:$0xf]
        %v7084 = vld [vmem:[%s5 + $0x48] sm:$0xf]
        %v7085 = vld [vmem:[%s5 + $0x4c] sm:$0xf]
        %v7086 = vld [vmem:[%s5 + $0x50] sm:$0xf]
        %v7087 = vld [vmem:[%s5 + $0x54] sm:$0xf]
        %v7088 = vld [vmem:[%s5 + $0x58] sm:$0xf]
        %v7089 = vld [vmem:[%s5 + $0x5c] sm:$0xf]
        %v7090 = vunpack.c.l.b16 %v6973
        %v7091 = vunpack.c.l.b16 %v6976
        %v7092 = vunpack.c.l.b16 %v6980
        %v7093 = vunpack.c.l.b16 %v6983
        %v7094 = vunpack.c.l.b16 %v6987
        %v7095 = vunpack.c.l.b16 %v6990
        %v7096 = vunpack.c.l.b16 %v6994
        %v7097 = vunpack.c.l.b16 %v6997
        %v7098 = vunpack.c.l.b16 %v7001
        %v7099 = vunpack.c.l.b16 %v7004
        %v7100 = vunpack.c.l.b16 %v7008
        %v7101 = vunpack.c.l.b16 %v7011
        %v7102 = vunpack.c.l.b16 %v7015
        %v7103 = vunpack.c.l.b16 %v7018
        %v7104 = vunpack.c.l.b16 %v7022
        %v7105 = vunpack.c.l.b16 %v7025
        %v7106 = vunpack.c.l.b16 %v7029
        %v7107 = vunpack.c.l.b16 %v7032
        %v7108 = vunpack.c.l.b16 %v7036
        %v7109 = vunpack.c.l.b16 %v7039
        %v7110 = vunpack.c.l.b16 %v7043
        %v7111 = vunpack.c.l.b16 %v7046
        %v7112 = vunpack.c.l.b16 %v7050
        %v7113 = vunpack.c.l.b16 %v7053
        %v7114 = vunpack.c.l.b16 %v7057
        %v7115 = vunpack.c.l.b16 %v7060
        %v7116 = vunpack.c.l.b16 %v7064
        %v7117 = vunpack.c.l.b16 %v7067
        %v7118 = vunpack.c.l.b16 %v7071
        %v7119 = vunpack.c.l.b16 %v7074
        %v7120 = vunpack.c.l.b16 %v7078
        %v7121 = vunpack.c.l.b16 %v7081
        %v7122 = vpack.c.b16 %v7091, %v7090
        %v7123 = vpack.c.b16 %v7093, %v7092
        %v7124 = vpack.c.b16 %v7095, %v7094
        %v7125 = vpack.c.b16 %v7097, %v7096
        %v7126 = vpack.c.b16 %v7099, %v7098
        %v7127 = vpack.c.b16 %v7101, %v7100
        %v7128 = vpack.c.b16 %v7103, %v7102
        %v7129 = vpack.c.b16 %v7105, %v7104
        %v7130 = vpack.c.b16 %v7107, %v7106
        %v7131 = vpack.c.b16 %v7109, %v7108
        %v7132 = vpack.c.b16 %v7111, %v7110
        %v7133 = vpack.c.b16 %v7113, %v7112
        %v7134 = vpack.c.b16 %v7115, %v7114
        %v7135 = vpack.c.b16 %v7117, %v7116
        %v7136 = vpack.c.b16 %v7119, %v7118
        %v7137 = vpack.c.b16 %v7121, %v7120
        %v7146 = vunpack.c.l.b16 %v7082
        %v7147 = vunpack.c.l.b16 %v7083
        %v7148 = vunpack.c.l.b16 %v7084
        %v7149 = vunpack.c.l.b16 %v7085
        %v7150 = vunpack.c.l.b16 %v7086
        %v7151 = vunpack.c.l.b16 %v7087
        %v7152 = vunpack.c.l.b16 %v7088
        %v7153 = vunpack.c.l.b16 %v7089
        %v7154 = vpack.c.b16 %v7147, %v7146
        %v7155 = vpack.c.b16 %v7149, %v7148
        %v7156 = vpack.c.b16 %v7151, %v7150
        %v7157 = vpack.c.b16 %v7153, %v7152
        %v7163 = vsel %vm6055, %v7122, 0
        %v7166 = vsel %vm6055, %v7123, 0
        %v7169 = vsel %vm6055, %v7124, 0
        %v7172 = vsel %vm6055, %v7125, 0
        %v7175 = vsel %vm6055, %v7126, 0
        %v7178 = vsel %vm6055, %v7127, 0
        %v7181 = vsel %vm6055, %v7128, 0
        %v7184 = vsel %vm6055, %v7129, 0
        %v7187 = vsel %vm6055, %v7130, 0
        %v7190 = vsel %vm6055, %v7131, 0
        %v7193 = vsel %vm6055, %v7132, 0
        %v7196 = vsel %vm6055, %v7133, 0
        %v7199 = vsel %vm6055, %v7134, 0
        %v7202 = vsel %vm6055, %v7135, 0
        %v7205 = vsel %vm6055, %v7136, 0
        %v7208 = vsel %vm6055, %v7137, 0
        %7210 = vmatpush.bf16.msra.mxu0 0
        %7211 = vmatpush.bf16.msra.mxu0 0
        %7212 = vmatpush.bf16.msra.mxu0 0
        %7213 = vmatpush.bf16.msra.mxu0 0
        %7214 = vmatpush.bf16.msra.mxu0 %v7157
        %7215 = vmatpush.bf16.msra.mxu0 %v7156
        %7216 = vmatpush.bf16.msra.mxu0 %v7155
        %7217 = vmatpush.bf16.msra.mxu0 %v7154
        %7218 = vmatmul.bf16.gmra.mxu0 %v7163
        %v7219 = vpop.f32.mrf.mxu0
        %v7220 = vadd.f32 0.0, %v7219
        %v7221 = vpop.f32.mrf.mxu0
        %v7222 = vadd.f32 0.0, %v7221
        %7223 = vmatmul.bf16.gmra.mxu0 %v7166
        %v7224 = vpop.f32.mrf.mxu0
        %v7225 = vadd.f32 0.0, %v7224
        %v7226 = vpop.f32.mrf.mxu0
        %v7227 = vadd.f32 0.0, %v7226
        %7228 = vmatmul.bf16.gmra.mxu0 %v7169
        %v7229 = vpop.f32.mrf.mxu0
        %v7230 = vadd.f32 0.0, %v7229
        %v7231 = vpop.f32.mrf.mxu0
        %v7232 = vadd.f32 0.0, %v7231
        %7233 = vmatmul.bf16.gmra.mxu0 %v7172
        %v7234 = vpop.f32.mrf.mxu0
        %v7235 = vadd.f32 0.0, %v7234
        %v7236 = vpop.f32.mrf.mxu0
        %v7237 = vadd.f32 0.0, %v7236
        %7238 = vmatmul.bf16.gmra.mxu0 %v7175
        %v7239 = vpop.f32.mrf.mxu0
        %v7240 = vadd.f32 0.0, %v7239
        %v7241 = vpop.f32.mrf.mxu0
        %v7242 = vadd.f32 0.0, %v7241
        %7243 = vmatmul.bf16.gmra.mxu0 %v7178
        %v7244 = vpop.f32.mrf.mxu0
        %v7245 = vadd.f32 0.0, %v7244
        %v7246 = vpop.f32.mrf.mxu0
        %v7247 = vadd.f32 0.0, %v7246
        %7248 = vmatmul.bf16.gmra.mxu0 %v7181
        %v7249 = vpop.f32.mrf.mxu0
        %v7250 = vadd.f32 0.0, %v7249
        %v7251 = vpop.f32.mrf.mxu0
        %v7252 = vadd.f32 0.0, %v7251
        %7253 = vmatmul.bf16.gmra.mxu0 %v7184
        %v7254 = vpop.f32.mrf.mxu0
        %v7255 = vadd.f32 0.0, %v7254
        %v7256 = vpop.f32.mrf.mxu0
        %v7257 = vadd.f32 0.0, %v7256
        %7258 = vmatmul.bf16.gmra.mxu0 %v7187
        %v7259 = vpop.f32.mrf.mxu0
        %v7260 = vadd.f32 0.0, %v7259
        %v7261 = vpop.f32.mrf.mxu0
        %v7262 = vadd.f32 0.0, %v7261
        %7263 = vmatmul.bf16.gmra.mxu0 %v7190
        %v7264 = vpop.f32.mrf.mxu0
        %v7265 = vadd.f32 0.0, %v7264
        %v7266 = vpop.f32.mrf.mxu0
        %v7267 = vadd.f32 0.0, %v7266
        %7268 = vmatmul.bf16.gmra.mxu0 %v7193
        %v7269 = vpop.f32.mrf.mxu0
        %v7270 = vadd.f32 0.0, %v7269
        %v7271 = vpop.f32.mrf.mxu0
        %v7272 = vadd.f32 0.0, %v7271
        %7273 = vmatmul.bf16.gmra.mxu0 %v7196
        %v7274 = vpop.f32.mrf.mxu0
        %v7275 = vadd.f32 0.0, %v7274
        %v7276 = vpop.f32.mrf.mxu0
        %v7277 = vadd.f32 0.0, %v7276
        %7278 = vmatmul.bf16.gmra.mxu0 %v7199
        %v7279 = vpop.f32.mrf.mxu0
        %v7280 = vadd.f32 0.0, %v7279
        %v7281 = vpop.f32.mrf.mxu0
        %v7282 = vadd.f32 0.0, %v7281
        %7283 = vmatmul.bf16.gmra.mxu0 %v7202
        %v7284 = vpop.f32.mrf.mxu0
        %v7285 = vadd.f32 0.0, %v7284
        %v7286 = vpop.f32.mrf.mxu0
        %v7287 = vadd.f32 0.0, %v7286
        %7288 = vmatmul.bf16.gmra.mxu0 %v7205
        %v7289 = vpop.f32.mrf.mxu0
        %v7290 = vadd.f32 0.0, %v7289
        %v7291 = vpop.f32.mrf.mxu0
        %v7292 = vadd.f32 0.0, %v7291
        %7293 = vmatmul.bf16.gmra.mxu0 %v7208
        %v7294 = vpop.f32.mrf.mxu0
        %v7295 = vadd.f32 0.0, %v7294
        %v7296 = vpop.f32.mrf.mxu0
        %v7297 = vadd.f32 0.0, %v7296
        %7298 = vdwg.mxu0
        %v7299 = vadd.f32 %v6874, %v7220
        %v7300 = vadd.f32 %v6875, %v7222
        %v7301 = vadd.f32 %v6876, %v7225
        %v7302 = vadd.f32 %v6877, %v7227
        %v7303 = vadd.f32 %v6878, %v7230
        %v7304 = vadd.f32 %v6879, %v7232
        %v7305 = vadd.f32 %v6880, %v7235
        %v7306 = vadd.f32 %v6881, %v7237
        %v7307 = vadd.f32 %v6882, %v7240
        %v7308 = vadd.f32 %v6883, %v7242
        %v7309 = vadd.f32 %v6884, %v7245
        %v7310 = vadd.f32 %v6885, %v7247
        %v7311 = vadd.f32 %v6886, %v7250
        %v7312 = vadd.f32 %v6887, %v7252
        %v7313 = vadd.f32 %v6888, %v7255
        %v7314 = vadd.f32 %v6889, %v7257
        %v7315 = vadd.f32 %v6890, %v7260
        %v7316 = vadd.f32 %v6891, %v7262
        %v7317 = vadd.f32 %v6892, %v7265
        %v7318 = vadd.f32 %v6893, %v7267
        %v7319 = vadd.f32 %v6894, %v7270
        %v7320 = vadd.f32 %v6895, %v7272
        %v7321 = vadd.f32 %v6896, %v7275
        %v7322 = vadd.f32 %v6897, %v7277
        %v7323 = vadd.f32 %v6898, %v7280
        %v7324 = vadd.f32 %v6899, %v7282
        %v7325 = vadd.f32 %v6900, %v7285
        %v7326 = vadd.f32 %v6901, %v7287
        %v7327 = vadd.f32 %v6902, %v7290
        %v7328 = vadd.f32 %v6903, %v7292
        %v7329 = vadd.f32 %v6904, %v7295
        %v7330 = vadd.f32 %v6905, %v7297
        %v7331 = vld [vmem:[%s5792] sm:$0xf]
        %v7332 = vld [vmem:[%s5792 + $0x4] sm:$0xf]
        %v7333 = vld [vmem:[%s5792 + $0xc] sm:$0xf]
        %v7334 = vld [vmem:[%s5792 + $0x10] sm:$0xf]
        %v7335 = vld [vmem:[%s5792 + $0x18] sm:$0xf]
        %v7336 = vld [vmem:[%s5792 + $0x1c] sm:$0xf]
        %v7337 = vld [vmem:[%s5792 + $0x24] sm:$0xf]
        %v7338 = vld [vmem:[%s5792 + $0x28] sm:$0xf]
        %v7339 = vld [vmem:[%s5792 + $0x30] sm:$0xf]
        %v7340 = vld [vmem:[%s5792 + $0x34] sm:$0xf]
        %v7341 = vld [vmem:[%s5792 + $0x3c] sm:$0xf]
        %v7342 = vld [vmem:[%s5792 + $0x40] sm:$0xf]
        %v7343 = vld [vmem:[%s5792 + $0x48] sm:$0xf]
        %v7344 = vld [vmem:[%s5792 + $0x4c] sm:$0xf]
        %v7345 = vld [vmem:[%s5792 + $0x54] sm:$0xf]
        %v7346 = vld [vmem:[%s5792 + $0x58] sm:$0xf]
        %v7347 = vld [vmem:[%s5792 + $0x60] sm:$0xf]
        %v7348 = vld [vmem:[%s5792 + $0x64] sm:$0xf]
        %v7349 = vld [vmem:[%s5792 + $0x6c] sm:$0xf]
        %v7350 = vld [vmem:[%s5792 + $0x70] sm:$0xf]
        %v7351 = vld [vmem:[%s5792 + $0x78] sm:$0xf]
        %v7352 = vld [vmem:[%s5792 + $0x7c] sm:$0xf]
        %v7353 = vld [vmem:[%s5792 + $0x84] sm:$0xf]
        %v7354 = vld [vmem:[%s5792 + $0x88] sm:$0xf]
        %v7355 = vld [vmem:[%s5792 + $0x90] sm:$0xf]
        %v7356 = vld [vmem:[%s5792 + $0x94] sm:$0xf]
        %v7357 = vld [vmem:[%s5792 + $0x9c] sm:$0xf]
        %v7358 = vld [vmem:[%s5792 + $0xa0] sm:$0xf]
        %v7359 = vld [vmem:[%s5792 + $0xa8] sm:$0xf]
        %v7360 = vld [vmem:[%s5792 + $0xac] sm:$0xf]
        %v7361 = vld [vmem:[%s5792 + $0xb4] sm:$0xf]
        %v7362 = vld [vmem:[%s5792 + $0xb8] sm:$0xf]
        %v7363 = vld [vmem:[%s5 + $0x60] sm:$0xf]
        %v7364 = vld [vmem:[%s5 + $0x64] sm:$0xf]
        %v7365 = vld [vmem:[%s5 + $0x68] sm:$0xf]
        %v7366 = vld [vmem:[%s5 + $0x6c] sm:$0xf]
        %v7367 = vld [vmem:[%s5 + $0x70] sm:$0xf]
        %v7368 = vld [vmem:[%s5 + $0x74] sm:$0xf]
        %v7369 = vld [vmem:[%s5 + $0x78] sm:$0xf]
        %v7370 = vld [vmem:[%s5 + $0x7c] sm:$0xf]
        %v7403 = vunpack.c.l.b16 %v7331
        %v7404 = vunpack.c.l.b16 %v7332
        %v7405 = vunpack.c.l.b16 %v7333
        %v7406 = vunpack.c.l.b16 %v7334
        %v7407 = vunpack.c.l.b16 %v7335
        %v7408 = vunpack.c.l.b16 %v7336
        %v7409 = vunpack.c.l.b16 %v7337
        %v7410 = vunpack.c.l.b16 %v7338
        %v7411 = vunpack.c.l.b16 %v7339
        %v7412 = vunpack.c.l.b16 %v7340
        %v7413 = vunpack.c.l.b16 %v7341
        %v7414 = vunpack.c.l.b16 %v7342
        %v7415 = vunpack.c.l.b16 %v7343
        %v7416 = vunpack.c.l.b16 %v7344
        %v7417 = vunpack.c.l.b16 %v7345
        %v7418 = vunpack.c.l.b16 %v7346
        %v7419 = vunpack.c.l.b16 %v7347
        %v7420 = vunpack.c.l.b16 %v7348
        %v7421 = vunpack.c.l.b16 %v7349
        %v7422 = vunpack.c.l.b16 %v7350
        %v7423 = vunpack.c.l.b16 %v7351
        %v7424 = vunpack.c.l.b16 %v7352
        %v7425 = vunpack.c.l.b16 %v7353
        %v7426 = vunpack.c.l.b16 %v7354
        %v7427 = vunpack.c.l.b16 %v7355
        %v7428 = vunpack.c.l.b16 %v7356
        %v7429 = vunpack.c.l.b16 %v7357
        %v7430 = vunpack.c.l.b16 %v7358
        %v7431 = vunpack.c.l.b16 %v7359
        %v7432 = vunpack.c.l.b16 %v7360
        %v7433 = vunpack.c.l.b16 %v7361
        %v7434 = vunpack.c.l.b16 %v7362
        %v7435 = vpack.c.b16 %v7404, %v7403
        %v7436 = vpack.c.b16 %v7406, %v7405
        %v7437 = vpack.c.b16 %v7408, %v7407
        %v7438 = vpack.c.b16 %v7410, %v7409
        %v7439 = vpack.c.b16 %v7412, %v7411
        %v7440 = vpack.c.b16 %v7414, %v7413
        %v7441 = vpack.c.b16 %v7416, %v7415
        %v7442 = vpack.c.b16 %v7418, %v7417
        %v7443 = vpack.c.b16 %v7420, %v7419
        %v7444 = vpack.c.b16 %v7422, %v7421
        %v7445 = vpack.c.b16 %v7424, %v7423
        %v7446 = vpack.c.b16 %v7426, %v7425
        %v7447 = vpack.c.b16 %v7428, %v7427
        %v7448 = vpack.c.b16 %v7430, %v7429
        %v7449 = vpack.c.b16 %v7432, %v7431
        %v7450 = vpack.c.b16 %v7434, %v7433
        %v7459 = vunpack.c.l.b16 %v7363
        %v7460 = vunpack.c.l.b16 %v7364
        %v7461 = vunpack.c.l.b16 %v7365
        %v7462 = vunpack.c.l.b16 %v7366
        %v7463 = vunpack.c.l.b16 %v7367
        %v7464 = vunpack.c.l.b16 %v7368
        %v7465 = vunpack.c.l.b16 %v7369
        %v7466 = vunpack.c.l.b16 %v7370
        %v7467 = vpack.c.b16 %v7460, %v7459
        %v7468 = vpack.c.b16 %v7462, %v7461
        %v7469 = vpack.c.b16 %v7464, %v7463
        %v7470 = vpack.c.b16 %v7466, %v7465
        %v7476 = vsel %vm6055, %v7435, 0
        %v7479 = vsel %vm6055, %v7436, 0
        %v7482 = vsel %vm6055, %v7437, 0
        %v7485 = vsel %vm6055, %v7438, 0
        %v7488 = vsel %vm6055, %v7439, 0
        %v7491 = vsel %vm6055, %v7440, 0
        %v7494 = vsel %vm6055, %v7441, 0
        %v7497 = vsel %vm6055, %v7442, 0
        %v7500 = vsel %vm6055, %v7443, 0
        %v7503 = vsel %vm6055, %v7444, 0
        %v7506 = vsel %vm6055, %v7445, 0
        %v7509 = vsel %vm6055, %v7446, 0
        %v7512 = vsel %vm6055, %v7447, 0
        %v7515 = vsel %vm6055, %v7448, 0
        %v7518 = vsel %vm6055, %v7449, 0
        %v7521 = vsel %vm6055, %v7450, 0
        %7523 = vmatpush.bf16.msra.mxu0 0
        %7524 = vmatpush.bf16.msra.mxu0 0
        %7525 = vmatpush.bf16.msra.mxu0 0
        %7526 = vmatpush.bf16.msra.mxu0 0
        %7527 = vmatpush.bf16.msra.mxu0 %v7470
        %7528 = vmatpush.bf16.msra.mxu0 %v7469
        %7529 = vmatpush.bf16.msra.mxu0 %v7468
        %7530 = vmatpush.bf16.msra.mxu0 %v7467
        %7531 = vmatmul.bf16.gmra.mxu0 %v7476
        %v7532 = vpop.f32.mrf.mxu0
        %v7533 = vadd.f32 0.0, %v7532
        %v7534 = vpop.f32.mrf.mxu0
        %v7535 = vadd.f32 0.0, %v7534
        %7536 = vmatmul.bf16.gmra.mxu0 %v7479
        %v7537 = vpop.f32.mrf.mxu0
        %v7538 = vadd.f32 0.0, %v7537
        %v7539 = vpop.f32.mrf.mxu0
        %v7540 = vadd.f32 0.0, %v7539
        %7541 = vmatmul.bf16.gmra.mxu0 %v7482
        %v7542 = vpop.f32.mrf.mxu0
        %v7543 = vadd.f32 0.0, %v7542
        %v7544 = vpop.f32.mrf.mxu0
        %v7545 = vadd.f32 0.0, %v7544
        %7546 = vmatmul.bf16.gmra.mxu0 %v7485
        %v7547 = vpop.f32.mrf.mxu0
        %v7548 = vadd.f32 0.0, %v7547
        %v7549 = vpop.f32.mrf.mxu0
        %v7550 = vadd.f32 0.0, %v7549
        %7551 = vmatmul.bf16.gmra.mxu0 %v7488
        %v7552 = vpop.f32.mrf.mxu0
        %v7553 = vadd.f32 0.0, %v7552
        %v7554 = vpop.f32.mrf.mxu0
        %v7555 = vadd.f32 0.0, %v7554
        %7556 = vmatmul.bf16.gmra.mxu0 %v7491
        %v7557 = vpop.f32.mrf.mxu0
        %v7558 = vadd.f32 0.0, %v7557
        %v7559 = vpop.f32.mrf.mxu0
        %v7560 = vadd.f32 0.0, %v7559
        %7561 = vmatmul.bf16.gmra.mxu0 %v7494
        %v7562 = vpop.f32.mrf.mxu0
        %v7563 = vadd.f32 0.0, %v7562
        %v7564 = vpop.f32.mrf.mxu0
        %v7565 = vadd.f32 0.0, %v7564
        %7566 = vmatmul.bf16.gmra.mxu0 %v7497
        %v7567 = vpop.f32.mrf.mxu0
        %v7568 = vadd.f32 0.0, %v7567
        %v7569 = vpop.f32.mrf.mxu0
        %v7570 = vadd.f32 0.0, %v7569
        %7571 = vmatmul.bf16.gmra.mxu0 %v7500
        %v7572 = vpop.f32.mrf.mxu0
        %v7573 = vadd.f32 0.0, %v7572
        %v7574 = vpop.f32.mrf.mxu0
        %v7575 = vadd.f32 0.0, %v7574
        %7576 = vmatmul.bf16.gmra.mxu0 %v7503
        %v7577 = vpop.f32.mrf.mxu0
        %v7578 = vadd.f32 0.0, %v7577
        %v7579 = vpop.f32.mrf.mxu0
        %v7580 = vadd.f32 0.0, %v7579
        %7581 = vmatmul.bf16.gmra.mxu0 %v7506
        %v7582 = vpop.f32.mrf.mxu0
        %v7583 = vadd.f32 0.0, %v7582
        %v7584 = vpop.f32.mrf.mxu0
        %v7585 = vadd.f32 0.0, %v7584
        %7586 = vmatmul.bf16.gmra.mxu0 %v7509
        %v7587 = vpop.f32.mrf.mxu0
        %v7588 = vadd.f32 0.0, %v7587
        %v7589 = vpop.f32.mrf.mxu0
        %v7590 = vadd.f32 0.0, %v7589
        %7591 = vmatmul.bf16.gmra.mxu0 %v7512
        %v7592 = vpop.f32.mrf.mxu0
        %v7593 = vadd.f32 0.0, %v7592
        %v7594 = vpop.f32.mrf.mxu0
        %v7595 = vadd.f32 0.0, %v7594
        %7596 = vmatmul.bf16.gmra.mxu0 %v7515
        %v7597 = vpop.f32.mrf.mxu0
        %v7598 = vadd.f32 0.0, %v7597
        %v7599 = vpop.f32.mrf.mxu0
        %v7600 = vadd.f32 0.0, %v7599
        %7601 = vmatmul.bf16.gmra.mxu0 %v7518
        %v7602 = vpop.f32.mrf.mxu0
        %v7603 = vadd.f32 0.0, %v7602
        %v7604 = vpop.f32.mrf.mxu0
        %v7605 = vadd.f32 0.0, %v7604
        %7606 = vmatmul.bf16.gmra.mxu0 %v7521
        %v7607 = vpop.f32.mrf.mxu0
        %v7608 = vadd.f32 0.0, %v7607
        %v7609 = vpop.f32.mrf.mxu0
        %v7610 = vadd.f32 0.0, %v7609
        %7611 = vdwg.mxu0
        %v7612 = vadd.f32 %v7299, %v7533
        %v7613 = vadd.f32 %v7300, %v7535
        %v7614 = vadd.f32 %v7301, %v7538
        %v7615 = vadd.f32 %v7302, %v7540
        %v7616 = vadd.f32 %v7303, %v7543
        %v7617 = vadd.f32 %v7304, %v7545
        %v7618 = vadd.f32 %v7305, %v7548
        %v7619 = vadd.f32 %v7306, %v7550
        %v7620 = vadd.f32 %v7307, %v7553
        %v7621 = vadd.f32 %v7308, %v7555
        %v7622 = vadd.f32 %v7309, %v7558
        %v7623 = vadd.f32 %v7310, %v7560
        %v7624 = vadd.f32 %v7311, %v7563
        %v7625 = vadd.f32 %v7312, %v7565
        %v7626 = vadd.f32 %v7313, %v7568
        %v7627 = vadd.f32 %v7314, %v7570
        %v7628 = vadd.f32 %v7315, %v7573
        %v7629 = vadd.f32 %v7316, %v7575
        %v7630 = vadd.f32 %v7317, %v7578
        %v7631 = vadd.f32 %v7318, %v7580
        %v7632 = vadd.f32 %v7319, %v7583
        %v7633 = vadd.f32 %v7320, %v7585
        %v7634 = vadd.f32 %v7321, %v7588
        %v7635 = vadd.f32 %v7322, %v7590
        %v7636 = vadd.f32 %v7323, %v7593
        %v7637 = vadd.f32 %v7324, %v7595
        %v7638 = vadd.f32 %v7325, %v7598
        %v7639 = vadd.f32 %v7326, %v7600
        %v7640 = vadd.f32 %v7327, %v7603
        %v7641 = vadd.f32 %v7328, %v7605
        %v7642 = vadd.f32 %v7329, %v7608
        %v7643 = vadd.f32 %v7330, %v7610
        %v7644 = vld [vmem:[%s5792] sm:$0xf]
        %v7645 = vld [vmem:[%s5792 + $0x4] sm:$0xf]
        %v7646 = vld [vmem:[%s5792 + $0x8] sm:$0x1]
        %v7647 = vld [vmem:[%s5792 + $0xc] sm:$0xf]
        %v7648 = vld [vmem:[%s5792 + $0x10] sm:$0xf]
        %v7649 = vld [vmem:[%s5792 + $0x14] sm:$0x1]
        %v7650 = vld [vmem:[%s5792 + $0x18] sm:$0xf]
        %v7651 = vld [vmem:[%s5792 + $0x1c] sm:$0xf]
        %v7652 = vld [vmem:[%s5792 + $0x20] sm:$0x1]
        %v7653 = vld [vmem:[%s5792 + $0x24] sm:$0xf]
        %v7654 = vld [vmem:[%s5792 + $0x28] sm:$0xf]
        %v7655 = vld [vmem:[%s5792 + $0x2c] sm:$0x1]
        %v7656 = vld [vmem:[%s5792 + $0x30] sm:$0xf]
        %v7657 = vld [vmem:[%s5792 + $0x34] sm:$0xf]
        %v7658 = vld [vmem:[%s5792 + $0x38] sm:$0x1]
        %v7659 = vld [vmem:[%s5792 + $0x3c] sm:$0xf]
        %v7660 = vld [vmem:[%s5792 + $0x40] sm:$0xf]
        %v7661 = vld [vmem:[%s5792 + $0x44] sm:$0x1]
        %v7662 = vld [vmem:[%s5792 + $0x48] sm:$0xf]
        %v7663 = vld [vmem:[%s5792 + $0x4c] sm:$0xf]
        %v7664 = vld [vmem:[%s5792 + $0x50] sm:$0x1]
        %v7665 = vld [vmem:[%s5792 + $0x54] sm:$0xf]
        %v7666 = vld [vmem:[%s5792 + $0x58] sm:$0xf]
        %v7667 = vld [vmem:[%s5792 + $0x5c] sm:$0x1]
        %v7668 = vld [vmem:[%s5792 + $0x60] sm:$0xf]
        %v7669 = vld [vmem:[%s5792 + $0x64] sm:$0xf]
        %v7670 = vld [vmem:[%s5792 + $0x68] sm:$0x1]
        %v7671 = vld [vmem:[%s5792 + $0x6c] sm:$0xf]
        %v7672 = vld [vmem:[%s5792 + $0x70] sm:$0xf]
        %v7673 = vld [vmem:[%s5792 + $0x74] sm:$0x1]
        %v7674 = vld [vmem:[%s5792 + $0x78] sm:$0xf]
        %v7675 = vld [vmem:[%s5792 + $0x7c] sm:$0xf]
        %v7676 = vld [vmem:[%s5792 + $0x80] sm:$0x1]
        %v7677 = vld [vmem:[%s5792 + $0x84] sm:$0xf]
        %v7678 = vld [vmem:[%s5792 + $0x88] sm:$0xf]
        %v7679 = vld [vmem:[%s5792 + $0x8c] sm:$0x1]
        %v7680 = vld [vmem:[%s5792 + $0x90] sm:$0xf]
        %v7681 = vld [vmem:[%s5792 + $0x94] sm:$0xf]
        %v7682 = vld [vmem:[%s5792 + $0x98] sm:$0x1]
        %v7683 = vld [vmem:[%s5792 + $0x9c] sm:$0xf]
        %v7684 = vld [vmem:[%s5792 + $0xa0] sm:$0xf]
        %v7685 = vld [vmem:[%s5792 + $0xa4] sm:$0x1]
        %v7686 = vld [vmem:[%s5792 + $0xa8] sm:$0xf]
        %v7687 = vld [vmem:[%s5792 + $0xac] sm:$0xf]
        %v7688 = vld [vmem:[%s5792 + $0xb0] sm:$0x1]
        %v7689 = vld [vmem:[%s5792 + $0xb4] sm:$0xf]
        %v7690 = vld [vmem:[%s5792 + $0xb8] sm:$0xf]
        %v7691 = vld [vmem:[%s5792 + $0xbc] sm:$0x1]
        %v7693 = vshrl.u32 %v7644, 16
        %v7695 = vrot.slane %v7693, 4
        %v7696 = vshll.u32 %v7644, 16
        %v7698 = vrot.slane %v7696, 5
        %v7699 = vor.u32 %v7695, %v7698
        %v7700 = vrot.slane %v7699, 4
        %v7702 = vshll.u32 %v7645, 16
        %v7704 = vrot.slane %v7702, 5
        %v7705 = vsel %vm1635, %v7700, %v7704
        %v7706 = vshrl.u32 %v7645, 16
        %v7708 = vrot.slane %v7706, 4
        %v7709 = vor.u32 %v7708, %v7704
        %v7710 = vrot.slane %v7709, 4
        %v7712 = vshll.u32 %v7646, 16
        %v7714 = vrot.slane %v7712, 5
        %v7715 = vsel %vm1635, %v7710, %v7714
        %v7717 = vshrl.u32 %v7647, 16
        %v7719 = vrot.slane %v7717, 4
        %v7720 = vshll.u32 %v7647, 16
        %v7722 = vrot.slane %v7720, 5
        %v7723 = vor.u32 %v7719, %v7722
        %v7724 = vrot.slane %v7723, 4
        %v7726 = vshll.u32 %v7648, 16
        %v7728 = vrot.slane %v7726, 5
        %v7729 = vsel %vm1635, %v7724, %v7728
        %v7730 = vshrl.u32 %v7648, 16
        %v7732 = vrot.slane %v7730, 4
        %v7733 = vor.u32 %v7732, %v7728
        %v7734 = vrot.slane %v7733, 4
        %v7736 = vshll.u32 %v7649, 16
        %v7738 = vrot.slane %v7736, 5
        %v7739 = vsel %vm1635, %v7734, %v7738
        %v7741 = vshrl.u32 %v7650, 16
        %v7743 = vrot.slane %v7741, 4
        %v7744 = vshll.u32 %v7650, 16
        %v7746 = vrot.slane %v7744, 5
        %v7747 = vor.u32 %v7743, %v7746
        %v7748 = vrot.slane %v7747, 4
        %v7750 = vshll.u32 %v7651, 16
        %v7752 = vrot.slane %v7750, 5
        %v7753 = vsel %vm1635, %v7748, %v7752
        %v7754 = vshrl.u32 %v7651, 16
        %v7756 = vrot.slane %v7754, 4
        %v7757 = vor.u32 %v7756, %v7752
        %v7758 = vrot.slane %v7757, 4
        %v7760 = vshll.u32 %v7652, 16
        %v7762 = vrot.slane %v7760, 5
        %v7763 = vsel %vm1635, %v7758, %v7762
        %v7765 = vshrl.u32 %v7653, 16
        %v7767 = vrot.slane %v7765, 4
        %v7768 = vshll.u32 %v7653, 16
        %v7770 = vrot.slane %v7768, 5
        %v7771 = vor.u32 %v7767, %v7770
        %v7772 = vrot.slane %v7771, 4
        %v7774 = vshll.u32 %v7654, 16
        %v7776 = vrot.slane %v7774, 5
        %v7777 = vsel %vm1635, %v7772, %v7776
        %v7778 = vshrl.u32 %v7654, 16
        %v7780 = vrot.slane %v7778, 4
        %v7781 = vor.u32 %v7780, %v7776
        %v7782 = vrot.slane %v7781, 4
        %v7784 = vshll.u32 %v7655, 16
        %v7786 = vrot.slane %v7784, 5
        %v7787 = vsel %vm1635, %v7782, %v7786
        %v7789 = vshrl.u32 %v7656, 16
        %v7791 = vrot.slane %v7789, 4
        %v7792 = vshll.u32 %v7656, 16
        %v7794 = vrot.slane %v7792, 5
        %v7795 = vor.u32 %v7791, %v7794
        %v7796 = vrot.slane %v7795, 4
        %v7798 = vshll.u32 %v7657, 16
        %v7800 = vrot.slane %v7798, 5
        %v7801 = vsel %vm1635, %v7796, %v7800
        %v7802 = vshrl.u32 %v7657, 16
        %v7804 = vrot.slane %v7802, 4
        %v7805 = vor.u32 %v7804, %v7800
        %v7806 = vrot.slane %v7805, 4
        %v7808 = vshll.u32 %v7658, 16
        %v7810 = vrot.slane %v7808, 5
        %v7811 = vsel %vm1635, %v7806, %v7810
        %v7813 = vshrl.u32 %v7659, 16
        %v7815 = vrot.slane %v7813, 4
        %v7816 = vshll.u32 %v7659, 16
        %v7818 = vrot.slane %v7816, 5
        %v7819 = vor.u32 %v7815, %v7818
        %v7820 = vrot.slane %v7819, 4
        %v7822 = vshll.u32 %v7660, 16
        %v7824 = vrot.slane %v7822, 5
        %v7825 = vsel %vm1635, %v7820, %v7824
        %v7826 = vshrl.u32 %v7660, 16
        %v7828 = vrot.slane %v7826, 4
        %v7829 = vor.u32 %v7828, %v7824
        %v7830 = vrot.slane %v7829, 4
        %v7832 = vshll.u32 %v7661, 16
        %v7834 = vrot.slane %v7832, 5
        %v7835 = vsel %vm1635, %v7830, %v7834
        %v7837 = vshrl.u32 %v7662, 16
        %v7839 = vrot.slane %v7837, 4
        %v7840 = vshll.u32 %v7662, 16
        %v7842 = vrot.slane %v7840, 5
        %v7843 = vor.u32 %v7839, %v7842
        %v7844 = vrot.slane %v7843, 4
        %v7846 = vshll.u32 %v7663, 16
        %v7848 = vrot.slane %v7846, 5
        %v7849 = vsel %vm1635, %v7844, %v7848
        %v7850 = vshrl.u32 %v7663, 16
        %v7852 = vrot.slane %v7850, 4
        %v7853 = vor.u32 %v7852, %v7848
        %v7854 = vrot.slane %v7853, 4
        %v7856 = vshll.u32 %v7664, 16
        %v7858 = vrot.slane %v7856, 5
        %v7859 = vsel %vm1635, %v7854, %v7858
        %v7861 = vshrl.u32 %v7665, 16
        %v7863 = vrot.slane %v7861, 4
        %v7864 = vshll.u32 %v7665, 16
        %v7866 = vrot.slane %v7864, 5
        %v7867 = vor.u32 %v7863, %v7866
        %v7868 = vrot.slane %v7867, 4
        %v7870 = vshll.u32 %v7666, 16
        %v7872 = vrot.slane %v7870, 5
        %v7873 = vsel %vm1635, %v7868, %v7872
        %v7874 = vshrl.u32 %v7666, 16
        %v7876 = vrot.slane %v7874, 4
        %v7877 = vor.u32 %v7876, %v7872
        %v7878 = vrot.slane %v7877, 4
        %v7880 = vshll.u32 %v7667, 16
        %v7882 = vrot.slane %v7880, 5
        %v7883 = vsel %vm1635, %v7878, %v7882
        %v7885 = vshrl.u32 %v7668, 16
        %v7887 = vrot.slane %v7885, 4
        %v7888 = vshll.u32 %v7668, 16
        %v7890 = vrot.slane %v7888, 5
        %v7891 = vor.u32 %v7887, %v7890
        %v7892 = vrot.slane %v7891, 4
        %v7894 = vshll.u32 %v7669, 16
        %v7896 = vrot.slane %v7894, 5
        %v7897 = vsel %vm1635, %v7892, %v7896
        %v7898 = vshrl.u32 %v7669, 16
        %v7900 = vrot.slane %v7898, 4
        %v7901 = vor.u32 %v7900, %v7896
        %v7902 = vrot.slane %v7901, 4
        %v7904 = vshll.u32 %v7670, 16
        %v7906 = vrot.slane %v7904, 5
        %v7907 = vsel %vm1635, %v7902, %v7906
        %v7909 = vshrl.u32 %v7671, 16
        %v7911 = vrot.slane %v7909, 4
        %v7912 = vshll.u32 %v7671, 16
        %v7914 = vrot.slane %v7912, 5
        %v7915 = vor.u32 %v7911, %v7914
        %v7916 = vrot.slane %v7915, 4
        %v7918 = vshll.u32 %v7672, 16
        %v7920 = vrot.slane %v7918, 5
        %v7921 = vsel %vm1635, %v7916, %v7920
        %v7922 = vshrl.u32 %v7672, 16
        %v7924 = vrot.slane %v7922, 4
        %v7925 = vor.u32 %v7924, %v7920
        %v7926 = vrot.slane %v7925, 4
        %v7928 = vshll.u32 %v7673, 16
        %v7930 = vrot.slane %v7928, 5
        %v7931 = vsel %vm1635, %v7926, %v7930
        %v7933 = vshrl.u32 %v7674, 16
        %v7935 = vrot.slane %v7933, 4
        %v7936 = vshll.u32 %v7674, 16
        %v7938 = vrot.slane %v7936, 5
        %v7939 = vor.u32 %v7935, %v7938
        %v7940 = vrot.slane %v7939, 4
        %v7942 = vshll.u32 %v7675, 16
        %v7944 = vrot.slane %v7942, 5
        %v7945 = vsel %vm1635, %v7940, %v7944
        %v7946 = vshrl.u32 %v7675, 16
        %v7948 = vrot.slane %v7946, 4
        %v7949 = vor.u32 %v7948, %v7944
        %v7950 = vrot.slane %v7949, 4
        %v7952 = vshll.u32 %v7676, 16
        %v7954 = vrot.slane %v7952, 5
        %v7955 = vsel %vm1635, %v7950, %v7954
        %v7957 = vshrl.u32 %v7677, 16
        %v7959 = vrot.slane %v7957, 4
        %v7960 = vshll.u32 %v7677, 16
        %v7962 = vrot.slane %v7960, 5
        %v7963 = vor.u32 %v7959, %v7962
        %v7964 = vrot.slane %v7963, 4
        %v7966 = vshll.u32 %v7678, 16
        %v7968 = vrot.slane %v7966, 5
        %v7969 = vsel %vm1635, %v7964, %v7968
        %v7970 = vshrl.u32 %v7678, 16
        %v7972 = vrot.slane %v7970, 4
        %v7973 = vor.u32 %v7972, %v7968
        %v7974 = vrot.slane %v7973, 4
        %v7976 = vshll.u32 %v7679, 16
        %v7978 = vrot.slane %v7976, 5
        %v7979 = vsel %vm1635, %v7974, %v7978
        %v7981 = vshrl.u32 %v7680, 16
        %v7983 = vrot.slane %v7981, 4
        %v7984 = vshll.u32 %v7680, 16
        %v7986 = vrot.slane %v7984, 5
        %v7987 = vor.u32 %v7983, %v7986
        %v7988 = vrot.slane %v7987, 4
        %v7990 = vshll.u32 %v7681, 16
        %v7992 = vrot.slane %v7990, 5
        %v7993 = vsel %vm1635, %v7988, %v7992
        %v7994 = vshrl.u32 %v7681, 16
        %v7996 = vrot.slane %v7994, 4
        %v7997 = vor.u32 %v7996, %v7992
        %v7998 = vrot.slane %v7997, 4
        %v8000 = vshll.u32 %v7682, 16
        %v8002 = vrot.slane %v8000, 5
        %v8003 = vsel %vm1635, %v7998, %v8002
        %v8005 = vshrl.u32 %v7683, 16
        %v8007 = vrot.slane %v8005, 4
        %v8008 = vshll.u32 %v7683, 16
        %v8010 = vrot.slane %v8008, 5
        %v8011 = vor.u32 %v8007, %v8010
        %v8012 = vrot.slane %v8011, 4
        %v8014 = vshll.u32 %v7684, 16
        %v8016 = vrot.slane %v8014, 5
        %v8017 = vsel %vm1635, %v8012, %v8016
        %v8018 = vshrl.u32 %v7684, 16
        %v8020 = vrot.slane %v8018, 4
        %v8021 = vor.u32 %v8020, %v8016
        %v8022 = vrot.slane %v8021, 4
        %v8024 = vshll.u32 %v7685, 16
        %v8026 = vrot.slane %v8024, 5
        %v8027 = vsel %vm1635, %v8022, %v8026
        %v8029 = vshrl.u32 %v7686, 16
        %v8031 = vrot.slane %v8029, 4
        %v8032 = vshll.u32 %v7686, 16
        %v8034 = vrot.slane %v8032, 5
        %v8035 = vor.u32 %v8031, %v8034
        %v8036 = vrot.slane %v8035, 4
        %v8038 = vshll.u32 %v7687, 16
        %v8040 = vrot.slane %v8038, 5
        %v8041 = vsel %vm1635, %v8036, %v8040
        %v8042 = vshrl.u32 %v7687, 16
        %v8044 = vrot.slane %v8042, 4
        %v8045 = vor.u32 %v8044, %v8040
        %v8046 = vrot.slane %v8045, 4
        %v8048 = vshll.u32 %v7688, 16
        %v8050 = vrot.slane %v8048, 5
        %v8051 = vsel %vm1635, %v8046, %v8050
        %v8053 = vshrl.u32 %v7689, 16
        %v8055 = vrot.slane %v8053, 4
        %v8056 = vshll.u32 %v7689, 16
        %v8058 = vrot.slane %v8056, 5
        %v8059 = vor.u32 %v8055, %v8058
        %v8060 = vrot.slane %v8059, 4
        %v8062 = vshll.u32 %v7690, 16
        %v8064 = vrot.slane %v8062, 5
        %v8065 = vsel %vm1635, %v8060, %v8064
        %v8066 = vshrl.u32 %v7690, 16
        %v8068 = vrot.slane %v8066, 4
        %v8069 = vor.u32 %v8068, %v8064
        %v8070 = vrot.slane %v8069, 4
        %v8072 = vshll.u32 %v7691, 16
        %v8074 = vrot.slane %v8072, 5
        %v8075 = vsel %vm1635, %v8070, %v8074
        %v8076 = vld [vmem:[%s5 + $0x80] sm:$0xf]
        %v8077 = vld [vmem:[%s5 + $0x84] sm:$0xf]
        %v8078 = vld [vmem:[%s5 + $0x88] sm:$0xf]
        %v8079 = vld [vmem:[%s5 + $0x8c] sm:$0xf]
        %v8080 = vld [vmem:[%s5 + $0x90] sm:$0xf]
        %v8081 = vld [vmem:[%s5 + $0x94] sm:$0xf]
        %v8082 = vld [vmem:[%s5 + $0x98] sm:$0xf]
        %v8083 = vld [vmem:[%s5 + $0x9c] sm:$0xf]
        %v8084 = vunpack.c.l.b16 %v7705
        %v8085 = vunpack.c.l.b16 %v7715
        %v8086 = vunpack.c.l.b16 %v7729
        %v8087 = vunpack.c.l.b16 %v7739
        %v8088 = vunpack.c.l.b16 %v7753
        %v8089 = vunpack.c.l.b16 %v7763
        %v8090 = vunpack.c.l.b16 %v7777
        %v8091 = vunpack.c.l.b16 %v7787
        %v8092 = vunpack.c.l.b16 %v7801
        %v8093 = vunpack.c.l.b16 %v7811
        %v8094 = vunpack.c.l.b16 %v7825
        %v8095 = vunpack.c.l.b16 %v7835
        %v8096 = vunpack.c.l.b16 %v7849
        %v8097 = vunpack.c.l.b16 %v7859
        %v8098 = vunpack.c.l.b16 %v7873
        %v8099 = vunpack.c.l.b16 %v7883
        %v8100 = vunpack.c.l.b16 %v7897
        %v8101 = vunpack.c.l.b16 %v7907
        %v8102 = vunpack.c.l.b16 %v7921
        %v8103 = vunpack.c.l.b16 %v7931
        %v8104 = vunpack.c.l.b16 %v7945
        %v8105 = vunpack.c.l.b16 %v7955
        %v8106 = vunpack.c.l.b16 %v7969
        %v8107 = vunpack.c.l.b16 %v7979
        %v8108 = vunpack.c.l.b16 %v7993
        %v8109 = vunpack.c.l.b16 %v8003
        %v8110 = vunpack.c.l.b16 %v8017
        %v8111 = vunpack.c.l.b16 %v8027
        %v8112 = vunpack.c.l.b16 %v8041
        %v8113 = vunpack.c.l.b16 %v8051
        %v8114 = vunpack.c.l.b16 %v8065
        %v8115 = vunpack.c.l.b16 %v8075
        %v8116 = vpack.c.b16 %v8085, %v8084
        %v8117 = vpack.c.b16 %v8087, %v8086
        %v8118 = vpack.c.b16 %v8089, %v8088
        %v8119 = vpack.c.b16 %v8091, %v8090
        %v8120 = vpack.c.b16 %v8093, %v8092
        %v8121 = vpack.c.b16 %v8095, %v8094
        %v8122 = vpack.c.b16 %v8097, %v8096
        %v8123 = vpack.c.b16 %v8099, %v8098
        %v8124 = vpack.c.b16 %v8101, %v8100
        %v8125 = vpack.c.b16 %v8103, %v8102
        %v8126 = vpack.c.b16 %v8105, %v8104
        %v8127 = vpack.c.b16 %v8107, %v8106
        %v8128 = vpack.c.b16 %v8109, %v8108
        %v8129 = vpack.c.b16 %v8111, %v8110
        %v8130 = vpack.c.b16 %v8113, %v8112
        %v8131 = vpack.c.b16 %v8115, %v8114
        %v8140 = vunpack.c.l.b16 %v8076
        %v8141 = vunpack.c.l.b16 %v8077
        %v8142 = vunpack.c.l.b16 %v8078
        %v8143 = vunpack.c.l.b16 %v8079
        %v8144 = vunpack.c.l.b16 %v8080
        %v8145 = vunpack.c.l.b16 %v8081
        %v8146 = vunpack.c.l.b16 %v8082
        %v8147 = vunpack.c.l.b16 %v8083
        %v8148 = vpack.c.b16 %v8141, %v8140
        %v8149 = vpack.c.b16 %v8143, %v8142
        %v8150 = vpack.c.b16 %v8145, %v8144
        %v8151 = vpack.c.b16 %v8147, %v8146
        %v8157 = vsel %vm6055, %v8116, 0
        %v8160 = vsel %vm6055, %v8117, 0
        %v8163 = vsel %vm6055, %v8118, 0
        %v8166 = vsel %vm6055, %v8119, 0
        %v8169 = vsel %vm6055, %v8120, 0
        %v8172 = vsel %vm6055, %v8121, 0
        %v8175 = vsel %vm6055, %v8122, 0
        %v8178 = vsel %vm6055, %v8123, 0
        %v8181 = vsel %vm6055, %v8124, 0
        %v8184 = vsel %vm6055, %v8125, 0
        %v8187 = vsel %vm6055, %v8126, 0
        %v8190 = vsel %vm6055, %v8127, 0
        %v8193 = vsel %vm6055, %v8128, 0
        %v8196 = vsel %vm6055, %v8129, 0
        %v8199 = vsel %vm6055, %v8130, 0
        %v8202 = vsel %vm6055, %v8131, 0
        %8204 = vmatpush.bf16.msra.mxu0 0
        %8205 = vmatpush.bf16.msra.mxu0 0
        %8206 = vmatpush.bf16.msra.mxu0 0
        %8207 = vmatpush.bf16.msra.mxu0 0
        %8208 = vmatpush.bf16.msra.mxu0 %v8151
        %8209 = vmatpush.bf16.msra.mxu0 %v8150
        %8210 = vmatpush.bf16.msra.mxu0 %v8149
        %8211 = vmatpush.bf16.msra.mxu0 %v8148
        %8212 = vmatmul.bf16.gmra.mxu0 %v8157
        %v8213 = vpop.f32.mrf.mxu0
        %v8214 = vadd.f32 0.0, %v8213
        %v8215 = vpop.f32.mrf.mxu0
        %v8216 = vadd.f32 0.0, %v8215
        %8217 = vmatmul.bf16.gmra.mxu0 %v8160
        %v8218 = vpop.f32.mrf.mxu0
        %v8219 = vadd.f32 0.0, %v8218
        %v8220 = vpop.f32.mrf.mxu0
        %v8221 = vadd.f32 0.0, %v8220
        %8222 = vmatmul.bf16.gmra.mxu0 %v8163
        %v8223 = vpop.f32.mrf.mxu0
        %v8224 = vadd.f32 0.0, %v8223
        %v8225 = vpop.f32.mrf.mxu0
        %v8226 = vadd.f32 0.0, %v8225
        %8227 = vmatmul.bf16.gmra.mxu0 %v8166
        %v8228 = vpop.f32.mrf.mxu0
        %v8229 = vadd.f32 0.0, %v8228
        %v8230 = vpop.f32.mrf.mxu0
        %v8231 = vadd.f32 0.0, %v8230
        %8232 = vmatmul.bf16.gmra.mxu0 %v8169
        %v8233 = vpop.f32.mrf.mxu0
        %v8234 = vadd.f32 0.0, %v8233
        %v8235 = vpop.f32.mrf.mxu0
        %v8236 = vadd.f32 0.0, %v8235
        %8237 = vmatmul.bf16.gmra.mxu0 %v8172
        %v8238 = vpop.f32.mrf.mxu0
        %v8239 = vadd.f32 0.0, %v8238
        %v8240 = vpop.f32.mrf.mxu0
        %v8241 = vadd.f32 0.0, %v8240
        %8242 = vmatmul.bf16.gmra.mxu0 %v8175
        %v8243 = vpop.f32.mrf.mxu0
        %v8244 = vadd.f32 0.0, %v8243
        %v8245 = vpop.f32.mrf.mxu0
        %v8246 = vadd.f32 0.0, %v8245
        %8247 = vmatmul.bf16.gmra.mxu0 %v8178
        %v8248 = vpop.f32.mrf.mxu0
        %v8249 = vadd.f32 0.0, %v8248
        %v8250 = vpop.f32.mrf.mxu0
        %v8251 = vadd.f32 0.0, %v8250
        %8252 = vmatmul.bf16.gmra.mxu0 %v8181
        %v8253 = vpop.f32.mrf.mxu0
        %v8254 = vadd.f32 0.0, %v8253
        %v8255 = vpop.f32.mrf.mxu0
        %v8256 = vadd.f32 0.0, %v8255
        %8257 = vmatmul.bf16.gmra.mxu0 %v8184
        %v8258 = vpop.f32.mrf.mxu0
        %v8259 = vadd.f32 0.0, %v8258
        %v8260 = vpop.f32.mrf.mxu0
        %v8261 = vadd.f32 0.0, %v8260
        %8262 = vmatmul.bf16.gmra.mxu0 %v8187
        %v8263 = vpop.f32.mrf.mxu0
        %v8264 = vadd.f32 0.0, %v8263
        %v8265 = vpop.f32.mrf.mxu0
        %v8266 = vadd.f32 0.0, %v8265
        %8267 = vmatmul.bf16.gmra.mxu0 %v8190
        %v8268 = vpop.f32.mrf.mxu0
        %v8269 = vadd.f32 0.0, %v8268
        %v8270 = vpop.f32.mrf.mxu0
        %v8271 = vadd.f32 0.0, %v8270
        %8272 = vmatmul.bf16.gmra.mxu0 %v8193
        %v8273 = vpop.f32.mrf.mxu0
        %v8274 = vadd.f32 0.0, %v8273
        %v8275 = vpop.f32.mrf.mxu0
        %v8276 = vadd.f32 0.0, %v8275
        %8277 = vmatmul.bf16.gmra.mxu0 %v8196
        %v8278 = vpop.f32.mrf.mxu0
        %v8279 = vadd.f32 0.0, %v8278
        %v8280 = vpop.f32.mrf.mxu0
        %v8281 = vadd.f32 0.0, %v8280
        %8282 = vmatmul.bf16.gmra.mxu0 %v8199
        %v8283 = vpop.f32.mrf.mxu0
        %v8284 = vadd.f32 0.0, %v8283
        %v8285 = vpop.f32.mrf.mxu0
        %v8286 = vadd.f32 0.0, %v8285
        %8287 = vmatmul.bf16.gmra.mxu0 %v8202
        %v8288 = vpop.f32.mrf.mxu0
        %v8289 = vadd.f32 0.0, %v8288
        %v8290 = vpop.f32.mrf.mxu0
        %v8291 = vadd.f32 0.0, %v8290
        %8292 = vdwg.mxu0
        %v8293 = vadd.f32 %v7612, %v8214
        %v8294 = vadd.f32 %v7613, %v8216
        %v8295 = vadd.f32 %v7614, %v8219
        %v8296 = vadd.f32 %v7615, %v8221
        %v8297 = vadd.f32 %v7616, %v8224
        %v8298 = vadd.f32 %v7617, %v8226
        %v8299 = vadd.f32 %v7618, %v8229
        %v8300 = vadd.f32 %v7619, %v8231
        %v8301 = vadd.f32 %v7620, %v8234
        %v8302 = vadd.f32 %v7621, %v8236
        %v8303 = vadd.f32 %v7622, %v8239
        %v8304 = vadd.f32 %v7623, %v8241
        %v8305 = vadd.f32 %v7624, %v8244
        %v8306 = vadd.f32 %v7625, %v8246
        %v8307 = vadd.f32 %v7626, %v8249
        %v8308 = vadd.f32 %v7627, %v8251
        %v8309 = vadd.f32 %v7628, %v8254
        %v8310 = vadd.f32 %v7629, %v8256
        %v8311 = vadd.f32 %v7630, %v8259
        %v8312 = vadd.f32 %v7631, %v8261
        %v8313 = vadd.f32 %v7632, %v8264
        %v8314 = vadd.f32 %v7633, %v8266
        %v8315 = vadd.f32 %v7634, %v8269
        %v8316 = vadd.f32 %v7635, %v8271
        %v8317 = vadd.f32 %v7636, %v8274
        %v8318 = vadd.f32 %v7637, %v8276
        %v8319 = vadd.f32 %v7638, %v8279
        %v8320 = vadd.f32 %v7639, %v8281
        %v8321 = vadd.f32 %v7640, %v8284
        %v8322 = vadd.f32 %v7641, %v8286
        %v8323 = vadd.f32 %v7642, %v8289
        %v8324 = vadd.f32 %v7643, %v8291
        %v8325 = vld [vmem:[%s5792] sm:$0xe]
        %v8326 = vld [vmem:[%s5792 + $0xc] sm:$0xe]
        %v8327 = vld [vmem:[%s5792 + $0x18] sm:$0xe]
        %v8328 = vld [vmem:[%s5792 + $0x24] sm:$0xe]
        %v8329 = vld [vmem:[%s5792 + $0x30] sm:$0xe]
        %v8330 = vld [vmem:[%s5792 + $0x3c] sm:$0xe]
        %v8331 = vld [vmem:[%s5792 + $0x48] sm:$0xe]
        %v8332 = vld [vmem:[%s5792 + $0x54] sm:$0xe]
        %v8333 = vld [vmem:[%s5792 + $0x60] sm:$0xe]
        %v8334 = vld [vmem:[%s5792 + $0x6c] sm:$0xe]
        %v8335 = vld [vmem:[%s5792 + $0x78] sm:$0xe]
        %v8336 = vld [vmem:[%s5792 + $0x84] sm:$0xe]
        %v8337 = vld [vmem:[%s5792 + $0x90] sm:$0xe]
        %v8338 = vld [vmem:[%s5792 + $0x9c] sm:$0xe]
        %v8339 = vld [vmem:[%s5792 + $0xa8] sm:$0xe]
        %v8340 = vld [vmem:[%s5792 + $0xb4] sm:$0xe]
        %v8389 = vrot.slane %v8325, 5
        %v8390 = vrot.slane %v8389, 4
        %v8391 = vrot.slane %v7645, 5
        %v8392 = vsel %vm2319, %v8390, %v8391
        %v8393 = vrot.slane %v8391, 4
        %v8394 = vrot.slane %v7646, 5
        %v8395 = vsel %vm2319, %v8393, %v8394
        %v8396 = vrot.slane %v8326, 5
        %v8397 = vrot.slane %v8396, 4
        %v8398 = vrot.slane %v7648, 5
        %v8399 = vsel %vm2319, %v8397, %v8398
        %v8400 = vrot.slane %v8398, 4
        %v8401 = vrot.slane %v7649, 5
        %v8402 = vsel %vm2319, %v8400, %v8401
        %v8403 = vrot.slane %v8327, 5
        %v8404 = vrot.slane %v8403, 4
        %v8405 = vrot.slane %v7651, 5
        %v8406 = vsel %vm2319, %v8404, %v8405
        %v8407 = vrot.slane %v8405, 4
        %v8408 = vrot.slane %v7652, 5
        %v8409 = vsel %vm2319, %v8407, %v8408
        %v8410 = vrot.slane %v8328, 5
        %v8411 = vrot.slane %v8410, 4
        %v8412 = vrot.slane %v7654, 5
        %v8413 = vsel %vm2319, %v8411, %v8412
        %v8414 = vrot.slane %v8412, 4
        %v8415 = vrot.slane %v7655, 5
        %v8416 = vsel %vm2319, %v8414, %v8415
        %v8417 = vrot.slane %v8329, 5
        %v8418 = vrot.slane %v8417, 4
        %v8419 = vrot.slane %v7657, 5
        %v8420 = vsel %vm2319, %v8418, %v8419
        %v8421 = vrot.slane %v8419, 4
        %v8422 = vrot.slane %v7658, 5
        %v8423 = vsel %vm2319, %v8421, %v8422
        %v8424 = vrot.slane %v8330, 5
        %v8425 = vrot.slane %v8424, 4
        %v8426 = vrot.slane %v7660, 5
        %v8427 = vsel %vm2319, %v8425, %v8426
        %v8428 = vrot.slane %v8426, 4
        %v8429 = vrot.slane %v7661, 5
        %v8430 = vsel %vm2319, %v8428, %v8429
        %v8431 = vrot.slane %v8331, 5
        %v8432 = vrot.slane %v8431, 4
        %v8433 = vrot.slane %v7663, 5
        %v8434 = vsel %vm2319, %v8432, %v8433
        %v8435 = vrot.slane %v8433, 4
        %v8436 = vrot.slane %v7664, 5
        %v8437 = vsel %vm2319, %v8435, %v8436
        %v8438 = vrot.slane %v8332, 5
        %v8439 = vrot.slane %v8438, 4
        %v8440 = vrot.slane %v7666, 5
        %v8441 = vsel %vm2319, %v8439, %v8440
        %v8442 = vrot.slane %v8440, 4
        %v8443 = vrot.slane %v7667, 5
        %v8444 = vsel %vm2319, %v8442, %v8443
        %v8445 = vrot.slane %v8333, 5
        %v8446 = vrot.slane %v8445, 4
        %v8447 = vrot.slane %v7669, 5
        %v8448 = vsel %vm2319, %v8446, %v8447
        %v8449 = vrot.slane %v8447, 4
        %v8450 = vrot.slane %v7670, 5
        %v8451 = vsel %vm2319, %v8449, %v8450
        %v8452 = vrot.slane %v8334, 5
        %v8453 = vrot.slane %v8452, 4
        %v8454 = vrot.slane %v7672, 5
        %v8455 = vsel %vm2319, %v8453, %v8454
        %v8456 = vrot.slane %v8454, 4
        %v8457 = vrot.slane %v7673, 5
        %v8458 = vsel %vm2319, %v8456, %v8457
        %v8459 = vrot.slane %v8335, 5
        %v8460 = vrot.slane %v8459, 4
        %v8461 = vrot.slane %v7675, 5
        %v8462 = vsel %vm2319, %v8460, %v8461
        %v8463 = vrot.slane %v8461, 4
        %v8464 = vrot.slane %v7676, 5
        %v8465 = vsel %vm2319, %v8463, %v8464
        %v8466 = vrot.slane %v8336, 5
        %v8467 = vrot.slane %v8466, 4
        %v8468 = vrot.slane %v7678, 5
        %v8469 = vsel %vm2319, %v8467, %v8468
        %v8470 = vrot.slane %v8468, 4
        %v8471 = vrot.slane %v7679, 5
        %v8472 = vsel %vm2319, %v8470, %v8471
        %v8473 = vrot.slane %v8337, 5
        %v8474 = vrot.slane %v8473, 4
        %v8475 = vrot.slane %v7681, 5
        %v8476 = vsel %vm2319, %v8474, %v8475
        %v8477 = vrot.slane %v8475, 4
        %v8478 = vrot.slane %v7682, 5
        %v8479 = vsel %vm2319, %v8477, %v8478
        %v8480 = vrot.slane %v8338, 5
        %v8481 = vrot.slane %v8480, 4
        %v8482 = vrot.slane %v7684, 5
        %v8483 = vsel %vm2319, %v8481, %v8482
        %v8484 = vrot.slane %v8482, 4
        %v8485 = vrot.slane %v7685, 5
        %v8486 = vsel %vm2319, %v8484, %v8485
        %v8487 = vrot.slane %v8339, 5
        %v8488 = vrot.slane %v8487, 4
        %v8489 = vrot.slane %v7687, 5
        %v8490 = vsel %vm2319, %v8488, %v8489
        %v8491 = vrot.slane %v8489, 4
        %v8492 = vrot.slane %v7688, 5
        %v8493 = vsel %vm2319, %v8491, %v8492
        %v8494 = vrot.slane %v8340, 5
        %v8495 = vrot.slane %v8494, 4
        %v8496 = vrot.slane %v7690, 5
        %v8497 = vsel %vm2319, %v8495, %v8496
        %v8498 = vrot.slane %v8496, 4
        %v8499 = vrot.slane %v7691, 5
        %v8500 = vsel %vm2319, %v8498, %v8499
        %v8501 = vld [vmem:[%s5 + $0xa0] sm:$0xf]
        %v8502 = vld [vmem:[%s5 + $0xa4] sm:$0xf]
        %v8503 = vld [vmem:[%s5 + $0xa8] sm:$0xf]
        %v8504 = vld [vmem:[%s5 + $0xac] sm:$0xf]
        %v8505 = vld [vmem:[%s5 + $0xb0] sm:$0xf]
        %v8506 = vld [vmem:[%s5 + $0xb4] sm:$0xf]
        %v8507 = vld [vmem:[%s5 + $0xb8] sm:$0xf]
        %v8508 = vld [vmem:[%s5 + $0xbc] sm:$0xf]
        %v8509 = vunpack.c.l.b16 %v8392
        %v8510 = vunpack.c.l.b16 %v8395
        %v8511 = vunpack.c.l.b16 %v8399
        %v8512 = vunpack.c.l.b16 %v8402
        %v8513 = vunpack.c.l.b16 %v8406
        %v8514 = vunpack.c.l.b16 %v8409
        %v8515 = vunpack.c.l.b16 %v8413
        %v8516 = vunpack.c.l.b16 %v8416
        %v8517 = vunpack.c.l.b16 %v8420
        %v8518 = vunpack.c.l.b16 %v8423
        %v8519 = vunpack.c.l.b16 %v8427
        %v8520 = vunpack.c.l.b16 %v8430
        %v8521 = vunpack.c.l.b16 %v8434
        %v8522 = vunpack.c.l.b16 %v8437
        %v8523 = vunpack.c.l.b16 %v8441
        %v8524 = vunpack.c.l.b16 %v8444
        %v8525 = vunpack.c.l.b16 %v8448
        %v8526 = vunpack.c.l.b16 %v8451
        %v8527 = vunpack.c.l.b16 %v8455
        %v8528 = vunpack.c.l.b16 %v8458
        %v8529 = vunpack.c.l.b16 %v8462
        %v8530 = vunpack.c.l.b16 %v8465
        %v8531 = vunpack.c.l.b16 %v8469
        %v8532 = vunpack.c.l.b16 %v8472
        %v8533 = vunpack.c.l.b16 %v8476
        %v8534 = vunpack.c.l.b16 %v8479
        %v8535 = vunpack.c.l.b16 %v8483
        %v8536 = vunpack.c.l.b16 %v8486
        %v8537 = vunpack.c.l.b16 %v8490
        %v8538 = vunpack.c.l.b16 %v8493
        %v8539 = vunpack.c.l.b16 %v8497
        %v8540 = vunpack.c.l.b16 %v8500
        %v8541 = vpack.c.b16 %v8510, %v8509
        %v8542 = vpack.c.b16 %v8512, %v8511
        %v8543 = vpack.c.b16 %v8514, %v8513
        %v8544 = vpack.c.b16 %v8516, %v8515
        %v8545 = vpack.c.b16 %v8518, %v8517
        %v8546 = vpack.c.b16 %v8520, %v8519
        %v8547 = vpack.c.b16 %v8522, %v8521
        %v8548 = vpack.c.b16 %v8524, %v8523
        %v8549 = vpack.c.b16 %v8526, %v8525
        %v8550 = vpack.c.b16 %v8528, %v8527
        %v8551 = vpack.c.b16 %v8530, %v8529
        %v8552 = vpack.c.b16 %v8532, %v8531
        %v8553 = vpack.c.b16 %v8534, %v8533
        %v8554 = vpack.c.b16 %v8536, %v8535
        %v8555 = vpack.c.b16 %v8538, %v8537
        %v8556 = vpack.c.b16 %v8540, %v8539
        %v8565 = vunpack.c.l.b16 %v8501
        %v8566 = vunpack.c.l.b16 %v8502
        %v8567 = vunpack.c.l.b16 %v8503
        %v8568 = vunpack.c.l.b16 %v8504
        %v8569 = vunpack.c.l.b16 %v8505
        %v8570 = vunpack.c.l.b16 %v8506
        %v8571 = vunpack.c.l.b16 %v8507
        %v8572 = vunpack.c.l.b16 %v8508
        %v8573 = vpack.c.b16 %v8566, %v8565
        %v8574 = vpack.c.b16 %v8568, %v8567
        %v8575 = vpack.c.b16 %v8570, %v8569
        %v8576 = vpack.c.b16 %v8572, %v8571
        %v8582 = vsel %vm6055, %v8541, 0
        %v8585 = vsel %vm6055, %v8542, 0
        %v8588 = vsel %vm6055, %v8543, 0
        %v8591 = vsel %vm6055, %v8544, 0
        %v8594 = vsel %vm6055, %v8545, 0
        %v8597 = vsel %vm6055, %v8546, 0
        %v8600 = vsel %vm6055, %v8547, 0
        %v8603 = vsel %vm6055, %v8548, 0
        %v8606 = vsel %vm6055, %v8549, 0
        %v8609 = vsel %vm6055, %v8550, 0
        %v8612 = vsel %vm6055, %v8551, 0
        %v8615 = vsel %vm6055, %v8552, 0
        %v8618 = vsel %vm6055, %v8553, 0
        %v8621 = vsel %vm6055, %v8554, 0
        %v8624 = vsel %vm6055, %v8555, 0
        %v8627 = vsel %vm6055, %v8556, 0
        %8629 = vmatpush.bf16.msra.mxu0 0
        %8630 = vmatpush.bf16.msra.mxu0 0
        %8631 = vmatpush.bf16.msra.mxu0 0
        %8632 = vmatpush.bf16.msra.mxu0 0
        %8633 = vmatpush.bf16.msra.mxu0 %v8576
        %8634 = vmatpush.bf16.msra.mxu0 %v8575
        %8635 = vmatpush.bf16.msra.mxu0 %v8574
        %8636 = vmatpush.bf16.msra.mxu0 %v8573
        %8637 = vmatmul.bf16.gmra.mxu0 %v8582
        %v8638 = vpop.f32.mrf.mxu0
        %v8639 = vadd.f32 0.0, %v8638
        %v8640 = vpop.f32.mrf.mxu0
        %v8641 = vadd.f32 0.0, %v8640
        %8642 = vmatmul.bf16.gmra.mxu0 %v8585
        %v8643 = vpop.f32.mrf.mxu0
        %v8644 = vadd.f32 0.0, %v8643
        %v8645 = vpop.f32.mrf.mxu0
        %v8646 = vadd.f32 0.0, %v8645
        %8647 = vmatmul.bf16.gmra.mxu0 %v8588
        %v8648 = vpop.f32.mrf.mxu0
        %v8649 = vadd.f32 0.0, %v8648
        %v8650 = vpop.f32.mrf.mxu0
        %v8651 = vadd.f32 0.0, %v8650
        %8652 = vmatmul.bf16.gmra.mxu0 %v8591
        %v8653 = vpop.f32.mrf.mxu0
        %v8654 = vadd.f32 0.0, %v8653
        %v8655 = vpop.f32.mrf.mxu0
        %v8656 = vadd.f32 0.0, %v8655
        %8657 = vmatmul.bf16.gmra.mxu0 %v8594
        %v8658 = vpop.f32.mrf.mxu0
        %v8659 = vadd.f32 0.0, %v8658
        %v8660 = vpop.f32.mrf.mxu0
        %v8661 = vadd.f32 0.0, %v8660
        %8662 = vmatmul.bf16.gmra.mxu0 %v8597
        %v8663 = vpop.f32.mrf.mxu0
        %v8664 = vadd.f32 0.0, %v8663
        %v8665 = vpop.f32.mrf.mxu0
        %v8666 = vadd.f32 0.0, %v8665
        %8667 = vmatmul.bf16.gmra.mxu0 %v8600
        %v8668 = vpop.f32.mrf.mxu0
        %v8669 = vadd.f32 0.0, %v8668
        %v8670 = vpop.f32.mrf.mxu0
        %v8671 = vadd.f32 0.0, %v8670
        %8672 = vmatmul.bf16.gmra.mxu0 %v8603
        %v8673 = vpop.f32.mrf.mxu0
        %v8674 = vadd.f32 0.0, %v8673
        %v8675 = vpop.f32.mrf.mxu0
        %v8676 = vadd.f32 0.0, %v8675
        %8677 = vmatmul.bf16.gmra.mxu0 %v8606
        %v8678 = vpop.f32.mrf.mxu0
        %v8679 = vadd.f32 0.0, %v8678
        %v8680 = vpop.f32.mrf.mxu0
        %v8681 = vadd.f32 0.0, %v8680
        %8682 = vmatmul.bf16.gmra.mxu0 %v8609
        %v8683 = vpop.f32.mrf.mxu0
        %v8684 = vadd.f32 0.0, %v8683
        %v8685 = vpop.f32.mrf.mxu0
        %v8686 = vadd.f32 0.0, %v8685
        %8687 = vmatmul.bf16.gmra.mxu0 %v8612
        %v8688 = vpop.f32.mrf.mxu0
        %v8689 = vadd.f32 0.0, %v8688
        %v8690 = vpop.f32.mrf.mxu0
        %v8691 = vadd.f32 0.0, %v8690
        %8692 = vmatmul.bf16.gmra.mxu0 %v8615
        %v8693 = vpop.f32.mrf.mxu0
        %v8694 = vadd.f32 0.0, %v8693
        %v8695 = vpop.f32.mrf.mxu0
        %v8696 = vadd.f32 0.0, %v8695
        %8697 = vmatmul.bf16.gmra.mxu0 %v8618
        %v8698 = vpop.f32.mrf.mxu0
        %v8699 = vadd.f32 0.0, %v8698
        %v8700 = vpop.f32.mrf.mxu0
        %v8701 = vadd.f32 0.0, %v8700
        %8702 = vmatmul.bf16.gmra.mxu0 %v8621
        %v8703 = vpop.f32.mrf.mxu0
        %v8704 = vadd.f32 0.0, %v8703
        %v8705 = vpop.f32.mrf.mxu0
        %v8706 = vadd.f32 0.0, %v8705
        %8707 = vmatmul.bf16.gmra.mxu0 %v8624
        %v8708 = vpop.f32.mrf.mxu0
        %v8709 = vadd.f32 0.0, %v8708
        %v8710 = vpop.f32.mrf.mxu0
        %v8711 = vadd.f32 0.0, %v8710
        %8712 = vmatmul.bf16.gmra.mxu0 %v8627
        %v8713 = vpop.f32.mrf.mxu0
        %v8714 = vadd.f32 0.0, %v8713
        %v8715 = vpop.f32.mrf.mxu0
        %v8716 = vadd.f32 0.0, %v8715
        %8717 = vdwg.mxu0
        %v8718 = vadd.f32 %v8293, %v8639
        %v8719 = vadd.f32 %v8294, %v8641
        %v8720 = vadd.f32 %v8295, %v8644
        %v8721 = vadd.f32 %v8296, %v8646
        %v8722 = vadd.f32 %v8297, %v8649
        %v8723 = vadd.f32 %v8298, %v8651
        %v8724 = vadd.f32 %v8299, %v8654
        %v8725 = vadd.f32 %v8300, %v8656
        %v8726 = vadd.f32 %v8301, %v8659
        %v8727 = vadd.f32 %v8302, %v8661
        %v8728 = vadd.f32 %v8303, %v8664
        %v8729 = vadd.f32 %v8304, %v8666
        %v8730 = vadd.f32 %v8305, %v8669
        %v8731 = vadd.f32 %v8306, %v8671
        %v8732 = vadd.f32 %v8307, %v8674
        %v8733 = vadd.f32 %v8308, %v8676
        %v8734 = vadd.f32 %v8309, %v8679
        %v8735 = vadd.f32 %v8310, %v8681
        %v8736 = vadd.f32 %v8311, %v8684
        %v8737 = vadd.f32 %v8312, %v8686
        %v8738 = vadd.f32 %v8313, %v8689
        %v8739 = vadd.f32 %v8314, %v8691
        %v8740 = vadd.f32 %v8315, %v8694
        %v8741 = vadd.f32 %v8316, %v8696
        %v8742 = vadd.f32 %v8317, %v8699
        %v8743 = vadd.f32 %v8318, %v8701
        %v8744 = vadd.f32 %v8319, %v8704
        %v8745 = vadd.f32 %v8320, %v8706
        %v8746 = vadd.f32 %v8321, %v8709
        %v8747 = vadd.f32 %v8322, %v8711
        %v8748 = vadd.f32 %v8323, %v8714
        %v8749 = vadd.f32 %v8324, %v8716
        %s8750 = scalar_lea.vmem [#allocation3], 24
        %v8751 = vld [vmem:[%s8750] sm:$0xf]
        %v8752 = vld [vmem:[%s8750 + $0x4] sm:$0xf]
        %v8753 = vld [vmem:[%s8750 + $0xc] sm:$0xf]
        %v8754 = vld [vmem:[%s8750 + $0x10] sm:$0xf]
        %v8755 = vld [vmem:[%s8750 + $0x18] sm:$0xf]
        %v8756 = vld [vmem:[%s8750 + $0x1c] sm:$0xf]
        %v8757 = vld [vmem:[%s8750 + $0x24] sm:$0xf]
        %v8758 = vld [vmem:[%s8750 + $0x28] sm:$0xf]
        %v8759 = vld [vmem:[%s8750 + $0x30] sm:$0xf]
        %v8760 = vld [vmem:[%s8750 + $0x34] sm:$0xf]
        %v8761 = vld [vmem:[%s8750 + $0x3c] sm:$0xf]
        %v8762 = vld [vmem:[%s8750 + $0x40] sm:$0xf]
        %v8763 = vld [vmem:[%s8750 + $0x48] sm:$0xf]
        %v8764 = vld [vmem:[%s8750 + $0x4c] sm:$0xf]
        %v8765 = vld [vmem:[%s8750 + $0x54] sm:$0xf]
        %v8766 = vld [vmem:[%s8750 + $0x58] sm:$0xf]
        %v8767 = vld [vmem:[%s8750 + $0x60] sm:$0xf]
        %v8768 = vld [vmem:[%s8750 + $0x64] sm:$0xf]
        %v8769 = vld [vmem:[%s8750 + $0x6c] sm:$0xf]
        %v8770 = vld [vmem:[%s8750 + $0x70] sm:$0xf]
        %v8771 = vld [vmem:[%s8750 + $0x78] sm:$0xf]
        %v8772 = vld [vmem:[%s8750 + $0x7c] sm:$0xf]
        %v8773 = vld [vmem:[%s8750 + $0x84] sm:$0xf]
        %v8774 = vld [vmem:[%s8750 + $0x88] sm:$0xf]
        %v8775 = vld [vmem:[%s8750 + $0x90] sm:$0xf]
        %v8776 = vld [vmem:[%s8750 + $0x94] sm:$0xf]
        %v8777 = vld [vmem:[%s8750 + $0x9c] sm:$0xf]
        %v8778 = vld [vmem:[%s8750 + $0xa0] sm:$0xf]
        %v8779 = vld [vmem:[%s8750 + $0xa8] sm:$0xf]
        %v8780 = vld [vmem:[%s8750 + $0xac] sm:$0xf]
        %v8781 = vld [vmem:[%s8750 + $0xb4] sm:$0xf]
        %v8782 = vld [vmem:[%s8750 + $0xb8] sm:$0xf]
        %v8783 = vld [vmem:[%s5 + $0xc0] sm:$0xf]
        %v8784 = vld [vmem:[%s5 + $0xc4] sm:$0xf]
        %v8785 = vld [vmem:[%s5 + $0xc8] sm:$0xf]
        %v8786 = vld [vmem:[%s5 + $0xcc] sm:$0xf]
        %v8787 = vld [vmem:[%s5 + $0xd0] sm:$0xf]
        %v8788 = vld [vmem:[%s5 + $0xd4] sm:$0xf]
        %v8789 = vld [vmem:[%s5 + $0xd8] sm:$0xf]
        %v8790 = vld [vmem:[%s5 + $0xdc] sm:$0xf]
        %v8823 = vunpack.c.l.b16 %v8751
        %v8824 = vunpack.c.l.b16 %v8752
        %v8825 = vunpack.c.l.b16 %v8753
        %v8826 = vunpack.c.l.b16 %v8754
        %v8827 = vunpack.c.l.b16 %v8755
        %v8828 = vunpack.c.l.b16 %v8756
        %v8829 = vunpack.c.l.b16 %v8757
        %v8830 = vunpack.c.l.b16 %v8758
        %v8831 = vunpack.c.l.b16 %v8759
        %v8832 = vunpack.c.l.b16 %v8760
        %v8833 = vunpack.c.l.b16 %v8761
        %v8834 = vunpack.c.l.b16 %v8762
        %v8835 = vunpack.c.l.b16 %v8763
        %v8836 = vunpack.c.l.b16 %v8764
        %v8837 = vunpack.c.l.b16 %v8765
        %v8838 = vunpack.c.l.b16 %v8766
        %v8839 = vunpack.c.l.b16 %v8767
        %v8840 = vunpack.c.l.b16 %v8768
        %v8841 = vunpack.c.l.b16 %v8769
        %v8842 = vunpack.c.l.b16 %v8770
        %v8843 = vunpack.c.l.b16 %v8771
        %v8844 = vunpack.c.l.b16 %v8772
        %v8845 = vunpack.c.l.b16 %v8773
        %v8846 = vunpack.c.l.b16 %v8774
        %v8847 = vunpack.c.l.b16 %v8775
        %v8848 = vunpack.c.l.b16 %v8776
        %v8849 = vunpack.c.l.b16 %v8777
        %v8850 = vunpack.c.l.b16 %v8778
        %v8851 = vunpack.c.l.b16 %v8779
        %v8852 = vunpack.c.l.b16 %v8780
        %v8853 = vunpack.c.l.b16 %v8781
        %v8854 = vunpack.c.l.b16 %v8782
        %v8855 = vpack.c.b16 %v8824, %v8823
        %v8856 = vpack.c.b16 %v8826, %v8825
        %v8857 = vpack.c.b16 %v8828, %v8827
        %v8858 = vpack.c.b16 %v8830, %v8829
        %v8859 = vpack.c.b16 %v8832, %v8831
        %v8860 = vpack.c.b16 %v8834, %v8833
        %v8861 = vpack.c.b16 %v8836, %v8835
        %v8862 = vpack.c.b16 %v8838, %v8837
        %v8863 = vpack.c.b16 %v8840, %v8839
        %v8864 = vpack.c.b16 %v8842, %v8841
        %v8865 = vpack.c.b16 %v8844, %v8843
        %v8866 = vpack.c.b16 %v8846, %v8845
        %v8867 = vpack.c.b16 %v8848, %v8847
        %v8868 = vpack.c.b16 %v8850, %v8849
        %v8869 = vpack.c.b16 %v8852, %v8851
        %v8870 = vpack.c.b16 %v8854, %v8853
        %v8879 = vunpack.c.l.b16 %v8783
        %v8880 = vunpack.c.l.b16 %v8784
        %v8881 = vunpack.c.l.b16 %v8785
        %v8882 = vunpack.c.l.b16 %v8786
        %v8883 = vunpack.c.l.b16 %v8787
        %v8884 = vunpack.c.l.b16 %v8788
        %v8885 = vunpack.c.l.b16 %v8789
        %v8886 = vunpack.c.l.b16 %v8790
        %v8887 = vpack.c.b16 %v8880, %v8879
        %v8888 = vpack.c.b16 %v8882, %v8881
        %v8889 = vpack.c.b16 %v8884, %v8883
        %v8890 = vpack.c.b16 %v8886, %v8885
        %v8896 = vsel %vm6055, %v8855, 0
        %v8899 = vsel %vm6055, %v8856, 0
        %v8902 = vsel %vm6055, %v8857, 0
        %v8905 = vsel %vm6055, %v8858, 0
        %v8908 = vsel %vm6055, %v8859, 0
        %v8911 = vsel %vm6055, %v8860, 0
        %v8914 = vsel %vm6055, %v8861, 0
        %v8917 = vsel %vm6055, %v8862, 0
        %v8920 = vsel %vm6055, %v8863, 0
        %v8923 = vsel %vm6055, %v8864, 0
        %v8926 = vsel %vm6055, %v8865, 0
        %v8929 = vsel %vm6055, %v8866, 0
        %v8932 = vsel %vm6055, %v8867, 0
        %v8935 = vsel %vm6055, %v8868, 0
        %v8938 = vsel %vm6055, %v8869, 0
        %v8941 = vsel %vm6055, %v8870, 0
        %8943 = vmatpush.bf16.msra.mxu0 0
        %8944 = vmatpush.bf16.msra.mxu0 0
        %8945 = vmatpush.bf16.msra.mxu0 0
        %8946 = vmatpush.bf16.msra.mxu0 0
        %8947 = vmatpush.bf16.msra.mxu0 %v8890
        %8948 = vmatpush.bf16.msra.mxu0 %v8889
        %8949 = vmatpush.bf16.msra.mxu0 %v8888
        %8950 = vmatpush.bf16.msra.mxu0 %v8887
        %8951 = vmatmul.bf16.gmra.mxu0 %v8896
        %v8952 = vpop.f32.mrf.mxu0
        %v8953 = vadd.f32 0.0, %v8952
        %v8954 = vpop.f32.mrf.mxu0
        %v8955 = vadd.f32 0.0, %v8954
        %8956 = vmatmul.bf16.gmra.mxu0 %v8899
        %v8957 = vpop.f32.mrf.mxu0
        %v8958 = vadd.f32 0.0, %v8957
        %v8959 = vpop.f32.mrf.mxu0
        %v8960 = vadd.f32 0.0, %v8959
        %8961 = vmatmul.bf16.gmra.mxu0 %v8902
        %v8962 = vpop.f32.mrf.mxu0
        %v8963 = vadd.f32 0.0, %v8962
        %v8964 = vpop.f32.mrf.mxu0
        %v8965 = vadd.f32 0.0, %v8964
        %8966 = vmatmul.bf16.gmra.mxu0 %v8905
        %v8967 = vpop.f32.mrf.mxu0
        %v8968 = vadd.f32 0.0, %v8967
        %v8969 = vpop.f32.mrf.mxu0
        %v8970 = vadd.f32 0.0, %v8969
        %8971 = vmatmul.bf16.gmra.mxu0 %v8908
        %v8972 = vpop.f32.mrf.mxu0
        %v8973 = vadd.f32 0.0, %v8972
        %v8974 = vpop.f32.mrf.mxu0
        %v8975 = vadd.f32 0.0, %v8974
        %8976 = vmatmul.bf16.gmra.mxu0 %v8911
        %v8977 = vpop.f32.mrf.mxu0
        %v8978 = vadd.f32 0.0, %v8977
        %v8979 = vpop.f32.mrf.mxu0
        %v8980 = vadd.f32 0.0, %v8979
        %8981 = vmatmul.bf16.gmra.mxu0 %v8914
        %v8982 = vpop.f32.mrf.mxu0
        %v8983 = vadd.f32 0.0, %v8982
        %v8984 = vpop.f32.mrf.mxu0
        %v8985 = vadd.f32 0.0, %v8984
        %8986 = vmatmul.bf16.gmra.mxu0 %v8917
        %v8987 = vpop.f32.mrf.mxu0
        %v8988 = vadd.f32 0.0, %v8987
        %v8989 = vpop.f32.mrf.mxu0
        %v8990 = vadd.f32 0.0, %v8989
        %8991 = vmatmul.bf16.gmra.mxu0 %v8920
        %v8992 = vpop.f32.mrf.mxu0
        %v8993 = vadd.f32 0.0, %v8992
        %v8994 = vpop.f32.mrf.mxu0
        %v8995 = vadd.f32 0.0, %v8994
        %8996 = vmatmul.bf16.gmra.mxu0 %v8923
        %v8997 = vpop.f32.mrf.mxu0
        %v8998 = vadd.f32 0.0, %v8997
        %v8999 = vpop.f32.mrf.mxu0
        %v9000 = vadd.f32 0.0, %v8999
        %9001 = vmatmul.bf16.gmra.mxu0 %v8926
        %v9002 = vpop.f32.mrf.mxu0
        %v9003 = vadd.f32 0.0, %v9002
        %v9004 = vpop.f32.mrf.mxu0
        %v9005 = vadd.f32 0.0, %v9004
        %9006 = vmatmul.bf16.gmra.mxu0 %v8929
        %v9007 = vpop.f32.mrf.mxu0
        %v9008 = vadd.f32 0.0, %v9007
        %v9009 = vpop.f32.mrf.mxu0
        %v9010 = vadd.f32 0.0, %v9009
        %9011 = vmatmul.bf16.gmra.mxu0 %v8932
        %v9012 = vpop.f32.mrf.mxu0
        %v9013 = vadd.f32 0.0, %v9012
        %v9014 = vpop.f32.mrf.mxu0
        %v9015 = vadd.f32 0.0, %v9014
        %9016 = vmatmul.bf16.gmra.mxu0 %v8935
        %v9017 = vpop.f32.mrf.mxu0
        %v9018 = vadd.f32 0.0, %v9017
        %v9019 = vpop.f32.mrf.mxu0
        %v9020 = vadd.f32 0.0, %v9019
        %9021 = vmatmul.bf16.gmra.mxu0 %v8938
        %v9022 = vpop.f32.mrf.mxu0
        %v9023 = vadd.f32 0.0, %v9022
        %v9024 = vpop.f32.mrf.mxu0
        %v9025 = vadd.f32 0.0, %v9024
        %9026 = vmatmul.bf16.gmra.mxu0 %v8941
        %v9027 = vpop.f32.mrf.mxu0
        %v9028 = vadd.f32 0.0, %v9027
        %v9029 = vpop.f32.mrf.mxu0
        %v9030 = vadd.f32 0.0, %v9029
        %9031 = vdwg.mxu0
        %v9032 = vadd.f32 %v8718, %v8953
        %v9033 = vadd.f32 %v8719, %v8955
        %v9034 = vadd.f32 %v8720, %v8958
        %v9035 = vadd.f32 %v8721, %v8960
        %v9036 = vadd.f32 %v8722, %v8963
        %v9037 = vadd.f32 %v8723, %v8965
        %v9038 = vadd.f32 %v8724, %v8968
        %v9039 = vadd.f32 %v8725, %v8970
        %v9040 = vadd.f32 %v8726, %v8973
        %v9041 = vadd.f32 %v8727, %v8975
        %v9042 = vadd.f32 %v8728, %v8978
        %v9043 = vadd.f32 %v8729, %v8980
        %v9044 = vadd.f32 %v8730, %v8983
        %v9045 = vadd.f32 %v8731, %v8985
        %v9046 = vadd.f32 %v8732, %v8988
        %v9047 = vadd.f32 %v8733, %v8990
        %v9048 = vadd.f32 %v8734, %v8993
        %v9049 = vadd.f32 %v8735, %v8995
        %v9050 = vadd.f32 %v8736, %v8998
        %v9051 = vadd.f32 %v8737, %v9000
        %v9052 = vadd.f32 %v8738, %v9003
        %v9053 = vadd.f32 %v8739, %v9005
        %v9054 = vadd.f32 %v8740, %v9008
        %v9055 = vadd.f32 %v8741, %v9010
        %v9056 = vadd.f32 %v8742, %v9013
        %v9057 = vadd.f32 %v8743, %v9015
        %v9058 = vadd.f32 %v8744, %v9018
        %v9059 = vadd.f32 %v8745, %v9020
        %v9060 = vadd.f32 %v8746, %v9023
        %v9061 = vadd.f32 %v8747, %v9025
        %v9062 = vadd.f32 %v8748, %v9028
        %v9063 = vadd.f32 %v8749, %v9030
        %v9064 = vld [vmem:[%s8750] sm:$0xf]
        %v9065 = vld [vmem:[%s8750 + $0x4] sm:$0xf]
        %v9066 = vld [vmem:[%s8750 + $0x8] sm:$0x1]
        %v9067 = vld [vmem:[%s8750 + $0xc] sm:$0xf]
        %v9068 = vld [vmem:[%s8750 + $0x10] sm:$0xf]
        %v9069 = vld [vmem:[%s8750 + $0x14] sm:$0x1]
        %v9070 = vld [vmem:[%s8750 + $0x18] sm:$0xf]
        %v9071 = vld [vmem:[%s8750 + $0x1c] sm:$0xf]
        %v9072 = vld [vmem:[%s8750 + $0x20] sm:$0x1]
        %v9073 = vld [vmem:[%s8750 + $0x24] sm:$0xf]
        %v9074 = vld [vmem:[%s8750 + $0x28] sm:$0xf]
        %v9075 = vld [vmem:[%s8750 + $0x2c] sm:$0x1]
        %v9076 = vld [vmem:[%s8750 + $0x30] sm:$0xf]
        %v9077 = vld [vmem:[%s8750 + $0x34] sm:$0xf]
        %v9078 = vld [vmem:[%s8750 + $0x38] sm:$0x1]
        %v9079 = vld [vmem:[%s8750 + $0x3c] sm:$0xf]
        %v9080 = vld [vmem:[%s8750 + $0x40] sm:$0xf]
        %v9081 = vld [vmem:[%s8750 + $0x44] sm:$0x1]
        %v9082 = vld [vmem:[%s8750 + $0x48] sm:$0xf]
        %v9083 = vld [vmem:[%s8750 + $0x4c] sm:$0xf]
        %v9084 = vld [vmem:[%s8750 + $0x50] sm:$0x1]
        %v9085 = vld [vmem:[%s8750 + $0x54] sm:$0xf]
        %v9086 = vld [vmem:[%s8750 + $0x58] sm:$0xf]
        %v9087 = vld [vmem:[%s8750 + $0x5c] sm:$0x1]
        %v9088 = vld [vmem:[%s8750 + $0x60] sm:$0xf]
        %v9089 = vld [vmem:[%s8750 + $0x64] sm:$0xf]
        %v9090 = vld [vmem:[%s8750 + $0x68] sm:$0x1]
        %v9091 = vld [vmem:[%s8750 + $0x6c] sm:$0xf]
        %v9092 = vld [vmem:[%s8750 + $0x70] sm:$0xf]
        %v9093 = vld [vmem:[%s8750 + $0x74] sm:$0x1]
        %v9094 = vld [vmem:[%s8750 + $0x78] sm:$0xf]
        %v9095 = vld [vmem:[%s8750 + $0x7c] sm:$0xf]
        %v9096 = vld [vmem:[%s8750 + $0x80] sm:$0x1]
        %v9097 = vld [vmem:[%s8750 + $0x84] sm:$0xf]
        %v9098 = vld [vmem:[%s8750 + $0x88] sm:$0xf]
        %v9099 = vld [vmem:[%s8750 + $0x8c] sm:$0x1]
        %v9100 = vld [vmem:[%s8750 + $0x90] sm:$0xf]
        %v9101 = vld [vmem:[%s8750 + $0x94] sm:$0xf]
        %v9102 = vld [vmem:[%s8750 + $0x98] sm:$0x1]
        %v9103 = vld [vmem:[%s8750 + $0x9c] sm:$0xf]
        %v9104 = vld [vmem:[%s8750 + $0xa0] sm:$0xf]
        %v9105 = vld [vmem:[%s8750 + $0xa4] sm:$0x1]
        %v9106 = vld [vmem:[%s8750 + $0xa8] sm:$0xf]
        %v9107 = vld [vmem:[%s8750 + $0xac] sm:$0xf]
        %v9108 = vld [vmem:[%s8750 + $0xb0] sm:$0x1]
        %v9109 = vld [vmem:[%s8750 + $0xb4] sm:$0xf]
        %v9110 = vld [vmem:[%s8750 + $0xb8] sm:$0xf]
        %v9111 = vld [vmem:[%s8750 + $0xbc] sm:$0x1]
        %v9113 = vshrl.u32 %v9064, 16
        %v9115 = vrot.slane %v9113, 4
        %v9116 = vshll.u32 %v9064, 16
        %v9118 = vrot.slane %v9116, 5
        %v9119 = vor.u32 %v9115, %v9118
        %v9120 = vrot.slane %v9119, 4
        %v9122 = vshll.u32 %v9065, 16
        %v9124 = vrot.slane %v9122, 5
        %v9125 = vsel %vm1635, %v9120, %v9124
        %v9126 = vshrl.u32 %v9065, 16
        %v9128 = vrot.slane %v9126, 4
        %v9129 = vor.u32 %v9128, %v9124
        %v9130 = vrot.slane %v9129, 4
        %v9132 = vshll.u32 %v9066, 16
        %v9134 = vrot.slane %v9132, 5
        %v9135 = vsel %vm1635, %v9130, %v9134
        %v9137 = vshrl.u32 %v9067, 16
        %v9139 = vrot.slane %v9137, 4
        %v9140 = vshll.u32 %v9067, 16
        %v9142 = vrot.slane %v9140, 5
        %v9143 = vor.u32 %v9139, %v9142
        %v9144 = vrot.slane %v9143, 4
        %v9146 = vshll.u32 %v9068, 16
        %v9148 = vrot.slane %v9146, 5
        %v9149 = vsel %vm1635, %v9144, %v9148
        %v9150 = vshrl.u32 %v9068, 16
        %v9152 = vrot.slane %v9150, 4
        %v9153 = vor.u32 %v9152, %v9148
        %v9154 = vrot.slane %v9153, 4
        %v9156 = vshll.u32 %v9069, 16
        %v9158 = vrot.slane %v9156, 5
        %v9159 = vsel %vm1635, %v9154, %v9158
        %v9161 = vshrl.u32 %v9070, 16
        %v9163 = vrot.slane %v9161, 4
        %v9164 = vshll.u32 %v9070, 16
        %v9166 = vrot.slane %v9164, 5
        %v9167 = vor.u32 %v9163, %v9166
        %v9168 = vrot.slane %v9167, 4
        %v9170 = vshll.u32 %v9071, 16
        %v9172 = vrot.slane %v9170, 5
        %v9173 = vsel %vm1635, %v9168, %v9172
        %v9174 = vshrl.u32 %v9071, 16
        %v9176 = vrot.slane %v9174, 4
        %v9177 = vor.u32 %v9176, %v9172
        %v9178 = vrot.slane %v9177, 4
        %v9180 = vshll.u32 %v9072, 16
        %v9182 = vrot.slane %v9180, 5
        %v9183 = vsel %vm1635, %v9178, %v9182
        %v9185 = vshrl.u32 %v9073, 16
        %v9187 = vrot.slane %v9185, 4
        %v9188 = vshll.u32 %v9073, 16
        %v9190 = vrot.slane %v9188, 5
        %v9191 = vor.u32 %v9187, %v9190
        %v9192 = vrot.slane %v9191, 4
        %v9194 = vshll.u32 %v9074, 16
        %v9196 = vrot.slane %v9194, 5
        %v9197 = vsel %vm1635, %v9192, %v9196
        %v9198 = vshrl.u32 %v9074, 16
        %v9200 = vrot.slane %v9198, 4
        %v9201 = vor.u32 %v9200, %v9196
        %v9202 = vrot.slane %v9201, 4
        %v9204 = vshll.u32 %v9075, 16
        %v9206 = vrot.slane %v9204, 5
        %v9207 = vsel %vm1635, %v9202, %v9206
        %v9209 = vshrl.u32 %v9076, 16
        %v9211 = vrot.slane %v9209, 4
        %v9212 = vshll.u32 %v9076, 16
        %v9214 = vrot.slane %v9212, 5
        %v9215 = vor.u32 %v9211, %v9214
        %v9216 = vrot.slane %v9215, 4
        %v9218 = vshll.u32 %v9077, 16
        %v9220 = vrot.slane %v9218, 5
        %v9221 = vsel %vm1635, %v9216, %v9220
        %v9222 = vshrl.u32 %v9077, 16
        %v9224 = vrot.slane %v9222, 4
        %v9225 = vor.u32 %v9224, %v9220
        %v9226 = vrot.slane %v9225, 4
        %v9228 = vshll.u32 %v9078, 16
        %v9230 = vrot.slane %v9228, 5
        %v9231 = vsel %vm1635, %v9226, %v9230
        %v9233 = vshrl.u32 %v9079, 16
        %v9235 = vrot.slane %v9233, 4
        %v9236 = vshll.u32 %v9079, 16
        %v9238 = vrot.slane %v9236, 5
        %v9239 = vor.u32 %v9235, %v9238
        %v9240 = vrot.slane %v9239, 4
        %v9242 = vshll.u32 %v9080, 16
        %v9244 = vrot.slane %v9242, 5
        %v9245 = vsel %vm1635, %v9240, %v9244
        %v9246 = vshrl.u32 %v9080, 16
        %v9248 = vrot.slane %v9246, 4
        %v9249 = vor.u32 %v9248, %v9244
        %v9250 = vrot.slane %v9249, 4
        %v9252 = vshll.u32 %v9081, 16
        %v9254 = vrot.slane %v9252, 5
        %v9255 = vsel %vm1635, %v9250, %v9254
        %v9257 = vshrl.u32 %v9082, 16
        %v9259 = vrot.slane %v9257, 4
        %v9260 = vshll.u32 %v9082, 16
        %v9262 = vrot.slane %v9260, 5
        %v9263 = vor.u32 %v9259, %v9262
        %v9264 = vrot.slane %v9263, 4
        %v9266 = vshll.u32 %v9083, 16
        %v9268 = vrot.slane %v9266, 5
        %v9269 = vsel %vm1635, %v9264, %v9268
        %v9270 = vshrl.u32 %v9083, 16
        %v9272 = vrot.slane %v9270, 4
        %v9273 = vor.u32 %v9272, %v9268
        %v9274 = vrot.slane %v9273, 4
        %v9276 = vshll.u32 %v9084, 16
        %v9278 = vrot.slane %v9276, 5
        %v9279 = vsel %vm1635, %v9274, %v9278
        %v9281 = vshrl.u32 %v9085, 16
        %v9283 = vrot.slane %v9281, 4
        %v9284 = vshll.u32 %v9085, 16
        %v9286 = vrot.slane %v9284, 5
        %v9287 = vor.u32 %v9283, %v9286
        %v9288 = vrot.slane %v9287, 4
        %v9290 = vshll.u32 %v9086, 16
        %v9292 = vrot.slane %v9290, 5
        %v9293 = vsel %vm1635, %v9288, %v9292
        %v9294 = vshrl.u32 %v9086, 16
        %v9296 = vrot.slane %v9294, 4
        %v9297 = vor.u32 %v9296, %v9292
        %v9298 = vrot.slane %v9297, 4
        %v9300 = vshll.u32 %v9087, 16
        %v9302 = vrot.slane %v9300, 5
        %v9303 = vsel %vm1635, %v9298, %v9302
        %v9305 = vshrl.u32 %v9088, 16
        %v9307 = vrot.slane %v9305, 4
        %v9308 = vshll.u32 %v9088, 16
        %v9310 = vrot.slane %v9308, 5
        %v9311 = vor.u32 %v9307, %v9310
        %v9312 = vrot.slane %v9311, 4
        %v9314 = vshll.u32 %v9089, 16
        %v9316 = vrot.slane %v9314, 5
        %v9317 = vsel %vm1635, %v9312, %v9316
        %v9318 = vshrl.u32 %v9089, 16
        %v9320 = vrot.slane %v9318, 4
        %v9321 = vor.u32 %v9320, %v9316
        %v9322 = vrot.slane %v9321, 4
        %v9324 = vshll.u32 %v9090, 16
        %v9326 = vrot.slane %v9324, 5
        %v9327 = vsel %vm1635, %v9322, %v9326
        %v9329 = vshrl.u32 %v9091, 16
        %v9331 = vrot.slane %v9329, 4
        %v9332 = vshll.u32 %v9091, 16
        %v9334 = vrot.slane %v9332, 5
        %v9335 = vor.u32 %v9331, %v9334
        %v9336 = vrot.slane %v9335, 4
        %v9338 = vshll.u32 %v9092, 16
        %v9340 = vrot.slane %v9338, 5
        %v9341 = vsel %vm1635, %v9336, %v9340
        %v9342 = vshrl.u32 %v9092, 16
        %v9344 = vrot.slane %v9342, 4
        %v9345 = vor.u32 %v9344, %v9340
        %v9346 = vrot.slane %v9345, 4
        %v9348 = vshll.u32 %v9093, 16
        %v9350 = vrot.slane %v9348, 5
        %v9351 = vsel %vm1635, %v9346, %v9350
        %v9353 = vshrl.u32 %v9094, 16
        %v9355 = vrot.slane %v9353, 4
        %v9356 = vshll.u32 %v9094, 16
        %v9358 = vrot.slane %v9356, 5
        %v9359 = vor.u32 %v9355, %v9358
        %v9360 = vrot.slane %v9359, 4
        %v9362 = vshll.u32 %v9095, 16
        %v9364 = vrot.slane %v9362, 5
        %v9365 = vsel %vm1635, %v9360, %v9364
        %v9366 = vshrl.u32 %v9095, 16
        %v9368 = vrot.slane %v9366, 4
        %v9369 = vor.u32 %v9368, %v9364
        %v9370 = vrot.slane %v9369, 4
        %v9372 = vshll.u32 %v9096, 16
        %v9374 = vrot.slane %v9372, 5
        %v9375 = vsel %vm1635, %v9370, %v9374
        %v9377 = vshrl.u32 %v9097, 16
        %v9379 = vrot.slane %v9377, 4
        %v9380 = vshll.u32 %v9097, 16
        %v9382 = vrot.slane %v9380, 5
        %v9383 = vor.u32 %v9379, %v9382
        %v9384 = vrot.slane %v9383, 4
        %v9386 = vshll.u32 %v9098, 16
        %v9388 = vrot.slane %v9386, 5
        %v9389 = vsel %vm1635, %v9384, %v9388
        %v9390 = vshrl.u32 %v9098, 16
        %v9392 = vrot.slane %v9390, 4
        %v9393 = vor.u32 %v9392, %v9388
        %v9394 = vrot.slane %v9393, 4
        %v9396 = vshll.u32 %v9099, 16
        %v9398 = vrot.slane %v9396, 5
        %v9399 = vsel %vm1635, %v9394, %v9398
        %v9401 = vshrl.u32 %v9100, 16
        %v9403 = vrot.slane %v9401, 4
        %v9404 = vshll.u32 %v9100, 16
        %v9406 = vrot.slane %v9404, 5
        %v9407 = vor.u32 %v9403, %v9406
        %v9408 = vrot.slane %v9407, 4
        %v9410 = vshll.u32 %v9101, 16
        %v9412 = vrot.slane %v9410, 5
        %v9413 = vsel %vm1635, %v9408, %v9412
        %v9414 = vshrl.u32 %v9101, 16
        %v9416 = vrot.slane %v9414, 4
        %v9417 = vor.u32 %v9416, %v9412
        %v9418 = vrot.slane %v9417, 4
        %v9420 = vshll.u32 %v9102, 16
        %v9422 = vrot.slane %v9420, 5
        %v9423 = vsel %vm1635, %v9418, %v9422
        %v9425 = vshrl.u32 %v9103, 16
        %v9427 = vrot.slane %v9425, 4
        %v9428 = vshll.u32 %v9103, 16
        %v9430 = vrot.slane %v9428, 5
        %v9431 = vor.u32 %v9427, %v9430
        %v9432 = vrot.slane %v9431, 4
        %v9434 = vshll.u32 %v9104, 16
        %v9436 = vrot.slane %v9434, 5
        %v9437 = vsel %vm1635, %v9432, %v9436
        %v9438 = vshrl.u32 %v9104, 16
        %v9440 = vrot.slane %v9438, 4
        %v9441 = vor.u32 %v9440, %v9436
        %v9442 = vrot.slane %v9441, 4
        %v9444 = vshll.u32 %v9105, 16
        %v9446 = vrot.slane %v9444, 5
        %v9447 = vsel %vm1635, %v9442, %v9446
        %v9449 = vshrl.u32 %v9106, 16
        %v9451 = vrot.slane %v9449, 4
        %v9452 = vshll.u32 %v9106, 16
        %v9454 = vrot.slane %v9452, 5
        %v9455 = vor.u32 %v9451, %v9454
        %v9456 = vrot.slane %v9455, 4
        %v9458 = vshll.u32 %v9107, 16
        %v9460 = vrot.slane %v9458, 5
        %v9461 = vsel %vm1635, %v9456, %v9460
        %v9462 = vshrl.u32 %v9107, 16
        %v9464 = vrot.slane %v9462, 4
        %v9465 = vor.u32 %v9464, %v9460
        %v9466 = vrot.slane %v9465, 4
        %v9468 = vshll.u32 %v9108, 16
        %v9470 = vrot.slane %v9468, 5
        %v9471 = vsel %vm1635, %v9466, %v9470
        %v9473 = vshrl.u32 %v9109, 16
        %v9475 = vrot.slane %v9473, 4
        %v9476 = vshll.u32 %v9109, 16
        %v9478 = vrot.slane %v9476, 5
        %v9479 = vor.u32 %v9475, %v9478
        %v9480 = vrot.slane %v9479, 4
        %v9482 = vshll.u32 %v9110, 16
        %v9484 = vrot.slane %v9482, 5
        %v9485 = vsel %vm1635, %v9480, %v9484
        %v9486 = vshrl.u32 %v9110, 16
        %v9488 = vrot.slane %v9486, 4
        %v9489 = vor.u32 %v9488, %v9484
        %v9490 = vrot.slane %v9489, 4
        %v9492 = vshll.u32 %v9111, 16
        %v9494 = vrot.slane %v9492, 5
        %v9495 = vsel %vm1635, %v9490, %v9494
        %v9496 = vld [vmem:[%s5 + $0xe0] sm:$0xf]
        %v9497 = vld [vmem:[%s5 + $0xe4] sm:$0xf]
        %v9498 = vld [vmem:[%s5 + $0xe8] sm:$0xf]
        %v9499 = vld [vmem:[%s5 + $0xec] sm:$0xf]
        %v9500 = vld [vmem:[%s5 + $0xf0] sm:$0xf]
        %v9501 = vld [vmem:[%s5 + $0xf4] sm:$0xf]
        %v9502 = vld [vmem:[%s5 + $0xf8] sm:$0xf]
        %v9503 = vld [vmem:[%s5 + $0xfc] sm:$0xf]
        %v9504 = vunpack.c.l.b16 %v9125
        %v9505 = vunpack.c.l.b16 %v9135
        %v9506 = vunpack.c.l.b16 %v9149
        %v9507 = vunpack.c.l.b16 %v9159
        %v9508 = vunpack.c.l.b16 %v9173
        %v9509 = vunpack.c.l.b16 %v9183
        %v9510 = vunpack.c.l.b16 %v9197
        %v9511 = vunpack.c.l.b16 %v9207
        %v9512 = vunpack.c.l.b16 %v9221
        %v9513 = vunpack.c.l.b16 %v9231
        %v9514 = vunpack.c.l.b16 %v9245
        %v9515 = vunpack.c.l.b16 %v9255
        %v9516 = vunpack.c.l.b16 %v9269
        %v9517 = vunpack.c.l.b16 %v9279
        %v9518 = vunpack.c.l.b16 %v9293
        %v9519 = vunpack.c.l.b16 %v9303
        %v9520 = vunpack.c.l.b16 %v9317
        %v9521 = vunpack.c.l.b16 %v9327
        %v9522 = vunpack.c.l.b16 %v9341
        %v9523 = vunpack.c.l.b16 %v9351
        %v9524 = vunpack.c.l.b16 %v9365
        %v9525 = vunpack.c.l.b16 %v9375
        %v9526 = vunpack.c.l.b16 %v9389
        %v9527 = vunpack.c.l.b16 %v9399
        %v9528 = vunpack.c.l.b16 %v9413
        %v9529 = vunpack.c.l.b16 %v9423
        %v9530 = vunpack.c.l.b16 %v9437
        %v9531 = vunpack.c.l.b16 %v9447
        %v9532 = vunpack.c.l.b16 %v9461
        %v9533 = vunpack.c.l.b16 %v9471
        %v9534 = vunpack.c.l.b16 %v9485
        %v9535 = vunpack.c.l.b16 %v9495
        %v9536 = vpack.c.b16 %v9505, %v9504
        %v9537 = vpack.c.b16 %v9507, %v9506
        %v9538 = vpack.c.b16 %v9509, %v9508
        %v9539 = vpack.c.b16 %v9511, %v9510
        %v9540 = vpack.c.b16 %v9513, %v9512
        %v9541 = vpack.c.b16 %v9515, %v9514
        %v9542 = vpack.c.b16 %v9517, %v9516
        %v9543 = vpack.c.b16 %v9519, %v9518
        %v9544 = vpack.c.b16 %v9521, %v9520
        %v9545 = vpack.c.b16 %v9523, %v9522
        %v9546 = vpack.c.b16 %v9525, %v9524
        %v9547 = vpack.c.b16 %v9527, %v9526
        %v9548 = vpack.c.b16 %v9529, %v9528
        %v9549 = vpack.c.b16 %v9531, %v9530
        %v9550 = vpack.c.b16 %v9533, %v9532
        %v9551 = vpack.c.b16 %v9535, %v9534
        %v9560 = vunpack.c.l.b16 %v9496
        %v9561 = vunpack.c.l.b16 %v9497
        %v9562 = vunpack.c.l.b16 %v9498
        %v9563 = vunpack.c.l.b16 %v9499
        %v9564 = vunpack.c.l.b16 %v9500
        %v9565 = vunpack.c.l.b16 %v9501
        %v9566 = vunpack.c.l.b16 %v9502
        %v9567 = vunpack.c.l.b16 %v9503
        %v9568 = vpack.c.b16 %v9561, %v9560
        %v9569 = vpack.c.b16 %v9563, %v9562
        %v9570 = vpack.c.b16 %v9565, %v9564
        %v9571 = vpack.c.b16 %v9567, %v9566
        %v9577 = vsel %vm6055, %v9536, 0
        %v9580 = vsel %vm6055, %v9537, 0
        %v9583 = vsel %vm6055, %v9538, 0
        %v9586 = vsel %vm6055, %v9539, 0
        %v9589 = vsel %vm6055, %v9540, 0
        %v9592 = vsel %vm6055, %v9541, 0
        %v9595 = vsel %vm6055, %v9542, 0
        %v9598 = vsel %vm6055, %v9543, 0
        %v9601 = vsel %vm6055, %v9544, 0
        %v9604 = vsel %vm6055, %v9545, 0
        %v9607 = vsel %vm6055, %v9546, 0
        %v9610 = vsel %vm6055, %v9547, 0
        %v9613 = vsel %vm6055, %v9548, 0
        %v9616 = vsel %vm6055, %v9549, 0
        %v9619 = vsel %vm6055, %v9550, 0
        %v9622 = vsel %vm6055, %v9551, 0
        %9624 = vmatpush.bf16.msra.mxu0 0
        %9625 = vmatpush.bf16.msra.mxu0 0
        %9626 = vmatpush.bf16.msra.mxu0 0
        %9627 = vmatpush.bf16.msra.mxu0 0
        %9628 = vmatpush.bf16.msra.mxu0 %v9571
        %9629 = vmatpush.bf16.msra.mxu0 %v9570
        %9630 = vmatpush.bf16.msra.mxu0 %v9569
        %9631 = vmatpush.bf16.msra.mxu0 %v9568
        %9632 = vmatmul.bf16.gmra.mxu0 %v9577
        %v9633 = vpop.f32.mrf.mxu0
        %v9634 = vadd.f32 0.0, %v9633
        %v9635 = vpop.f32.mrf.mxu0
        %v9636 = vadd.f32 0.0, %v9635
        %9637 = vmatmul.bf16.gmra.mxu0 %v9580
        %v9638 = vpop.f32.mrf.mxu0
        %v9639 = vadd.f32 0.0, %v9638
        %v9640 = vpop.f32.mrf.mxu0
        %v9641 = vadd.f32 0.0, %v9640
        %9642 = vmatmul.bf16.gmra.mxu0 %v9583
        %v9643 = vpop.f32.mrf.mxu0
        %v9644 = vadd.f32 0.0, %v9643
        %v9645 = vpop.f32.mrf.mxu0
        %v9646 = vadd.f32 0.0, %v9645
        %9647 = vmatmul.bf16.gmra.mxu0 %v9586
        %v9648 = vpop.f32.mrf.mxu0
        %v9649 = vadd.f32 0.0, %v9648
        %v9650 = vpop.f32.mrf.mxu0
        %v9651 = vadd.f32 0.0, %v9650
        %9652 = vmatmul.bf16.gmra.mxu0 %v9589
        %v9653 = vpop.f32.mrf.mxu0
        %v9654 = vadd.f32 0.0, %v9653
        %v9655 = vpop.f32.mrf.mxu0
        %v9656 = vadd.f32 0.0, %v9655
        %9657 = vmatmul.bf16.gmra.mxu0 %v9592
        %v9658 = vpop.f32.mrf.mxu0
        %v9659 = vadd.f32 0.0, %v9658
        %v9660 = vpop.f32.mrf.mxu0
        %v9661 = vadd.f32 0.0, %v9660
        %9662 = vmatmul.bf16.gmra.mxu0 %v9595
        %v9663 = vpop.f32.mrf.mxu0
        %v9664 = vadd.f32 0.0, %v9663
        %v9665 = vpop.f32.mrf.mxu0
        %v9666 = vadd.f32 0.0, %v9665
        %9667 = vmatmul.bf16.gmra.mxu0 %v9598
        %v9668 = vpop.f32.mrf.mxu0
        %v9669 = vadd.f32 0.0, %v9668
        %v9670 = vpop.f32.mrf.mxu0
        %v9671 = vadd.f32 0.0, %v9670
        %9672 = vmatmul.bf16.gmra.mxu0 %v9601
        %v9673 = vpop.f32.mrf.mxu0
        %v9674 = vadd.f32 0.0, %v9673
        %v9675 = vpop.f32.mrf.mxu0
        %v9676 = vadd.f32 0.0, %v9675
        %9677 = vmatmul.bf16.gmra.mxu0 %v9604
        %v9678 = vpop.f32.mrf.mxu0
        %v9679 = vadd.f32 0.0, %v9678
        %v9680 = vpop.f32.mrf.mxu0
        %v9681 = vadd.f32 0.0, %v9680
        %9682 = vmatmul.bf16.gmra.mxu0 %v9607
        %v9683 = vpop.f32.mrf.mxu0
        %v9684 = vadd.f32 0.0, %v9683
        %v9685 = vpop.f32.mrf.mxu0
        %v9686 = vadd.f32 0.0, %v9685
        %9687 = vmatmul.bf16.gmra.mxu0 %v9610
        %v9688 = vpop.f32.mrf.mxu0
        %v9689 = vadd.f32 0.0, %v9688
        %v9690 = vpop.f32.mrf.mxu0
        %v9691 = vadd.f32 0.0, %v9690
        %9692 = vmatmul.bf16.gmra.mxu0 %v9613
        %v9693 = vpop.f32.mrf.mxu0
        %v9694 = vadd.f32 0.0, %v9693
        %v9695 = vpop.f32.mrf.mxu0
        %v9696 = vadd.f32 0.0, %v9695
        %9697 = vmatmul.bf16.gmra.mxu0 %v9616
        %v9698 = vpop.f32.mrf.mxu0
        %v9699 = vadd.f32 0.0, %v9698
        %v9700 = vpop.f32.mrf.mxu0
        %v9701 = vadd.f32 0.0, %v9700
        %9702 = vmatmul.bf16.gmra.mxu0 %v9619
        %v9703 = vpop.f32.mrf.mxu0
        %v9704 = vadd.f32 0.0, %v9703
        %v9705 = vpop.f32.mrf.mxu0
        %v9706 = vadd.f32 0.0, %v9705
        %9707 = vmatmul.bf16.gmra.mxu0 %v9622
        %v9708 = vpop.f32.mrf.mxu0
        %v9709 = vadd.f32 0.0, %v9708
        %v9710 = vpop.f32.mrf.mxu0
        %v9711 = vadd.f32 0.0, %v9710
        %9712 = vdwg.mxu0
        %v9713 = vadd.f32 %v9032, %v9634
        %v9714 = vadd.f32 %v9033, %v9636
        %v9715 = vadd.f32 %v9034, %v9639
        %v9716 = vadd.f32 %v9035, %v9641
        %v9717 = vadd.f32 %v9036, %v9644
        %v9718 = vadd.f32 %v9037, %v9646
        %v9719 = vadd.f32 %v9038, %v9649
        %v9720 = vadd.f32 %v9039, %v9651
        %v9721 = vadd.f32 %v9040, %v9654
        %v9722 = vadd.f32 %v9041, %v9656
        %v9723 = vadd.f32 %v9042, %v9659
        %v9724 = vadd.f32 %v9043, %v9661
        %v9725 = vadd.f32 %v9044, %v9664
        %v9726 = vadd.f32 %v9045, %v9666
        %v9727 = vadd.f32 %v9046, %v9669
        %v9728 = vadd.f32 %v9047, %v9671
        %v9729 = vadd.f32 %v9048, %v9674
        %v9730 = vadd.f32 %v9049, %v9676
        %v9731 = vadd.f32 %v9050, %v9679
        %v9732 = vadd.f32 %v9051, %v9681
        %v9733 = vadd.f32 %v9052, %v9684
        %v9734 = vadd.f32 %v9053, %v9686
        %v9735 = vadd.f32 %v9054, %v9689
        %v9736 = vadd.f32 %v9055, %v9691
        %v9737 = vadd.f32 %v9056, %v9694
        %v9738 = vadd.f32 %v9057, %v9696
        %v9739 = vadd.f32 %v9058, %v9699
        %v9740 = vadd.f32 %v9059, %v9701
        %v9741 = vadd.f32 %v9060, %v9704
        %v9742 = vadd.f32 %v9061, %v9706
        %v9743 = vadd.f32 %v9062, %v9709
        %v9744 = vadd.f32 %v9063, %v9711
        %v9745 = vld [vmem:[%s8750] sm:$0xe]
        %v9746 = vld [vmem:[%s8750 + $0xc] sm:$0xe]
        %v9747 = vld [vmem:[%s8750 + $0x18] sm:$0xe]
        %v9748 = vld [vmem:[%s8750 + $0x24] sm:$0xe]
        %v9749 = vld [vmem:[%s8750 + $0x30] sm:$0xe]
        %v9750 = vld [vmem:[%s8750 + $0x3c] sm:$0xe]
        %v9751 = vld [vmem:[%s8750 + $0x48] sm:$0xe]
        %v9752 = vld [vmem:[%s8750 + $0x54] sm:$0xe]
        %v9753 = vld [vmem:[%s8750 + $0x60] sm:$0xe]
        %v9754 = vld [vmem:[%s8750 + $0x6c] sm:$0xe]
        %v9755 = vld [vmem:[%s8750 + $0x78] sm:$0xe]
        %v9756 = vld [vmem:[%s8750 + $0x84] sm:$0xe]
        %v9757 = vld [vmem:[%s8750 + $0x90] sm:$0xe]
        %v9758 = vld [vmem:[%s8750 + $0x9c] sm:$0xe]
        %v9759 = vld [vmem:[%s8750 + $0xa8] sm:$0xe]
        %v9760 = vld [vmem:[%s8750 + $0xb4] sm:$0xe]
        %v9809 = vrot.slane %v9745, 5
        %v9810 = vrot.slane %v9809, 4
        %v9811 = vrot.slane %v9065, 5
        %v9812 = vsel %vm2319, %v9810, %v9811
        %v9813 = vrot.slane %v9811, 4
        %v9814 = vrot.slane %v9066, 5
        %v9815 = vsel %vm2319, %v9813, %v9814
        %v9816 = vrot.slane %v9746, 5
        %v9817 = vrot.slane %v9816, 4
        %v9818 = vrot.slane %v9068, 5
        %v9819 = vsel %vm2319, %v9817, %v9818
        %v9820 = vrot.slane %v9818, 4
        %v9821 = vrot.slane %v9069, 5
        %v9822 = vsel %vm2319, %v9820, %v9821
        %v9823 = vrot.slane %v9747, 5
        %v9824 = vrot.slane %v9823, 4
        %v9825 = vrot.slane %v9071, 5
        %v9826 = vsel %vm2319, %v9824, %v9825
        %v9827 = vrot.slane %v9825, 4
        %v9828 = vrot.slane %v9072, 5
        %v9829 = vsel %vm2319, %v9827, %v9828
        %v9830 = vrot.slane %v9748, 5
        %v9831 = vrot.slane %v9830, 4
        %v9832 = vrot.slane %v9074, 5
        %v9833 = vsel %vm2319, %v9831, %v9832
        %v9834 = vrot.slane %v9832, 4
        %v9835 = vrot.slane %v9075, 5
        %v9836 = vsel %vm2319, %v9834, %v9835
        %v9837 = vrot.slane %v9749, 5
        %v9838 = vrot.slane %v9837, 4
        %v9839 = vrot.slane %v9077, 5
        %v9840 = vsel %vm2319, %v9838, %v9839
        %v9841 = vrot.slane %v9839, 4
        %v9842 = vrot.slane %v9078, 5
        %v9843 = vsel %vm2319, %v9841, %v9842
        %v9844 = vrot.slane %v9750, 5
        %v9845 = vrot.slane %v9844, 4
        %v9846 = vrot.slane %v9080, 5
        %v9847 = vsel %vm2319, %v9845, %v9846
        %v9848 = vrot.slane %v9846, 4
        %v9849 = vrot.slane %v9081, 5
        %v9850 = vsel %vm2319, %v9848, %v9849
        %v9851 = vrot.slane %v9751, 5
        %v9852 = vrot.slane %v9851, 4
        %v9853 = vrot.slane %v9083, 5
        %v9854 = vsel %vm2319, %v9852, %v9853
        %v9855 = vrot.slane %v9853, 4
        %v9856 = vrot.slane %v9084, 5
        %v9857 = vsel %vm2319, %v9855, %v9856
        %v9858 = vrot.slane %v9752, 5
        %v9859 = vrot.slane %v9858, 4
        %v9860 = vrot.slane %v9086, 5
        %v9861 = vsel %vm2319, %v9859, %v9860
        %v9862 = vrot.slane %v9860, 4
        %v9863 = vrot.slane %v9087, 5
        %v9864 = vsel %vm2319, %v9862, %v9863
        %v9865 = vrot.slane %v9753, 5
        %v9866 = vrot.slane %v9865, 4
        %v9867 = vrot.slane %v9089, 5
        %v9868 = vsel %vm2319, %v9866, %v9867
        %v9869 = vrot.slane %v9867, 4
        %v9870 = vrot.slane %v9090, 5
        %v9871 = vsel %vm2319, %v9869, %v9870
        %v9872 = vrot.slane %v9754, 5
        %v9873 = vrot.slane %v9872, 4
        %v9874 = vrot.slane %v9092, 5
        %v9875 = vsel %vm2319, %v9873, %v9874
        %v9876 = vrot.slane %v9874, 4
        %v9877 = vrot.slane %v9093, 5
        %v9878 = vsel %vm2319, %v9876, %v9877
        %v9879 = vrot.slane %v9755, 5
        %v9880 = vrot.slane %v9879, 4
        %v9881 = vrot.slane %v9095, 5
        %v9882 = vsel %vm2319, %v9880, %v9881
        %v9883 = vrot.slane %v9881, 4
        %v9884 = vrot.slane %v9096, 5
        %v9885 = vsel %vm2319, %v9883, %v9884
        %v9886 = vrot.slane %v9756, 5
        %v9887 = vrot.slane %v9886, 4
        %v9888 = vrot.slane %v9098, 5
        %v9889 = vsel %vm2319, %v9887, %v9888
        %v9890 = vrot.slane %v9888, 4
        %v9891 = vrot.slane %v9099, 5
        %v9892 = vsel %vm2319, %v9890, %v9891
        %v9893 = vrot.slane %v9757, 5
        %v9894 = vrot.slane %v9893, 4
        %v9895 = vrot.slane %v9101, 5
        %v9896 = vsel %vm2319, %v9894, %v9895
        %v9897 = vrot.slane %v9895, 4
        %v9898 = vrot.slane %v9102, 5
        %v9899 = vsel %vm2319, %v9897, %v9898
        %v9900 = vrot.slane %v9758, 5
        %v9901 = vrot.slane %v9900, 4
        %v9902 = vrot.slane %v9104, 5
        %v9903 = vsel %vm2319, %v9901, %v9902
        %v9904 = vrot.slane %v9902, 4
        %v9905 = vrot.slane %v9105, 5
        %v9906 = vsel %vm2319, %v9904, %v9905
        %v9907 = vrot.slane %v9759, 5
        %v9908 = vrot.slane %v9907, 4
        %v9909 = vrot.slane %v9107, 5
        %v9910 = vsel %vm2319, %v9908, %v9909
        %v9911 = vrot.slane %v9909, 4
        %v9912 = vrot.slane %v9108, 5
        %v9913 = vsel %vm2319, %v9911, %v9912
        %v9914 = vrot.slane %v9760, 5
        %v9915 = vrot.slane %v9914, 4
        %v9916 = vrot.slane %v9110, 5
        %v9917 = vsel %vm2319, %v9915, %v9916
        %v9918 = vrot.slane %v9916, 4
        %v9919 = vrot.slane %v9111, 5
        %v9920 = vsel %vm2319, %v9918, %v9919
        %v9921 = vld [vmem:[%s5 + $0x100] sm:$0xf]
        %v9922 = vld [vmem:[%s5 + $0x104] sm:$0xf]
        %v9923 = vld [vmem:[%s5 + $0x108] sm:$0xf]
        %v9924 = vld [vmem:[%s5 + $0x10c] sm:$0xf]
        %v9925 = vld [vmem:[%s5 + $0x110] sm:$0xf]
        %v9926 = vld [vmem:[%s5 + $0x114] sm:$0xf]
        %v9927 = vld [vmem:[%s5 + $0x118] sm:$0xf]
        %v9928 = vld [vmem:[%s5 + $0x11c] sm:$0xf]
        %v9929 = vunpack.c.l.b16 %v9812
        %v9930 = vunpack.c.l.b16 %v9815
        %v9931 = vunpack.c.l.b16 %v9819
        %v9932 = vunpack.c.l.b16 %v9822
        %v9933 = vunpack.c.l.b16 %v9826
        %v9934 = vunpack.c.l.b16 %v9829
        %v9935 = vunpack.c.l.b16 %v9833
        %v9936 = vunpack.c.l.b16 %v9836
        %v9937 = vunpack.c.l.b16 %v9840
        %v9938 = vunpack.c.l.b16 %v9843
        %v9939 = vunpack.c.l.b16 %v9847
        %v9940 = vunpack.c.l.b16 %v9850
        %v9941 = vunpack.c.l.b16 %v9854
        %v9942 = vunpack.c.l.b16 %v9857
        %v9943 = vunpack.c.l.b16 %v9861
        %v9944 = vunpack.c.l.b16 %v9864
        %v9945 = vunpack.c.l.b16 %v9868
        %v9946 = vunpack.c.l.b16 %v9871
        %v9947 = vunpack.c.l.b16 %v9875
        %v9948 = vunpack.c.l.b16 %v9878
        %v9949 = vunpack.c.l.b16 %v9882
        %v9950 = vunpack.c.l.b16 %v9885
        %v9951 = vunpack.c.l.b16 %v9889
        %v9952 = vunpack.c.l.b16 %v9892
        %v9953 = vunpack.c.l.b16 %v9896
        %v9954 = vunpack.c.l.b16 %v9899
        %v9955 = vunpack.c.l.b16 %v9903
        %v9956 = vunpack.c.l.b16 %v9906
        %v9957 = vunpack.c.l.b16 %v9910
        %v9958 = vunpack.c.l.b16 %v9913
        %v9959 = vunpack.c.l.b16 %v9917
        %v9960 = vunpack.c.l.b16 %v9920
        %v9961 = vpack.c.b16 %v9930, %v9929
        %v9962 = vpack.c.b16 %v9932, %v9931
        %v9963 = vpack.c.b16 %v9934, %v9933
        %v9964 = vpack.c.b16 %v9936, %v9935
        %v9965 = vpack.c.b16 %v9938, %v9937
        %v9966 = vpack.c.b16 %v9940, %v9939
        %v9967 = vpack.c.b16 %v9942, %v9941
        %v9968 = vpack.c.b16 %v9944, %v9943
        %v9969 = vpack.c.b16 %v9946, %v9945
        %v9970 = vpack.c.b16 %v9948, %v9947
        %v9971 = vpack.c.b16 %v9950, %v9949
        %v9972 = vpack.c.b16 %v9952, %v9951
        %v9973 = vpack.c.b16 %v9954, %v9953
        %v9974 = vpack.c.b16 %v9956, %v9955
        %v9975 = vpack.c.b16 %v9958, %v9957
        %v9976 = vpack.c.b16 %v9960, %v9959
        %v9985 = vunpack.c.l.b16 %v9921
        %v9986 = vunpack.c.l.b16 %v9922
        %v9987 = vunpack.c.l.b16 %v9923
        %v9988 = vunpack.c.l.b16 %v9924
        %v9989 = vunpack.c.l.b16 %v9925
        %v9990 = vunpack.c.l.b16 %v9926
        %v9991 = vunpack.c.l.b16 %v9927
        %v9992 = vunpack.c.l.b16 %v9928
        %v9993 = vpack.c.b16 %v9986, %v9985
        %v9994 = vpack.c.b16 %v9988, %v9987
        %v9995 = vpack.c.b16 %v9990, %v9989
        %v9996 = vpack.c.b16 %v9992, %v9991
        %v10002 = vsel %vm6055, %v9961, 0
        %v10005 = vsel %vm6055, %v9962, 0
        %v10008 = vsel %vm6055, %v9963, 0
        %v10011 = vsel %vm6055, %v9964, 0
        %v10014 = vsel %vm6055, %v9965, 0
        %v10017 = vsel %vm6055, %v9966, 0
        %v10020 = vsel %vm6055, %v9967, 0
        %v10023 = vsel %vm6055, %v9968, 0
        %v10026 = vsel %vm6055, %v9969, 0
        %v10029 = vsel %vm6055, %v9970, 0
        %v10032 = vsel %vm6055, %v9971, 0
        %v10035 = vsel %vm6055, %v9972, 0
        %v10038 = vsel %vm6055, %v9973, 0
        %v10041 = vsel %vm6055, %v9974, 0
        %v10044 = vsel %vm6055, %v9975, 0
        %v10047 = vsel %vm6055, %v9976, 0
        %10049 = vmatpush.bf16.msra.mxu0 0
        %10050 = vmatpush.bf16.msra.mxu0 0
        %10051 = vmatpush.bf16.msra.mxu0 0
        %10052 = vmatpush.bf16.msra.mxu0 0
        %10053 = vmatpush.bf16.msra.mxu0 %v9996
        %10054 = vmatpush.bf16.msra.mxu0 %v9995
        %10055 = vmatpush.bf16.msra.mxu0 %v9994
        %10056 = vmatpush.bf16.msra.mxu0 %v9993
        %10057 = vmatmul.bf16.gmra.mxu0 %v10002
        %v10058 = vpop.f32.mrf.mxu0
        %v10059 = vadd.f32 0.0, %v10058
        %v10060 = vpop.f32.mrf.mxu0
        %v10061 = vadd.f32 0.0, %v10060
        %10062 = vmatmul.bf16.gmra.mxu0 %v10005
        %v10063 = vpop.f32.mrf.mxu0
        %v10064 = vadd.f32 0.0, %v10063
        %v10065 = vpop.f32.mrf.mxu0
        %v10066 = vadd.f32 0.0, %v10065
        %10067 = vmatmul.bf16.gmra.mxu0 %v10008
        %v10068 = vpop.f32.mrf.mxu0
        %v10069 = vadd.f32 0.0, %v10068
        %v10070 = vpop.f32.mrf.mxu0
        %v10071 = vadd.f32 0.0, %v10070
        %10072 = vmatmul.bf16.gmra.mxu0 %v10011
        %v10073 = vpop.f32.mrf.mxu0
        %v10074 = vadd.f32 0.0, %v10073
        %v10075 = vpop.f32.mrf.mxu0
        %v10076 = vadd.f32 0.0, %v10075
        %10077 = vmatmul.bf16.gmra.mxu0 %v10014
        %v10078 = vpop.f32.mrf.mxu0
        %v10079 = vadd.f32 0.0, %v10078
        %v10080 = vpop.f32.mrf.mxu0
        %v10081 = vadd.f32 0.0, %v10080
        %10082 = vmatmul.bf16.gmra.mxu0 %v10017
        %v10083 = vpop.f32.mrf.mxu0
        %v10084 = vadd.f32 0.0, %v10083
        %v10085 = vpop.f32.mrf.mxu0
        %v10086 = vadd.f32 0.0, %v10085
        %10087 = vmatmul.bf16.gmra.mxu0 %v10020
        %v10088 = vpop.f32.mrf.mxu0
        %v10089 = vadd.f32 0.0, %v10088
        %v10090 = vpop.f32.mrf.mxu0
        %v10091 = vadd.f32 0.0, %v10090
        %10092 = vmatmul.bf16.gmra.mxu0 %v10023
        %v10093 = vpop.f32.mrf.mxu0
        %v10094 = vadd.f32 0.0, %v10093
        %v10095 = vpop.f32.mrf.mxu0
        %v10096 = vadd.f32 0.0, %v10095
        %10097 = vmatmul.bf16.gmra.mxu0 %v10026
        %v10098 = vpop.f32.mrf.mxu0
        %v10099 = vadd.f32 0.0, %v10098
        %v10100 = vpop.f32.mrf.mxu0
        %v10101 = vadd.f32 0.0, %v10100
        %10102 = vmatmul.bf16.gmra.mxu0 %v10029
        %v10103 = vpop.f32.mrf.mxu0
        %v10104 = vadd.f32 0.0, %v10103
        %v10105 = vpop.f32.mrf.mxu0
        %v10106 = vadd.f32 0.0, %v10105
        %10107 = vmatmul.bf16.gmra.mxu0 %v10032
        %v10108 = vpop.f32.mrf.mxu0
        %v10109 = vadd.f32 0.0, %v10108
        %v10110 = vpop.f32.mrf.mxu0
        %v10111 = vadd.f32 0.0, %v10110
        %10112 = vmatmul.bf16.gmra.mxu0 %v10035
        %v10113 = vpop.f32.mrf.mxu0
        %v10114 = vadd.f32 0.0, %v10113
        %v10115 = vpop.f32.mrf.mxu0
        %v10116 = vadd.f32 0.0, %v10115
        %10117 = vmatmul.bf16.gmra.mxu0 %v10038
        %v10118 = vpop.f32.mrf.mxu0
        %v10119 = vadd.f32 0.0, %v10118
        %v10120 = vpop.f32.mrf.mxu0
        %v10121 = vadd.f32 0.0, %v10120
        %10122 = vmatmul.bf16.gmra.mxu0 %v10041
        %v10123 = vpop.f32.mrf.mxu0
        %v10124 = vadd.f32 0.0, %v10123
        %v10125 = vpop.f32.mrf.mxu0
        %v10126 = vadd.f32 0.0, %v10125
        %10127 = vmatmul.bf16.gmra.mxu0 %v10044
        %v10128 = vpop.f32.mrf.mxu0
        %v10129 = vadd.f32 0.0, %v10128
        %v10130 = vpop.f32.mrf.mxu0
        %v10131 = vadd.f32 0.0, %v10130
        %10132 = vmatmul.bf16.gmra.mxu0 %v10047
        %v10133 = vpop.f32.mrf.mxu0
        %v10134 = vadd.f32 0.0, %v10133
        %v10135 = vpop.f32.mrf.mxu0
        %v10136 = vadd.f32 0.0, %v10135
        %10137 = vdwg.mxu0
        %v10138 = vadd.f32 %v9713, %v10059
        %v10139 = vadd.f32 %v9714, %v10061
        %v10140 = vadd.f32 %v9715, %v10064
        %v10141 = vadd.f32 %v9716, %v10066
        %v10142 = vadd.f32 %v9717, %v10069
        %v10143 = vadd.f32 %v9718, %v10071
        %v10144 = vadd.f32 %v9719, %v10074
        %v10145 = vadd.f32 %v9720, %v10076
        %v10146 = vadd.f32 %v9721, %v10079
        %v10147 = vadd.f32 %v9722, %v10081
        %v10148 = vadd.f32 %v9723, %v10084
        %v10149 = vadd.f32 %v9724, %v10086
        %v10150 = vadd.f32 %v9725, %v10089
        %v10151 = vadd.f32 %v9726, %v10091
        %v10152 = vadd.f32 %v9727, %v10094
        %v10153 = vadd.f32 %v9728, %v10096
        %v10154 = vadd.f32 %v9729, %v10099
        %v10155 = vadd.f32 %v9730, %v10101
        %v10156 = vadd.f32 %v9731, %v10104
        %v10157 = vadd.f32 %v9732, %v10106
        %v10158 = vadd.f32 %v9733, %v10109
        %v10159 = vadd.f32 %v9734, %v10111
        %v10160 = vadd.f32 %v9735, %v10114
        %v10161 = vadd.f32 %v9736, %v10116
        %v10162 = vadd.f32 %v9737, %v10119
        %v10163 = vadd.f32 %v9738, %v10121
        %v10164 = vadd.f32 %v9739, %v10124
        %v10165 = vadd.f32 %v9740, %v10126
        %v10166 = vadd.f32 %v9741, %v10129
        %v10167 = vadd.f32 %v9742, %v10131
        %v10168 = vadd.f32 %v9743, %v10134
        %v10169 = vadd.f32 %v9744, %v10136
        %v10170 = vmax.f32 %v10138, 0.0
        %v10171 = vmax.f32 %v10139, 0.0
        %v10172 = vmax.f32 %v10140, 0.0
        %v10173 = vmax.f32 %v10141, 0.0
        %v10174 = vmax.f32 %v10142, 0.0
        %v10175 = vmax.f32 %v10143, 0.0
        %v10176 = vmax.f32 %v10144, 0.0
        %v10177 = vmax.f32 %v10145, 0.0
        %v10178 = vmax.f32 %v10146, 0.0
        %v10179 = vmax.f32 %v10147, 0.0
        %v10180 = vmax.f32 %v10148, 0.0
        %v10181 = vmax.f32 %v10149, 0.0
        %v10182 = vmax.f32 %v10150, 0.0
        %v10183 = vmax.f32 %v10151, 0.0
        %v10184 = vmax.f32 %v10152, 0.0
        %v10185 = vmax.f32 %v10153, 0.0
        %v10186 = vmax.f32 %v10154, 0.0
        %v10187 = vmax.f32 %v10155, 0.0
        %v10188 = vmax.f32 %v10156, 0.0
        %v10189 = vmax.f32 %v10157, 0.0
        %v10190 = vmax.f32 %v10158, 0.0
        %v10191 = vmax.f32 %v10159, 0.0
        %v10192 = vmax.f32 %v10160, 0.0
        %v10193 = vmax.f32 %v10161, 0.0
        %v10194 = vmax.f32 %v10162, 0.0
        %v10195 = vmax.f32 %v10163, 0.0
        %v10196 = vmax.f32 %v10164, 0.0
        %v10197 = vmax.f32 %v10165, 0.0
        %v10198 = vmax.f32 %v10166, 0.0
        %v10199 = vmax.f32 %v10167, 0.0
        %v10200 = vmax.f32 %v10168, 0.0
        %v10201 = vmax.f32 %v10169, 0.0
        %10202 = vst [vmem:[%s271] sm:$0xff] %v10170
        %10203 = vst [vmem:[%s271 + $0x8] sm:$0xff] %v10171
        %10204 = vst [vmem:[%s271 + $0x10] sm:$0xff] %v10172
        %10205 = vst [vmem:[%s271 + $0x18] sm:$0xff] %v10173
        %10206 = vst [vmem:[%s271 + $0x20] sm:$0xff] %v10174
        %10207 = vst [vmem:[%s271 + $0x28] sm:$0xff] %v10175
        %10208 = vst [vmem:[%s271 + $0x30] sm:$0xff] %v10176
        %10209 = vst [vmem:[%s271 + $0x38] sm:$0xff] %v10177
        %10210 = vst [vmem:[%s271 + $0x40] sm:$0xff] %v10178
        %10211 = vst [vmem:[%s271 + $0x48] sm:$0xff] %v10179
        %10212 = vst [vmem:[%s271 + $0x50] sm:$0xff] %v10180
        %10213 = vst [vmem:[%s271 + $0x58] sm:$0xff] %v10181
        %10214 = vst [vmem:[%s271 + $0x60] sm:$0xff] %v10182
        %10215 = vst [vmem:[%s271 + $0x68] sm:$0xff] %v10183
        %10216 = vst [vmem:[%s271 + $0x70] sm:$0xff] %v10184
        %10217 = vst [vmem:[%s271 + $0x78] sm:$0xff] %v10185
        %10218 = vst [vmem:[%s271 + $0x80] sm:$0xff] %v10186
        %10219 = vst [vmem:[%s271 + $0x88] sm:$0xff] %v10187
        %10220 = vst [vmem:[%s271 + $0x90] sm:$0xff] %v10188
        %10221 = vst [vmem:[%s271 + $0x98] sm:$0xff] %v10189
        %10222 = vst [vmem:[%s271 + $0xa0] sm:$0xff] %v10190
        %10223 = vst [vmem:[%s271 + $0xa8] sm:$0xff] %v10191
        %10224 = vst [vmem:[%s271 + $0xb0] sm:$0xff] %v10192
        %10225 = vst [vmem:[%s271 + $0xb8] sm:$0xff] %v10193
        %10226 = vst [vmem:[%s271 + $0xc0] sm:$0xff] %v10194
        %10227 = vst [vmem:[%s271 + $0xc8] sm:$0xff] %v10195
        %10228 = vst [vmem:[%s271 + $0xd0] sm:$0xff] %v10196
        %10229 = vst [vmem:[%s271 + $0xd8] sm:$0xff] %v10197
        %10230 = vst [vmem:[%s271 + $0xe0] sm:$0xff] %v10198
        %10231 = vst [vmem:[%s271 + $0xe8] sm:$0xff] %v10199
        %10232 = vst [vmem:[%s271 + $0xf0] sm:$0xff] %v10200
        %10233 = vst [vmem:[%s271 + $0xf8] sm:$0xff] %v10201
        %s10234 = sand.u32 %s181, 1
        %s10235 = scalar_lea.sflag [#allocation5], %s10234
        %s10236 = sand.u32 %s181, 1
        %s10237 = smul.addr %s10236, 256
        %s10238 = scalar_lea.vmem [#allocation4], %s10237
        // Predicated region
        $region49: #{main_net_forward.1} parent=47 // pred_check
          %p10239 = pneg %p191
        $region50: #{main_net_forward.1} parent=47 // pred_check_branch
          %10241 = sbr.rel (%p10239) target = $region52
        $region51: #{main_net_forward.1} parent=47 // pred_region
          %10243 = vsyncadd %s10235, 0
          %s10244 = smul.addr %s21, 32
          %s10245 = smul.addr %s10244, 8
          %s10246 = scalar_lea.hbm %s7, %s10245
          %s10247 = sshll.u32 %s10238, 4
          %s10248 = int_to_ptr.vmem [resolvable:$true] %s10247
          %s10249 = sshll.u32 %s10246, 4
          %s10250 = int_to_ptr.hbm [resolvable:$true] %s10249
          %10255 = dma.vmem_to_hbm [thread:$0]  %s10248, 4096, %s10250, %s10235, 128, 128, 8
        $region52: #{main_net_forward.1} parent=47 // pred_fallthru
          _
      $region48: #{main_net_forward.1} parent=5 // pred_fallthru
        _
      %p10256 = scmp.le.s32.totalorder 2, %s16
      // Predicated region
      $region53: #{main_net_forward.1} parent=5 // pred_check
        %p10257 = pneg %p10256
      $region54: #{main_net_forward.1} parent=5 // pred_check_branch
        %10259 = sbr.rel (%p10257) target = $region56
      $region55: #{main_net_forward.1} parent=5 // pred_region
        %s10260 = ssub.s32 %s16, 2
        // Predicated region
        $region57: #{main_net_forward.1} parent=55 // pred_check
          %p10261 = pneg %p197
        $region58: #{main_net_forward.1} parent=55 // pred_check_branch
          %10263 = sbr.rel (%p10261) target = $region60
        $region59: #{main_net_forward.1} parent=55 // pred_region
          %s10264 = sand.u32 %s182, 1
          %s10265 = scalar_lea.sflag [#allocation5], %s10264
          %s10266 = sand.u32 %s182, 1
          %s10267 = smul.addr %s10266, 256
          %s10268 = scalar_lea.vmem [#allocation4], %s10267
          %10270 = dma.done %s10265, 4096
        $region60: #{main_net_forward.1} parent=55 // pred_fallthru
          _
      $region56: #{main_net_forward.1} parent=5 // pred_fallthru
        _
    $region6: #{main_net_forward.1} parent=1 // loop_footer
      %s20 = sadd.s32 1, %s16
    $region7: #{main_net_forward.1} parent=1 // loop_footer_branch
      %15 = sbr.rel target = $region3
    $region8: #{main_net_forward.1} parent=1 // loop_exit
      _
    %10271 = vsyncpa [#allocation5], 1
    %s10272 = scalar_lea.sflag [#allocation5], 1
    %10273 = vsyncpa %s10272, 1

</llo_original>
